<compile_context>
chip_gen: v7x
topology: tpu7x:2x2x1
jax: 0.10.0
libtpu: 0.0.40
codegen_flags: <defaults>
</compile_context>

<pallas_src>
import jax
import jax.numpy as jnp
from jax.experimental import pallas as pl
from jax.experimental.pallas import tpu as pltpu

GN_GROUPS = 32          # normalization(channels) == GroupNorm32(32, channels)
GN_EPS = 1e-5


def _silu(x):
    return x * jax.nn.sigmoid(x)


def _pad_rows(H, W):
    """Flat padded-scratch geometry: zero border >= W+1 rows on each side,
    bf16-tile (16-row) aligned data offset and total size."""
    hw = H * W
    top = ((W + 1 + 15) // 16) * 16
    total = ((top + hw + W + 1 + 15) // 16) * 16
    return top, total


def resblock_kernel(x_ref, emb_ref,
                    g1_ref, be1_ref, wc1_ref, bc1_ref,
                    wemb_ref, bemb_ref,
                    g2_ref, be2_ref, wc2_ref, bc2_ref,
                    gmat_ref, o_ref, hb_ref):
    """Fused ResBlock forward for `Bt` batch elements (grid over batch)."""
    Bt, H, W, C = x_ref.shape
    HW = H * W
    top, total = _pad_rows(H, W)
    inv_n = 1.0 / ((C // GN_GROUPS) * HW)

    # ---- hoisted constants (shared by every tap / conv / batch element) ----
    x_idx = jax.lax.broadcasted_iota(jnp.int32, (HW, 1), 0) % W
    mask_l = (x_idx != 0).astype(jnp.bfloat16)       # kill x-wrap when reading row r-1
    mask_r = (x_idx != W - 1).astype(jnp.bfloat16)   # kill x-wrap when reading row r+1
    gmat = gmat_ref[...]                             # [C, C] f32 group membership

    # Zero only the borders of the flat padded scratch (the interior is fully
    # overwritten before every conv; borders are never written afterwards).
    hb_ref[0:top, :] = jnp.zeros((top, C), jnp.bfloat16)
    hb_ref[top + HW:total, :] = jnp.zeros((total - top - HW, C), jnp.bfloat16)

    def group_norm(h2, gamma, beta):
        # Stacked [2, C] (sum, sum_sq) -> one MXU hit with the membership matrix.
        stats = jnp.concatenate(
            [jnp.sum(h2, axis=0, keepdims=True),
             jnp.sum(h2 * h2, axis=0, keepdims=True)], axis=0)          # [2, C]
        g = jnp.dot(stats, gmat, preferred_element_type=jnp.float32) * inv_n
        mean_c = g[0:1, :]
        var_c = g[1:2, :] - mean_c * mean_c
        return (h2 - mean_c) * jax.lax.rsqrt(var_c + GN_EPS) * gamma + beta

    def conv3x3(h2, w_ref, bias):
        # Store the activation once (bf16) at an aligned offset; every tap is a
        # contiguous [HW, C] window read at a static row offset (dy: +/-W rows,
        # dx: +/-1 row), masked at the image-row boundary for dx != 0.
        hb_ref[top:top + HW, :] = h2.astype(jnp.bfloat16)
        acc = None
        for dy in (-1, 0, 1):
            base = top + dy * W
            for dx in (-1, 0, 1):
                src = hb_ref[base + dx:base + dx + HW, :]
                if dx == -1:
                    src = src * mask_l
                elif dx == 1:
                    src = src * mask_r
                p = jnp.dot(src, w_ref[dy + 1, dx + 1],
                            preferred_element_type=jnp.float32)
                acc = p if acc is None else acc + p
        return acc + bias

    for i in range(Bt):
        # --- in_layers: GroupNorm32 -> SiLU -> conv3x3 ---
        h = group_norm(x_ref[i].reshape(HW, C), g1_ref[...], be1_ref[...])
        h = conv3x3(_silu(h), wc1_ref, bc1_ref[...])

        # --- emb_layers: SiLU -> Linear (bf16, f32 acc), broadcast over space ---
        e = _silu(emb_ref[i]).astype(jnp.bfloat16)                     # [1, E]
        emb_out = jnp.dot(e, wemb_ref[...],
                          preferred_element_type=jnp.float32) + bemb_ref[...]
        h = h + emb_out

        # --- out_layers: GroupNorm32 -> SiLU -> Dropout(eval: id) -> conv3x3 ---
        h = group_norm(h, g2_ref[...], be2_ref[...])
        h = conv3x3(_silu(h), wc2_ref, bc2_ref[...])

        # --- skip_connection (Identity) + residual; re-read x (short live range) ---
        o_ref[i] = x_ref[i] + h.reshape(H, W, C)


def resblock_forward_nhwc(x, emb, params, *, block_batch=1):
    """Channel-last entry point: x [B, H, W, C], emb [B, E] -> [B, H, W, C]."""
    B, H, W, C = x.shape
    E = emb.shape[-1]
    assert C % 128 == 0 and C % GN_GROUPS == 0, "kernel assumes lane-dense C"
    assert B % block_batch == 0
    _, total = _pad_rows(H, W)

    emb3 = emb[:, None, :]                              # [B, 1, E]
    weights = [params[k] for k in
               ("gn1_gamma", "gn1_beta", "w_conv1", "b_conv1",
                "w_emb", "b_emb",
                "gn2_gamma", "gn2_beta", "w_conv2", "b_conv2", "gn_gmat")]
    full = lambda a: pl.BlockSpec(a.shape, lambda b: (0,) * a.ndim)

    in_specs = [pl.BlockSpec((block_batch, H, W, C), lambda b: (b, 0, 0, 0)),
                pl.BlockSpec((block_batch, 1, E), lambda b: (b, 0, 0))]
    in_specs += [full(w) for w in weights]

    return pl.pallas_call(
        resblock_kernel,
        out_shape=jax.ShapeDtypeStruct((B, H, W, C), jnp.float32),
        grid_spec=pltpu.PrefetchScalarGridSpec(
            num_scalar_prefetch=0,
            grid=(B // block_batch,),
            in_specs=in_specs,
            out_specs=pl.BlockSpec((block_batch, H, W, C),
                                   lambda b: (b, 0, 0, 0)),
            scratch_shapes=[pltpu.VMEM((total, C), jnp.bfloat16)],
        ),
        compiler_params=pltpu.CompilerParams(
            dimension_semantics=("parallel",)),
    )(x, emb3, *weights)


def resblock_forward(x_nchw, emb, params, *, block_batch=1):
    """PyTorch ResBlock._forward contract: x [B,C,H,W] f32, emb [B,E] f32.
    (Keep activations NHWC across consecutive blocks; only convert here.)"""
    x = jnp.transpose(x_nchw, (0, 2, 3, 1))
    y = resblock_forward_nhwc(x, emb, params, block_batch=block_batch)
    return jnp.transpose(y, (0, 3, 1, 2))


def init_params(key, channels, emb_channels):
    C, E = channels, emb_channels
    ks = jax.random.split(key, 6)
    n = lambda k, shp, s=0.05: s * jax.random.normal(k, shp, jnp.float32)
    p = {
        # GroupNorm affine params (PyTorch default init)
        "gn1_gamma": jnp.ones((1, C), jnp.float32),
        "gn1_beta": jnp.zeros((1, C), jnp.float32),
        "gn2_gamma": jnp.ones((1, C), jnp.float32),
        "gn2_beta": jnp.zeros((1, C), jnp.float32),
        # conv weights pre-laid-out [ky, kx, Cin, Cout], bf16 for the MXU
        "w_conv1": n(ks[0], (3, 3, C, C)).astype(jnp.bfloat16),
        "b_conv1": n(ks[1], (1, C)),
        # emb Linear stored [in, out], bf16 (f32 accumulation in-kernel)
        "w_emb": n(ks[2], (E, C)).astype(jnp.bfloat16),
        "b_emb": n(ks[3], (1, C)),
        # zero_module() only zeros the *init*; forward semantics are identical
        # for any weights, so small random values exercise the path.
        "w_conv2": n(ks[4], (3, 3, C, C)).astype(jnp.bfloat16),
        "b_conv2": n(ks[5], (1, C)),
    }
    # [C, C] 0/1 same-group membership matrix: one MXU hit maps the stacked
    # [2, C] (sum, sum_sq) row to per-channel group totals.
    gid = jnp.arange(C) // (C // GN_GROUPS)
    p["gn_gmat"] = (gid[:, None] == gid[None, :]).astype(jnp.float32)
    return p


if __name__ == "__main__":
    key = jax.random.PRNGKey(0)
    kx, ke, kp = jax.random.split(key, 3)
    # GroupNorm32 requires channels % 32 == 0; 128 = one lane-dense vreg width.
    B, C, H, W, E = 2, 128, 16, 16, 64
    x = jax.random.normal(kx, (B, C, H, W), jnp.float32)
    emb = jax.random.normal(ke, (B, E), jnp.float32)
    params = init_params(kp, C, E)

    out = jax.jit(resblock_forward)(x, emb, params)
    jax.block_until_ready(out)
    assert out.shape == (B, C, H, W) and out.dtype == jnp.float32
    print("KERNEL_OK")
</pallas_src>

<mosaic_0001>
module attributes {stable_mosaic.version = 11 : i64} {
  func.func @resblock_kernel(%arg0: i32, %arg1: memref<1x16x16x128xf32, #tpu.memory_space<vmem>>, %arg2: memref<1x1x64xf32, #tpu.memory_space<vmem>>, %arg3: memref<1x128xf32, #tpu.memory_space<vmem>>, %arg4: memref<1x128xf32, #tpu.memory_space<vmem>>, %arg5: memref<3x3x128x128xbf16, #tpu.memory_space<vmem>>, %arg6: memref<1x128xf32, #tpu.memory_space<vmem>>, %arg7: memref<64x128xbf16, #tpu.memory_space<vmem>>, %arg8: memref<1x128xf32, #tpu.memory_space<vmem>>, %arg9: memref<1x128xf32, #tpu.memory_space<vmem>>, %arg10: memref<1x128xf32, #tpu.memory_space<vmem>>, %arg11: memref<3x3x128x128xbf16, #tpu.memory_space<vmem>>, %arg12: memref<1x128xf32, #tpu.memory_space<vmem>>, %arg13: memref<128x128xf32, #tpu.memory_space<vmem>>, %arg14: memref<1x16x16x128xf32, #tpu.memory_space<vmem>>, %arg15: memref<320x128xbf16, #tpu.memory_space<vmem>>) attributes {dimension_semantics = [#tpu.dimension_semantics<parallel>], iteration_bounds = array<i64: 2>, scalar_prefetch = 0 : i64, scratch_operands = 1 : i64, tpu.core_type = #tpu.core_type<tc>, window_params = [{transform_indices = @transform_0, window_bounds = array<i64: 1, 16, 16, 128>}, {transform_indices = @transform_1, window_bounds = array<i64: 1, 1, 64>}, {pipeline_mode = #tpu.pipeline_mode<synchronous>, transform_indices = @transform_2, window_bounds = array<i64: 1, 128>}, {pipeline_mode = #tpu.pipeline_mode<synchronous>, transform_indices = @transform_3, window_bounds = array<i64: 1, 128>}, {pipeline_mode = #tpu.pipeline_mode<synchronous>, transform_indices = @transform_4, window_bounds = array<i64: 3, 3, 128, 128>}, {pipeline_mode = #tpu.pipeline_mode<synchronous>, transform_indices = @transform_5, window_bounds = array<i64: 1, 128>}, {pipeline_mode = #tpu.pipeline_mode<synchronous>, transform_indices = @transform_6, window_bounds = array<i64: 64, 128>}, {pipeline_mode = #tpu.pipeline_mode<synchronous>, transform_indices = @transform_7, window_bounds = array<i64: 1, 128>}, {pipeline_mode = #tpu.pipeline_mode<synchronous>, transform_indices = @transform_8, window_bounds = array<i64: 1, 128>}, {pipeline_mode = #tpu.pipeline_mode<synchronous>, transform_indices = @transform_9, window_bounds = array<i64: 1, 128>}, {pipeline_mode = #tpu.pipeline_mode<synchronous>, transform_indices = @transform_10, window_bounds = array<i64: 3, 3, 128, 128>}, {pipeline_mode = #tpu.pipeline_mode<synchronous>, transform_indices = @transform_11, window_bounds = array<i64: 1, 128>}, {pipeline_mode = #tpu.pipeline_mode<synchronous>, transform_indices = @transform_12, window_bounds = array<i64: 128, 128>}, {transform_indices = @transform_13, window_bounds = array<i64: 1, 16, 16, 128>}]} {
    %0 = tpu.iota {dimensions = array<i32: 0>} : vector<256x1xi32>
    %c16_i32 = arith.constant 16 : i32
    %c0_i32 = arith.constant 0 : i32
    %1 = arith.cmpi eq, %c16_i32, %c0_i32 : i32
    %c1_i32 = arith.constant 1 : i32
    %2 = arith.select %1, %c1_i32, %c16_i32 : i32
    %3 = vector.broadcast %2 : i32 to vector<256x1xi32>
    %4 = arith.remsi %0, %3 : vector<256x1xi32>
    %c0_i32_0 = arith.constant 0 : i32
    %5 = vector.broadcast %c0_i32_0 : i32 to vector<256x1xi32>
    %6 = arith.cmpi ne, %4, %5 : vector<256x1xi32>
    %c0_i32_1 = arith.constant 0 : i32
    %7 = vector.broadcast %c0_i32_1 : i32 to vector<256x1xi32>
    %8 = arith.cmpi slt, %4, %7 : vector<256x1xi32>
    %c0_i32_2 = arith.constant 0 : i32
    %9 = arith.cmpi slt, %2, %c0_i32_2 : i32
    %10 = vector.broadcast %9 : i1 to vector<256x1xi1>
    %11 = vector.broadcast %10 : vector<256x1xi1> to vector<256x1xi1>
    %12 = arith.xori %8, %11 : vector<256x1xi1>
    %13 = arith.andi %12, %6 : vector<256x1xi1>
    %14 = vector.broadcast %2 : i32 to vector<256x1xi32>
    %15 = arith.addi %4, %14 : vector<256x1xi32>
    %16 = arith.select %13, %15, %4 : vector<256x1xi1>, vector<256x1xi32>
    %c0_i32_3 = arith.constant 0 : i32
    %17 = vector.broadcast %c0_i32_3 : i32 to vector<256x1xi32>
    %18 = arith.cmpi ne, %16, %17 : vector<256x1xi32>
    %19 = arith.extui %18 : vector<256x1xi1> to vector<256x1xi32>
    %20 = arith.sitofp %19 : vector<256x1xi32> to vector<256x1xf32>
    %21 = arith.truncf %20 : vector<256x1xf32> to vector<256x1xbf16>
    %c15_i32 = arith.constant 15 : i32
    %22 = vector.broadcast %c15_i32 : i32 to vector<256x1xi32>
    %23 = arith.cmpi ne, %16, %22 : vector<256x1xi32>
    %24 = arith.extui %23 : vector<256x1xi1> to vector<256x1xi32>
    %25 = arith.sitofp %24 : vector<256x1xi32> to vector<256x1xf32>
    %26 = arith.truncf %25 : vector<256x1xf32> to vector<256x1xbf16>
    %c0 = arith.constant 0 : index
    %c0_4 = arith.constant 0 : index
    %27 = vector.load %arg13[%c0, %c0_4] : memref<128x128xf32, #tpu.memory_space<vmem>>, vector<128x128xf32>
    %cst = arith.constant 0.000000e+00 : bf16
    %28 = vector.broadcast %cst : bf16 to vector<32x128xbf16>
    %c0_5 = arith.constant 0 : index
    %c0_6 = arith.constant 0 : index
    %29 = vector.load %arg15[%c0_5, %c0_6] : memref<320x128xbf16, #tpu.memory_space<vmem>>, vector<32x128xbf16>
    tpu.vector_store %arg15[%c0_5, %c0_6], %28 {strides = array<i32>} : memref<320x128xbf16, #tpu.memory_space<vmem>>, vector<32x128xbf16>,
    %cst_7 = arith.constant 0.000000e+00 : bf16
    %30 = vector.broadcast %cst_7 : bf16 to vector<32x128xbf16>
    %c288 = arith.constant 288 : index
    %c0_8 = arith.constant 0 : index
    %31 = vector.load %arg15[%c288, %c0_8] : memref<320x128xbf16, #tpu.memory_space<vmem>>, vector<32x128xbf16>
    tpu.vector_store %arg15[%c288, %c0_8], %30 {strides = array<i32>} : memref<320x128xbf16, #tpu.memory_space<vmem>>, vector<32x128xbf16>,
    %c0_9 = arith.constant 0 : index
    %c0_10 = arith.constant 0 : index
    %c0_11 = arith.constant 0 : index
    %c0_12 = arith.constant 0 : index
    %32 = vector.load %arg1[%c0_9, %c0_10, %c0_11, %c0_12] : memref<1x16x16x128xf32, #tpu.memory_space<vmem>>, vector<1x16x16x128xf32>
    %33 = vector.shape_cast %32 : vector<1x16x16x128xf32> to vector<16x16x128xf32>
    %34 = vector.shape_cast %33 : vector<16x16x128xf32> to vector<256x128xf32>
    %c0_13 = arith.constant 0 : index
    %c0_14 = arith.constant 0 : index
    %35 = vector.load %arg3[%c0_13, %c0_14] : memref<1x128xf32, #tpu.memory_space<vmem>>, vector<1x128xf32>
    %c0_15 = arith.constant 0 : index
    %c0_16 = arith.constant 0 : index
    %36 = vector.load %arg4[%c0_15, %c0_16] : memref<1x128xf32, #tpu.memory_space<vmem>>, vector<1x128xf32>
    %cst_17 = arith.constant dense<0.000000e+00> : vector<128xf32>
    %37 = vector.multi_reduction <add>, %34, %cst_17 [0] : vector<256x128xf32> to vector<128xf32>
    %38 = vector.shape_cast %37 : vector<128xf32> to vector<1x128xf32>
    %39 = arith.mulf %34, %34 : vector<256x128xf32>
    %cst_18 = arith.constant dense<0.000000e+00> : vector<128xf32>
    %40 = vector.multi_reduction <add>, %39, %cst_18 [0] : vector<256x128xf32> to vector<128xf32>
    %41 = vector.shape_cast %40 : vector<128xf32> to vector<1x128xf32>
    %42 = tpu.concatenate %38, %41 in 0 : vector<1x128xf32>, vector<1x128xf32> -> vector<2x128xf32>
    %cst_19 = arith.constant dense<0.000000e+00> : vector<2x128xf32>
    %43 = tpu.matmul %42, %27, %cst_19 {dimension_numbers = #tpu.dot_dimension_numbers<[1], [0], [0], [1], [0, 0, 1, 1], [], []>} : vector<2x128xf32>, vector<128x128xf32>, vector<2x128xf32> -> vector<2x128xf32>
    %cst_20 = arith.constant 9.765625E-4 : f32
    %44 = vector.broadcast %cst_20 : f32 to vector<2x128xf32>
    %45 = arith.mulf %43, %44 : vector<2x128xf32>
    %46 = vector.extract_strided_slice %45 {offsets = [0, 0], sizes = [1, 128], strides = [1, 1]} : vector<2x128xf32> to vector<1x128xf32>
    %47 = vector.extract_strided_slice %45 {offsets = [1, 0], sizes = [1, 128], strides = [1, 1]} : vector<2x128xf32> to vector<1x128xf32>
    %48 = arith.mulf %46, %46 : vector<1x128xf32>
    %49 = arith.subf %47, %48 : vector<1x128xf32>
    %50 = vector.broadcast %46 : vector<1x128xf32> to vector<256x128xf32>
    %51 = arith.subf %34, %50 : vector<256x128xf32>
    %cst_21 = arith.constant 9.99999974E-6 : f32
    %52 = vector.broadcast %cst_21 : f32 to vector<1x128xf32>
    %53 = arith.addf %49, %52 : vector<1x128xf32>
    %54 = math.rsqrt %53 : vector<1x128xf32>
    %55 = vector.broadcast %54 : vector<1x128xf32> to vector<256x128xf32>
    %56 = arith.mulf %51, %55 : vector<256x128xf32>
    %57 = vector.broadcast %35 : vector<1x128xf32> to vector<256x128xf32>
    %58 = arith.mulf %56, %57 : vector<256x128xf32>
    %59 = vector.broadcast %36 : vector<1x128xf32> to vector<256x128xf32>
    %60 = arith.addf %58, %59 : vector<256x128xf32>
    %61 = arith.negf %60 : vector<256x128xf32>
    %62 = math.exp %61 : vector<256x128xf32>
    %cst_22 = arith.constant 1.000000e+00 : f32
    %63 = vector.broadcast %cst_22 : f32 to vector<256x128xf32>
    %64 = arith.addf %63, %62 : vector<256x128xf32>
    %65 = arith.divf %63, %64 : vector<256x128xf32>
    %66 = arith.mulf %60, %65 : vector<256x128xf32>
    %c0_23 = arith.constant 0 : index
    %c0_24 = arith.constant 0 : index
    %67 = vector.load %arg6[%c0_23, %c0_24] : memref<1x128xf32, #tpu.memory_space<vmem>>, vector<1x128xf32>
    %68 = arith.truncf %66 : vector<256x128xf32> to vector<256x128xbf16>
    %c32 = arith.constant 32 : index
    %c0_25 = arith.constant 0 : index
    %69 = vector.load %arg15[%c32, %c0_25] : memref<320x128xbf16, #tpu.memory_space<vmem>>, vector<256x128xbf16>
    tpu.vector_store %arg15[%c32, %c0_25], %68 {strides = array<i32>} : memref<320x128xbf16, #tpu.memory_space<vmem>>, vector<256x128xbf16>,
    %c15 = arith.constant 15 : index
    %c0_26 = arith.constant 0 : index
    %70 = vector.load %arg15[%c15, %c0_26] : memref<320x128xbf16, #tpu.memory_space<vmem>>, vector<256x128xbf16>
    %71 = vector.broadcast %21 : vector<256x1xbf16> to vector<256x128xbf16>
    %72 = arith.mulf %70, %71 : vector<256x128xbf16>
    %c0_27 = arith.constant 0 : index
    %c0_28 = arith.constant 0 : index
    %c0_29 = arith.constant 0 : index
    %c0_30 = arith.constant 0 : index
    %73 = vector.load %arg5[%c0_27, %c0_28, %c0_29, %c0_30] : memref<3x3x128x128xbf16, #tpu.memory_space<vmem>>, vector<1x1x128x128xbf16>
    %74 = vector.shape_cast %73 : vector<1x1x128x128xbf16> to vector<128x128xbf16>
    %cst_31 = arith.constant dense<0.000000e+00> : vector<256x128xf32>
    %75 = tpu.matmul %72, %74, %cst_31 {dimension_numbers = #tpu.dot_dimension_numbers<[1], [0], [0], [1], [0, 0, 1, 1], [], []>} : vector<256x128xbf16>, vector<128x128xbf16>, vector<256x128xf32> -> vector<256x128xf32>
    %c16 = arith.constant 16 : index
    %c0_32 = arith.constant 0 : index
    %76 = vector.load %arg15[%c16, %c0_32] : memref<320x128xbf16, #tpu.memory_space<vmem>>, vector<256x128xbf16>
    %c0_33 = arith.constant 0 : index
    %c1 = arith.constant 1 : index
    %c0_34 = arith.constant 0 : index
    %c0_35 = arith.constant 0 : index
    %77 = vector.load %arg5[%c0_33, %c1, %c0_34, %c0_35] : memref<3x3x128x128xbf16, #tpu.memory_space<vmem>>, vector<1x1x128x128xbf16>
    %78 = vector.shape_cast %77 : vector<1x1x128x128xbf16> to vector<128x128xbf16>
    %cst_36 = arith.constant dense<0.000000e+00> : vector<256x128xf32>
    %79 = tpu.matmul %76, %78, %cst_36 {dimension_numbers = #tpu.dot_dimension_numbers<[1], [0], [0], [1], [0, 0, 1, 1], [], []>} : vector<256x128xbf16>, vector<128x128xbf16>, vector<256x128xf32> -> vector<256x128xf32>
    %80 = arith.addf %75, %79 : vector<256x128xf32>
    %c17 = arith.constant 17 : index
    %c0_37 = arith.constant 0 : index
    %81 = vector.load %arg15[%c17, %c0_37] : memref<320x128xbf16, #tpu.memory_space<vmem>>, vector<256x128xbf16>
    %82 = vector.broadcast %26 : vector<256x1xbf16> to vector<256x128xbf16>
    %83 = arith.mulf %81, %82 : vector<256x128xbf16>
    %c0_38 = arith.constant 0 : index
    %c2 = arith.constant 2 : index
    %c0_39 = arith.constant 0 : index
    %c0_40 = arith.constant 0 : index
    %84 = vector.load %arg5[%c0_38, %c2, %c0_39, %c0_40] : memref<3x3x128x128xbf16, #tpu.memory_space<vmem>>, vector<1x1x128x128xbf16>
    %85 = vector.shape_cast %84 : vector<1x1x128x128xbf16> to vector<128x128xbf16>
    %cst_41 = arith.constant dense<0.000000e+00> : vector<256x128xf32>
    %86 = tpu.matmul %83, %85, %cst_41 {dimension_numbers = #tpu.dot_dimension_numbers<[1], [0], [0], [1], [0, 0, 1, 1], [], []>} : vector<256x128xbf16>, vector<128x128xbf16>, vector<256x128xf32> -> vector<256x128xf32>
    %87 = arith.addf %80, %86 : vector<256x128xf32>
    %c31 = arith.constant 31 : index
    %c0_42 = arith.constant 0 : index
    %88 = vector.load %arg15[%c31, %c0_42] : memref<320x128xbf16, #tpu.memory_space<vmem>>, vector<256x128xbf16>
    %89 = vector.broadcast %21 : vector<256x1xbf16> to vector<256x128xbf16>
    %90 = arith.mulf %88, %89 : vector<256x128xbf16>
    %c1_43 = arith.constant 1 : index
    %c0_44 = arith.constant 0 : index
    %c0_45 = arith.constant 0 : index
    %c0_46 = arith.constant 0 : index
    %91 = vector.load %arg5[%c1_43, %c0_44, %c0_45, %c0_46] : memref<3x3x128x128xbf16, #tpu.memory_space<vmem>>, vector<1x1x128x128xbf16>
    %92 = vector.shape_cast %91 : vector<1x1x128x128xbf16> to vector<128x128xbf16>
    %cst_47 = arith.constant dense<0.000000e+00> : vector<256x128xf32>
    %93 = tpu.matmul %90, %92, %cst_47 {dimension_numbers = #tpu.dot_dimension_numbers<[1], [0], [0], [1], [0, 0, 1, 1], [], []>} : vector<256x128xbf16>, vector<128x128xbf16>, vector<256x128xf32> -> vector<256x128xf32>
    %94 = arith.addf %87, %93 : vector<256x128xf32>
    %c32_48 = arith.constant 32 : index
    %c0_49 = arith.constant 0 : index
    %95 = vector.load %arg15[%c32_48, %c0_49] : memref<320x128xbf16, #tpu.memory_space<vmem>>, vector<256x128xbf16>
    %c1_50 = arith.constant 1 : index
    %c1_51 = arith.constant 1 : index
    %c0_52 = arith.constant 0 : index
    %c0_53 = arith.constant 0 : index
    %96 = vector.load %arg5[%c1_50, %c1_51, %c0_52, %c0_53] : memref<3x3x128x128xbf16, #tpu.memory_space<vmem>>, vector<1x1x128x128xbf16>
    %97 = vector.shape_cast %96 : vector<1x1x128x128xbf16> to vector<128x128xbf16>
    %cst_54 = arith.constant dense<0.000000e+00> : vector<256x128xf32>
    %98 = tpu.matmul %95, %97, %cst_54 {dimension_numbers = #tpu.dot_dimension_numbers<[1], [0], [0], [1], [0, 0, 1, 1], [], []>} : vector<256x128xbf16>, vector<128x128xbf16>, vector<256x128xf32> -> vector<256x128xf32>
    %99 = arith.addf %94, %98 : vector<256x128xf32>
    %c33 = arith.constant 33 : index
    %c0_55 = arith.constant 0 : index
    %100 = vector.load %arg15[%c33, %c0_55] : memref<320x128xbf16, #tpu.memory_space<vmem>>, vector<256x128xbf16>
    %101 = vector.broadcast %26 : vector<256x1xbf16> to vector<256x128xbf16>
    %102 = arith.mulf %100, %101 : vector<256x128xbf16>
    %c1_56 = arith.constant 1 : index
    %c2_57 = arith.constant 2 : index
    %c0_58 = arith.constant 0 : index
    %c0_59 = arith.constant 0 : index
    %103 = vector.load %arg5[%c1_56, %c2_57, %c0_58, %c0_59] : memref<3x3x128x128xbf16, #tpu.memory_space<vmem>>, vector<1x1x128x128xbf16>
    %104 = vector.shape_cast %103 : vector<1x1x128x128xbf16> to vector<128x128xbf16>
    %cst_60 = arith.constant dense<0.000000e+00> : vector<256x128xf32>
    %105 = tpu.matmul %102, %104, %cst_60 {dimension_numbers = #tpu.dot_dimension_numbers<[1], [0], [0], [1], [0, 0, 1, 1], [], []>} : vector<256x128xbf16>, vector<128x128xbf16>, vector<256x128xf32> -> vector<256x128xf32>
    %106 = arith.addf %99, %105 : vector<256x128xf32>
    %c47 = arith.constant 47 : index
    %c0_61 = arith.constant 0 : index
    %107 = vector.load %arg15[%c47, %c0_61] : memref<320x128xbf16, #tpu.memory_space<vmem>>, vector<256x128xbf16>
    %108 = vector.broadcast %21 : vector<256x1xbf16> to vector<256x128xbf16>
    %109 = arith.mulf %107, %108 : vector<256x128xbf16>
    %c2_62 = arith.constant 2 : index
    %c0_63 = arith.constant 0 : index
    %c0_64 = arith.constant 0 : index
    %c0_65 = arith.constant 0 : index
    %110 = vector.load %arg5[%c2_62, %c0_63, %c0_64, %c0_65] : memref<3x3x128x128xbf16, #tpu.memory_space<vmem>>, vector<1x1x128x128xbf16>
    %111 = vector.shape_cast %110 : vector<1x1x128x128xbf16> to vector<128x128xbf16>
    %cst_66 = arith.constant dense<0.000000e+00> : vector<256x128xf32>
    %112 = tpu.matmul %109, %111, %cst_66 {dimension_numbers = #tpu.dot_dimension_numbers<[1], [0], [0], [1], [0, 0, 1, 1], [], []>} : vector<256x128xbf16>, vector<128x128xbf16>, vector<256x128xf32> -> vector<256x128xf32>
    %113 = arith.addf %106, %112 : vector<256x128xf32>
    %c48 = arith.constant 48 : index
    %c0_67 = arith.constant 0 : index
    %114 = vector.load %arg15[%c48, %c0_67] : memref<320x128xbf16, #tpu.memory_space<vmem>>, vector<256x128xbf16>
    %c2_68 = arith.constant 2 : index
    %c1_69 = arith.constant 1 : index
    %c0_70 = arith.constant 0 : index
    %c0_71 = arith.constant 0 : index
    %115 = vector.load %arg5[%c2_68, %c1_69, %c0_70, %c0_71] : memref<3x3x128x128xbf16, #tpu.memory_space<vmem>>, vector<1x1x128x128xbf16>
    %116 = vector.shape_cast %115 : vector<1x1x128x128xbf16> to vector<128x128xbf16>
    %cst_72 = arith.constant dense<0.000000e+00> : vector<256x128xf32>
    %117 = tpu.matmul %114, %116, %cst_72 {dimension_numbers = #tpu.dot_dimension_numbers<[1], [0], [0], [1], [0, 0, 1, 1], [], []>} : vector<256x128xbf16>, vector<128x128xbf16>, vector<256x128xf32> -> vector<256x128xf32>
    %118 = arith.addf %113, %117 : vector<256x128xf32>
    %c49 = arith.constant 49 : index
    %c0_73 = arith.constant 0 : index
    %119 = vector.load %arg15[%c49, %c0_73] : memref<320x128xbf16, #tpu.memory_space<vmem>>, vector<256x128xbf16>
    %120 = vector.broadcast %26 : vector<256x1xbf16> to vector<256x128xbf16>
    %121 = arith.mulf %119, %120 : vector<256x128xbf16>
    %c2_74 = arith.constant 2 : index
    %c2_75 = arith.constant 2 : index
    %c0_76 = arith.constant 0 : index
    %c0_77 = arith.constant 0 : index
    %122 = vector.load %arg5[%c2_74, %c2_75, %c0_76, %c0_77] : memref<3x3x128x128xbf16, #tpu.memory_space<vmem>>, vector<1x1x128x128xbf16>
    %123 = vector.shape_cast %122 : vector<1x1x128x128xbf16> to vector<128x128xbf16>
    %cst_78 = arith.constant dense<0.000000e+00> : vector<256x128xf32>
    %124 = tpu.matmul %121, %123, %cst_78 {dimension_numbers = #tpu.dot_dimension_numbers<[1], [0], [0], [1], [0, 0, 1, 1], [], []>} : vector<256x128xbf16>, vector<128x128xbf16>, vector<256x128xf32> -> vector<256x128xf32>
    %125 = arith.addf %118, %124 : vector<256x128xf32>
    %126 = vector.broadcast %67 : vector<1x128xf32> to vector<256x128xf32>
    %127 = arith.addf %125, %126 : vector<256x128xf32>
    %c0_79 = arith.constant 0 : index
    %c0_80 = arith.constant 0 : index
    %c0_81 = arith.constant 0 : index
    %128 = vector.load %arg2[%c0_79, %c0_80, %c0_81] : memref<1x1x64xf32, #tpu.memory_space<vmem>>, vector<1x1x64xf32>
    %129 = vector.shape_cast %128 : vector<1x1x64xf32> to vector<1x64xf32>
    %130 = arith.negf %129 : vector<1x64xf32>
    %131 = math.exp %130 : vector<1x64xf32>
    %cst_82 = arith.constant 1.000000e+00 : f32
    %132 = vector.broadcast %cst_82 : f32 to vector<1x64xf32>
    %133 = arith.addf %132, %131 : vector<1x64xf32>
    %134 = arith.divf %132, %133 : vector<1x64xf32>
    %135 = arith.mulf %129, %134 : vector<1x64xf32>
    %136 = arith.truncf %135 : vector<1x64xf32> to vector<1x64xbf16>
    %c0_83 = arith.constant 0 : index
    %c0_84 = arith.constant 0 : index
    %137 = vector.load %arg7[%c0_83, %c0_84] : memref<64x128xbf16, #tpu.memory_space<vmem>>, vector<64x128xbf16>
    %cst_85 = arith.constant dense<0.000000e+00> : vector<1x128xf32>
    %138 = tpu.matmul %136, %137, %cst_85 {dimension_numbers = #tpu.dot_dimension_numbers<[1], [0], [0], [1], [0, 0, 1, 1], [], []>} : vector<1x64xbf16>, vector<64x128xbf16>, vector<1x128xf32> -> vector<1x128xf32>
    %c0_86 = arith.constant 0 : index
    %c0_87 = arith.constant 0 : index
    %139 = vector.load %arg8[%c0_86, %c0_87] : memref<1x128xf32, #tpu.memory_space<vmem>>, vector<1x128xf32>
    %140 = arith.addf %138, %139 : vector<1x128xf32>
    %141 = vector.broadcast %140 : vector<1x128xf32> to vector<256x128xf32>
    %142 = arith.addf %127, %141 : vector<256x128xf32>
    %c0_88 = arith.constant 0 : index
    %c0_89 = arith.constant 0 : index
    %143 = vector.load %arg9[%c0_88, %c0_89] : memref<1x128xf32, #tpu.memory_space<vmem>>, vector<1x128xf32>
    %c0_90 = arith.constant 0 : index
    %c0_91 = arith.constant 0 : index
    %144 = vector.load %arg10[%c0_90, %c0_91] : memref<1x128xf32, #tpu.memory_space<vmem>>, vector<1x128xf32>
    %cst_92 = arith.constant dense<0.000000e+00> : vector<128xf32>
    %145 = vector.multi_reduction <add>, %142, %cst_92 [0] : vector<256x128xf32> to vector<128xf32>
    %146 = vector.shape_cast %145 : vector<128xf32> to vector<1x128xf32>
    %147 = arith.mulf %142, %142 : vector<256x128xf32>
    %cst_93 = arith.constant dense<0.000000e+00> : vector<128xf32>
    %148 = vector.multi_reduction <add>, %147, %cst_93 [0] : vector<256x128xf32> to vector<128xf32>
    %149 = vector.shape_cast %148 : vector<128xf32> to vector<1x128xf32>
    %150 = tpu.concatenate %146, %149 in 0 : vector<1x128xf32>, vector<1x128xf32> -> vector<2x128xf32>
    %cst_94 = arith.constant dense<0.000000e+00> : vector<2x128xf32>
    %151 = tpu.matmul %150, %27, %cst_94 {dimension_numbers = #tpu.dot_dimension_numbers<[1], [0], [0], [1], [0, 0, 1, 1], [], []>} : vector<2x128xf32>, vector<128x128xf32>, vector<2x128xf32> -> vector<2x128xf32>
    %cst_95 = arith.constant 9.765625E-4 : f32
    %152 = vector.broadcast %cst_95 : f32 to vector<2x128xf32>
    %153 = arith.mulf %151, %152 : vector<2x128xf32>
    %154 = vector.extract_strided_slice %153 {offsets = [0, 0], sizes = [1, 128], strides = [1, 1]} : vector<2x128xf32> to vector<1x128xf32>
    %155 = vector.extract_strided_slice %153 {offsets = [1, 0], sizes = [1, 128], strides = [1, 1]} : vector<2x128xf32> to vector<1x128xf32>
    %156 = arith.mulf %154, %154 : vector<1x128xf32>
    %157 = arith.subf %155, %156 : vector<1x128xf32>
    %158 = vector.broadcast %154 : vector<1x128xf32> to vector<256x128xf32>
    %159 = arith.subf %142, %158 : vector<256x128xf32>
    %cst_96 = arith.constant 9.99999974E-6 : f32
    %160 = vector.broadcast %cst_96 : f32 to vector<1x128xf32>
    %161 = arith.addf %157, %160 : vector<1x128xf32>
    %162 = math.rsqrt %161 : vector<1x128xf32>
    %163 = vector.broadcast %162 : vector<1x128xf32> to vector<256x128xf32>
    %164 = arith.mulf %159, %163 : vector<256x128xf32>
    %165 = vector.broadcast %143 : vector<1x128xf32> to vector<256x128xf32>
    %166 = arith.mulf %164, %165 : vector<256x128xf32>
    %167 = vector.broadcast %144 : vector<1x128xf32> to vector<256x128xf32>
    %168 = arith.addf %166, %167 : vector<256x128xf32>
    %169 = arith.negf %168 : vector<256x128xf32>
    %170 = math.exp %169 : vector<256x128xf32>
    %cst_97 = arith.constant 1.000000e+00 : f32
    %171 = vector.broadcast %cst_97 : f32 to vector<256x128xf32>
    %172 = arith.addf %171, %170 : vector<256x128xf32>
    %173 = arith.divf %171, %172 : vector<256x128xf32>
    %174 = arith.mulf %168, %173 : vector<256x128xf32>
    %c0_98 = arith.constant 0 : index
    %c0_99 = arith.constant 0 : index
    %175 = vector.load %arg12[%c0_98, %c0_99] : memref<1x128xf32, #tpu.memory_space<vmem>>, vector<1x128xf32>
    %176 = arith.truncf %174 : vector<256x128xf32> to vector<256x128xbf16>
    %c32_100 = arith.constant 32 : index
    %c0_101 = arith.constant 0 : index
    %177 = vector.load %arg15[%c32_100, %c0_101] : memref<320x128xbf16, #tpu.memory_space<vmem>>, vector<256x128xbf16>
    tpu.vector_store %arg15[%c32_100, %c0_101], %176 {strides = array<i32>} : memref<320x128xbf16, #tpu.memory_space<vmem>>, vector<256x128xbf16>,
    %c15_102 = arith.constant 15 : index
    %c0_103 = arith.constant 0 : index
    %178 = vector.load %arg15[%c15_102, %c0_103] : memref<320x128xbf16, #tpu.memory_space<vmem>>, vector<256x128xbf16>
    %179 = vector.broadcast %21 : vector<256x1xbf16> to vector<256x128xbf16>
    %180 = arith.mulf %178, %179 : vector<256x128xbf16>
    %c0_104 = arith.constant 0 : index
    %c0_105 = arith.constant 0 : index
    %c0_106 = arith.constant 0 : index
    %c0_107 = arith.constant 0 : index
    %181 = vector.load %arg11[%c0_104, %c0_105, %c0_106, %c0_107] : memref<3x3x128x128xbf16, #tpu.memory_space<vmem>>, vector<1x1x128x128xbf16>
    %182 = vector.shape_cast %181 : vector<1x1x128x128xbf16> to vector<128x128xbf16>
    %cst_108 = arith.constant dense<0.000000e+00> : vector<256x128xf32>
    %183 = tpu.matmul %180, %182, %cst_108 {dimension_numbers = #tpu.dot_dimension_numbers<[1], [0], [0], [1], [0, 0, 1, 1], [], []>} : vector<256x128xbf16>, vector<128x128xbf16>, vector<256x128xf32> -> vector<256x128xf32>
    %c16_109 = arith.constant 16 : index
    %c0_110 = arith.constant 0 : index
    %184 = vector.load %arg15[%c16_109, %c0_110] : memref<320x128xbf16, #tpu.memory_space<vmem>>, vector<256x128xbf16>
    %c0_111 = arith.constant 0 : index
    %c1_112 = arith.constant 1 : index
    %c0_113 = arith.constant 0 : index
    %c0_114 = arith.constant 0 : index
    %185 = vector.load %arg11[%c0_111, %c1_112, %c0_113, %c0_114] : memref<3x3x128x128xbf16, #tpu.memory_space<vmem>>, vector<1x1x128x128xbf16>
    %186 = vector.shape_cast %185 : vector<1x1x128x128xbf16> to vector<128x128xbf16>
    %cst_115 = arith.constant dense<0.000000e+00> : vector<256x128xf32>
    %187 = tpu.matmul %184, %186, %cst_115 {dimension_numbers = #tpu.dot_dimension_numbers<[1], [0], [0], [1], [0, 0, 1, 1], [], []>} : vector<256x128xbf16>, vector<128x128xbf16>, vector<256x128xf32> -> vector<256x128xf32>
    %188 = arith.addf %183, %187 : vector<256x128xf32>
    %c17_116 = arith.constant 17 : index
    %c0_117 = arith.constant 0 : index
    %189 = vector.load %arg15[%c17_116, %c0_117] : memref<320x128xbf16, #tpu.memory_space<vmem>>, vector<256x128xbf16>
    %190 = vector.broadcast %26 : vector<256x1xbf16> to vector<256x128xbf16>
    %191 = arith.mulf %189, %190 : vector<256x128xbf16>
    %c0_118 = arith.constant 0 : index
    %c2_119 = arith.constant 2 : index
    %c0_120 = arith.constant 0 : index
    %c0_121 = arith.constant 0 : index
    %192 = vector.load %arg11[%c0_118, %c2_119, %c0_120, %c0_121] : memref<3x3x128x128xbf16, #tpu.memory_space<vmem>>, vector<1x1x128x128xbf16>
    %193 = vector.shape_cast %192 : vector<1x1x128x128xbf16> to vector<128x128xbf16>
    %cst_122 = arith.constant dense<0.000000e+00> : vector<256x128xf32>
    %194 = tpu.matmul %191, %193, %cst_122 {dimension_numbers = #tpu.dot_dimension_numbers<[1], [0], [0], [1], [0, 0, 1, 1], [], []>} : vector<256x128xbf16>, vector<128x128xbf16>, vector<256x128xf32> -> vector<256x128xf32>
    %195 = arith.addf %188, %194 : vector<256x128xf32>
    %c31_123 = arith.constant 31 : index
    %c0_124 = arith.constant 0 : index
    %196 = vector.load %arg15[%c31_123, %c0_124] : memref<320x128xbf16, #tpu.memory_space<vmem>>, vector<256x128xbf16>
    %197 = vector.broadcast %21 : vector<256x1xbf16> to vector<256x128xbf16>
    %198 = arith.mulf %196, %197 : vector<256x128xbf16>
    %c1_125 = arith.constant 1 : index
    %c0_126 = arith.constant 0 : index
    %c0_127 = arith.constant 0 : index
    %c0_128 = arith.constant 0 : index
    %199 = vector.load %arg11[%c1_125, %c0_126, %c0_127, %c0_128] : memref<3x3x128x128xbf16, #tpu.memory_space<vmem>>, vector<1x1x128x128xbf16>
    %200 = vector.shape_cast %199 : vector<1x1x128x128xbf16> to vector<128x128xbf16>
    %cst_129 = arith.constant dense<0.000000e+00> : vector<256x128xf32>
    %201 = tpu.matmul %198, %200, %cst_129 {dimension_numbers = #tpu.dot_dimension_numbers<[1], [0], [0], [1], [0, 0, 1, 1], [], []>} : vector<256x128xbf16>, vector<128x128xbf16>, vector<256x128xf32> -> vector<256x128xf32>
    %202 = arith.addf %195, %201 : vector<256x128xf32>
    %c32_130 = arith.constant 32 : index
    %c0_131 = arith.constant 0 : index
    %203 = vector.load %arg15[%c32_130, %c0_131] : memref<320x128xbf16, #tpu.memory_space<vmem>>, vector<256x128xbf16>
    %c1_132 = arith.constant 1 : index
    %c1_133 = arith.constant 1 : index
    %c0_134 = arith.constant 0 : index
    %c0_135 = arith.constant 0 : index
    %204 = vector.load %arg11[%c1_132, %c1_133, %c0_134, %c0_135] : memref<3x3x128x128xbf16, #tpu.memory_space<vmem>>, vector<1x1x128x128xbf16>
    %205 = vector.shape_cast %204 : vector<1x1x128x128xbf16> to vector<128x128xbf16>
    %cst_136 = arith.constant dense<0.000000e+00> : vector<256x128xf32>
    %206 = tpu.matmul %203, %205, %cst_136 {dimension_numbers = #tpu.dot_dimension_numbers<[1], [0], [0], [1], [0, 0, 1, 1], [], []>} : vector<256x128xbf16>, vector<128x128xbf16>, vector<256x128xf32> -> vector<256x128xf32>
    %207 = arith.addf %202, %206 : vector<256x128xf32>
    %c33_137 = arith.constant 33 : index
    %c0_138 = arith.constant 0 : index
    %208 = vector.load %arg15[%c33_137, %c0_138] : memref<320x128xbf16, #tpu.memory_space<vmem>>, vector<256x128xbf16>
    %209 = vector.broadcast %26 : vector<256x1xbf16> to vector<256x128xbf16>
    %210 = arith.mulf %208, %209 : vector<256x128xbf16>
    %c1_139 = arith.constant 1 : index
    %c2_140 = arith.constant 2 : index
    %c0_141 = arith.constant 0 : index
    %c0_142 = arith.constant 0 : index
    %211 = vector.load %arg11[%c1_139, %c2_140, %c0_141, %c0_142] : memref<3x3x128x128xbf16, #tpu.memory_space<vmem>>, vector<1x1x128x128xbf16>
    %212 = vector.shape_cast %211 : vector<1x1x128x128xbf16> to vector<128x128xbf16>
    %cst_143 = arith.constant dense<0.000000e+00> : vector<256x128xf32>
    %213 = tpu.matmul %210, %212, %cst_143 {dimension_numbers = #tpu.dot_dimension_numbers<[1], [0], [0], [1], [0, 0, 1, 1], [], []>} : vector<256x128xbf16>, vector<128x128xbf16>, vector<256x128xf32> -> vector<256x128xf32>
    %214 = arith.addf %207, %213 : vector<256x128xf32>
    %c47_144 = arith.constant 47 : index
    %c0_145 = arith.constant 0 : index
    %215 = vector.load %arg15[%c47_144, %c0_145] : memref<320x128xbf16, #tpu.memory_space<vmem>>, vector<256x128xbf16>
    %216 = vector.broadcast %21 : vector<256x1xbf16> to vector<256x128xbf16>
    %217 = arith.mulf %215, %216 : vector<256x128xbf16>
    %c2_146 = arith.constant 2 : index
    %c0_147 = arith.constant 0 : index
    %c0_148 = arith.constant 0 : index
    %c0_149 = arith.constant 0 : index
    %218 = vector.load %arg11[%c2_146, %c0_147, %c0_148, %c0_149] : memref<3x3x128x128xbf16, #tpu.memory_space<vmem>>, vector<1x1x128x128xbf16>
    %219 = vector.shape_cast %218 : vector<1x1x128x128xbf16> to vector<128x128xbf16>
    %cst_150 = arith.constant dense<0.000000e+00> : vector<256x128xf32>
    %220 = tpu.matmul %217, %219, %cst_150 {dimension_numbers = #tpu.dot_dimension_numbers<[1], [0], [0], [1], [0, 0, 1, 1], [], []>} : vector<256x128xbf16>, vector<128x128xbf16>, vector<256x128xf32> -> vector<256x128xf32>
    %221 = arith.addf %214, %220 : vector<256x128xf32>
    %c48_151 = arith.constant 48 : index
    %c0_152 = arith.constant 0 : index
    %222 = vector.load %arg15[%c48_151, %c0_152] : memref<320x128xbf16, #tpu.memory_space<vmem>>, vector<256x128xbf16>
    %c2_153 = arith.constant 2 : index
    %c1_154 = arith.constant 1 : index
    %c0_155 = arith.constant 0 : index
    %c0_156 = arith.constant 0 : index
    %223 = vector.load %arg11[%c2_153, %c1_154, %c0_155, %c0_156] : memref<3x3x128x128xbf16, #tpu.memory_space<vmem>>, vector<1x1x128x128xbf16>
    %224 = vector.shape_cast %223 : vector<1x1x128x128xbf16> to vector<128x128xbf16>
    %cst_157 = arith.constant dense<0.000000e+00> : vector<256x128xf32>
    %225 = tpu.matmul %222, %224, %cst_157 {dimension_numbers = #tpu.dot_dimension_numbers<[1], [0], [0], [1], [0, 0, 1, 1], [], []>} : vector<256x128xbf16>, vector<128x128xbf16>, vector<256x128xf32> -> vector<256x128xf32>
    %226 = arith.addf %221, %225 : vector<256x128xf32>
    %c49_158 = arith.constant 49 : index
    %c0_159 = arith.constant 0 : index
    %227 = vector.load %arg15[%c49_158, %c0_159] : memref<320x128xbf16, #tpu.memory_space<vmem>>, vector<256x128xbf16>
    %228 = vector.broadcast %26 : vector<256x1xbf16> to vector<256x128xbf16>
    %229 = arith.mulf %227, %228 : vector<256x128xbf16>
    %c2_160 = arith.constant 2 : index
    %c2_161 = arith.constant 2 : index
    %c0_162 = arith.constant 0 : index
    %c0_163 = arith.constant 0 : index
    %230 = vector.load %arg11[%c2_160, %c2_161, %c0_162, %c0_163] : memref<3x3x128x128xbf16, #tpu.memory_space<vmem>>, vector<1x1x128x128xbf16>
    %231 = vector.shape_cast %230 : vector<1x1x128x128xbf16> to vector<128x128xbf16>
    %cst_164 = arith.constant dense<0.000000e+00> : vector<256x128xf32>
    %232 = tpu.matmul %229, %231, %cst_164 {dimension_numbers = #tpu.dot_dimension_numbers<[1], [0], [0], [1], [0, 0, 1, 1], [], []>} : vector<256x128xbf16>, vector<128x128xbf16>, vector<256x128xf32> -> vector<256x128xf32>
    %233 = arith.addf %226, %232 : vector<256x128xf32>
    %234 = vector.broadcast %175 : vector<1x128xf32> to vector<256x128xf32>
    %235 = arith.addf %233, %234 : vector<256x128xf32>
    %c0_165 = arith.constant 0 : index
    %c0_166 = arith.constant 0 : index
    %c0_167 = arith.constant 0 : index
    %c0_168 = arith.constant 0 : index
    %236 = vector.load %arg1[%c0_165, %c0_166, %c0_167, %c0_168] : memref<1x16x16x128xf32, #tpu.memory_space<vmem>>, vector<1x16x16x128xf32>
    %237 = vector.shape_cast %236 : vector<1x16x16x128xf32> to vector<16x16x128xf32>
    %238 = vector.shape_cast %235 : vector<256x128xf32> to vector<16x16x128xf32>
    %239 = arith.addf %237, %238 : vector<16x16x128xf32>
    %c0_169 = arith.constant 0 : index
    %c0_170 = arith.constant 0 : index
    %c0_171 = arith.constant 0 : index
    %c0_172 = arith.constant 0 : index
    %240 = vector.load %arg14[%c0_169, %c0_170, %c0_171, %c0_172] : memref<1x16x16x128xf32, #tpu.memory_space<vmem>>, vector<1x16x16x128xf32>
    %241 = vector.shape_cast %240 : vector<1x16x16x128xf32> to vector<16x16x128xf32>
    %242 = vector.shape_cast %239 : vector<16x16x128xf32> to vector<1x16x16x128xf32>
    tpu.vector_store %arg14[%c0_169, %c0_170, %c0_171, %c0_172], %242 {strides = array<i32>} : memref<1x16x16x128xf32, #tpu.memory_space<vmem>>, vector<1x16x16x128xf32>,
    return
  }
  func.func @transform_0(%arg0: i32) -> (i32, i32, i32, i32) {
    %c0_i32 = arith.constant 0 : i32
    %c0_i32_0 = arith.constant 0 : i32
    %c0_i32_1 = arith.constant 0 : i32
    %c0_i32_2 = arith.constant 0 : i32
    return %arg0, %c0_i32, %c0_i32_0, %c0_i32_1 : i32, i32, i32, i32
  }
  func.func @transform_1(%arg0: i32) -> (i32, i32, i32) {
    %c0_i32 = arith.constant 0 : i32
    %c0_i32_0 = arith.constant 0 : i32
    %c0_i32_1 = arith.constant 0 : i32
    return %arg0, %c0_i32, %c0_i32_0 : i32, i32, i32
  }
  func.func @transform_2(%arg0: i32) -> (i32, i32) {
    %c0_i32 = arith.constant 0 : i32
    %c0_i32_0 = arith.constant 0 : i32
    %c0_i32_1 = arith.constant 0 : i32
    return %c0_i32, %c0_i32_0 : i32, i32
  }
  func.func @transform_3(%arg0: i32) -> (i32, i32) {
    %c0_i32 = arith.constant 0 : i32
    %c0_i32_0 = arith.constant 0 : i32
    %c0_i32_1 = arith.constant 0 : i32
    return %c0_i32, %c0_i32_0 : i32, i32
  }
  func.func @transform_4(%arg0: i32) -> (i32, i32, i32, i32) {
    %c0_i32 = arith.constant 0 : i32
    %c0_i32_0 = arith.constant 0 : i32
    %c0_i32_1 = arith.constant 0 : i32
    %c0_i32_2 = arith.constant 0 : i32
    %c0_i32_3 = arith.constant 0 : i32
    return %c0_i32, %c0_i32_0, %c0_i32_1, %c0_i32_2 : i32, i32, i32, i32
  }
  func.func @transform_5(%arg0: i32) -> (i32, i32) {
    %c0_i32 = arith.constant 0 : i32
    %c0_i32_0 = arith.constant 0 : i32
    %c0_i32_1 = arith.constant 0 : i32
    return %c0_i32, %c0_i32_0 : i32, i32
  }
  func.func @transform_6(%arg0: i32) -> (i32, i32) {
    %c0_i32 = arith.constant 0 : i32
    %c0_i32_0 = arith.constant 0 : i32
    %c0_i32_1 = arith.constant 0 : i32
    return %c0_i32, %c0_i32_0 : i32, i32
  }
  func.func @transform_7(%arg0: i32) -> (i32, i32) {
    %c0_i32 = arith.constant 0 : i32
    %c0_i32_0 = arith.constant 0 : i32
    %c0_i32_1 = arith.constant 0 : i32
    return %c0_i32, %c0_i32_0 : i32, i32
  }
  func.func @transform_8(%arg0: i32) -> (i32, i32) {
    %c0_i32 = arith.constant 0 : i32
    %c0_i32_0 = arith.constant 0 : i32
    %c0_i32_1 = arith.constant 0 : i32
    return %c0_i32, %c0_i32_0 : i32, i32
  }
  func.func @transform_9(%arg0: i32) -> (i32, i32) {
    %c0_i32 = arith.constant 0 : i32
    %c0_i32_0 = arith.constant 0 : i32
    %c0_i32_1 = arith.constant 0 : i32
    return %c0_i32, %c0_i32_0 : i32, i32
  }
  func.func @transform_10(%arg0: i32) -> (i32, i32, i32, i32) {
    %c0_i32 = arith.constant 0 : i32
    %c0_i32_0 = arith.constant 0 : i32
    %c0_i32_1 = arith.constant 0 : i32
    %c0_i32_2 = arith.constant 0 : i32
    %c0_i32_3 = arith.constant 0 : i32
    return %c0_i32, %c0_i32_0, %c0_i32_1, %c0_i32_2 : i32, i32, i32, i32
  }
  func.func @transform_11(%arg0: i32) -> (i32, i32) {
    %c0_i32 = arith.constant 0 : i32
    %c0_i32_0 = arith.constant 0 : i32
    %c0_i32_1 = arith.constant 0 : i32
    return %c0_i32, %c0_i32_0 : i32, i32
  }
  func.func @transform_12(%arg0: i32) -> (i32, i32) {
    %c0_i32 = arith.constant 0 : i32
    %c0_i32_0 = arith.constant 0 : i32
    %c0_i32_1 = arith.constant 0 : i32
    return %c0_i32, %c0_i32_0 : i32, i32
  }
  func.func @transform_13(%arg0: i32) -> (i32, i32, i32, i32) {
    %c0_i32 = arith.constant 0 : i32
    %c0_i32_0 = arith.constant 0 : i32
    %c0_i32_1 = arith.constant 0 : i32
    %c0_i32_2 = arith.constant 0 : i32
    return %arg0, %c0_i32, %c0_i32_0, %c0_i32_1 : i32, i32, i32, i32
  }
}

</mosaic_0001>

<llo_original>
// kernel: resblock_forward.1
$region0: #{resblock_forward.1}
  #allocation0 [shape = 'u32[]', space=smem, size = 0x4, offset = 0x4, fixed_abs, tag = 'smem constant byte address 0x4 - core index']
  #allocation1 [shape = 'u32[144,128]{1,0:T(1,128)}', space=vmem, size = 0x12000, scoped, tag = 'internal scratch']
  #allocation2 [shape = 'bf16[320,128]{1,0:T(16,128)(2,1)}', space=vmem, size = 0x14000, scoped, tag = 'scratch operand']
  %s0 = inlined_call_operand.hbm [shape: f32[2,16,16,128], index: 0, kind: input, shape index: {}]
  %s1 = inlined_call_operand.vmem [shape: f32[2,1,64], index: 1, kind: input, shape index: {}]
  %s2 = inlined_call_operand.vmem [shape: f32[1,128], index: 2, kind: input, shape index: {}]
  %s3 = inlined_call_operand.vmem [shape: f32[1,128], index: 3, kind: input, shape index: {}]
  %s4 = inlined_call_operand.hbm [shape: bf16[3,3,128,128], index: 4, kind: input, shape index: {}]
  %s5 = inlined_call_operand.vmem [shape: f32[1,128], index: 5, kind: input, shape index: {}]
  %s6 = inlined_call_operand.vmem [shape: bf16[64,128], index: 6, kind: input, shape index: {}]
  %s7 = inlined_call_operand.vmem [shape: f32[1,128], index: 7, kind: input, shape index: {}]
  %s8 = inlined_call_operand.vmem [shape: f32[1,128], index: 8, kind: input, shape index: {}]
  %s9 = inlined_call_operand.vmem [shape: f32[1,128], index: 9, kind: input, shape index: {}]
  %s10 = inlined_call_operand.hbm [shape: bf16[3,3,128,128], index: 10, kind: input, shape index: {}]
  %s11 = inlined_call_operand.vmem [shape: f32[1,128], index: 11, kind: input, shape index: {}]
  %s12 = inlined_call_operand.hbm [shape: f32[128,128], index: 12, kind: input, shape index: {}]
  %s13 = inlined_call_operand.hbm [shape: f32[2,16,16,128], index: 13, kind: output, shape index: {}]
  %s14 = sld [smem:[#allocation0]]
  $region101: #{resblock_forward.1} parent=0
    _
  %s16 = ssub.s32 1, %s14
  %s17 = scalar_select 0, %s16, %s14
  $region1: #{resblock_forward.1} parent=0
    #allocation3 [shape = 'u8[262144]{0}', space=vmem, size = 0x40000, scoped, tag = 'input window, operand 0']
    #allocation4 [shape = 's32[2]{0}', space=sflag, size = 0x8, scoped, tag = 'scoped memory for resblock_forward.1']
    #allocation5 [shape = 's32[2]{0}', space=sflag, size = 0x8, scoped, tag = 'scoped memory for resblock_forward.1']
    #allocation6 [shape = 'u8[294912]{0}', space=vmem, size = 0x48000, scoped, tag = 'input window, operand 4, single buffered']
    #allocation7 [shape = 's32[1]{0}', space=sflag, size = 0x4, scoped, tag = 'scoped memory for resblock_forward.1']
    #allocation8 [shape = 'u8[294912]{0}', space=vmem, size = 0x48000, scoped, tag = 'input window, operand 10, single buffered']
    #allocation9 [shape = 'u8[65536]{0}', space=vmem, size = 0x10000, scoped, tag = 'input window, operand 12, single buffered']
    #allocation10 [shape = 's32[1]{0}', space=sflag, size = 0x4, scoped, tag = 'scoped memory for resblock_forward.1']
    #allocation11 [shape = 'u8[262144]{0}', space=vmem, size = 0x40000, scoped, tag = 'output window, operand 0']
    %18 = vsyncpa [#allocation4], 0
    %s19 = scalar_lea.sflag [#allocation4], 1
    %20 = vsyncpa %s19, 0
    %21 = vsyncpa [#allocation7], 0
    %22 = vsyncpa [#allocation10], 0
    %23 = vsyncpa [#allocation5], 0
    %s24 = scalar_lea.sflag [#allocation5], 1
    %25 = vsyncpa %s24, 0
    loop: start=0, step=1, limit=4
    $region2: #{resblock_forward.1} parent=1 // loop_pre_header
      _
    $region3: #{resblock_forward.1} parent=1 // loop_header
      %s27 = sphi 0, %s31
      %p28 = scmp.ge.s32.totalorder %s27, 4
      %s37 = sphi 0, %s39
      %s40 = sphi 0, %s37
      %s41 = sphi 0, %s40
      %s57 = sphi 0, %s41
      %s63 = sphi 0, %s65
      %s66 = sphi 0, %s63
      %s67 = sphi 0, %s66
      %s83 = sphi 0, %s67
      %s87 = sphi 0, %s87
      %s89 = sphi 0, %s87
      %s90 = sphi 0, %s89
      %s104 = sphi 0, %s90
      %s108 = sphi 0, %s108
      %s110 = sphi 0, %s108
      %s111 = sphi 0, %s110
      %s125 = sphi 0, %s111
      %s129 = sphi 0, %s129
      %s131 = sphi 0, %s129
      %s132 = sphi 0, %s131
      %s146 = sphi 0, %s132
      %s150 = sphi 0, %s150
      %s152 = sphi 0, %s150
      %s153 = sphi 0, %s152
      %s167 = sphi 0, %s153
      %s171 = sphi 0, %s171
      %s173 = sphi 0, %s171
      %s174 = sphi 0, %s173
      %s188 = sphi 0, %s174
      %s192 = sphi 0, %s192
      %s194 = sphi 0, %s192
      %s195 = sphi 0, %s194
      %s209 = sphi 0, %s195
      %s213 = sphi 0, %s213
      %s215 = sphi 0, %s213
      %s216 = sphi 0, %s215
      %s230 = sphi 0, %s216
      %s234 = sphi 0, %s234
      %s236 = sphi 0, %s234
      %s237 = sphi 0, %s236
      %s251 = sphi 0, %s237
      %s255 = sphi 0, %s255
      %s257 = sphi 0, %s255
      %s258 = sphi 0, %s257
      %s272 = sphi 0, %s258
      %s276 = sphi 0, %s276
      %s278 = sphi 0, %s276
      %s279 = sphi 0, %s278
      %s293 = sphi 0, %s279
      %s297 = sphi 0, %s297
      %s299 = sphi 0, %s297
      %s300 = sphi 0, %s299
      %s314 = sphi 0, %s300
      %s320 = sphi 0, %s322
      %s323 = sphi 0, %s320
      %s324 = sphi 0, %s323
      %s340 = sphi 0, %s324
    $region4: #{resblock_forward.1} parent=1 // loop_header_branch
      %30 = sbr.rel (%p28) target = $region8
    $region5: #{resblock_forward.1} parent=1 // loop_body
      %s32 = ssub.s32 %s27, 1
      %s33 = ssub.s32 %s27, 2
      %s34 = sadd.s32 %s27, 1
      %s35 = ssub.s32 %s27, %s34
      %p36 = scmp.eq.s32.totalorder %s35, 0
      %s38 = sadd.s32 %s37, 1
      %s39 = scalar_select %p36, %s37, %s38
      %p42 = pneg %p36
      %p43 = scmp.eq.s32.totalorder %s27, 1
      %p44 = por %p42, %p43
      %p45 = scmp.ne.s32.totalorder %s37, %s40
      %p46 = scmp.eq.s32.totalorder %s27, 0
      %p47 = por %p45, %p46
      %p48 = scmp.ne.s32.totalorder %s37, %s40
      %p49 = scmp.eq.s32.totalorder %s32, 1
      %p50 = por %p48, %p49
      %p51 = scmp.ne.s32.totalorder %s40, %s41
      %p52 = scmp.eq.s32.totalorder %s32, 0
      %p53 = por %p51, %p52
      %p54 = scmp.ne.s32.totalorder %s40, %s41
      %p55 = scmp.eq.s32.totalorder %s33, 1
      %p56 = por %p54, %p55
      %p58 = scmp.ne.s32.totalorder %s41, %s57
      %p59 = scmp.eq.s32.totalorder %s33, 0
      %p60 = por %p58, %p59
      %s61 = ssub.s32 %s27, %s34
      %p62 = scmp.eq.s32.totalorder %s61, 0
      %s64 = sadd.s32 %s63, 1
      %s65 = scalar_select %p62, %s63, %s64
      %p68 = pneg %p62
      %p69 = scmp.eq.s32.totalorder %s27, 1
      %p70 = por %p68, %p69
      %p71 = scmp.ne.s32.totalorder %s63, %s66
      %p72 = scmp.eq.s32.totalorder %s27, 0
      %p73 = por %p71, %p72
      %p74 = scmp.ne.s32.totalorder %s63, %s66
      %p75 = scmp.eq.s32.totalorder %s32, 1
      %p76 = por %p74, %p75
      %p77 = scmp.ne.s32.totalorder %s66, %s67
      %p78 = scmp.eq.s32.totalorder %s32, 0
      %p79 = por %p77, %p78
      %p80 = scmp.ne.s32.totalorder %s66, %s67
      %p81 = scmp.eq.s32.totalorder %s33, 1
      %p82 = por %p80, %p81
      %p84 = scmp.ne.s32.totalorder %s67, %s83
      %p85 = scmp.eq.s32.totalorder %s33, 0
      %p86 = por %p84, %p85
      %s88 = sadd.s32 %s87, 1
      %p91 = scmp.eq.s32.totalorder %s27, 1
      %p92 = scmp.ne.s32.totalorder %s87, %s89
      %p93 = scmp.eq.s32.totalorder %s27, 0
      %p94 = por %p92, %p93
      %p95 = scmp.ne.s32.totalorder %s87, %s89
      %p96 = scmp.eq.s32.totalorder %s32, 1
      %p97 = por %p95, %p96
      %p98 = scmp.ne.s32.totalorder %s89, %s90
      %p99 = scmp.eq.s32.totalorder %s32, 0
      %p100 = por %p98, %p99
      %p101 = scmp.ne.s32.totalorder %s89, %s90
      %p102 = scmp.eq.s32.totalorder %s33, 1
      %p103 = por %p101, %p102
      %p105 = scmp.ne.s32.totalorder %s90, %s104
      %p106 = scmp.eq.s32.totalorder %s33, 0
      %p107 = por %p105, %p106
      %s109 = sadd.s32 %s108, 1
      %p112 = scmp.eq.s32.totalorder %s27, 1
      %p113 = scmp.ne.s32.totalorder %s108, %s110
      %p114 = scmp.eq.s32.totalorder %s27, 0
      %p115 = por %p113, %p114
      %p116 = scmp.ne.s32.totalorder %s108, %s110
      %p117 = scmp.eq.s32.totalorder %s32, 1
      %p118 = por %p116, %p117
      %p119 = scmp.ne.s32.totalorder %s110, %s111
      %p120 = scmp.eq.s32.totalorder %s32, 0
      %p121 = por %p119, %p120
      %p122 = scmp.ne.s32.totalorder %s110, %s111
      %p123 = scmp.eq.s32.totalorder %s33, 1
      %p124 = por %p122, %p123
      %p126 = scmp.ne.s32.totalorder %s111, %s125
      %p127 = scmp.eq.s32.totalorder %s33, 0
      %p128 = por %p126, %p127
      %s130 = sadd.s32 %s129, 1
      %p133 = scmp.eq.s32.totalorder %s27, 1
      %p134 = scmp.ne.s32.totalorder %s129, %s131
      %p135 = scmp.eq.s32.totalorder %s27, 0
      %p136 = por %p134, %p135
      %p137 = scmp.ne.s32.totalorder %s129, %s131
      %p138 = scmp.eq.s32.totalorder %s32, 1
      %p139 = por %p137, %p138
      %p140 = scmp.ne.s32.totalorder %s131, %s132
      %p141 = scmp.eq.s32.totalorder %s32, 0
      %p142 = por %p140, %p141
      %p143 = scmp.ne.s32.totalorder %s131, %s132
      %p144 = scmp.eq.s32.totalorder %s33, 1
      %p145 = por %p143, %p144
      %p147 = scmp.ne.s32.totalorder %s132, %s146
      %p148 = scmp.eq.s32.totalorder %s33, 0
      %p149 = por %p147, %p148
      %s151 = sadd.s32 %s150, 1
      %p154 = scmp.eq.s32.totalorder %s27, 1
      %p155 = scmp.ne.s32.totalorder %s150, %s152
      %p156 = scmp.eq.s32.totalorder %s27, 0
      %p157 = por %p155, %p156
      %p158 = scmp.ne.s32.totalorder %s150, %s152
      %p159 = scmp.eq.s32.totalorder %s32, 1
      %p160 = por %p158, %p159
      %p161 = scmp.ne.s32.totalorder %s152, %s153
      %p162 = scmp.eq.s32.totalorder %s32, 0
      %p163 = por %p161, %p162
      %p164 = scmp.ne.s32.totalorder %s152, %s153
      %p165 = scmp.eq.s32.totalorder %s33, 1
      %p166 = por %p164, %p165
      %p168 = scmp.ne.s32.totalorder %s153, %s167
      %p169 = scmp.eq.s32.totalorder %s33, 0
      %p170 = por %p168, %p169
      %s172 = sadd.s32 %s171, 1
      %p175 = scmp.eq.s32.totalorder %s27, 1
      %p176 = scmp.ne.s32.totalorder %s171, %s173
      %p177 = scmp.eq.s32.totalorder %s27, 0
      %p178 = por %p176, %p177
      %p179 = scmp.ne.s32.totalorder %s171, %s173
      %p180 = scmp.eq.s32.totalorder %s32, 1
      %p181 = por %p179, %p180
      %p182 = scmp.ne.s32.totalorder %s173, %s174
      %p183 = scmp.eq.s32.totalorder %s32, 0
      %p184 = por %p182, %p183
      %p185 = scmp.ne.s32.totalorder %s173, %s174
      %p186 = scmp.eq.s32.totalorder %s33, 1
      %p187 = por %p185, %p186
      %p189 = scmp.ne.s32.totalorder %s174, %s188
      %p190 = scmp.eq.s32.totalorder %s33, 0
      %p191 = por %p189, %p190
      %s193 = sadd.s32 %s192, 1
      %p196 = scmp.eq.s32.totalorder %s27, 1
      %p197 = scmp.ne.s32.totalorder %s192, %s194
      %p198 = scmp.eq.s32.totalorder %s27, 0
      %p199 = por %p197, %p198
      %p200 = scmp.ne.s32.totalorder %s192, %s194
      %p201 = scmp.eq.s32.totalorder %s32, 1
      %p202 = por %p200, %p201
      %p203 = scmp.ne.s32.totalorder %s194, %s195
      %p204 = scmp.eq.s32.totalorder %s32, 0
      %p205 = por %p203, %p204
      %p206 = scmp.ne.s32.totalorder %s194, %s195
      %p207 = scmp.eq.s32.totalorder %s33, 1
      %p208 = por %p206, %p207
      %p210 = scmp.ne.s32.totalorder %s195, %s209
      %p211 = scmp.eq.s32.totalorder %s33, 0
      %p212 = por %p210, %p211
      %s214 = sadd.s32 %s213, 1
      %p217 = scmp.eq.s32.totalorder %s27, 1
      %p218 = scmp.ne.s32.totalorder %s213, %s215
      %p219 = scmp.eq.s32.totalorder %s27, 0
      %p220 = por %p218, %p219
      %p221 = scmp.ne.s32.totalorder %s213, %s215
      %p222 = scmp.eq.s32.totalorder %s32, 1
      %p223 = por %p221, %p222
      %p224 = scmp.ne.s32.totalorder %s215, %s216
      %p225 = scmp.eq.s32.totalorder %s32, 0
      %p226 = por %p224, %p225
      %p227 = scmp.ne.s32.totalorder %s215, %s216
      %p228 = scmp.eq.s32.totalorder %s33, 1
      %p229 = por %p227, %p228
      %p231 = scmp.ne.s32.totalorder %s216, %s230
      %p232 = scmp.eq.s32.totalorder %s33, 0
      %p233 = por %p231, %p232
      %s235 = sadd.s32 %s234, 1
      %p238 = scmp.eq.s32.totalorder %s27, 1
      %p239 = scmp.ne.s32.totalorder %s234, %s236
      %p240 = scmp.eq.s32.totalorder %s27, 0
      %p241 = por %p239, %p240
      %p242 = scmp.ne.s32.totalorder %s234, %s236
      %p243 = scmp.eq.s32.totalorder %s32, 1
      %p244 = por %p242, %p243
      %p245 = scmp.ne.s32.totalorder %s236, %s237
      %p246 = scmp.eq.s32.totalorder %s32, 0
      %p247 = por %p245, %p246
      %p248 = scmp.ne.s32.totalorder %s236, %s237
      %p249 = scmp.eq.s32.totalorder %s33, 1
      %p250 = por %p248, %p249
      %p252 = scmp.ne.s32.totalorder %s237, %s251
      %p253 = scmp.eq.s32.totalorder %s33, 0
      %p254 = por %p252, %p253
      %s256 = sadd.s32 %s255, 1
      %p259 = scmp.eq.s32.totalorder %s27, 1
      %p260 = scmp.ne.s32.totalorder %s255, %s257
      %p261 = scmp.eq.s32.totalorder %s27, 0
      %p262 = por %p260, %p261
      %p263 = scmp.ne.s32.totalorder %s255, %s257
      %p264 = scmp.eq.s32.totalorder %s32, 1
      %p265 = por %p263, %p264
      %p266 = scmp.ne.s32.totalorder %s257, %s258
      %p267 = scmp.eq.s32.totalorder %s32, 0
      %p268 = por %p266, %p267
      %p269 = scmp.ne.s32.totalorder %s257, %s258
      %p270 = scmp.eq.s32.totalorder %s33, 1
      %p271 = por %p269, %p270
      %p273 = scmp.ne.s32.totalorder %s258, %s272
      %p274 = scmp.eq.s32.totalorder %s33, 0
      %p275 = por %p273, %p274
      %s277 = sadd.s32 %s276, 1
      %p280 = scmp.eq.s32.totalorder %s27, 1
      %p281 = scmp.ne.s32.totalorder %s276, %s278
      %p282 = scmp.eq.s32.totalorder %s27, 0
      %p283 = por %p281, %p282
      %p284 = scmp.ne.s32.totalorder %s276, %s278
      %p285 = scmp.eq.s32.totalorder %s32, 1
      %p286 = por %p284, %p285
      %p287 = scmp.ne.s32.totalorder %s278, %s279
      %p288 = scmp.eq.s32.totalorder %s32, 0
      %p289 = por %p287, %p288
      %p290 = scmp.ne.s32.totalorder %s278, %s279
      %p291 = scmp.eq.s32.totalorder %s33, 1
      %p292 = por %p290, %p291
      %p294 = scmp.ne.s32.totalorder %s279, %s293
      %p295 = scmp.eq.s32.totalorder %s33, 0
      %p296 = por %p294, %p295
      %s298 = sadd.s32 %s297, 1
      %p301 = scmp.eq.s32.totalorder %s27, 1
      %p302 = scmp.ne.s32.totalorder %s297, %s299
      %p303 = scmp.eq.s32.totalorder %s27, 0
      %p304 = por %p302, %p303
      %p305 = scmp.ne.s32.totalorder %s297, %s299
      %p306 = scmp.eq.s32.totalorder %s32, 1
      %p307 = por %p305, %p306
      %p308 = scmp.ne.s32.totalorder %s299, %s300
      %p309 = scmp.eq.s32.totalorder %s32, 0
      %p310 = por %p308, %p309
      %p311 = scmp.ne.s32.totalorder %s299, %s300
      %p312 = scmp.eq.s32.totalorder %s33, 1
      %p313 = por %p311, %p312
      %p315 = scmp.ne.s32.totalorder %s300, %s314
      %p316 = scmp.eq.s32.totalorder %s33, 0
      %p317 = por %p315, %p316
      %s318 = ssub.s32 %s27, %s34
      %p319 = scmp.eq.s32.totalorder %s318, 0
      %s321 = sadd.s32 %s320, 1
      %s322 = scalar_select %p319, %s320, %s321
      %p325 = pneg %p319
      %p326 = scmp.eq.s32.totalorder %s27, 1
      %p327 = por %p325, %p326
      %p328 = scmp.ne.s32.totalorder %s320, %s323
      %p329 = scmp.eq.s32.totalorder %s27, 0
      %p330 = por %p328, %p329
      %p331 = scmp.ne.s32.totalorder %s320, %s323
      %p332 = scmp.eq.s32.totalorder %s32, 1
      %p333 = por %p331, %p332
      %p334 = scmp.ne.s32.totalorder %s323, %s324
      %p335 = scmp.eq.s32.totalorder %s32, 0
      %p336 = por %p334, %p335
      %p337 = scmp.ne.s32.totalorder %s323, %s324
      %p338 = scmp.eq.s32.totalorder %s33, 1
      %p339 = por %p337, %p338
      %p341 = scmp.ne.s32.totalorder %s324, %s340
      %p342 = scmp.eq.s32.totalorder %s33, 0
      %p343 = por %p341, %p342
      %p344 = scmp.le.s32.totalorder 1, %s27
      %p345 = scmp.lt.s32.totalorder %s27, 3
      %p346 = pnand %p344, %p345
      %p347 = pneg %p346
      // Predicated region
      $region9: #{resblock_forward.1} parent=5 // pred_check
        _
      $region10: #{resblock_forward.1} parent=5 // pred_check_branch
        %349 = sbr.rel (%p346) target = $region12
      $region11: #{resblock_forward.1} parent=5 // pred_region
        %s350 = ssub.s32 %s27, 1
        // Predicated region
        $region13: #{resblock_forward.1} parent=11 // pred_check
          %p351 = pneg %p100
        $region14: #{resblock_forward.1} parent=11 // pred_check_branch
          %353 = sbr.rel (%p351) target = $region16
        $region15: #{resblock_forward.1} parent=11 // pred_region
          _
        $region16: #{resblock_forward.1} parent=11 // pred_fallthru
          _
        // Predicated region
        $region17: #{resblock_forward.1} parent=11 // pred_check
          %p354 = pneg %p121
        $region18: #{resblock_forward.1} parent=11 // pred_check_branch
          %356 = sbr.rel (%p354) target = $region20
        $region19: #{resblock_forward.1} parent=11 // pred_region
          _
        $region20: #{resblock_forward.1} parent=11 // pred_fallthru
          _
        // Predicated region
        $region21: #{resblock_forward.1} parent=11 // pred_check
          %p357 = pneg %p142
        $region22: #{resblock_forward.1} parent=11 // pred_check_branch
          %359 = sbr.rel (%p357) target = $region24
        $region23: #{resblock_forward.1} parent=11 // pred_region
          %s361 = ssub.s32 9216, 9216
          %362 = vsyncadd [#allocation7], %s361
          %s363 = sshll.u32 [#allocation6], 4
          %s364 = int_to_ptr.vmem [resolvable:$true] %s363
          %369 = dma.hbm_to_vmem [thread:$0]  %s4, 9216, %s364, [#allocation7], 64, 64, 4
        $region24: #{resblock_forward.1} parent=11 // pred_fallthru
          _
        // Predicated region
        $region25: #{resblock_forward.1} parent=11 // pred_check
          %p370 = pneg %p163
        $region26: #{resblock_forward.1} parent=11 // pred_check_branch
          %372 = sbr.rel (%p370) target = $region28
        $region27: #{resblock_forward.1} parent=11 // pred_region
          _
        $region28: #{resblock_forward.1} parent=11 // pred_fallthru
          _
        // Predicated region
        $region29: #{resblock_forward.1} parent=11 // pred_check
          %p373 = pneg %p184
        $region30: #{resblock_forward.1} parent=11 // pred_check_branch
          %375 = sbr.rel (%p373) target = $region32
        $region31: #{resblock_forward.1} parent=11 // pred_region
          _
        $region32: #{resblock_forward.1} parent=11 // pred_fallthru
          _
        // Predicated region
        $region33: #{resblock_forward.1} parent=11 // pred_check
          %p376 = pneg %p205
        $region34: #{resblock_forward.1} parent=11 // pred_check_branch
          %378 = sbr.rel (%p376) target = $region36
        $region35: #{resblock_forward.1} parent=11 // pred_region
          _
        $region36: #{resblock_forward.1} parent=11 // pred_fallthru
          _
        // Predicated region
        $region37: #{resblock_forward.1} parent=11 // pred_check
          %p379 = pneg %p226
        $region38: #{resblock_forward.1} parent=11 // pred_check_branch
          %381 = sbr.rel (%p379) target = $region40
        $region39: #{resblock_forward.1} parent=11 // pred_region
          _
        $region40: #{resblock_forward.1} parent=11 // pred_fallthru
          _
        // Predicated region
        $region41: #{resblock_forward.1} parent=11 // pred_check
          %p382 = pneg %p247
        $region42: #{resblock_forward.1} parent=11 // pred_check_branch
          %384 = sbr.rel (%p382) target = $region44
        $region43: #{resblock_forward.1} parent=11 // pred_region
          _
        $region44: #{resblock_forward.1} parent=11 // pred_fallthru
          _
        // Predicated region
        $region45: #{resblock_forward.1} parent=11 // pred_check
          %p385 = pneg %p268
        $region46: #{resblock_forward.1} parent=11 // pred_check_branch
          %387 = sbr.rel (%p385) target = $region48
        $region47: #{resblock_forward.1} parent=11 // pred_region
          %s389 = ssub.s32 9216, 9216
          %390 = vsyncadd [#allocation7], %s389
          %s391 = sshll.u32 [#allocation8], 4
          %s392 = int_to_ptr.vmem [resolvable:$true] %s391
          %397 = dma.hbm_to_vmem [thread:$0]  %s10, 9216, %s392, [#allocation7], 64, 64, 4
        $region48: #{resblock_forward.1} parent=11 // pred_fallthru
          _
        // Predicated region
        $region49: #{resblock_forward.1} parent=11 // pred_check
          %p398 = pneg %p289
        $region50: #{resblock_forward.1} parent=11 // pred_check_branch
          %400 = sbr.rel (%p398) target = $region52
        $region51: #{resblock_forward.1} parent=11 // pred_region
          _
        $region52: #{resblock_forward.1} parent=11 // pred_fallthru
          _
        // Predicated region
        $region53: #{resblock_forward.1} parent=11 // pred_check
          %p401 = pneg %p310
        $region54: #{resblock_forward.1} parent=11 // pred_check_branch
          %403 = sbr.rel (%p401) target = $region56
        $region55: #{resblock_forward.1} parent=11 // pred_region
          %s405 = ssub.s32 2048, 2048
          %406 = vsyncadd [#allocation10], %s405
          %s407 = sshll.u32 [#allocation9], 4
          %s408 = int_to_ptr.vmem [resolvable:$true] %s407
          %413 = dma.hbm_to_vmem [thread:$0]  %s12, 2048, %s408, [#allocation10], 128, 128, 8
        $region56: #{resblock_forward.1} parent=11 // pred_fallthru
          _
      $region12: #{resblock_forward.1} parent=5 // pred_fallthru
        _
      %p414 = scmp.lt.s32.totalorder %s27, 2
      // Predicated region
      $region57: #{resblock_forward.1} parent=5 // pred_check
        %p415 = pneg %p414
      $region58: #{resblock_forward.1} parent=5 // pred_check_branch
        %417 = sbr.rel (%p415) target = $region60
      $region59: #{resblock_forward.1} parent=5 // pred_region
        // Predicated region
        $region61: #{resblock_forward.1} parent=59 // pred_check
          %p418 = pneg %p47
        $region62: #{resblock_forward.1} parent=59 // pred_check_branch
          %420 = sbr.rel (%p418) target = $region64
        $region63: #{resblock_forward.1} parent=59 // pred_region
          %s421 = sand.u32 %s37, 1
          %s422 = scalar_lea.sflag [#allocation4], %s421
          %s423 = sand.u32 %s37, 1
          %s424 = smul.addr %s423, 256
          %s425 = scalar_lea.vmem [#allocation3], %s424
          %s427 = ssub.s32 4096, 4096
          %428 = vsyncadd %s422, %s427
          %s429 = smul.addr %s27, 32
          %s430 = smul.addr %s429, 128
          %s431 = scalar_lea.hbm %s0, %s430
          %s432 = sshll.u32 %s425, 4
          %s433 = int_to_ptr.vmem [resolvable:$true] %s432
          %438 = dma.hbm_to_vmem [thread:$0]  %s431, 4096, %s433, %s422, 128, 128, 8
        $region64: #{resblock_forward.1} parent=59 // pred_fallthru
          _
        // Predicated region
        $region65: #{resblock_forward.1} parent=59 // pred_check
          %p439 = pneg %p73
        $region66: #{resblock_forward.1} parent=59 // pred_check_branch
          %441 = sbr.rel (%p439) target = $region68
        $region67: #{resblock_forward.1} parent=59 // pred_region
          %p442 = scmp.lt.s32.totalorder %s27, 1
          %s443 = scalar_select %p442, %s27, 1
          %s444 = scalar_lea.vmem %s1, %s443
        $region68: #{resblock_forward.1} parent=59 // pred_fallthru
          _
      $region60: #{resblock_forward.1} parent=5 // pred_fallthru
        _
      %p445 = scmp.le.s32.totalorder 1, %s27
      %p446 = scmp.lt.s32.totalorder %s27, 3
      %p447 = pnand %p445, %p446
      %p448 = pneg %p447
      // Predicated region
      $region69: #{resblock_forward.1} parent=5 // pred_check
        _
      $region70: #{resblock_forward.1} parent=5 // pred_check_branch
        %450 = sbr.rel (%p447) target = $region72
      $region71: #{resblock_forward.1} parent=5 // pred_region
        %s451 = ssub.s32 %s27, 1
        %s452 = sand.u32 %s40, 1
        %s453 = scalar_lea.sflag [#allocation4], %s452
        %s454 = sand.u32 %s40, 1
        %s455 = smul.addr %s454, 256
        %s456 = scalar_lea.vmem [#allocation3], %s455
        // Predicated region
        $region73: #{resblock_forward.1} parent=71 // pred_check
          %p457 = pneg %p53
        $region74: #{resblock_forward.1} parent=71 // pred_check_branch
          %459 = sbr.rel (%p457) target = $region76
        $region75: #{resblock_forward.1} parent=71 // pred_region
          %460 = dma.done %s453, 4096
        $region76: #{resblock_forward.1} parent=71 // pred_fallthru
          _
        // Predicated region
        $region77: #{resblock_forward.1} parent=71 // pred_check
          %p461 = pneg %p142
        $region78: #{resblock_forward.1} parent=71 // pred_check_branch
          %463 = sbr.rel (%p461) target = $region80
        $region79: #{resblock_forward.1} parent=71 // pred_region
          %464 = dma.done [#allocation7], 9216
        $region80: #{resblock_forward.1} parent=71 // pred_fallthru
          _
        // Predicated region
        $region81: #{resblock_forward.1} parent=71 // pred_check
          %p465 = pneg %p268
        $region82: #{resblock_forward.1} parent=71 // pred_check_branch
          %467 = sbr.rel (%p465) target = $region84
        $region83: #{resblock_forward.1} parent=71 // pred_region
          %468 = dma.done [#allocation7], 9216
        $region84: #{resblock_forward.1} parent=71 // pred_fallthru
          _
        // Predicated region
        $region85: #{resblock_forward.1} parent=71 // pred_check
          %p469 = pneg %p310
        $region86: #{resblock_forward.1} parent=71 // pred_check_branch
          %471 = sbr.rel (%p469) target = $region88
        $region87: #{resblock_forward.1} parent=71 // pred_region
          %472 = dma.done [#allocation10], 2048
        $region88: #{resblock_forward.1} parent=71 // pred_fallthru
          _
        %s473 = sand.u32 %s40, 1
        %s474 = scalar_lea.sflag [#allocation4], %s473
        %s475 = sand.u32 %s40, 1
        %s476 = smul.addr %s475, 256
        %s477 = scalar_lea.vmem [#allocation3], %s476
        %p478 = pneg %p53
        %p479 = pneg %p50
        %p480 = scmp.lt.s32.totalorder %s32, 1
        %s481 = scalar_select %p480, %s32, 1
        %s482 = scalar_lea.vmem %s1, %s481
        %p483 = pneg %p79
        %p484 = pneg %p76
        %p485 = pneg %p100
        %p486 = pneg %p97
        %p487 = pneg %p121
        %p488 = pneg %p118
        %p489 = pneg %p142
        %p490 = pneg %p139
        %p491 = pneg %p163
        %p492 = pneg %p160
        %p493 = pneg %p184
        %p494 = pneg %p181
        %p495 = pneg %p205
        %p496 = pneg %p202
        %p497 = pneg %p226
        %p498 = pneg %p223
        %p499 = pneg %p247
        %p500 = pneg %p244
        %p501 = pneg %p268
        %p502 = pneg %p265
        %p503 = pneg %p289
        %p504 = pneg %p286
        %p505 = pneg %p310
        %p506 = pneg %p307
        %p507 = pneg %p336
        %p508 = pneg %p333
        %s509 = sand.u32 %s323, 1
        %s510 = scalar_lea.sflag [#allocation5], %s509
        %s511 = sand.u32 %s323, 1
        %s512 = smul.addr %s511, 256
        %s513 = scalar_lea.vmem [#allocation11], %s512
        %p514 = scmp.lt.s32.totalorder %s32, 1
        %s515 = scalar_select %p514, %s32, 1
        %s516 = scalar_lea.vmem %s1, %s515
        %v518 = vlaneseq
        %v519 = vshrl.u32 %v518, 7
        %v520 = vadd.s32 %v519, 8
        %v521 = vadd.s32 %v519, 16
        %v522 = vadd.s32 %v519, 24
        %v523 = vadd.s32 %v519, 32
        %v524 = vadd.s32 %v519, 40
        %v525 = vadd.s32 %v519, 48
        %v526 = vadd.s32 %v519, 56
        %v527 = vadd.s32 %v519, 64
        %v528 = vadd.s32 %v519, 72
        %v529 = vadd.s32 %v519, 80
        %v530 = vadd.s32 %v519, 88
        %v531 = vadd.s32 %v519, 96
        %v532 = vadd.s32 %v519, 104
        %v533 = vadd.s32 %v519, 112
        %v534 = vadd.s32 %v519, 120
        %v535 = vadd.s32 %v519, 128
        %v536 = vadd.s32 %v519, 136
        %v537 = vadd.s32 %v519, 144
        %v538 = vadd.s32 %v519, 152
        %v539 = vadd.s32 %v519, 160
        %v540 = vadd.s32 %v519, 168
        %v541 = vadd.s32 %v519, 176
        %v542 = vadd.s32 %v519, 184
        %v543 = vadd.s32 %v519, 192
        %v544 = vadd.s32 %v519, 200
        %v545 = vadd.s32 %v519, 208
        %v546 = vadd.s32 %v519, 216
        %v547 = vadd.s32 %v519, 224
        %v548 = vadd.s32 %v519, 232
        %v549 = vadd.s32 %v519, 240
        %v550 = vadd.s32 %v519, 248
        %vm551 = vcmp.lt.s32.totalorder %v519, 0
        %v552 = vsub.s32 0, %v519
        %v553 = vsel %vm551, %v552, %v519
        %v554 = vshrl.u32 %v553, 4
        %v555 = vand.u32 %v553, 15
        %v556 = vsub.s32 0, %v555
        %v557 = vsel %vm551, %v556, %v555
        %vm558 = vcmp.lt.s32.totalorder %v520, 0
        %v559 = vsub.s32 0, %v520
        %v560 = vsel %vm558, %v559, %v520
        %v561 = vshrl.u32 %v560, 4
        %v562 = vand.u32 %v560, 15
        %v563 = vsub.s32 0, %v562
        %v564 = vsel %vm558, %v563, %v562
        %vm565 = vcmp.lt.s32.totalorder %v521, 0
        %v566 = vsub.s32 0, %v521
        %v567 = vsel %vm565, %v566, %v521
        %v568 = vshrl.u32 %v567, 4
        %v569 = vand.u32 %v567, 15
        %v570 = vsub.s32 0, %v569
        %v571 = vsel %vm565, %v570, %v569
        %vm572 = vcmp.lt.s32.totalorder %v522, 0
        %v573 = vsub.s32 0, %v522
        %v574 = vsel %vm572, %v573, %v522
        %v575 = vshrl.u32 %v574, 4
        %v576 = vand.u32 %v574, 15
        %v577 = vsub.s32 0, %v576
        %v578 = vsel %vm572, %v577, %v576
        %vm579 = vcmp.lt.s32.totalorder %v523, 0
        %v580 = vsub.s32 0, %v523
        %v581 = vsel %vm579, %v580, %v523
        %v582 = vshrl.u32 %v581, 4
        %v583 = vand.u32 %v581, 15
        %v584 = vsub.s32 0, %v583
        %v585 = vsel %vm579, %v584, %v583
        %vm586 = vcmp.lt.s32.totalorder %v524, 0
        %v587 = vsub.s32 0, %v524
        %v588 = vsel %vm586, %v587, %v524
        %v589 = vshrl.u32 %v588, 4
        %v590 = vand.u32 %v588, 15
        %v591 = vsub.s32 0, %v590
        %v592 = vsel %vm586, %v591, %v590
        %vm593 = vcmp.lt.s32.totalorder %v525, 0
        %v594 = vsub.s32 0, %v525
        %v595 = vsel %vm593, %v594, %v525
        %v596 = vshrl.u32 %v595, 4
        %v597 = vand.u32 %v595, 15
        %v598 = vsub.s32 0, %v597
        %v599 = vsel %vm593, %v598, %v597
        %vm600 = vcmp.lt.s32.totalorder %v526, 0
        %v601 = vsub.s32 0, %v526
        %v602 = vsel %vm600, %v601, %v526
        %v603 = vshrl.u32 %v602, 4
        %v604 = vand.u32 %v602, 15
        %v605 = vsub.s32 0, %v604
        %v606 = vsel %vm600, %v605, %v604
        %vm607 = vcmp.lt.s32.totalorder %v527, 0
        %v608 = vsub.s32 0, %v527
        %v609 = vsel %vm607, %v608, %v527
        %v610 = vshrl.u32 %v609, 4
        %v611 = vand.u32 %v609, 15
        %v612 = vsub.s32 0, %v611
        %v613 = vsel %vm607, %v612, %v611
        %vm614 = vcmp.lt.s32.totalorder %v528, 0
        %v615 = vsub.s32 0, %v528
        %v616 = vsel %vm614, %v615, %v528
        %v617 = vshrl.u32 %v616, 4
        %v618 = vand.u32 %v616, 15
        %v619 = vsub.s32 0, %v618
        %v620 = vsel %vm614, %v619, %v618
        %vm621 = vcmp.lt.s32.totalorder %v529, 0
        %v622 = vsub.s32 0, %v529
        %v623 = vsel %vm621, %v622, %v529
        %v624 = vshrl.u32 %v623, 4
        %v625 = vand.u32 %v623, 15
        %v626 = vsub.s32 0, %v625
        %v627 = vsel %vm621, %v626, %v625
        %vm628 = vcmp.lt.s32.totalorder %v530, 0
        %v629 = vsub.s32 0, %v530
        %v630 = vsel %vm628, %v629, %v530
        %v631 = vshrl.u32 %v630, 4
        %v632 = vand.u32 %v630, 15
        %v633 = vsub.s32 0, %v632
        %v634 = vsel %vm628, %v633, %v632
        %vm635 = vcmp.lt.s32.totalorder %v531, 0
        %v636 = vsub.s32 0, %v531
        %v637 = vsel %vm635, %v636, %v531
        %v638 = vshrl.u32 %v637, 4
        %v639 = vand.u32 %v637, 15
        %v640 = vsub.s32 0, %v639
        %v641 = vsel %vm635, %v640, %v639
        %vm642 = vcmp.lt.s32.totalorder %v532, 0
        %v643 = vsub.s32 0, %v532
        %v644 = vsel %vm642, %v643, %v532
        %v645 = vshrl.u32 %v644, 4
        %v646 = vand.u32 %v644, 15
        %v647 = vsub.s32 0, %v646
        %v648 = vsel %vm642, %v647, %v646
        %vm649 = vcmp.lt.s32.totalorder %v533, 0
        %v650 = vsub.s32 0, %v533
        %v651 = vsel %vm649, %v650, %v533
        %v652 = vshrl.u32 %v651, 4
        %v653 = vand.u32 %v651, 15
        %v654 = vsub.s32 0, %v653
        %v655 = vsel %vm649, %v654, %v653
        %vm656 = vcmp.lt.s32.totalorder %v534, 0
        %v657 = vsub.s32 0, %v534
        %v658 = vsel %vm656, %v657, %v534
        %v659 = vshrl.u32 %v658, 4
        %v660 = vand.u32 %v658, 15
        %v661 = vsub.s32 0, %v660
        %v662 = vsel %vm656, %v661, %v660
        %vm663 = vcmp.lt.s32.totalorder %v535, 0
        %v664 = vsub.s32 0, %v535
        %v665 = vsel %vm663, %v664, %v535
        %v666 = vshrl.u32 %v665, 4
        %v667 = vand.u32 %v665, 15
        %v668 = vsub.s32 0, %v667
        %v669 = vsel %vm663, %v668, %v667
        %vm670 = vcmp.lt.s32.totalorder %v536, 0
        %v671 = vsub.s32 0, %v536
        %v672 = vsel %vm670, %v671, %v536
        %v673 = vshrl.u32 %v672, 4
        %v674 = vand.u32 %v672, 15
        %v675 = vsub.s32 0, %v674
        %v676 = vsel %vm670, %v675, %v674
        %vm677 = vcmp.lt.s32.totalorder %v537, 0
        %v678 = vsub.s32 0, %v537
        %v679 = vsel %vm677, %v678, %v537
        %v680 = vshrl.u32 %v679, 4
        %v681 = vand.u32 %v679, 15
        %v682 = vsub.s32 0, %v681
        %v683 = vsel %vm677, %v682, %v681
        %vm684 = vcmp.lt.s32.totalorder %v538, 0
        %v685 = vsub.s32 0, %v538
        %v686 = vsel %vm684, %v685, %v538
        %v687 = vshrl.u32 %v686, 4
        %v688 = vand.u32 %v686, 15
        %v689 = vsub.s32 0, %v688
        %v690 = vsel %vm684, %v689, %v688
        %vm691 = vcmp.lt.s32.totalorder %v539, 0
        %v692 = vsub.s32 0, %v539
        %v693 = vsel %vm691, %v692, %v539
        %v694 = vshrl.u32 %v693, 4
        %v695 = vand.u32 %v693, 15
        %v696 = vsub.s32 0, %v695
        %v697 = vsel %vm691, %v696, %v695
        %vm698 = vcmp.lt.s32.totalorder %v540, 0
        %v699 = vsub.s32 0, %v540
        %v700 = vsel %vm698, %v699, %v540
        %v701 = vshrl.u32 %v700, 4
        %v702 = vand.u32 %v700, 15
        %v703 = vsub.s32 0, %v702
        %v704 = vsel %vm698, %v703, %v702
        %vm705 = vcmp.lt.s32.totalorder %v541, 0
        %v706 = vsub.s32 0, %v541
        %v707 = vsel %vm705, %v706, %v541
        %v708 = vshrl.u32 %v707, 4
        %v709 = vand.u32 %v707, 15
        %v710 = vsub.s32 0, %v709
        %v711 = vsel %vm705, %v710, %v709
        %vm712 = vcmp.lt.s32.totalorder %v542, 0
        %v713 = vsub.s32 0, %v542
        %v714 = vsel %vm712, %v713, %v542
        %v715 = vshrl.u32 %v714, 4
        %v716 = vand.u32 %v714, 15
        %v717 = vsub.s32 0, %v716
        %v718 = vsel %vm712, %v717, %v716
        %vm719 = vcmp.lt.s32.totalorder %v543, 0
        %v720 = vsub.s32 0, %v543
        %v721 = vsel %vm719, %v720, %v543
        %v722 = vshrl.u32 %v721, 4
        %v723 = vand.u32 %v721, 15
        %v724 = vsub.s32 0, %v723
        %v725 = vsel %vm719, %v724, %v723
        %vm726 = vcmp.lt.s32.totalorder %v544, 0
        %v727 = vsub.s32 0, %v544
        %v728 = vsel %vm726, %v727, %v544
        %v729 = vshrl.u32 %v728, 4
        %v730 = vand.u32 %v728, 15
        %v731 = vsub.s32 0, %v730
        %v732 = vsel %vm726, %v731, %v730
        %vm733 = vcmp.lt.s32.totalorder %v545, 0
        %v734 = vsub.s32 0, %v545
        %v735 = vsel %vm733, %v734, %v545
        %v736 = vshrl.u32 %v735, 4
        %v737 = vand.u32 %v735, 15
        %v738 = vsub.s32 0, %v737
        %v739 = vsel %vm733, %v738, %v737
        %vm740 = vcmp.lt.s32.totalorder %v546, 0
        %v741 = vsub.s32 0, %v546
        %v742 = vsel %vm740, %v741, %v546
        %v743 = vshrl.u32 %v742, 4
        %v744 = vand.u32 %v742, 15
        %v745 = vsub.s32 0, %v744
        %v746 = vsel %vm740, %v745, %v744
        %vm747 = vcmp.lt.s32.totalorder %v547, 0
        %v748 = vsub.s32 0, %v547
        %v749 = vsel %vm747, %v748, %v547
        %v750 = vshrl.u32 %v749, 4
        %v751 = vand.u32 %v749, 15
        %v752 = vsub.s32 0, %v751
        %v753 = vsel %vm747, %v752, %v751
        %vm754 = vcmp.lt.s32.totalorder %v548, 0
        %v755 = vsub.s32 0, %v548
        %v756 = vsel %vm754, %v755, %v548
        %v757 = vshrl.u32 %v756, 4
        %v758 = vand.u32 %v756, 15
        %v759 = vsub.s32 0, %v758
        %v760 = vsel %vm754, %v759, %v758
        %vm761 = vcmp.lt.s32.totalorder %v549, 0
        %v762 = vsub.s32 0, %v549
        %v763 = vsel %vm761, %v762, %v549
        %v764 = vshrl.u32 %v763, 4
        %v765 = vand.u32 %v763, 15
        %v766 = vsub.s32 0, %v765
        %v767 = vsel %vm761, %v766, %v765
        %vm768 = vcmp.lt.s32.totalorder %v550, 0
        %v769 = vsub.s32 0, %v550
        %v770 = vsel %vm768, %v769, %v550
        %v771 = vshrl.u32 %v770, 4
        %v772 = vand.u32 %v770, 15
        %v773 = vsub.s32 0, %v772
        %v774 = vsel %vm768, %v773, %v772
        %vm775 = vcmp.ne.s32.totalorder %v557, 0
        %vm776 = vcmp.ne.s32.totalorder %v564, 0
        %vm777 = vcmp.ne.s32.totalorder %v571, 0
        %vm778 = vcmp.ne.s32.totalorder %v578, 0
        %vm779 = vcmp.ne.s32.totalorder %v585, 0
        %vm780 = vcmp.ne.s32.totalorder %v592, 0
        %vm781 = vcmp.ne.s32.totalorder %v599, 0
        %vm782 = vcmp.ne.s32.totalorder %v606, 0
        %vm783 = vcmp.ne.s32.totalorder %v613, 0
        %vm784 = vcmp.ne.s32.totalorder %v620, 0
        %vm785 = vcmp.ne.s32.totalorder %v627, 0
        %vm786 = vcmp.ne.s32.totalorder %v634, 0
        %vm787 = vcmp.ne.s32.totalorder %v641, 0
        %vm788 = vcmp.ne.s32.totalorder %v648, 0
        %vm789 = vcmp.ne.s32.totalorder %v655, 0
        %vm790 = vcmp.ne.s32.totalorder %v662, 0
        %vm791 = vcmp.ne.s32.totalorder %v669, 0
        %vm792 = vcmp.ne.s32.totalorder %v676, 0
        %vm793 = vcmp.ne.s32.totalorder %v683, 0
        %vm794 = vcmp.ne.s32.totalorder %v690, 0
        %vm795 = vcmp.ne.s32.totalorder %v697, 0
        %vm796 = vcmp.ne.s32.totalorder %v704, 0
        %vm797 = vcmp.ne.s32.totalorder %v711, 0
        %vm798 = vcmp.ne.s32.totalorder %v718, 0
        %vm799 = vcmp.ne.s32.totalorder %v725, 0
        %vm800 = vcmp.ne.s32.totalorder %v732, 0
        %vm801 = vcmp.ne.s32.totalorder %v739, 0
        %vm802 = vcmp.ne.s32.totalorder %v746, 0
        %vm803 = vcmp.ne.s32.totalorder %v753, 0
        %vm804 = vcmp.ne.s32.totalorder %v760, 0
        %vm805 = vcmp.ne.s32.totalorder %v767, 0
        %vm806 = vcmp.ne.s32.totalorder %v774, 0
        %vm807 = vcmp.lt.s32.totalorder %v557, 0
        %vm808 = vcmp.lt.s32.totalorder %v564, 0
        %vm809 = vcmp.lt.s32.totalorder %v571, 0
        %vm810 = vcmp.lt.s32.totalorder %v578, 0
        %vm811 = vcmp.lt.s32.totalorder %v585, 0
        %vm812 = vcmp.lt.s32.totalorder %v592, 0
        %vm813 = vcmp.lt.s32.totalorder %v599, 0
        %vm814 = vcmp.lt.s32.totalorder %v606, 0
        %vm815 = vcmp.lt.s32.totalorder %v613, 0
        %vm816 = vcmp.lt.s32.totalorder %v620, 0
        %vm817 = vcmp.lt.s32.totalorder %v627, 0
        %vm818 = vcmp.lt.s32.totalorder %v634, 0
        %vm819 = vcmp.lt.s32.totalorder %v641, 0
        %vm820 = vcmp.lt.s32.totalorder %v648, 0
        %vm821 = vcmp.lt.s32.totalorder %v655, 0
        %vm822 = vcmp.lt.s32.totalorder %v662, 0
        %vm823 = vcmp.lt.s32.totalorder %v669, 0
        %vm824 = vcmp.lt.s32.totalorder %v676, 0
        %vm825 = vcmp.lt.s32.totalorder %v683, 0
        %vm826 = vcmp.lt.s32.totalorder %v690, 0
        %vm827 = vcmp.lt.s32.totalorder %v697, 0
        %vm828 = vcmp.lt.s32.totalorder %v704, 0
        %vm829 = vcmp.lt.s32.totalorder %v711, 0
        %vm830 = vcmp.lt.s32.totalorder %v718, 0
        %vm831 = vcmp.lt.s32.totalorder %v725, 0
        %vm832 = vcmp.lt.s32.totalorder %v732, 0
        %vm833 = vcmp.lt.s32.totalorder %v739, 0
        %vm834 = vcmp.lt.s32.totalorder %v746, 0
        %vm835 = vcmp.lt.s32.totalorder %v753, 0
        %vm836 = vcmp.lt.s32.totalorder %v760, 0
        %vm837 = vcmp.lt.s32.totalorder %v767, 0
        %vm838 = vcmp.lt.s32.totalorder %v774, 0
        %vm839 = vmand %vm807, %vm775
        %vm840 = vmand %vm808, %vm776
        %vm841 = vmand %vm809, %vm777
        %vm842 = vmand %vm810, %vm778
        %vm843 = vmand %vm811, %vm779
        %vm844 = vmand %vm812, %vm780
        %vm845 = vmand %vm813, %vm781
        %vm846 = vmand %vm814, %vm782
        %vm847 = vmand %vm815, %vm783
        %vm848 = vmand %vm816, %vm784
        %vm849 = vmand %vm817, %vm785
        %vm850 = vmand %vm818, %vm786
        %vm851 = vmand %vm819, %vm787
        %vm852 = vmand %vm820, %vm788
        %vm853 = vmand %vm821, %vm789
        %vm854 = vmand %vm822, %vm790
        %vm855 = vmand %vm823, %vm791
        %vm856 = vmand %vm824, %vm792
        %vm857 = vmand %vm825, %vm793
        %vm858 = vmand %vm826, %vm794
        %vm859 = vmand %vm827, %vm795
        %vm860 = vmand %vm828, %vm796
        %vm861 = vmand %vm829, %vm797
        %vm862 = vmand %vm830, %vm798
        %vm863 = vmand %vm831, %vm799
        %vm864 = vmand %vm832, %vm800
        %vm865 = vmand %vm833, %vm801
        %vm866 = vmand %vm834, %vm802
        %vm867 = vmand %vm835, %vm803
        %vm868 = vmand %vm836, %vm804
        %vm869 = vmand %vm837, %vm805
        %vm870 = vmand %vm838, %vm806
        %v871 = vadd.s32 %v557, 16
        %v872 = vadd.s32 %v564, 16
        %v873 = vadd.s32 %v571, 16
        %v874 = vadd.s32 %v578, 16
        %v875 = vadd.s32 %v585, 16
        %v876 = vadd.s32 %v592, 16
        %v877 = vadd.s32 %v599, 16
        %v878 = vadd.s32 %v606, 16
        %v879 = vadd.s32 %v613, 16
        %v880 = vadd.s32 %v620, 16
        %v881 = vadd.s32 %v627, 16
        %v882 = vadd.s32 %v634, 16
        %v883 = vadd.s32 %v641, 16
        %v884 = vadd.s32 %v648, 16
        %v885 = vadd.s32 %v655, 16
        %v886 = vadd.s32 %v662, 16
        %v887 = vadd.s32 %v669, 16
        %v888 = vadd.s32 %v676, 16
        %v889 = vadd.s32 %v683, 16
        %v890 = vadd.s32 %v690, 16
        %v891 = vadd.s32 %v697, 16
        %v892 = vadd.s32 %v704, 16
        %v893 = vadd.s32 %v711, 16
        %v894 = vadd.s32 %v718, 16
        %v895 = vadd.s32 %v725, 16
        %v896 = vadd.s32 %v732, 16
        %v897 = vadd.s32 %v739, 16
        %v898 = vadd.s32 %v746, 16
        %v899 = vadd.s32 %v753, 16
        %v900 = vadd.s32 %v760, 16
        %v901 = vadd.s32 %v767, 16
        %v902 = vadd.s32 %v774, 16
        %v903 = vsel %vm839, %v871, %v557
        %v904 = vsel %vm840, %v872, %v564
        %v905 = vsel %vm841, %v873, %v571
        %v906 = vsel %vm842, %v874, %v578
        %v907 = vsel %vm843, %v875, %v585
        %v908 = vsel %vm844, %v876, %v592
        %v909 = vsel %vm845, %v877, %v599
        %v910 = vsel %vm846, %v878, %v606
        %v911 = vsel %vm847, %v879, %v613
        %v912 = vsel %vm848, %v880, %v620
        %v913 = vsel %vm849, %v881, %v627
        %v914 = vsel %vm850, %v882, %v634
        %v915 = vsel %vm851, %v883, %v641
        %v916 = vsel %vm852, %v884, %v648
        %v917 = vsel %vm853, %v885, %v655
        %v918 = vsel %vm854, %v886, %v662
        %v919 = vsel %vm855, %v887, %v669
        %v920 = vsel %vm856, %v888, %v676
        %v921 = vsel %vm857, %v889, %v683
        %v922 = vsel %vm858, %v890, %v690
        %v923 = vsel %vm859, %v891, %v697
        %v924 = vsel %vm860, %v892, %v704
        %v925 = vsel %vm861, %v893, %v711
        %v926 = vsel %vm862, %v894, %v718
        %v927 = vsel %vm863, %v895, %v725
        %v928 = vsel %vm864, %v896, %v732
        %v929 = vsel %vm865, %v897, %v739
        %v930 = vsel %vm866, %v898, %v746
        %v931 = vsel %vm867, %v899, %v753
        %v932 = vsel %vm868, %v900, %v760
        %v933 = vsel %vm869, %v901, %v767
        %v934 = vsel %vm870, %v902, %v774
        %vm935 = vcmp.ne.s32.totalorder %v903, 0
        %vm936 = vcmp.ne.s32.totalorder %v904, 0
        %vm937 = vcmp.ne.s32.totalorder %v905, 0
        %vm938 = vcmp.ne.s32.totalorder %v906, 0
        %vm939 = vcmp.ne.s32.totalorder %v907, 0
        %vm940 = vcmp.ne.s32.totalorder %v908, 0
        %vm941 = vcmp.ne.s32.totalorder %v909, 0
        %vm942 = vcmp.ne.s32.totalorder %v910, 0
        %vm943 = vcmp.ne.s32.totalorder %v911, 0
        %vm944 = vcmp.ne.s32.totalorder %v912, 0
        %vm945 = vcmp.ne.s32.totalorder %v913, 0
        %vm946 = vcmp.ne.s32.totalorder %v914, 0
        %vm947 = vcmp.ne.s32.totalorder %v915, 0
        %vm948 = vcmp.ne.s32.totalorder %v916, 0
        %vm949 = vcmp.ne.s32.totalorder %v917, 0
        %vm950 = vcmp.ne.s32.totalorder %v918, 0
        %vm951 = vcmp.ne.s32.totalorder %v919, 0
        %vm952 = vcmp.ne.s32.totalorder %v920, 0
        %vm953 = vcmp.ne.s32.totalorder %v921, 0
        %vm954 = vcmp.ne.s32.totalorder %v922, 0
        %vm955 = vcmp.ne.s32.totalorder %v923, 0
        %vm956 = vcmp.ne.s32.totalorder %v924, 0
        %vm957 = vcmp.ne.s32.totalorder %v925, 0
        %vm958 = vcmp.ne.s32.totalorder %v926, 0
        %vm959 = vcmp.ne.s32.totalorder %v927, 0
        %vm960 = vcmp.ne.s32.totalorder %v928, 0
        %vm961 = vcmp.ne.s32.totalorder %v929, 0
        %vm962 = vcmp.ne.s32.totalorder %v930, 0
        %vm963 = vcmp.ne.s32.totalorder %v931, 0
        %vm964 = vcmp.ne.s32.totalorder %v932, 0
        %vm965 = vcmp.ne.s32.totalorder %v933, 0
        %vm966 = vcmp.ne.s32.totalorder %v934, 0
        %v967 = vsel %vm935, 1, 0
        %v968 = vsel %vm936, 1, 0
        %v969 = vsel %vm937, 1, 0
        %v970 = vsel %vm938, 1, 0
        %v971 = vsel %vm939, 1, 0
        %v972 = vsel %vm940, 1, 0
        %v973 = vsel %vm941, 1, 0
        %v974 = vsel %vm942, 1, 0
        %v975 = vsel %vm943, 1, 0
        %v976 = vsel %vm944, 1, 0
        %v977 = vsel %vm945, 1, 0
        %v978 = vsel %vm946, 1, 0
        %v979 = vsel %vm947, 1, 0
        %v980 = vsel %vm948, 1, 0
        %v981 = vsel %vm949, 1, 0
        %v982 = vsel %vm950, 1, 0
        %v983 = vsel %vm951, 1, 0
        %v984 = vsel %vm952, 1, 0
        %v985 = vsel %vm953, 1, 0
        %v986 = vsel %vm954, 1, 0
        %v987 = vsel %vm955, 1, 0
        %v988 = vsel %vm956, 1, 0
        %v989 = vsel %vm957, 1, 0
        %v990 = vsel %vm958, 1, 0
        %v991 = vsel %vm959, 1, 0
        %v992 = vsel %vm960, 1, 0
        %v993 = vsel %vm961, 1, 0
        %v994 = vsel %vm962, 1, 0
        %v995 = vsel %vm963, 1, 0
        %v996 = vsel %vm964, 1, 0
        %v997 = vsel %vm965, 1, 0
        %v998 = vsel %vm966, 1, 0
        %v999 = vcvt.s32.f32 %v967
        %v1000 = vcvt.s32.f32 %v968
        %v1001 = vcvt.s32.f32 %v969
        %v1002 = vcvt.s32.f32 %v970
        %v1003 = vcvt.s32.f32 %v971
        %v1004 = vcvt.s32.f32 %v972
        %v1005 = vcvt.s32.f32 %v973
        %v1006 = vcvt.s32.f32 %v974
        %v1007 = vcvt.s32.f32 %v975
        %v1008 = vcvt.s32.f32 %v976
        %v1009 = vcvt.s32.f32 %v977
        %v1010 = vcvt.s32.f32 %v978
        %v1011 = vcvt.s32.f32 %v979
        %v1012 = vcvt.s32.f32 %v980
        %v1013 = vcvt.s32.f32 %v981
        %v1014 = vcvt.s32.f32 %v982
        %v1015 = vcvt.s32.f32 %v983
        %v1016 = vcvt.s32.f32 %v984
        %v1017 = vcvt.s32.f32 %v985
        %v1018 = vcvt.s32.f32 %v986
        %v1019 = vcvt.s32.f32 %v987
        %v1020 = vcvt.s32.f32 %v988
        %v1021 = vcvt.s32.f32 %v989
        %v1022 = vcvt.s32.f32 %v990
        %v1023 = vcvt.s32.f32 %v991
        %v1024 = vcvt.s32.f32 %v992
        %v1025 = vcvt.s32.f32 %v993
        %v1026 = vcvt.s32.f32 %v994
        %v1027 = vcvt.s32.f32 %v995
        %v1028 = vcvt.s32.f32 %v996
        %v1029 = vcvt.s32.f32 %v997
        %v1030 = vcvt.s32.f32 %v998
        %v1031 = vpack.c.bf16 %v1000, %v999
        %v1032 = vpack.c.bf16 %v1002, %v1001
        %v1033 = vpack.c.bf16 %v1004, %v1003
        %v1034 = vpack.c.bf16 %v1006, %v1005
        %v1035 = vpack.c.bf16 %v1008, %v1007
        %v1036 = vpack.c.bf16 %v1010, %v1009
        %v1037 = vpack.c.bf16 %v1012, %v1011
        %v1038 = vpack.c.bf16 %v1014, %v1013
        %v1039 = vpack.c.bf16 %v1016, %v1015
        %v1040 = vpack.c.bf16 %v1018, %v1017
        %v1041 = vpack.c.bf16 %v1020, %v1019
        %v1042 = vpack.c.bf16 %v1022, %v1021
        %v1043 = vpack.c.bf16 %v1024, %v1023
        %v1044 = vpack.c.bf16 %v1026, %v1025
        %v1045 = vpack.c.bf16 %v1028, %v1027
        %v1046 = vpack.c.bf16 %v1030, %v1029
        %vm1047 = vcmp.ne.s32.totalorder %v903, 15
        %vm1048 = vcmp.ne.s32.totalorder %v904, 15
        %vm1049 = vcmp.ne.s32.totalorder %v905, 15
        %vm1050 = vcmp.ne.s32.totalorder %v906, 15
        %vm1051 = vcmp.ne.s32.totalorder %v907, 15
        %vm1052 = vcmp.ne.s32.totalorder %v908, 15
        %vm1053 = vcmp.ne.s32.totalorder %v909, 15
        %vm1054 = vcmp.ne.s32.totalorder %v910, 15
        %vm1055 = vcmp.ne.s32.totalorder %v911, 15
        %vm1056 = vcmp.ne.s32.totalorder %v912, 15
        %vm1057 = vcmp.ne.s32.totalorder %v913, 15
        %vm1058 = vcmp.ne.s32.totalorder %v914, 15
        %vm1059 = vcmp.ne.s32.totalorder %v915, 15
        %vm1060 = vcmp.ne.s32.totalorder %v916, 15
        %vm1061 = vcmp.ne.s32.totalorder %v917, 15
        %vm1062 = vcmp.ne.s32.totalorder %v918, 15
        %vm1063 = vcmp.ne.s32.totalorder %v919, 15
        %vm1064 = vcmp.ne.s32.totalorder %v920, 15
        %vm1065 = vcmp.ne.s32.totalorder %v921, 15
        %vm1066 = vcmp.ne.s32.totalorder %v922, 15
        %vm1067 = vcmp.ne.s32.totalorder %v923, 15
        %vm1068 = vcmp.ne.s32.totalorder %v924, 15
        %vm1069 = vcmp.ne.s32.totalorder %v925, 15
        %vm1070 = vcmp.ne.s32.totalorder %v926, 15
        %vm1071 = vcmp.ne.s32.totalorder %v927, 15
        %vm1072 = vcmp.ne.s32.totalorder %v928, 15
        %vm1073 = vcmp.ne.s32.totalorder %v929, 15
        %vm1074 = vcmp.ne.s32.totalorder %v930, 15
        %vm1075 = vcmp.ne.s32.totalorder %v931, 15
        %vm1076 = vcmp.ne.s32.totalorder %v932, 15
        %vm1077 = vcmp.ne.s32.totalorder %v933, 15
        %vm1078 = vcmp.ne.s32.totalorder %v934, 15
        %v1079 = vsel %vm1047, 1, 0
        %v1080 = vsel %vm1048, 1, 0
        %v1081 = vsel %vm1049, 1, 0
        %v1082 = vsel %vm1050, 1, 0
        %v1083 = vsel %vm1051, 1, 0
        %v1084 = vsel %vm1052, 1, 0
        %v1085 = vsel %vm1053, 1, 0
        %v1086 = vsel %vm1054, 1, 0
        %v1087 = vsel %vm1055, 1, 0
        %v1088 = vsel %vm1056, 1, 0
        %v1089 = vsel %vm1057, 1, 0
        %v1090 = vsel %vm1058, 1, 0
        %v1091 = vsel %vm1059, 1, 0
        %v1092 = vsel %vm1060, 1, 0
        %v1093 = vsel %vm1061, 1, 0
        %v1094 = vsel %vm1062, 1, 0
        %v1095 = vsel %vm1063, 1, 0
        %v1096 = vsel %vm1064, 1, 0
        %v1097 = vsel %vm1065, 1, 0
        %v1098 = vsel %vm1066, 1, 0
        %v1099 = vsel %vm1067, 1, 0
        %v1100 = vsel %vm1068, 1, 0
        %v1101 = vsel %vm1069, 1, 0
        %v1102 = vsel %vm1070, 1, 0
        %v1103 = vsel %vm1071, 1, 0
        %v1104 = vsel %vm1072, 1, 0
        %v1105 = vsel %vm1073, 1, 0
        %v1106 = vsel %vm1074, 1, 0
        %v1107 = vsel %vm1075, 1, 0
        %v1108 = vsel %vm1076, 1, 0
        %v1109 = vsel %vm1077, 1, 0
        %v1110 = vsel %vm1078, 1, 0
        %v1111 = vcvt.s32.f32 %v1079
        %v1112 = vcvt.s32.f32 %v1080
        %v1113 = vcvt.s32.f32 %v1081
        %v1114 = vcvt.s32.f32 %v1082
        %v1115 = vcvt.s32.f32 %v1083
        %v1116 = vcvt.s32.f32 %v1084
        %v1117 = vcvt.s32.f32 %v1085
        %v1118 = vcvt.s32.f32 %v1086
        %v1119 = vcvt.s32.f32 %v1087
        %v1120 = vcvt.s32.f32 %v1088
        %v1121 = vcvt.s32.f32 %v1089
        %v1122 = vcvt.s32.f32 %v1090
        %v1123 = vcvt.s32.f32 %v1091
        %v1124 = vcvt.s32.f32 %v1092
        %v1125 = vcvt.s32.f32 %v1093
        %v1126 = vcvt.s32.f32 %v1094
        %v1127 = vcvt.s32.f32 %v1095
        %v1128 = vcvt.s32.f32 %v1096
        %v1129 = vcvt.s32.f32 %v1097
        %v1130 = vcvt.s32.f32 %v1098
        %v1131 = vcvt.s32.f32 %v1099
        %v1132 = vcvt.s32.f32 %v1100
        %v1133 = vcvt.s32.f32 %v1101
        %v1134 = vcvt.s32.f32 %v1102
        %v1135 = vcvt.s32.f32 %v1103
        %v1136 = vcvt.s32.f32 %v1104
        %v1137 = vcvt.s32.f32 %v1105
        %v1138 = vcvt.s32.f32 %v1106
        %v1139 = vcvt.s32.f32 %v1107
        %v1140 = vcvt.s32.f32 %v1108
        %v1141 = vcvt.s32.f32 %v1109
        %v1142 = vcvt.s32.f32 %v1110
        %v1143 = vpack.c.bf16 %v1112, %v1111
        %v1144 = vpack.c.bf16 %v1114, %v1113
        %v1145 = vpack.c.bf16 %v1116, %v1115
        %v1146 = vpack.c.bf16 %v1118, %v1117
        %v1147 = vpack.c.bf16 %v1120, %v1119
        %v1148 = vpack.c.bf16 %v1122, %v1121
        %v1149 = vpack.c.bf16 %v1124, %v1123
        %v1150 = vpack.c.bf16 %v1126, %v1125
        %v1151 = vpack.c.bf16 %v1128, %v1127
        %v1152 = vpack.c.bf16 %v1130, %v1129
        %v1153 = vpack.c.bf16 %v1132, %v1131
        %v1154 = vpack.c.bf16 %v1134, %v1133
        %v1155 = vpack.c.bf16 %v1136, %v1135
        %v1156 = vpack.c.bf16 %v1138, %v1137
        %v1157 = vpack.c.bf16 %v1140, %v1139
        %v1158 = vpack.c.bf16 %v1142, %v1141
        %v1159 = vld [vmem:[#allocation9] sm:$0xff]
        %v1160 = vld [vmem:[#allocation9 + $0x8] sm:$0xff]
        %v1161 = vld [vmem:[#allocation9 + $0x10] sm:$0xff]
        %v1162 = vld [vmem:[#allocation9 + $0x18] sm:$0xff]
        %v1163 = vld [vmem:[#allocation9 + $0x20] sm:$0xff]
        %v1164 = vld [vmem:[#allocation9 + $0x28] sm:$0xff]
        %v1165 = vld [vmem:[#allocation9 + $0x30] sm:$0xff]
        %v1166 = vld [vmem:[#allocation9 + $0x38] sm:$0xff]
        %v1167 = vld [vmem:[#allocation9 + $0x40] sm:$0xff]
        %v1168 = vld [vmem:[#allocation9 + $0x48] sm:$0xff]
        %v1169 = vld [vmem:[#allocation9 + $0x50] sm:$0xff]
        %v1170 = vld [vmem:[#allocation9 + $0x58] sm:$0xff]
        %v1171 = vld [vmem:[#allocation9 + $0x60] sm:$0xff]
        %v1172 = vld [vmem:[#allocation9 + $0x68] sm:$0xff]
        %v1173 = vld [vmem:[#allocation9 + $0x70] sm:$0xff]
        %v1174 = vld [vmem:[#allocation9 + $0x78] sm:$0xff]
        %1175 = vst [vmem:[#allocation2] sm:$0xff] 0
        %1176 = vst [vmem:[#allocation2 + $0x8] sm:$0xff] 0
        %1177 = vst [vmem:[#allocation2 + $0x90] sm:$0xff] 0
        %1178 = vst [vmem:[#allocation2 + $0x98] sm:$0xff] 0
        %v1179 = vld [vmem:[%s456] sm:$0xff]
        %v1180 = vld [vmem:[%s456 + $0x8] sm:$0xff]
        %v1181 = vld [vmem:[%s456 + $0x10] sm:$0xff]
        %v1182 = vld [vmem:[%s456 + $0x18] sm:$0xff]
        %v1183 = vld [vmem:[%s456 + $0x20] sm:$0xff]
        %v1184 = vld [vmem:[%s456 + $0x28] sm:$0xff]
        %v1185 = vld [vmem:[%s456 + $0x30] sm:$0xff]
        %v1186 = vld [vmem:[%s456 + $0x38] sm:$0xff]
        %v1187 = vld [vmem:[%s456 + $0x40] sm:$0xff]
        %v1188 = vld [vmem:[%s456 + $0x48] sm:$0xff]
        %v1189 = vld [vmem:[%s456 + $0x50] sm:$0xff]
        %v1190 = vld [vmem:[%s456 + $0x58] sm:$0xff]
        %v1191 = vld [vmem:[%s456 + $0x60] sm:$0xff]
        %v1192 = vld [vmem:[%s456 + $0x68] sm:$0xff]
        %v1193 = vld [vmem:[%s456 + $0x70] sm:$0xff]
        %v1194 = vld [vmem:[%s456 + $0x78] sm:$0xff]
        %v1195 = vld [vmem:[%s456 + $0x80] sm:$0xff]
        %v1196 = vld [vmem:[%s456 + $0x88] sm:$0xff]
        %v1197 = vld [vmem:[%s456 + $0x90] sm:$0xff]
        %v1198 = vld [vmem:[%s456 + $0x98] sm:$0xff]
        %v1199 = vld [vmem:[%s456 + $0xa0] sm:$0xff]
        %v1200 = vld [vmem:[%s456 + $0xa8] sm:$0xff]
        %v1201 = vld [vmem:[%s456 + $0xb0] sm:$0xff]
        %v1202 = vld [vmem:[%s456 + $0xb8] sm:$0xff]
        %v1203 = vld [vmem:[%s456 + $0xc0] sm:$0xff]
        %v1204 = vld [vmem:[%s456 + $0xc8] sm:$0xff]
        %v1205 = vld [vmem:[%s456 + $0xd0] sm:$0xff]
        %v1206 = vld [vmem:[%s456 + $0xd8] sm:$0xff]
        %v1207 = vld [vmem:[%s456 + $0xe0] sm:$0xff]
        %v1208 = vld [vmem:[%s456 + $0xe8] sm:$0xff]
        %v1209 = vld [vmem:[%s456 + $0xf0] sm:$0xff]
        %v1210 = vld [vmem:[%s456 + $0xf8] sm:$0xff]
        %v1211 = vld [vmem:[%s2] sm:$0x1]
        %v1212 = vld [vmem:[%s3] sm:$0x1]
        %v1213 = vadd.f32 %v1179, %v1180
        %v1214 = vadd.f32 %v1213, %v1181
        %v1215 = vadd.f32 %v1214, %v1182
        %v1216 = vadd.f32 %v1215, %v1183
        %v1217 = vadd.f32 %v1216, %v1184
        %v1218 = vadd.f32 %v1217, %v1185
        %v1219 = vadd.f32 %v1218, %v1186
        %v1220 = vadd.f32 %v1219, %v1187
        %v1221 = vadd.f32 %v1220, %v1188
        %v1222 = vadd.f32 %v1221, %v1189
        %v1223 = vadd.f32 %v1222, %v1190
        %v1224 = vadd.f32 %v1223, %v1191
        %v1225 = vadd.f32 %v1224, %v1192
        %v1226 = vadd.f32 %v1225, %v1193
        %v1227 = vadd.f32 %v1226, %v1194
        %v1228 = vadd.f32 %v1227, %v1195
        %v1229 = vadd.f32 %v1228, %v1196
        %v1230 = vadd.f32 %v1229, %v1197
        %v1231 = vadd.f32 %v1230, %v1198
        %v1232 = vadd.f32 %v1231, %v1199
        %v1233 = vadd.f32 %v1232, %v1200
        %v1234 = vadd.f32 %v1233, %v1201
        %v1235 = vadd.f32 %v1234, %v1202
        %v1236 = vadd.f32 %v1235, %v1203
        %v1237 = vadd.f32 %v1236, %v1204
        %v1238 = vadd.f32 %v1237, %v1205
        %v1239 = vadd.f32 %v1238, %v1206
        %v1240 = vadd.f32 %v1239, %v1207
        %v1241 = vadd.f32 %v1240, %v1208
        %v1242 = vadd.f32 %v1241, %v1209
        %v1243 = vadd.f32 %v1242, %v1210
        %v1244 = vrot.slane %v1243, 4
        %v1245 = vadd.f32 %v1243, %v1244
        %v1246 = vrot.slane %v1245, 2
        %v1247 = vadd.f32 %v1245, %v1246
        %v1248 = vrot.slane %v1247, 1
        %v1249 = vadd.f32 %v1247, %v1248
        %v1250 = vmul.f32 %v1179, %v1179
        %v1251 = vmul.f32 %v1180, %v1180
        %v1252 = vmul.f32 %v1181, %v1181
        %v1253 = vmul.f32 %v1182, %v1182
        %v1254 = vmul.f32 %v1183, %v1183
        %v1255 = vmul.f32 %v1184, %v1184
        %v1256 = vmul.f32 %v1185, %v1185
        %v1257 = vmul.f32 %v1186, %v1186
        %v1258 = vmul.f32 %v1187, %v1187
        %v1259 = vmul.f32 %v1188, %v1188
        %v1260 = vmul.f32 %v1189, %v1189
        %v1261 = vmul.f32 %v1190, %v1190
        %v1262 = vmul.f32 %v1191, %v1191
        %v1263 = vmul.f32 %v1192, %v1192
        %v1264 = vmul.f32 %v1193, %v1193
        %v1265 = vmul.f32 %v1194, %v1194
        %v1266 = vmul.f32 %v1195, %v1195
        %v1267 = vmul.f32 %v1196, %v1196
        %v1268 = vmul.f32 %v1197, %v1197
        %v1269 = vmul.f32 %v1198, %v1198
        %v1270 = vmul.f32 %v1199, %v1199
        %v1271 = vmul.f32 %v1200, %v1200
        %v1272 = vmul.f32 %v1201, %v1201
        %v1273 = vmul.f32 %v1202, %v1202
        %v1274 = vmul.f32 %v1203, %v1203
        %v1275 = vmul.f32 %v1204, %v1204
        %v1276 = vmul.f32 %v1205, %v1205
        %v1277 = vmul.f32 %v1206, %v1206
        %v1278 = vmul.f32 %v1207, %v1207
        %v1279 = vmul.f32 %v1208, %v1208
        %v1280 = vmul.f32 %v1209, %v1209
        %v1281 = vmul.f32 %v1210, %v1210
        %v1282 = vadd.f32 %v1250, %v1251
        %v1283 = vadd.f32 %v1282, %v1252
        %v1284 = vadd.f32 %v1283, %v1253
        %v1285 = vadd.f32 %v1284, %v1254
        %v1286 = vadd.f32 %v1285, %v1255
        %v1287 = vadd.f32 %v1286, %v1256
        %v1288 = vadd.f32 %v1287, %v1257
        %v1289 = vadd.f32 %v1288, %v1258
        %v1290 = vadd.f32 %v1289, %v1259
        %v1291 = vadd.f32 %v1290, %v1260
        %v1292 = vadd.f32 %v1291, %v1261
        %v1293 = vadd.f32 %v1292, %v1262
        %v1294 = vadd.f32 %v1293, %v1263
        %v1295 = vadd.f32 %v1294, %v1264
        %v1296 = vadd.f32 %v1295, %v1265
        %v1297 = vadd.f32 %v1296, %v1266
        %v1298 = vadd.f32 %v1297, %v1267
        %v1299 = vadd.f32 %v1298, %v1268
        %v1300 = vadd.f32 %v1299, %v1269
        %v1301 = vadd.f32 %v1300, %v1270
        %v1302 = vadd.f32 %v1301, %v1271
        %v1303 = vadd.f32 %v1302, %v1272
        %v1304 = vadd.f32 %v1303, %v1273
        %v1305 = vadd.f32 %v1304, %v1274
        %v1306 = vadd.f32 %v1305, %v1275
        %v1307 = vadd.f32 %v1306, %v1276
        %v1308 = vadd.f32 %v1307, %v1277
        %v1309 = vadd.f32 %v1308, %v1278
        %v1310 = vadd.f32 %v1309, %v1279
        %v1311 = vadd.f32 %v1310, %v1280
        %v1312 = vadd.f32 %v1311, %v1281
        %v1313 = vrot.slane %v1312, 4
        %v1314 = vadd.f32 %v1312, %v1313
        %v1315 = vrot.slane %v1314, 2
        %v1316 = vadd.f32 %v1314, %v1315
        %v1317 = vrot.slane %v1316, 1
        %v1318 = vadd.f32 %v1316, %v1317
        %vm1319 = vcmask 1040384
        %v1320 = vsel %vm1319, %v1249, %v1318
        %1321 = vmatprep.subr.mxu0 0.0
        %1322 = vmatpush1.msra.mxu0 %v1159
        %1323 = vmatprep.subr.mxu0 0.0
        %1324 = vmatpush1.msra.mxu0 %v1160
        %1325 = vmatprep.subr.mxu0 0.0
        %1326 = vmatpush1.msra.mxu0 %v1161
        %1327 = vmatprep.subr.mxu0 0.0
        %1328 = vmatpush1.msra.mxu0 %v1162
        %1329 = vmatprep.subr.mxu0 0.0
        %1330 = vmatpush1.msra.mxu0 %v1163
        %1331 = vmatprep.subr.mxu0 0.0
        %1332 = vmatpush1.msra.mxu0 %v1164
        %1333 = vmatprep.subr.mxu0 0.0
        %1334 = vmatpush1.msra.mxu0 %v1165
        %1335 = vmatprep.subr.mxu0 0.0
        %1336 = vmatpush1.msra.mxu0 %v1166
        %1337 = vmatprep.subr.mxu0 0.0
        %1338 = vmatpush1.msra.mxu0 %v1167
        %1339 = vmatprep.subr.mxu0 0.0
        %1340 = vmatpush1.msra.mxu0 %v1168
        %1341 = vmatprep.subr.mxu0 0.0
        %1342 = vmatpush1.msra.mxu0 %v1169
        %1343 = vmatprep.subr.mxu0 0.0
        %1344 = vmatpush1.msra.mxu0 %v1170
        %1345 = vmatprep.subr.mxu0 0.0
        %1346 = vmatpush1.msra.mxu0 %v1171
        %1347 = vmatprep.subr.mxu0 0.0
        %1348 = vmatpush1.msra.mxu0 %v1172
        %1349 = vmatprep.subr.mxu0 0.0
        %1350 = vmatpush1.msra.mxu0 %v1173
        %1351 = vmatprep.subr.mxu0 0.0
        %1352 = vmatpush1.msra.mxu0 %v1174
        %1353 = vmatprep.subr.mxu0 0.0
        %1354 = vmatpush1.msra.mxu0 0.0
        %1355 = vmatprep.subr.mxu0 0.0
        %1356 = vmatpush1.msra.mxu0 0.0
        %1357 = vmatprep.subr.mxu0 0.0
        %1358 = vmatpush1.msra.mxu0 0.0
        %1359 = vmatprep.subr.mxu0 0.0
        %1360 = vmatpush1.msra.mxu0 0.0
        %1361 = vmatprep.subr.mxu0 0.0
        %1362 = vmatpush1.msra.mxu0 0.0
        %1363 = vmatprep.subr.mxu0 0.0
        %1364 = vmatpush1.msra.mxu0 0.0
        %1365 = vmatprep.subr.mxu0 0.0
        %1366 = vmatpush1.msra.mxu0 0.0
        %1367 = vmatprep.subr.mxu0 0.0
        %1368 = vmatpush1.msra.mxu0 0.0
        %1369 = vmatprep.subr.mxu0 0.0
        %1370 = vmatpush1.msra.mxu0 0.0
        %1371 = vmatprep.subr.mxu0 0.0
        %1372 = vmatpush1.msra.mxu0 0.0
        %1373 = vmatprep.subr.mxu0 0.0
        %1374 = vmatpush1.msra.mxu0 0.0
        %1375 = vmatprep.subr.mxu0 0.0
        %1376 = vmatpush1.msra.mxu0 0.0
        %1377 = vmatprep.subr.mxu0 0.0
        %1378 = vmatpush1.msra.mxu0 0.0
        %1379 = vmatprep.subr.mxu0 0.0
        %1380 = vmatpush1.msra.mxu0 0.0
        %1381 = vmatprep.subr.mxu0 0.0
        %1382 = vmatpush1.msra.mxu0 0.0
        %1383 = vmatprep.subr.mxu0 0.0
        %1384 = vmatpush1.msra.mxu0 0.0
        %1385 = vmatprep.mubr.f32.mxu0 0.0
        %1386 = vmatmul.mubr.f32.gmra.mrb[0].mxu0 %v1320
        %v1387 = vpop.f32.mrb[0].mxu0
        %v1388 = vadd.f32 0.0, %v1387
        %v1389 = vpop.f32.mrb[0].mxu0
        %1390 = vdwg.mxu0
        %v1391 = vmul.f32 %v1388, 0.0009765625
        %v1392 = vmul.f32 %v1391, %v1391
        %v1394 = vrot.slane %v1392, 7
        %v1396 = vsub.f32 %v1391, %v1394
        %v1397 = vlaneseq
        %v1398 = vshrl.u32 %v1397, 7
        %v1399 = vsub.s32 0, %v1398
        %v1400 = vrot.slane %v1391, %v1399
        %v1401 = vsub.f32 %v1179, %v1400
        %v1402 = vsub.f32 %v1180, %v1400
        %v1403 = vsub.f32 %v1181, %v1400
        %v1404 = vsub.f32 %v1182, %v1400
        %v1405 = vsub.f32 %v1183, %v1400
        %v1406 = vsub.f32 %v1184, %v1400
        %v1407 = vsub.f32 %v1185, %v1400
        %v1408 = vsub.f32 %v1186, %v1400
        %v1409 = vsub.f32 %v1187, %v1400
        %v1410 = vsub.f32 %v1188, %v1400
        %v1411 = vsub.f32 %v1189, %v1400
        %v1412 = vsub.f32 %v1190, %v1400
        %v1413 = vsub.f32 %v1191, %v1400
        %v1414 = vsub.f32 %v1192, %v1400
        %v1415 = vsub.f32 %v1193, %v1400
        %v1416 = vsub.f32 %v1194, %v1400
        %v1417 = vsub.f32 %v1195, %v1400
        %v1418 = vsub.f32 %v1196, %v1400
        %v1419 = vsub.f32 %v1197, %v1400
        %v1420 = vsub.f32 %v1198, %v1400
        %v1421 = vsub.f32 %v1199, %v1400
        %v1422 = vsub.f32 %v1200, %v1400
        %v1423 = vsub.f32 %v1201, %v1400
        %v1424 = vsub.f32 %v1202, %v1400
        %v1425 = vsub.f32 %v1203, %v1400
        %v1426 = vsub.f32 %v1204, %v1400
        %v1427 = vsub.f32 %v1205, %v1400
        %v1428 = vsub.f32 %v1206, %v1400
        %v1429 = vsub.f32 %v1207, %v1400
        %v1430 = vsub.f32 %v1208, %v1400
        %v1431 = vsub.f32 %v1209, %v1400
        %v1432 = vsub.f32 %v1210, %v1400
        %v1433 = vadd.f32 %v1396, 1e-05
        %v1434 = vrsqrt.pop %v1433
        %v1435 = vlaneseq
        %v1436 = vshrl.u32 %v1435, 7
        %v1437 = vsub.s32 1, %v1436
        %v1438 = vrot.slane %v1434, %v1437
        %v1439 = vmul.f32 %v1401, %v1438
        %v1440 = vmul.f32 %v1402, %v1438
        %v1441 = vmul.f32 %v1403, %v1438
        %v1442 = vmul.f32 %v1404, %v1438
        %v1443 = vmul.f32 %v1405, %v1438
        %v1444 = vmul.f32 %v1406, %v1438
        %v1445 = vmul.f32 %v1407, %v1438
        %v1446 = vmul.f32 %v1408, %v1438
        %v1447 = vmul.f32 %v1409, %v1438
        %v1448 = vmul.f32 %v1410, %v1438
        %v1449 = vmul.f32 %v1411, %v1438
        %v1450 = vmul.f32 %v1412, %v1438
        %v1451 = vmul.f32 %v1413, %v1438
        %v1452 = vmul.f32 %v1414, %v1438
        %v1453 = vmul.f32 %v1415, %v1438
        %v1454 = vmul.f32 %v1416, %v1438
        %v1455 = vmul.f32 %v1417, %v1438
        %v1456 = vmul.f32 %v1418, %v1438
        %v1457 = vmul.f32 %v1419, %v1438
        %v1458 = vmul.f32 %v1420, %v1438
        %v1459 = vmul.f32 %v1421, %v1438
        %v1460 = vmul.f32 %v1422, %v1438
        %v1461 = vmul.f32 %v1423, %v1438
        %v1462 = vmul.f32 %v1424, %v1438
        %v1463 = vmul.f32 %v1425, %v1438
        %v1464 = vmul.f32 %v1426, %v1438
        %v1465 = vmul.f32 %v1427, %v1438
        %v1466 = vmul.f32 %v1428, %v1438
        %v1467 = vmul.f32 %v1429, %v1438
        %v1468 = vmul.f32 %v1430, %v1438
        %v1469 = vmul.f32 %v1431, %v1438
        %v1470 = vmul.f32 %v1432, %v1438
        %v1472 = vlaneseq
        %v1473 = vshrl.u32 %v1472, 7
        %v1474 = vsub.s32 0, %v1473
        %v1475 = vrot.slane %v1211, %v1474
        %v1477 = vmul.f32 %v1439, %v1475
        %v1478 = vmul.f32 %v1440, %v1475
        %v1479 = vmul.f32 %v1441, %v1475
        %v1480 = vmul.f32 %v1442, %v1475
        %v1481 = vmul.f32 %v1443, %v1475
        %v1482 = vmul.f32 %v1444, %v1475
        %v1483 = vmul.f32 %v1445, %v1475
        %v1484 = vmul.f32 %v1446, %v1475
        %v1485 = vmul.f32 %v1447, %v1475
        %v1486 = vmul.f32 %v1448, %v1475
        %v1487 = vmul.f32 %v1449, %v1475
        %v1488 = vmul.f32 %v1450, %v1475
        %v1489 = vmul.f32 %v1451, %v1475
        %v1490 = vmul.f32 %v1452, %v1475
        %v1491 = vmul.f32 %v1453, %v1475
        %v1492 = vmul.f32 %v1454, %v1475
        %v1493 = vmul.f32 %v1455, %v1475
        %v1494 = vmul.f32 %v1456, %v1475
        %v1495 = vmul.f32 %v1457, %v1475
        %v1496 = vmul.f32 %v1458, %v1475
        %v1497 = vmul.f32 %v1459, %v1475
        %v1498 = vmul.f32 %v1460, %v1475
        %v1499 = vmul.f32 %v1461, %v1475
        %v1500 = vmul.f32 %v1462, %v1475
        %v1501 = vmul.f32 %v1463, %v1475
        %v1502 = vmul.f32 %v1464, %v1475
        %v1503 = vmul.f32 %v1465, %v1475
        %v1504 = vmul.f32 %v1466, %v1475
        %v1505 = vmul.f32 %v1467, %v1475
        %v1506 = vmul.f32 %v1468, %v1475
        %v1507 = vmul.f32 %v1469, %v1475
        %v1508 = vmul.f32 %v1470, %v1475
        %v1510 = vlaneseq
        %v1511 = vshrl.u32 %v1510, 7
        %v1512 = vsub.s32 0, %v1511
        %v1513 = vrot.slane %v1212, %v1512
        %v1515 = vadd.f32 %v1477, %v1513
        %v1516 = vadd.f32 %v1478, %v1513
        %v1517 = vadd.f32 %v1479, %v1513
        %v1518 = vadd.f32 %v1480, %v1513
        %v1519 = vadd.f32 %v1481, %v1513
        %v1520 = vadd.f32 %v1482, %v1513
        %v1521 = vadd.f32 %v1483, %v1513
        %v1522 = vadd.f32 %v1484, %v1513
        %v1523 = vadd.f32 %v1485, %v1513
        %v1524 = vadd.f32 %v1486, %v1513
        %v1525 = vadd.f32 %v1487, %v1513
        %v1526 = vadd.f32 %v1488, %v1513
        %v1527 = vadd.f32 %v1489, %v1513
        %v1528 = vadd.f32 %v1490, %v1513
        %v1529 = vadd.f32 %v1491, %v1513
        %v1530 = vadd.f32 %v1492, %v1513
        %v1531 = vadd.f32 %v1493, %v1513
        %v1532 = vadd.f32 %v1494, %v1513
        %v1533 = vadd.f32 %v1495, %v1513
        %v1534 = vadd.f32 %v1496, %v1513
        %v1535 = vadd.f32 %v1497, %v1513
        %v1536 = vadd.f32 %v1498, %v1513
        %v1537 = vadd.f32 %v1499, %v1513
        %v1538 = vadd.f32 %v1500, %v1513
        %v1539 = vadd.f32 %v1501, %v1513
        %v1540 = vadd.f32 %v1502, %v1513
        %v1541 = vadd.f32 %v1503, %v1513
        %v1542 = vadd.f32 %v1504, %v1513
        %v1543 = vadd.f32 %v1505, %v1513
        %v1544 = vadd.f32 %v1506, %v1513
        %v1545 = vadd.f32 %v1507, %v1513
        %v1546 = vadd.f32 %v1508, %v1513
        %v1547 = vxor.u32 %v1515, 2147483648
        %v1548 = vxor.u32 %v1516, 2147483648
        %v1549 = vxor.u32 %v1517, 2147483648
        %v1550 = vxor.u32 %v1518, 2147483648
        %v1551 = vxor.u32 %v1519, 2147483648
        %v1552 = vxor.u32 %v1520, 2147483648
        %v1553 = vxor.u32 %v1521, 2147483648
        %v1554 = vxor.u32 %v1522, 2147483648
        %v1555 = vxor.u32 %v1523, 2147483648
        %v1556 = vxor.u32 %v1524, 2147483648
        %v1557 = vxor.u32 %v1525, 2147483648
        %v1558 = vxor.u32 %v1526, 2147483648
        %v1559 = vxor.u32 %v1527, 2147483648
        %v1560 = vxor.u32 %v1528, 2147483648
        %v1561 = vxor.u32 %v1529, 2147483648
        %v1562 = vxor.u32 %v1530, 2147483648
        %v1563 = vxor.u32 %v1531, 2147483648
        %v1564 = vxor.u32 %v1532, 2147483648
        %v1565 = vxor.u32 %v1533, 2147483648
        %v1566 = vxor.u32 %v1534, 2147483648
        %v1567 = vxor.u32 %v1535, 2147483648
        %v1568 = vxor.u32 %v1536, 2147483648
        %v1569 = vxor.u32 %v1537, 2147483648
        %v1570 = vxor.u32 %v1538, 2147483648
        %v1571 = vxor.u32 %v1539, 2147483648
        %v1572 = vxor.u32 %v1540, 2147483648
        %v1573 = vxor.u32 %v1541, 2147483648
        %v1574 = vxor.u32 %v1542, 2147483648
        %v1575 = vxor.u32 %v1543, 2147483648
        %v1576 = vxor.u32 %v1544, 2147483648
        %v1577 = vxor.u32 %v1545, 2147483648
        %v1578 = vxor.u32 %v1546, 2147483648
        %v1579 = vmul.f32 %v1547, 1.442695
        %v1580 = vpow.pop %v1579
        %v1581 = vmul.f32 %v1548, 1.442695
        %v1582 = vpow.pop %v1581
        %v1583 = vmul.f32 %v1549, 1.442695
        %v1584 = vpow.pop %v1583
        %v1585 = vmul.f32 %v1550, 1.442695
        %v1586 = vpow.pop %v1585
        %v1587 = vmul.f32 %v1551, 1.442695
        %v1588 = vpow.pop %v1587
        %v1589 = vmul.f32 %v1552, 1.442695
        %v1590 = vpow.pop %v1589
        %v1591 = vmul.f32 %v1553, 1.442695
        %v1592 = vpow.pop %v1591
        %v1593 = vmul.f32 %v1554, 1.442695
        %v1594 = vpow.pop %v1593
        %v1595 = vmul.f32 %v1555, 1.442695
        %v1596 = vpow.pop %v1595
        %v1597 = vmul.f32 %v1556, 1.442695
        %v1598 = vpow.pop %v1597
        %v1599 = vmul.f32 %v1557, 1.442695
        %v1600 = vpow.pop %v1599
        %v1601 = vmul.f32 %v1558, 1.442695
        %v1602 = vpow.pop %v1601
        %v1603 = vmul.f32 %v1559, 1.442695
        %v1604 = vpow.pop %v1603
        %v1605 = vmul.f32 %v1560, 1.442695
        %v1606 = vpow.pop %v1605
        %v1607 = vmul.f32 %v1561, 1.442695
        %v1608 = vpow.pop %v1607
        %v1609 = vmul.f32 %v1562, 1.442695
        %v1610 = vpow.pop %v1609
        %v1611 = vmul.f32 %v1563, 1.442695
        %v1612 = vpow.pop %v1611
        %v1613 = vmul.f32 %v1564, 1.442695
        %v1614 = vpow.pop %v1613
        %v1615 = vmul.f32 %v1565, 1.442695
        %v1616 = vpow.pop %v1615
        %v1617 = vmul.f32 %v1566, 1.442695
        %v1618 = vpow.pop %v1617
        %v1619 = vmul.f32 %v1567, 1.442695
        %v1620 = vpow.pop %v1619
        %v1621 = vmul.f32 %v1568, 1.442695
        %v1622 = vpow.pop %v1621
        %v1623 = vmul.f32 %v1569, 1.442695
        %v1624 = vpow.pop %v1623
        %v1625 = vmul.f32 %v1570, 1.442695
        %v1626 = vpow.pop %v1625
        %v1627 = vmul.f32 %v1571, 1.442695
        %v1628 = vpow.pop %v1627
        %v1629 = vmul.f32 %v1572, 1.442695
        %v1630 = vpow.pop %v1629
        %v1631 = vmul.f32 %v1573, 1.442695
        %v1632 = vpow.pop %v1631
        %v1633 = vmul.f32 %v1574, 1.442695
        %v1634 = vpow.pop %v1633
        %v1635 = vmul.f32 %v1575, 1.442695
        %v1636 = vpow.pop %v1635
        %v1637 = vmul.f32 %v1576, 1.442695
        %v1638 = vpow.pop %v1637
        %v1639 = vmul.f32 %v1577, 1.442695
        %v1640 = vpow.pop %v1639
        %v1641 = vmul.f32 %v1578, 1.442695
        %v1642 = vpow.pop %v1641
        %v1643 = vadd.f32 %v1580, 1.0
        %v1644 = vadd.f32 %v1582, 1.0
        %v1645 = vadd.f32 %v1584, 1.0
        %v1646 = vadd.f32 %v1586, 1.0
        %v1647 = vadd.f32 %v1588, 1.0
        %v1648 = vadd.f32 %v1590, 1.0
        %v1649 = vadd.f32 %v1592, 1.0
        %v1650 = vadd.f32 %v1594, 1.0
        %v1651 = vadd.f32 %v1596, 1.0
        %v1652 = vadd.f32 %v1598, 1.0
        %v1653 = vadd.f32 %v1600, 1.0
        %v1654 = vadd.f32 %v1602, 1.0
        %v1655 = vadd.f32 %v1604, 1.0
        %v1656 = vadd.f32 %v1606, 1.0
        %v1657 = vadd.f32 %v1608, 1.0
        %v1658 = vadd.f32 %v1610, 1.0
        %v1659 = vadd.f32 %v1612, 1.0
        %v1660 = vadd.f32 %v1614, 1.0
        %v1661 = vadd.f32 %v1616, 1.0
        %v1662 = vadd.f32 %v1618, 1.0
        %v1663 = vadd.f32 %v1620, 1.0
        %v1664 = vadd.f32 %v1622, 1.0
        %v1665 = vadd.f32 %v1624, 1.0
        %v1666 = vadd.f32 %v1626, 1.0
        %v1667 = vadd.f32 %v1628, 1.0
        %v1668 = vadd.f32 %v1630, 1.0
        %v1669 = vadd.f32 %v1632, 1.0
        %v1670 = vadd.f32 %v1634, 1.0
        %v1671 = vadd.f32 %v1636, 1.0
        %v1672 = vadd.f32 %v1638, 1.0
        %v1673 = vadd.f32 %v1640, 1.0
        %v1674 = vadd.f32 %v1642, 1.0
        %v1675 = vrcp.pop %v1643
        %v1676 = vmul.f32 1.0, %v1675
        %v1677 = vrcp.pop %v1644
        %v1678 = vmul.f32 1.0, %v1677
        %v1679 = vrcp.pop %v1645
        %v1680 = vmul.f32 1.0, %v1679
        %v1681 = vrcp.pop %v1646
        %v1682 = vmul.f32 1.0, %v1681
        %v1683 = vrcp.pop %v1647
        %v1684 = vmul.f32 1.0, %v1683
        %v1685 = vrcp.pop %v1648
        %v1686 = vmul.f32 1.0, %v1685
        %v1687 = vrcp.pop %v1649
        %v1688 = vmul.f32 1.0, %v1687
        %v1689 = vrcp.pop %v1650
        %v1690 = vmul.f32 1.0, %v1689
        %v1691 = vrcp.pop %v1651
        %v1692 = vmul.f32 1.0, %v1691
        %v1693 = vrcp.pop %v1652
        %v1694 = vmul.f32 1.0, %v1693
        %v1695 = vrcp.pop %v1653
        %v1696 = vmul.f32 1.0, %v1695
        %v1697 = vrcp.pop %v1654
        %v1698 = vmul.f32 1.0, %v1697
        %v1699 = vrcp.pop %v1655
        %v1700 = vmul.f32 1.0, %v1699
        %v1701 = vrcp.pop %v1656
        %v1702 = vmul.f32 1.0, %v1701
        %v1703 = vrcp.pop %v1657
        %v1704 = vmul.f32 1.0, %v1703
        %v1705 = vrcp.pop %v1658
        %v1706 = vmul.f32 1.0, %v1705
        %v1707 = vrcp.pop %v1659
        %v1708 = vmul.f32 1.0, %v1707
        %v1709 = vrcp.pop %v1660
        %v1710 = vmul.f32 1.0, %v1709
        %v1711 = vrcp.pop %v1661
        %v1712 = vmul.f32 1.0, %v1711
        %v1713 = vrcp.pop %v1662
        %v1714 = vmul.f32 1.0, %v1713
        %v1715 = vrcp.pop %v1663
        %v1716 = vmul.f32 1.0, %v1715
        %v1717 = vrcp.pop %v1664
        %v1718 = vmul.f32 1.0, %v1717
        %v1719 = vrcp.pop %v1665
        %v1720 = vmul.f32 1.0, %v1719
        %v1721 = vrcp.pop %v1666
        %v1722 = vmul.f32 1.0, %v1721
        %v1723 = vrcp.pop %v1667
        %v1724 = vmul.f32 1.0, %v1723
        %v1725 = vrcp.pop %v1668
        %v1726 = vmul.f32 1.0, %v1725
        %v1727 = vrcp.pop %v1669
        %v1728 = vmul.f32 1.0, %v1727
        %v1729 = vrcp.pop %v1670
        %v1730 = vmul.f32 1.0, %v1729
        %v1731 = vrcp.pop %v1671
        %v1732 = vmul.f32 1.0, %v1731
        %v1733 = vrcp.pop %v1672
        %v1734 = vmul.f32 1.0, %v1733
        %v1735 = vrcp.pop %v1673
        %v1736 = vmul.f32 1.0, %v1735
        %v1737 = vrcp.pop %v1674
        %v1738 = vmul.f32 1.0, %v1737
        %v1739 = vmul.f32 %v1515, %v1676
        %v1740 = vmul.f32 %v1516, %v1678
        %v1741 = vmul.f32 %v1517, %v1680
        %v1742 = vmul.f32 %v1518, %v1682
        %v1743 = vmul.f32 %v1519, %v1684
        %v1744 = vmul.f32 %v1520, %v1686
        %v1745 = vmul.f32 %v1521, %v1688
        %v1746 = vmul.f32 %v1522, %v1690
        %v1747 = vmul.f32 %v1523, %v1692
        %v1748 = vmul.f32 %v1524, %v1694
        %v1749 = vmul.f32 %v1525, %v1696
        %v1750 = vmul.f32 %v1526, %v1698
        %v1751 = vmul.f32 %v1527, %v1700
        %v1752 = vmul.f32 %v1528, %v1702
        %v1753 = vmul.f32 %v1529, %v1704
        %v1754 = vmul.f32 %v1530, %v1706
        %v1755 = vmul.f32 %v1531, %v1708
        %v1756 = vmul.f32 %v1532, %v1710
        %v1757 = vmul.f32 %v1533, %v1712
        %v1758 = vmul.f32 %v1534, %v1714
        %v1759 = vmul.f32 %v1535, %v1716
        %v1760 = vmul.f32 %v1536, %v1718
        %v1761 = vmul.f32 %v1537, %v1720
        %v1762 = vmul.f32 %v1538, %v1722
        %v1763 = vmul.f32 %v1539, %v1724
        %v1764 = vmul.f32 %v1540, %v1726
        %v1765 = vmul.f32 %v1541, %v1728
        %v1766 = vmul.f32 %v1542, %v1730
        %v1767 = vmul.f32 %v1543, %v1732
        %v1768 = vmul.f32 %v1544, %v1734
        %v1769 = vmul.f32 %v1545, %v1736
        %v1770 = vmul.f32 %v1546, %v1738
        %v1771 = vld [vmem:[%s5] sm:$0x1]
        %v1772 = vpack.c.bf16 %v1740, %v1739
        %v1773 = vpack.c.bf16 %v1742, %v1741
        %v1774 = vpack.c.bf16 %v1744, %v1743
        %v1775 = vpack.c.bf16 %v1746, %v1745
        %v1776 = vpack.c.bf16 %v1748, %v1747
        %v1777 = vpack.c.bf16 %v1750, %v1749
        %v1778 = vpack.c.bf16 %v1752, %v1751
        %v1779 = vpack.c.bf16 %v1754, %v1753
        %v1780 = vpack.c.bf16 %v1756, %v1755
        %v1781 = vpack.c.bf16 %v1758, %v1757
        %v1782 = vpack.c.bf16 %v1760, %v1759
        %v1783 = vpack.c.bf16 %v1762, %v1761
        %v1784 = vpack.c.bf16 %v1764, %v1763
        %v1785 = vpack.c.bf16 %v1766, %v1765
        %v1786 = vpack.c.bf16 %v1768, %v1767
        %v1787 = vpack.c.bf16 %v1770, %v1769
        %1788 = vst [vmem:[#allocation2 + $0x10] sm:$0xff] %v1772
        %1789 = vst [vmem:[#allocation2 + $0x18] sm:$0xff] %v1773
        %1790 = vst [vmem:[#allocation2 + $0x20] sm:$0xff] %v1774
        %1791 = vst [vmem:[#allocation2 + $0x28] sm:$0xff] %v1775
        %1792 = vst [vmem:[#allocation2 + $0x30] sm:$0xff] %v1776
        %1793 = vst [vmem:[#allocation2 + $0x38] sm:$0xff] %v1777
        %1794 = vst [vmem:[#allocation2 + $0x40] sm:$0xff] %v1778
        %1795 = vst [vmem:[#allocation2 + $0x48] sm:$0xff] %v1779
        %1796 = vst [vmem:[#allocation2 + $0x50] sm:$0xff] %v1780
        %1797 = vst [vmem:[#allocation2 + $0x58] sm:$0xff] %v1781
        %1798 = vst [vmem:[#allocation2 + $0x60] sm:$0xff] %v1782
        %1799 = vst [vmem:[#allocation2 + $0x68] sm:$0xff] %v1783
        %1800 = vst [vmem:[#allocation2 + $0x70] sm:$0xff] %v1784
        %1801 = vst [vmem:[#allocation2 + $0x78] sm:$0xff] %v1785
        %1802 = vst [vmem:[#allocation2 + $0x80] sm:$0xff] %v1786
        %1803 = vst [vmem:[#allocation2 + $0x88] sm:$0xff] %v1787
        %v1804 = vld [vmem:[#allocation2] sm:$0x80]
        %v1805 = vld [vmem:[#allocation2 + $0x8] sm:$0xff]
        %v1806 = vld [vmem:[#allocation2 + $0x10] sm:$0xff]
        %v1807 = vld [vmem:[#allocation2 + $0x18] sm:$0xff]
        %v1808 = vld [vmem:[#allocation2 + $0x20] sm:$0xff]
        %v1809 = vld [vmem:[#allocation2 + $0x28] sm:$0xff]
        %v1810 = vld [vmem:[#allocation2 + $0x30] sm:$0xff]
        %v1811 = vld [vmem:[#allocation2 + $0x38] sm:$0xff]
        %v1812 = vld [vmem:[#allocation2 + $0x40] sm:$0xff]
        %v1813 = vld [vmem:[#allocation2 + $0x48] sm:$0xff]
        %v1814 = vld [vmem:[#allocation2 + $0x50] sm:$0xff]
        %v1815 = vld [vmem:[#allocation2 + $0x58] sm:$0xff]
        %v1816 = vld [vmem:[#allocation2 + $0x60] sm:$0xff]
        %v1817 = vld [vmem:[#allocation2 + $0x68] sm:$0xff]
        %v1818 = vld [vmem:[#allocation2 + $0x70] sm:$0xff]
        %v1819 = vld [vmem:[#allocation2 + $0x78] sm:$0xff]
        %v1820 = vld [vmem:[#allocation2 + $0x80] sm:$0xff]
        %vm1821 = vsmask.f32 7424
        %v1823 = vshll.u32 %v1031, 16
        %v1825 = vrot.slane %v1823, 1
        %v1826 = vshrl.u32 %v1031, 16
        %v1828 = vor.u32 %v1826, %v1825
        %v1830 = vshll.u32 %v1032, 16
        %v1832 = vrot.slane %v1830, 1
        %v1833 = vsel %vm1821, %v1828, %v1832
        %v1834 = vshrl.u32 %v1032, 16
        %v1836 = vor.u32 %v1834, %v1832
        %v1838 = vshll.u32 %v1033, 16
        %v1840 = vrot.slane %v1838, 1
        %v1841 = vsel %vm1821, %v1836, %v1840
        %v1842 = vshrl.u32 %v1033, 16
        %v1844 = vor.u32 %v1842, %v1840
        %v1846 = vshll.u32 %v1034, 16
        %v1848 = vrot.slane %v1846, 1
        %v1849 = vsel %vm1821, %v1844, %v1848
        %v1850 = vshrl.u32 %v1034, 16
        %v1852 = vor.u32 %v1850, %v1848
        %v1854 = vshll.u32 %v1035, 16
        %v1856 = vrot.slane %v1854, 1
        %v1857 = vsel %vm1821, %v1852, %v1856
        %v1858 = vshrl.u32 %v1035, 16
        %v1860 = vor.u32 %v1858, %v1856
        %v1862 = vshll.u32 %v1036, 16
        %v1864 = vrot.slane %v1862, 1
        %v1865 = vsel %vm1821, %v1860, %v1864
        %v1866 = vshrl.u32 %v1036, 16
        %v1868 = vor.u32 %v1866, %v1864
        %v1870 = vshll.u32 %v1037, 16
        %v1872 = vrot.slane %v1870, 1
        %v1873 = vsel %vm1821, %v1868, %v1872
        %v1874 = vshrl.u32 %v1037, 16
        %v1876 = vor.u32 %v1874, %v1872
        %v1878 = vshll.u32 %v1038, 16
        %v1880 = vrot.slane %v1878, 1
        %v1881 = vsel %vm1821, %v1876, %v1880
        %v1882 = vshrl.u32 %v1038, 16
        %v1884 = vor.u32 %v1882, %v1880
        %v1886 = vshll.u32 %v1039, 16
        %v1888 = vrot.slane %v1886, 1
        %v1889 = vsel %vm1821, %v1884, %v1888
        %v1890 = vshrl.u32 %v1039, 16
        %v1892 = vor.u32 %v1890, %v1888
        %v1894 = vshll.u32 %v1040, 16
        %v1896 = vrot.slane %v1894, 1
        %v1897 = vsel %vm1821, %v1892, %v1896
        %v1898 = vshrl.u32 %v1040, 16
        %v1900 = vor.u32 %v1898, %v1896
        %v1902 = vshll.u32 %v1041, 16
        %v1904 = vrot.slane %v1902, 1
        %v1905 = vsel %vm1821, %v1900, %v1904
        %v1906 = vshrl.u32 %v1041, 16
        %v1908 = vor.u32 %v1906, %v1904
        %v1910 = vshll.u32 %v1042, 16
        %v1912 = vrot.slane %v1910, 1
        %v1913 = vsel %vm1821, %v1908, %v1912
        %v1914 = vshrl.u32 %v1042, 16
        %v1916 = vor.u32 %v1914, %v1912
        %v1918 = vshll.u32 %v1043, 16
        %v1920 = vrot.slane %v1918, 1
        %v1921 = vsel %vm1821, %v1916, %v1920
        %v1922 = vshrl.u32 %v1043, 16
        %v1924 = vor.u32 %v1922, %v1920
        %v1926 = vshll.u32 %v1044, 16
        %v1928 = vrot.slane %v1926, 1
        %v1929 = vsel %vm1821, %v1924, %v1928
        %v1930 = vshrl.u32 %v1044, 16
        %v1932 = vor.u32 %v1930, %v1928
        %v1934 = vshll.u32 %v1045, 16
        %v1936 = vrot.slane %v1934, 1
        %v1937 = vsel %vm1821, %v1932, %v1936
        %v1938 = vshrl.u32 %v1045, 16
        %v1940 = vor.u32 %v1938, %v1936
        %v1942 = vshll.u32 %v1046, 16
        %v1944 = vrot.slane %v1942, 1
        %v1945 = vsel %vm1821, %v1940, %v1944
        %v1946 = vshrl.u32 %v1046, 16
        %v1948 = vor.u32 %v1946, %v1944
        %v1966 = vmul.bf16 %v1804, %v1825
        %v1967 = vmul.bf16 %v1805, %v1833
        %v1968 = vmul.bf16 %v1806, %v1841
        %v1969 = vmul.bf16 %v1807, %v1849
        %v1970 = vmul.bf16 %v1808, %v1857
        %v1971 = vmul.bf16 %v1809, %v1865
        %v1972 = vmul.bf16 %v1810, %v1873
        %v1973 = vmul.bf16 %v1811, %v1881
        %v1974 = vmul.bf16 %v1812, %v1889
        %v1975 = vmul.bf16 %v1813, %v1897
        %v1976 = vmul.bf16 %v1814, %v1905
        %v1977 = vmul.bf16 %v1815, %v1913
        %v1978 = vmul.bf16 %v1816, %v1921
        %v1979 = vmul.bf16 %v1817, %v1929
        %v1980 = vmul.bf16 %v1818, %v1937
        %v1981 = vmul.bf16 %v1819, %v1945
        %v1982 = vmul.bf16 %v1820, %v1948
        %v1983 = vld [vmem:[#allocation6] sm:$0xf]
        %v1984 = vld [vmem:[#allocation6 + $0x4] sm:$0xf]
        %v1985 = vld [vmem:[#allocation6 + $0x8] sm:$0xf]
        %v1986 = vld [vmem:[#allocation6 + $0xc] sm:$0xf]
        %v1987 = vld [vmem:[#allocation6 + $0x10] sm:$0xf]
        %v1988 = vld [vmem:[#allocation6 + $0x14] sm:$0xf]
        %v1989 = vld [vmem:[#allocation6 + $0x18] sm:$0xf]
        %v1990 = vld [vmem:[#allocation6 + $0x1c] sm:$0xf]
        %v1991 = vld [vmem:[#allocation6 + $0x20] sm:$0xf]
        %v1992 = vld [vmem:[#allocation6 + $0x24] sm:$0xf]
        %v1993 = vld [vmem:[#allocation6 + $0x28] sm:$0xf]
        %v1994 = vld [vmem:[#allocation6 + $0x2c] sm:$0xf]
        %v1995 = vld [vmem:[#allocation6 + $0x30] sm:$0xf]
        %v1996 = vld [vmem:[#allocation6 + $0x34] sm:$0xf]
        %v1997 = vld [vmem:[#allocation6 + $0x38] sm:$0xf]
        %v1998 = vld [vmem:[#allocation6 + $0x3c] sm:$0xf]
        %s1999 = scalar_lea.vmem [#allocation6], 64
        %v2000 = vld [vmem:[%s1999] sm:$0xf]
        %v2001 = vld [vmem:[%s1999 + $0x4] sm:$0xf]
        %v2002 = vld [vmem:[%s1999 + $0x8] sm:$0xf]
        %v2003 = vld [vmem:[%s1999 + $0xc] sm:$0xf]
        %v2004 = vld [vmem:[%s1999 + $0x10] sm:$0xf]
        %v2005 = vld [vmem:[%s1999 + $0x14] sm:$0xf]
        %v2006 = vld [vmem:[%s1999 + $0x18] sm:$0xf]
        %v2007 = vld [vmem:[%s1999 + $0x1c] sm:$0xf]
        %v2008 = vld [vmem:[%s1999 + $0x20] sm:$0xf]
        %v2009 = vld [vmem:[%s1999 + $0x24] sm:$0xf]
        %v2010 = vld [vmem:[%s1999 + $0x28] sm:$0xf]
        %v2011 = vld [vmem:[%s1999 + $0x2c] sm:$0xf]
        %v2012 = vld [vmem:[%s1999 + $0x30] sm:$0xf]
        %v2013 = vld [vmem:[%s1999 + $0x34] sm:$0xf]
        %v2014 = vld [vmem:[%s1999 + $0x38] sm:$0xf]
        %v2015 = vld [vmem:[%s1999 + $0x3c] sm:$0xf]
        %v2032 = vunpack.c.l.b16 %v2000
        %v2033 = vunpack.c.l.b16 %v2001
        %v2034 = vunpack.c.l.b16 %v2002
        %v2035 = vunpack.c.l.b16 %v2003
        %v2036 = vunpack.c.l.b16 %v2004
        %v2037 = vunpack.c.l.b16 %v2005
        %v2038 = vunpack.c.l.b16 %v2006
        %v2039 = vunpack.c.l.b16 %v2007
        %v2040 = vunpack.c.l.b16 %v2008
        %v2041 = vunpack.c.l.b16 %v2009
        %v2042 = vunpack.c.l.b16 %v2010
        %v2043 = vunpack.c.l.b16 %v2011
        %v2044 = vunpack.c.l.b16 %v2012
        %v2045 = vunpack.c.l.b16 %v2013
        %v2046 = vunpack.c.l.b16 %v2014
        %v2047 = vunpack.c.l.b16 %v2015
        %v2048 = vpack.c.b16 %v2033, %v2032
        %v2049 = vpack.c.b16 %v2035, %v2034
        %v2050 = vpack.c.b16 %v2037, %v2036
        %v2051 = vpack.c.b16 %v2039, %v2038
        %v2052 = vpack.c.b16 %v2041, %v2040
        %v2053 = vpack.c.b16 %v2043, %v2042
        %v2054 = vpack.c.b16 %v2045, %v2044
        %v2055 = vpack.c.b16 %v2047, %v2046
        %2064 = vmatprep.subr.bf16.mxu0 0
        %2065 = vmatpush1.bf16.msra.mxu0 %v2048
        %2066 = vmatprep.subr.bf16.mxu0 0
        %2067 = vmatpush1.bf16.msra.mxu0 %v2049
        %2068 = vmatprep.subr.bf16.mxu0 0
        %2069 = vmatpush1.bf16.msra.mxu0 %v2050
        %2070 = vmatprep.subr.bf16.mxu0 0
        %2071 = vmatpush1.bf16.msra.mxu0 %v2051
        %2072 = vmatprep.subr.bf16.mxu0 0
        %2073 = vmatpush1.bf16.msra.mxu0 %v2052
        %2074 = vmatprep.subr.bf16.mxu0 0
        %2075 = vmatpush1.bf16.msra.mxu0 %v2053
        %2076 = vmatprep.subr.bf16.mxu0 0
        %2077 = vmatpush1.bf16.msra.mxu0 %v2054
        %2078 = vmatprep.subr.bf16.mxu0 0
        %2079 = vmatpush1.bf16.msra.mxu0 %v2055
        %2080 = vmatprep.subr.bf16.mxu0 0
        %2081 = vmatpush1.bf16.msra.mxu0 0
        %2082 = vmatprep.subr.bf16.mxu0 0
        %2083 = vmatpush1.bf16.msra.mxu0 0
        %2084 = vmatprep.subr.bf16.mxu0 0
        %2085 = vmatpush1.bf16.msra.mxu0 0
        %2086 = vmatprep.subr.bf16.mxu0 0
        %2087 = vmatpush1.bf16.msra.mxu0 0
        %2088 = vmatprep.subr.bf16.mxu0 0
        %2089 = vmatpush1.bf16.msra.mxu0 0
        %2090 = vmatprep.subr.bf16.mxu0 0
        %2091 = vmatpush1.bf16.msra.mxu0 0
        %2092 = vmatprep.subr.bf16.mxu0 0
        %2093 = vmatpush1.bf16.msra.mxu0 0
        %2094 = vmatprep.subr.bf16.mxu0 0
        %2095 = vmatpush1.bf16.msra.mxu0 0
        %2096 = vmatprep.mubr.bf16.mxu0 0
        %2097 = vmatmul.mubr.bf16.gmra.mrb[0].mxu0 %v1805
        %v2098 = vpop.f32.mrb[0].mxu0
        %v2099 = vadd.f32 0.0, %v2098
        %v2100 = vpop.f32.mrb[0].mxu0
        %v2101 = vpop.f32.mrb[0].mxu0
        %v2102 = vadd.f32 0.0, %v2101
        %v2103 = vpop.f32.mrb[0].mxu0
        %2104 = vmatprep.mubr.bf16.mxu0 0
        %2105 = vmatmul.mubr.bf16.gmra.mrb[0].mxu0 %v1806
        %v2106 = vpop.f32.mrb[0].mxu0
        %v2107 = vadd.f32 0.0, %v2106
        %v2108 = vpop.f32.mrb[0].mxu0
        %v2109 = vpop.f32.mrb[0].mxu0
        %v2110 = vadd.f32 0.0, %v2109
        %v2111 = vpop.f32.mrb[0].mxu0
        %2112 = vmatprep.mubr.bf16.mxu0 0
        %2113 = vmatmul.mubr.bf16.gmra.mrb[0].mxu0 %v1807
        %v2114 = vpop.f32.mrb[0].mxu0
        %v2115 = vadd.f32 0.0, %v2114
        %v2116 = vpop.f32.mrb[0].mxu0
        %v2117 = vpop.f32.mrb[0].mxu0
        %v2118 = vadd.f32 0.0, %v2117
        %v2119 = vpop.f32.mrb[0].mxu0
        %2120 = vmatprep.mubr.bf16.mxu0 0
        %2121 = vmatmul.mubr.bf16.gmra.mrb[0].mxu0 %v1808
        %v2122 = vpop.f32.mrb[0].mxu0
        %v2123 = vadd.f32 0.0, %v2122
        %v2124 = vpop.f32.mrb[0].mxu0
        %v2125 = vpop.f32.mrb[0].mxu0
        %v2126 = vadd.f32 0.0, %v2125
        %v2127 = vpop.f32.mrb[0].mxu0
        %2128 = vmatprep.mubr.bf16.mxu0 0
        %2129 = vmatmul.mubr.bf16.gmra.mrb[0].mxu0 %v1809
        %v2130 = vpop.f32.mrb[0].mxu0
        %v2131 = vadd.f32 0.0, %v2130
        %v2132 = vpop.f32.mrb[0].mxu0
        %v2133 = vpop.f32.mrb[0].mxu0
        %v2134 = vadd.f32 0.0, %v2133
        %v2135 = vpop.f32.mrb[0].mxu0
        %2136 = vmatprep.mubr.bf16.mxu0 0
        %2137 = vmatmul.mubr.bf16.gmra.mrb[0].mxu0 %v1810
        %v2138 = vpop.f32.mrb[0].mxu0
        %v2139 = vadd.f32 0.0, %v2138
        %v2140 = vpop.f32.mrb[0].mxu0
        %v2141 = vpop.f32.mrb[0].mxu0
        %v2142 = vadd.f32 0.0, %v2141
        %v2143 = vpop.f32.mrb[0].mxu0
        %2144 = vmatprep.mubr.bf16.mxu0 0
        %2145 = vmatmul.mubr.bf16.gmra.mrb[0].mxu0 %v1811
        %v2146 = vpop.f32.mrb[0].mxu0
        %v2147 = vadd.f32 0.0, %v2146
        %v2148 = vpop.f32.mrb[0].mxu0
        %v2149 = vpop.f32.mrb[0].mxu0
        %v2150 = vadd.f32 0.0, %v2149
        %v2151 = vpop.f32.mrb[0].mxu0
        %2152 = vmatprep.mubr.bf16.mxu0 0
        %2153 = vmatmul.mubr.bf16.gmra.mrb[0].mxu0 %v1812
        %v2154 = vpop.f32.mrb[0].mxu0
        %v2155 = vadd.f32 0.0, %v2154
        %v2156 = vpop.f32.mrb[0].mxu0
        %v2157 = vpop.f32.mrb[0].mxu0
        %v2158 = vadd.f32 0.0, %v2157
        %v2159 = vpop.f32.mrb[0].mxu0
        %2160 = vmatprep.mubr.bf16.mxu0 0
        %2161 = vmatmul.mubr.bf16.gmra.mrb[0].mxu0 %v1813
        %v2162 = vpop.f32.mrb[0].mxu0
        %v2163 = vadd.f32 0.0, %v2162
        %v2164 = vpop.f32.mrb[0].mxu0
        %v2165 = vpop.f32.mrb[0].mxu0
        %v2166 = vadd.f32 0.0, %v2165
        %v2167 = vpop.f32.mrb[0].mxu0
        %2168 = vmatprep.mubr.bf16.mxu0 0
        %2169 = vmatmul.mubr.bf16.gmra.mrb[0].mxu0 %v1814
        %v2170 = vpop.f32.mrb[0].mxu0
        %v2171 = vadd.f32 0.0, %v2170
        %v2172 = vpop.f32.mrb[0].mxu0
        %v2173 = vpop.f32.mrb[0].mxu0
        %v2174 = vadd.f32 0.0, %v2173
        %v2175 = vpop.f32.mrb[0].mxu0
        %2176 = vmatprep.mubr.bf16.mxu0 0
        %2177 = vmatmul.mubr.bf16.gmra.mrb[0].mxu0 %v1815
        %v2178 = vpop.f32.mrb[0].mxu0
        %v2179 = vadd.f32 0.0, %v2178
        %v2180 = vpop.f32.mrb[0].mxu0
        %v2181 = vpop.f32.mrb[0].mxu0
        %v2182 = vadd.f32 0.0, %v2181
        %v2183 = vpop.f32.mrb[0].mxu0
        %2184 = vmatprep.mubr.bf16.mxu0 0
        %2185 = vmatmul.mubr.bf16.gmra.mrb[0].mxu0 %v1816
        %v2186 = vpop.f32.mrb[0].mxu0
        %v2187 = vadd.f32 0.0, %v2186
        %v2188 = vpop.f32.mrb[0].mxu0
        %v2189 = vpop.f32.mrb[0].mxu0
        %v2190 = vadd.f32 0.0, %v2189
        %v2191 = vpop.f32.mrb[0].mxu0
        %2192 = vmatprep.mubr.bf16.mxu0 0
        %2193 = vmatmul.mubr.bf16.gmra.mrb[0].mxu0 %v1817
        %v2194 = vpop.f32.mrb[0].mxu0
        %v2195 = vadd.f32 0.0, %v2194
        %v2196 = vpop.f32.mrb[0].mxu0
        %v2197 = vpop.f32.mrb[0].mxu0
        %v2198 = vadd.f32 0.0, %v2197
        %v2199 = vpop.f32.mrb[0].mxu0
        %2200 = vmatprep.mubr.bf16.mxu0 0
        %2201 = vmatmul.mubr.bf16.gmra.mrb[0].mxu0 %v1818
        %v2202 = vpop.f32.mrb[0].mxu0
        %v2203 = vadd.f32 0.0, %v2202
        %v2204 = vpop.f32.mrb[0].mxu0
        %v2205 = vpop.f32.mrb[0].mxu0
        %v2206 = vadd.f32 0.0, %v2205
        %v2207 = vpop.f32.mrb[0].mxu0
        %2208 = vmatprep.mubr.bf16.mxu0 0
        %2209 = vmatmul.mubr.bf16.gmra.mrb[0].mxu0 %v1819
        %v2210 = vpop.f32.mrb[0].mxu0
        %v2211 = vadd.f32 0.0, %v2210
        %v2212 = vpop.f32.mrb[0].mxu0
        %v2213 = vpop.f32.mrb[0].mxu0
        %v2214 = vadd.f32 0.0, %v2213
        %v2215 = vpop.f32.mrb[0].mxu0
        %2216 = vmatprep.mubr.bf16.mxu0 0
        %2217 = vmatmul.mubr.bf16.gmra.mrb[0].mxu0 %v1820
        %v2218 = vpop.f32.mrb[0].mxu0
        %v2219 = vadd.f32 0.0, %v2218
        %v2220 = vpop.f32.mrb[0].mxu0
        %v2221 = vpop.f32.mrb[0].mxu0
        %v2222 = vadd.f32 0.0, %v2221
        %v2223 = vpop.f32.mrb[0].mxu0
        %2224 = vdwg.mxu0
        %vm2225 = vsmask.f32 256
        %v2227 = vshrl.u32 %v1966, 16
        %v2229 = vrot.slane %v2227, 7
        %v2231 = vshrl.u32 %v1967, 16
        %v2233 = vrot.slane %v2231, 7
        %v2234 = vshll.u32 %v1967, 16
        %v2236 = vor.u32 %v2233, %v2234
        %v2237 = vsel %vm2225, %v2229, %v2236
        %v2239 = vshrl.u32 %v1968, 16
        %v2241 = vrot.slane %v2239, 7
        %v2242 = vshll.u32 %v1968, 16
        %v2244 = vor.u32 %v2241, %v2242
        %v2245 = vsel %vm2225, %v2233, %v2244
        %v2247 = vshrl.u32 %v1969, 16
        %v2249 = vrot.slane %v2247, 7
        %v2250 = vshll.u32 %v1969, 16
        %v2252 = vor.u32 %v2249, %v2250
        %v2253 = vsel %vm2225, %v2241, %v2252
        %v2255 = vshrl.u32 %v1970, 16
        %v2257 = vrot.slane %v2255, 7
        %v2258 = vshll.u32 %v1970, 16
        %v2260 = vor.u32 %v2257, %v2258
        %v2261 = vsel %vm2225, %v2249, %v2260
        %v2263 = vshrl.u32 %v1971, 16
        %v2265 = vrot.slane %v2263, 7
        %v2266 = vshll.u32 %v1971, 16
        %v2268 = vor.u32 %v2265, %v2266
        %v2269 = vsel %vm2225, %v2257, %v2268
        %v2271 = vshrl.u32 %v1972, 16
        %v2273 = vrot.slane %v2271, 7
        %v2274 = vshll.u32 %v1972, 16
        %v2276 = vor.u32 %v2273, %v2274
        %v2277 = vsel %vm2225, %v2265, %v2276
        %v2279 = vshrl.u32 %v1973, 16
        %v2281 = vrot.slane %v2279, 7
        %v2282 = vshll.u32 %v1973, 16
        %v2284 = vor.u32 %v2281, %v2282
        %v2285 = vsel %vm2225, %v2273, %v2284
        %v2287 = vshrl.u32 %v1974, 16
        %v2289 = vrot.slane %v2287, 7
        %v2290 = vshll.u32 %v1974, 16
        %v2292 = vor.u32 %v2289, %v2290
        %v2293 = vsel %vm2225, %v2281, %v2292
        %v2295 = vshrl.u32 %v1975, 16
        %v2297 = vrot.slane %v2295, 7
        %v2298 = vshll.u32 %v1975, 16
        %v2300 = vor.u32 %v2297, %v2298
        %v2301 = vsel %vm2225, %v2289, %v2300
        %v2303 = vshrl.u32 %v1976, 16
        %v2305 = vrot.slane %v2303, 7
        %v2306 = vshll.u32 %v1976, 16
        %v2308 = vor.u32 %v2305, %v2306
        %v2309 = vsel %vm2225, %v2297, %v2308
        %v2311 = vshrl.u32 %v1977, 16
        %v2313 = vrot.slane %v2311, 7
        %v2314 = vshll.u32 %v1977, 16
        %v2316 = vor.u32 %v2313, %v2314
        %v2317 = vsel %vm2225, %v2305, %v2316
        %v2319 = vshrl.u32 %v1978, 16
        %v2321 = vrot.slane %v2319, 7
        %v2322 = vshll.u32 %v1978, 16
        %v2324 = vor.u32 %v2321, %v2322
        %v2325 = vsel %vm2225, %v2313, %v2324
        %v2327 = vshrl.u32 %v1979, 16
        %v2329 = vrot.slane %v2327, 7
        %v2330 = vshll.u32 %v1979, 16
        %v2332 = vor.u32 %v2329, %v2330
        %v2333 = vsel %vm2225, %v2321, %v2332
        %v2335 = vshrl.u32 %v1980, 16
        %v2337 = vrot.slane %v2335, 7
        %v2338 = vshll.u32 %v1980, 16
        %v2340 = vor.u32 %v2337, %v2338
        %v2341 = vsel %vm2225, %v2329, %v2340
        %v2343 = vshrl.u32 %v1981, 16
        %v2345 = vrot.slane %v2343, 7
        %v2346 = vshll.u32 %v1981, 16
        %v2348 = vor.u32 %v2345, %v2346
        %v2349 = vsel %vm2225, %v2337, %v2348
        %v2351 = vshrl.u32 %v1982, 16
        %v2353 = vrot.slane %v2351, 7
        %v2354 = vshll.u32 %v1982, 16
        %v2356 = vor.u32 %v2353, %v2354
        %v2357 = vsel %vm2225, %v2345, %v2356
        %v2390 = vunpack.c.l.b16 %v1983
        %v2391 = vunpack.c.l.b16 %v1984
        %v2392 = vunpack.c.l.b16 %v1985
        %v2393 = vunpack.c.l.b16 %v1986
        %v2394 = vunpack.c.l.b16 %v1987
        %v2395 = vunpack.c.l.b16 %v1988
        %v2396 = vunpack.c.l.b16 %v1989
        %v2397 = vunpack.c.l.b16 %v1990
        %v2398 = vunpack.c.l.b16 %v1991
        %v2399 = vunpack.c.l.b16 %v1992
        %v2400 = vunpack.c.l.b16 %v1993
        %v2401 = vunpack.c.l.b16 %v1994
        %v2402 = vunpack.c.l.b16 %v1995
        %v2403 = vunpack.c.l.b16 %v1996
        %v2404 = vunpack.c.l.b16 %v1997
        %v2405 = vunpack.c.l.b16 %v1998
        %v2406 = vpack.c.b16 %v2391, %v2390
        %v2407 = vpack.c.b16 %v2393, %v2392
        %v2408 = vpack.c.b16 %v2395, %v2394
        %v2409 = vpack.c.b16 %v2397, %v2396
        %v2410 = vpack.c.b16 %v2399, %v2398
        %v2411 = vpack.c.b16 %v2401, %v2400
        %v2412 = vpack.c.b16 %v2403, %v2402
        %v2413 = vpack.c.b16 %v2405, %v2404
        %2422 = vmatprep.subr.bf16.mxu0 0
        %2423 = vmatpush1.bf16.msra.mxu0 %v2406
        %2424 = vmatprep.subr.bf16.mxu0 0
        %2425 = vmatpush1.bf16.msra.mxu0 %v2407
        %2426 = vmatprep.subr.bf16.mxu0 0
        %2427 = vmatpush1.bf16.msra.mxu0 %v2408
        %2428 = vmatprep.subr.bf16.mxu0 0
        %2429 = vmatpush1.bf16.msra.mxu0 %v2409
        %2430 = vmatprep.subr.bf16.mxu0 0
        %2431 = vmatpush1.bf16.msra.mxu0 %v2410
        %2432 = vmatprep.subr.bf16.mxu0 0
        %2433 = vmatpush1.bf16.msra.mxu0 %v2411
        %2434 = vmatprep.subr.bf16.mxu0 0
        %2435 = vmatpush1.bf16.msra.mxu0 %v2412
        %2436 = vmatprep.subr.bf16.mxu0 0
        %2437 = vmatpush1.bf16.msra.mxu0 %v2413
        %2438 = vmatprep.subr.bf16.mxu0 0
        %2439 = vmatpush1.bf16.msra.mxu0 0
        %2440 = vmatprep.subr.bf16.mxu0 0
        %2441 = vmatpush1.bf16.msra.mxu0 0
        %2442 = vmatprep.subr.bf16.mxu0 0
        %2443 = vmatpush1.bf16.msra.mxu0 0
        %2444 = vmatprep.subr.bf16.mxu0 0
        %2445 = vmatpush1.bf16.msra.mxu0 0
        %2446 = vmatprep.subr.bf16.mxu0 0
        %2447 = vmatpush1.bf16.msra.mxu0 0
        %2448 = vmatprep.subr.bf16.mxu0 0
        %2449 = vmatpush1.bf16.msra.mxu0 0
        %2450 = vmatprep.subr.bf16.mxu0 0
        %2451 = vmatpush1.bf16.msra.mxu0 0
        %2452 = vmatprep.subr.bf16.mxu0 0
        %2453 = vmatpush1.bf16.msra.mxu0 0
        %2454 = vmatprep.mubr.bf16.mxu0 0
        %2455 = vmatmul.mubr.bf16.gmra.mrb[0].mxu0 %v2237
        %v2456 = vpop.f32.mrb[0].mxu0
        %v2457 = vadd.f32 %v2099, %v2456
        %v2458 = vpop.f32.mrb[0].mxu0
        %v2459 = vpop.f32.mrb[0].mxu0
        %v2460 = vadd.f32 %v2102, %v2459
        %v2461 = vpop.f32.mrb[0].mxu0
        %2462 = vmatprep.mubr.bf16.mxu0 0
        %2463 = vmatmul.mubr.bf16.gmra.mrb[0].mxu0 %v2245
        %v2464 = vpop.f32.mrb[0].mxu0
        %v2465 = vadd.f32 %v2107, %v2464
        %v2466 = vpop.f32.mrb[0].mxu0
        %v2467 = vpop.f32.mrb[0].mxu0
        %v2468 = vadd.f32 %v2110, %v2467
        %v2469 = vpop.f32.mrb[0].mxu0
        %2470 = vmatprep.mubr.bf16.mxu0 0
        %2471 = vmatmul.mubr.bf16.gmra.mrb[0].mxu0 %v2253
        %v2472 = vpop.f32.mrb[0].mxu0
        %v2473 = vadd.f32 %v2115, %v2472
        %v2474 = vpop.f32.mrb[0].mxu0
        %v2475 = vpop.f32.mrb[0].mxu0
        %v2476 = vadd.f32 %v2118, %v2475
        %v2477 = vpop.f32.mrb[0].mxu0
        %2478 = vmatprep.mubr.bf16.mxu0 0
        %2479 = vmatmul.mubr.bf16.gmra.mrb[0].mxu0 %v2261
        %v2480 = vpop.f32.mrb[0].mxu0
        %v2481 = vadd.f32 %v2123, %v2480
        %v2482 = vpop.f32.mrb[0].mxu0
        %v2483 = vpop.f32.mrb[0].mxu0
        %v2484 = vadd.f32 %v2126, %v2483
        %v2485 = vpop.f32.mrb[0].mxu0
        %2486 = vmatprep.mubr.bf16.mxu0 0
        %2487 = vmatmul.mubr.bf16.gmra.mrb[0].mxu0 %v2269
        %v2488 = vpop.f32.mrb[0].mxu0
        %v2489 = vadd.f32 %v2131, %v2488
        %v2490 = vpop.f32.mrb[0].mxu0
        %v2491 = vpop.f32.mrb[0].mxu0
        %v2492 = vadd.f32 %v2134, %v2491
        %v2493 = vpop.f32.mrb[0].mxu0
        %2494 = vmatprep.mubr.bf16.mxu0 0
        %2495 = vmatmul.mubr.bf16.gmra.mrb[0].mxu0 %v2277
        %v2496 = vpop.f32.mrb[0].mxu0
        %v2497 = vadd.f32 %v2139, %v2496
        %v2498 = vpop.f32.mrb[0].mxu0
        %v2499 = vpop.f32.mrb[0].mxu0
        %v2500 = vadd.f32 %v2142, %v2499
        %v2501 = vpop.f32.mrb[0].mxu0
        %2502 = vmatprep.mubr.bf16.mxu0 0
        %2503 = vmatmul.mubr.bf16.gmra.mrb[0].mxu0 %v2285
        %v2504 = vpop.f32.mrb[0].mxu0
        %v2505 = vadd.f32 %v2147, %v2504
        %v2506 = vpop.f32.mrb[0].mxu0
        %v2507 = vpop.f32.mrb[0].mxu0
        %v2508 = vadd.f32 %v2150, %v2507
        %v2509 = vpop.f32.mrb[0].mxu0
        %2510 = vmatprep.mubr.bf16.mxu0 0
        %2511 = vmatmul.mubr.bf16.gmra.mrb[0].mxu0 %v2293
        %v2512 = vpop.f32.mrb[0].mxu0
        %v2513 = vadd.f32 %v2155, %v2512
        %v2514 = vpop.f32.mrb[0].mxu0
        %v2515 = vpop.f32.mrb[0].mxu0
        %v2516 = vadd.f32 %v2158, %v2515
        %v2517 = vpop.f32.mrb[0].mxu0
        %2518 = vmatprep.mubr.bf16.mxu0 0
        %2519 = vmatmul.mubr.bf16.gmra.mrb[0].mxu0 %v2301
        %v2520 = vpop.f32.mrb[0].mxu0
        %v2521 = vadd.f32 %v2163, %v2520
        %v2522 = vpop.f32.mrb[0].mxu0
        %v2523 = vpop.f32.mrb[0].mxu0
        %v2524 = vadd.f32 %v2166, %v2523
        %v2525 = vpop.f32.mrb[0].mxu0
        %2526 = vmatprep.mubr.bf16.mxu0 0
        %2527 = vmatmul.mubr.bf16.gmra.mrb[0].mxu0 %v2309
        %v2528 = vpop.f32.mrb[0].mxu0
        %v2529 = vadd.f32 %v2171, %v2528
        %v2530 = vpop.f32.mrb[0].mxu0
        %v2531 = vpop.f32.mrb[0].mxu0
        %v2532 = vadd.f32 %v2174, %v2531
        %v2533 = vpop.f32.mrb[0].mxu0
        %2534 = vmatprep.mubr.bf16.mxu0 0
        %2535 = vmatmul.mubr.bf16.gmra.mrb[0].mxu0 %v2317
        %v2536 = vpop.f32.mrb[0].mxu0
        %v2537 = vadd.f32 %v2179, %v2536
        %v2538 = vpop.f32.mrb[0].mxu0
        %v2539 = vpop.f32.mrb[0].mxu0
        %v2540 = vadd.f32 %v2182, %v2539
        %v2541 = vpop.f32.mrb[0].mxu0
        %2542 = vmatprep.mubr.bf16.mxu0 0
        %2543 = vmatmul.mubr.bf16.gmra.mrb[0].mxu0 %v2325
        %v2544 = vpop.f32.mrb[0].mxu0
        %v2545 = vadd.f32 %v2187, %v2544
        %v2546 = vpop.f32.mrb[0].mxu0
        %v2547 = vpop.f32.mrb[0].mxu0
        %v2548 = vadd.f32 %v2190, %v2547
        %v2549 = vpop.f32.mrb[0].mxu0
        %2550 = vmatprep.mubr.bf16.mxu0 0
        %2551 = vmatmul.mubr.bf16.gmra.mrb[0].mxu0 %v2333
        %v2552 = vpop.f32.mrb[0].mxu0
        %v2553 = vadd.f32 %v2195, %v2552
        %v2554 = vpop.f32.mrb[0].mxu0
        %v2555 = vpop.f32.mrb[0].mxu0
        %v2556 = vadd.f32 %v2198, %v2555
        %v2557 = vpop.f32.mrb[0].mxu0
        %2558 = vmatprep.mubr.bf16.mxu0 0
        %2559 = vmatmul.mubr.bf16.gmra.mrb[0].mxu0 %v2341
        %v2560 = vpop.f32.mrb[0].mxu0
        %v2561 = vadd.f32 %v2203, %v2560
        %v2562 = vpop.f32.mrb[0].mxu0
        %v2563 = vpop.f32.mrb[0].mxu0
        %v2564 = vadd.f32 %v2206, %v2563
        %v2565 = vpop.f32.mrb[0].mxu0
        %2566 = vmatprep.mubr.bf16.mxu0 0
        %2567 = vmatmul.mubr.bf16.gmra.mrb[0].mxu0 %v2349
        %v2568 = vpop.f32.mrb[0].mxu0
        %v2569 = vadd.f32 %v2211, %v2568
        %v2570 = vpop.f32.mrb[0].mxu0
        %v2571 = vpop.f32.mrb[0].mxu0
        %v2572 = vadd.f32 %v2214, %v2571
        %v2573 = vpop.f32.mrb[0].mxu0
        %2574 = vmatprep.mubr.bf16.mxu0 0
        %2575 = vmatmul.mubr.bf16.gmra.mrb[0].mxu0 %v2357
        %v2576 = vpop.f32.mrb[0].mxu0
        %v2577 = vadd.f32 %v2219, %v2576
        %v2578 = vpop.f32.mrb[0].mxu0
        %v2579 = vpop.f32.mrb[0].mxu0
        %v2580 = vadd.f32 %v2222, %v2579
        %v2581 = vpop.f32.mrb[0].mxu0
        %2582 = vdwg.mxu0
        %v2583 = vld [vmem:[#allocation2 + $0x8] sm:$0xff]
        %v2584 = vld [vmem:[#allocation2 + $0x10] sm:$0xff]
        %v2585 = vld [vmem:[#allocation2 + $0x18] sm:$0xff]
        %v2586 = vld [vmem:[#allocation2 + $0x20] sm:$0xff]
        %v2587 = vld [vmem:[#allocation2 + $0x28] sm:$0xff]
        %v2588 = vld [vmem:[#allocation2 + $0x30] sm:$0xff]
        %v2589 = vld [vmem:[#allocation2 + $0x38] sm:$0xff]
        %v2590 = vld [vmem:[#allocation2 + $0x40] sm:$0xff]
        %v2591 = vld [vmem:[#allocation2 + $0x48] sm:$0xff]
        %v2592 = vld [vmem:[#allocation2 + $0x50] sm:$0xff]
        %v2593 = vld [vmem:[#allocation2 + $0x58] sm:$0xff]
        %v2594 = vld [vmem:[#allocation2 + $0x60] sm:$0xff]
        %v2595 = vld [vmem:[#allocation2 + $0x68] sm:$0xff]
        %v2596 = vld [vmem:[#allocation2 + $0x70] sm:$0xff]
        %v2597 = vld [vmem:[#allocation2 + $0x78] sm:$0xff]
        %v2598 = vld [vmem:[#allocation2 + $0x80] sm:$0xff]
        %v2599 = vld [vmem:[#allocation2 + $0x88] sm:$0x1]
        %v2601 = vshrl.u32 %v1143, 16
        %v2603 = vrot.slane %v2601, 7
        %v2604 = vshll.u32 %v1143, 16
        %v2606 = vor.u32 %v2603, %v2604
        %v2608 = vshrl.u32 %v1144, 16
        %v2610 = vrot.slane %v2608, 7
        %v2611 = vshll.u32 %v1144, 16
        %v2613 = vor.u32 %v2610, %v2611
        %v2614 = vsel %vm2225, %v2603, %v2613
        %v2616 = vshrl.u32 %v1145, 16
        %v2618 = vrot.slane %v2616, 7
        %v2619 = vshll.u32 %v1145, 16
        %v2621 = vor.u32 %v2618, %v2619
        %v2622 = vsel %vm2225, %v2610, %v2621
        %v2624 = vshrl.u32 %v1146, 16
        %v2626 = vrot.slane %v2624, 7
        %v2627 = vshll.u32 %v1146, 16
        %v2629 = vor.u32 %v2626, %v2627
        %v2630 = vsel %vm2225, %v2618, %v2629
        %v2632 = vshrl.u32 %v1147, 16
        %v2634 = vrot.slane %v2632, 7
        %v2635 = vshll.u32 %v1147, 16
        %v2637 = vor.u32 %v2634, %v2635
        %v2638 = vsel %vm2225, %v2626, %v2637
        %v2640 = vshrl.u32 %v1148, 16
        %v2642 = vrot.slane %v2640, 7
        %v2643 = vshll.u32 %v1148, 16
        %v2645 = vor.u32 %v2642, %v2643
        %v2646 = vsel %vm2225, %v2634, %v2645
        %v2648 = vshrl.u32 %v1149, 16
        %v2650 = vrot.slane %v2648, 7
        %v2651 = vshll.u32 %v1149, 16
        %v2653 = vor.u32 %v2650, %v2651
        %v2654 = vsel %vm2225, %v2642, %v2653
        %v2656 = vshrl.u32 %v1150, 16
        %v2658 = vrot.slane %v2656, 7
        %v2659 = vshll.u32 %v1150, 16
        %v2661 = vor.u32 %v2658, %v2659
        %v2662 = vsel %vm2225, %v2650, %v2661
        %v2664 = vshrl.u32 %v1151, 16
        %v2666 = vrot.slane %v2664, 7
        %v2667 = vshll.u32 %v1151, 16
        %v2669 = vor.u32 %v2666, %v2667
        %v2670 = vsel %vm2225, %v2658, %v2669
        %v2672 = vshrl.u32 %v1152, 16
        %v2674 = vrot.slane %v2672, 7
        %v2675 = vshll.u32 %v1152, 16
        %v2677 = vor.u32 %v2674, %v2675
        %v2678 = vsel %vm2225, %v2666, %v2677
        %v2680 = vshrl.u32 %v1153, 16
        %v2682 = vrot.slane %v2680, 7
        %v2683 = vshll.u32 %v1153, 16
        %v2685 = vor.u32 %v2682, %v2683
        %v2686 = vsel %vm2225, %v2674, %v2685
        %v2688 = vshrl.u32 %v1154, 16
        %v2690 = vrot.slane %v2688, 7
        %v2691 = vshll.u32 %v1154, 16
        %v2693 = vor.u32 %v2690, %v2691
        %v2694 = vsel %vm2225, %v2682, %v2693
        %v2696 = vshrl.u32 %v1155, 16
        %v2698 = vrot.slane %v2696, 7
        %v2699 = vshll.u32 %v1155, 16
        %v2701 = vor.u32 %v2698, %v2699
        %v2702 = vsel %vm2225, %v2690, %v2701
        %v2704 = vshrl.u32 %v1156, 16
        %v2706 = vrot.slane %v2704, 7
        %v2707 = vshll.u32 %v1156, 16
        %v2709 = vor.u32 %v2706, %v2707
        %v2710 = vsel %vm2225, %v2698, %v2709
        %v2712 = vshrl.u32 %v1157, 16
        %v2714 = vrot.slane %v2712, 7
        %v2715 = vshll.u32 %v1157, 16
        %v2717 = vor.u32 %v2714, %v2715
        %v2718 = vsel %vm2225, %v2706, %v2717
        %v2720 = vshrl.u32 %v1158, 16
        %v2722 = vrot.slane %v2720, 7
        %v2723 = vshll.u32 %v1158, 16
        %v2725 = vor.u32 %v2722, %v2723
        %v2726 = vsel %vm2225, %v2714, %v2725
        %v2744 = vmul.bf16 %v2583, %v2606
        %v2745 = vmul.bf16 %v2584, %v2614
        %v2746 = vmul.bf16 %v2585, %v2622
        %v2747 = vmul.bf16 %v2586, %v2630
        %v2748 = vmul.bf16 %v2587, %v2638
        %v2749 = vmul.bf16 %v2588, %v2646
        %v2750 = vmul.bf16 %v2589, %v2654
        %v2751 = vmul.bf16 %v2590, %v2662
        %v2752 = vmul.bf16 %v2591, %v2670
        %v2753 = vmul.bf16 %v2592, %v2678
        %v2754 = vmul.bf16 %v2593, %v2686
        %v2755 = vmul.bf16 %v2594, %v2694
        %v2756 = vmul.bf16 %v2595, %v2702
        %v2757 = vmul.bf16 %v2596, %v2710
        %v2758 = vmul.bf16 %v2597, %v2718
        %v2759 = vmul.bf16 %v2598, %v2726
        %v2760 = vmul.bf16 %v2599, %v2722
        %s2761 = scalar_lea.vmem [#allocation6], 128
        %v2762 = vld [vmem:[%s2761] sm:$0xf]
        %v2763 = vld [vmem:[%s2761 + $0x4] sm:$0xf]
        %v2764 = vld [vmem:[%s2761 + $0x8] sm:$0xf]
        %v2765 = vld [vmem:[%s2761 + $0xc] sm:$0xf]
        %v2766 = vld [vmem:[%s2761 + $0x10] sm:$0xf]
        %v2767 = vld [vmem:[%s2761 + $0x14] sm:$0xf]
        %v2768 = vld [vmem:[%s2761 + $0x18] sm:$0xf]
        %v2769 = vld [vmem:[%s2761 + $0x1c] sm:$0xf]
        %v2770 = vld [vmem:[%s2761 + $0x20] sm:$0xf]
        %v2771 = vld [vmem:[%s2761 + $0x24] sm:$0xf]
        %v2772 = vld [vmem:[%s2761 + $0x28] sm:$0xf]
        %v2773 = vld [vmem:[%s2761 + $0x2c] sm:$0xf]
        %v2774 = vld [vmem:[%s2761 + $0x30] sm:$0xf]
        %v2775 = vld [vmem:[%s2761 + $0x34] sm:$0xf]
        %v2776 = vld [vmem:[%s2761 + $0x38] sm:$0xf]
        %v2777 = vld [vmem:[%s2761 + $0x3c] sm:$0xf]
        %v2779 = vshrl.u32 %v2744, 16
        %v2781 = vshll.u32 %v2744, 16
        %v2783 = vrot.slane %v2781, 1
        %v2784 = vor.u32 %v2779, %v2783
        %v2786 = vshll.u32 %v2745, 16
        %v2788 = vrot.slane %v2786, 1
        %v2789 = vsel %vm1821, %v2784, %v2788
        %v2790 = vshrl.u32 %v2745, 16
        %v2792 = vor.u32 %v2790, %v2788
        %v2794 = vshll.u32 %v2746, 16
        %v2796 = vrot.slane %v2794, 1
        %v2797 = vsel %vm1821, %v2792, %v2796
        %v2798 = vshrl.u32 %v2746, 16
        %v2800 = vor.u32 %v2798, %v2796
        %v2802 = vshll.u32 %v2747, 16
        %v2804 = vrot.slane %v2802, 1
        %v2805 = vsel %vm1821, %v2800, %v2804
        %v2806 = vshrl.u32 %v2747, 16
        %v2808 = vor.u32 %v2806, %v2804
        %v2810 = vshll.u32 %v2748, 16
        %v2812 = vrot.slane %v2810, 1
        %v2813 = vsel %vm1821, %v2808, %v2812
        %v2814 = vshrl.u32 %v2748, 16
        %v2816 = vor.u32 %v2814, %v2812
        %v2818 = vshll.u32 %v2749, 16
        %v2820 = vrot.slane %v2818, 1
        %v2821 = vsel %vm1821, %v2816, %v2820
        %v2822 = vshrl.u32 %v2749, 16
        %v2824 = vor.u32 %v2822, %v2820
        %v2826 = vshll.u32 %v2750, 16
        %v2828 = vrot.slane %v2826, 1
        %v2829 = vsel %vm1821, %v2824, %v2828
        %v2830 = vshrl.u32 %v2750, 16
        %v2832 = vor.u32 %v2830, %v2828
        %v2834 = vshll.u32 %v2751, 16
        %v2836 = vrot.slane %v2834, 1
        %v2837 = vsel %vm1821, %v2832, %v2836
        %v2838 = vshrl.u32 %v2751, 16
        %v2840 = vor.u32 %v2838, %v2836
        %v2842 = vshll.u32 %v2752, 16
        %v2844 = vrot.slane %v2842, 1
        %v2845 = vsel %vm1821, %v2840, %v2844
        %v2846 = vshrl.u32 %v2752, 16
        %v2848 = vor.u32 %v2846, %v2844
        %v2850 = vshll.u32 %v2753, 16
        %v2852 = vrot.slane %v2850, 1
        %v2853 = vsel %vm1821, %v2848, %v2852
        %v2854 = vshrl.u32 %v2753, 16
        %v2856 = vor.u32 %v2854, %v2852
        %v2858 = vshll.u32 %v2754, 16
        %v2860 = vrot.slane %v2858, 1
        %v2861 = vsel %vm1821, %v2856, %v2860
        %v2862 = vshrl.u32 %v2754, 16
        %v2864 = vor.u32 %v2862, %v2860
        %v2866 = vshll.u32 %v2755, 16
        %v2868 = vrot.slane %v2866, 1
        %v2869 = vsel %vm1821, %v2864, %v2868
        %v2870 = vshrl.u32 %v2755, 16
        %v2872 = vor.u32 %v2870, %v2868
        %v2874 = vshll.u32 %v2756, 16
        %v2876 = vrot.slane %v2874, 1
        %v2877 = vsel %vm1821, %v2872, %v2876
        %v2878 = vshrl.u32 %v2756, 16
        %v2880 = vor.u32 %v2878, %v2876
        %v2882 = vshll.u32 %v2757, 16
        %v2884 = vrot.slane %v2882, 1
        %v2885 = vsel %vm1821, %v2880, %v2884
        %v2886 = vshrl.u32 %v2757, 16
        %v2888 = vor.u32 %v2886, %v2884
        %v2890 = vshll.u32 %v2758, 16
        %v2892 = vrot.slane %v2890, 1
        %v2893 = vsel %vm1821, %v2888, %v2892
        %v2894 = vshrl.u32 %v2758, 16
        %v2896 = vor.u32 %v2894, %v2892
        %v2898 = vshll.u32 %v2759, 16
        %v2900 = vrot.slane %v2898, 1
        %v2901 = vsel %vm1821, %v2896, %v2900
        %v2902 = vshrl.u32 %v2759, 16
        %v2904 = vor.u32 %v2902, %v2900
        %v2906 = vshll.u32 %v2760, 16
        %v2908 = vrot.slane %v2906, 1
        %v2909 = vsel %vm1821, %v2904, %v2908
        %v2942 = vunpack.c.l.b16 %v2762
        %v2943 = vunpack.c.l.b16 %v2763
        %v2944 = vunpack.c.l.b16 %v2764
        %v2945 = vunpack.c.l.b16 %v2765
        %v2946 = vunpack.c.l.b16 %v2766
        %v2947 = vunpack.c.l.b16 %v2767
        %v2948 = vunpack.c.l.b16 %v2768
        %v2949 = vunpack.c.l.b16 %v2769
        %v2950 = vunpack.c.l.b16 %v2770
        %v2951 = vunpack.c.l.b16 %v2771
        %v2952 = vunpack.c.l.b16 %v2772
        %v2953 = vunpack.c.l.b16 %v2773
        %v2954 = vunpack.c.l.b16 %v2774
        %v2955 = vunpack.c.l.b16 %v2775
        %v2956 = vunpack.c.l.b16 %v2776
        %v2957 = vunpack.c.l.b16 %v2777
        %v2958 = vpack.c.b16 %v2943, %v2942
        %v2959 = vpack.c.b16 %v2945, %v2944
        %v2960 = vpack.c.b16 %v2947, %v2946
        %v2961 = vpack.c.b16 %v2949, %v2948
        %v2962 = vpack.c.b16 %v2951, %v2950
        %v2963 = vpack.c.b16 %v2953, %v2952
        %v2964 = vpack.c.b16 %v2955, %v2954
        %v2965 = vpack.c.b16 %v2957, %v2956
        %2974 = vmatprep.subr.bf16.mxu0 0
        %2975 = vmatpush1.bf16.msra.mxu0 %v2958
        %2976 = vmatprep.subr.bf16.mxu0 0
        %2977 = vmatpush1.bf16.msra.mxu0 %v2959
        %2978 = vmatprep.subr.bf16.mxu0 0
        %2979 = vmatpush1.bf16.msra.mxu0 %v2960
        %2980 = vmatprep.subr.bf16.mxu0 0
        %2981 = vmatpush1.bf16.msra.mxu0 %v2961
        %2982 = vmatprep.subr.bf16.mxu0 0
        %2983 = vmatpush1.bf16.msra.mxu0 %v2962
        %2984 = vmatprep.subr.bf16.mxu0 0
        %2985 = vmatpush1.bf16.msra.mxu0 %v2963
        %2986 = vmatprep.subr.bf16.mxu0 0
        %2987 = vmatpush1.bf16.msra.mxu0 %v2964
        %2988 = vmatprep.subr.bf16.mxu0 0
        %2989 = vmatpush1.bf16.msra.mxu0 %v2965
        %2990 = vmatprep.subr.bf16.mxu0 0
        %2991 = vmatpush1.bf16.msra.mxu0 0
        %2992 = vmatprep.subr.bf16.mxu0 0
        %2993 = vmatpush1.bf16.msra.mxu0 0
        %2994 = vmatprep.subr.bf16.mxu0 0
        %2995 = vmatpush1.bf16.msra.mxu0 0
        %2996 = vmatprep.subr.bf16.mxu0 0
        %2997 = vmatpush1.bf16.msra.mxu0 0
        %2998 = vmatprep.subr.bf16.mxu0 0
        %2999 = vmatpush1.bf16.msra.mxu0 0
        %3000 = vmatprep.subr.bf16.mxu0 0
        %3001 = vmatpush1.bf16.msra.mxu0 0
        %3002 = vmatprep.subr.bf16.mxu0 0
        %3003 = vmatpush1.bf16.msra.mxu0 0
        %3004 = vmatprep.subr.bf16.mxu0 0
        %3005 = vmatpush1.bf16.msra.mxu0 0
        %3006 = vmatprep.mubr.bf16.mxu0 0
        %3007 = vmatmul.mubr.bf16.gmra.mrb[0].mxu0 %v2789
        %v3008 = vpop.f32.mrb[0].mxu0
        %v3009 = vadd.f32 0.0, %v3008
        %v3010 = vpop.f32.mrb[0].mxu0
        %v3011 = vpop.f32.mrb[0].mxu0
        %v3012 = vadd.f32 0.0, %v3011
        %v3013 = vpop.f32.mrb[0].mxu0
        %3014 = vmatprep.mubr.bf16.mxu0 0
        %3015 = vmatmul.mubr.bf16.gmra.mrb[0].mxu0 %v2797
        %v3016 = vpop.f32.mrb[0].mxu0
        %v3017 = vadd.f32 0.0, %v3016
        %v3018 = vpop.f32.mrb[0].mxu0
        %v3019 = vpop.f32.mrb[0].mxu0
        %v3020 = vadd.f32 0.0, %v3019
        %v3021 = vpop.f32.mrb[0].mxu0
        %3022 = vmatprep.mubr.bf16.mxu0 0
        %3023 = vmatmul.mubr.bf16.gmra.mrb[0].mxu0 %v2805
        %v3024 = vpop.f32.mrb[0].mxu0
        %v3025 = vadd.f32 0.0, %v3024
        %v3026 = vpop.f32.mrb[0].mxu0
        %v3027 = vpop.f32.mrb[0].mxu0
        %v3028 = vadd.f32 0.0, %v3027
        %v3029 = vpop.f32.mrb[0].mxu0
        %3030 = vmatprep.mubr.bf16.mxu0 0
        %3031 = vmatmul.mubr.bf16.gmra.mrb[0].mxu0 %v2813
        %v3032 = vpop.f32.mrb[0].mxu0
        %v3033 = vadd.f32 0.0, %v3032
        %v3034 = vpop.f32.mrb[0].mxu0
        %v3035 = vpop.f32.mrb[0].mxu0
        %v3036 = vadd.f32 0.0, %v3035
        %v3037 = vpop.f32.mrb[0].mxu0
        %3038 = vmatprep.mubr.bf16.mxu0 0
        %3039 = vmatmul.mubr.bf16.gmra.mrb[0].mxu0 %v2821
        %v3040 = vpop.f32.mrb[0].mxu0
        %v3041 = vadd.f32 0.0, %v3040
        %v3042 = vpop.f32.mrb[0].mxu0
        %v3043 = vpop.f32.mrb[0].mxu0
        %v3044 = vadd.f32 0.0, %v3043
        %v3045 = vpop.f32.mrb[0].mxu0
        %3046 = vmatprep.mubr.bf16.mxu0 0
        %3047 = vmatmul.mubr.bf16.gmra.mrb[0].mxu0 %v2829
        %v3048 = vpop.f32.mrb[0].mxu0
        %v3049 = vadd.f32 0.0, %v3048
        %v3050 = vpop.f32.mrb[0].mxu0
        %v3051 = vpop.f32.mrb[0].mxu0
        %v3052 = vadd.f32 0.0, %v3051
        %v3053 = vpop.f32.mrb[0].mxu0
        %3054 = vmatprep.mubr.bf16.mxu0 0
        %3055 = vmatmul.mubr.bf16.gmra.mrb[0].mxu0 %v2837
        %v3056 = vpop.f32.mrb[0].mxu0
        %v3057 = vadd.f32 0.0, %v3056
        %v3058 = vpop.f32.mrb[0].mxu0
        %v3059 = vpop.f32.mrb[0].mxu0
        %v3060 = vadd.f32 0.0, %v3059
        %v3061 = vpop.f32.mrb[0].mxu0
        %3062 = vmatprep.mubr.bf16.mxu0 0
        %3063 = vmatmul.mubr.bf16.gmra.mrb[0].mxu0 %v2845
        %v3064 = vpop.f32.mrb[0].mxu0
        %v3065 = vadd.f32 0.0, %v3064
        %v3066 = vpop.f32.mrb[0].mxu0
        %v3067 = vpop.f32.mrb[0].mxu0
        %v3068 = vadd.f32 0.0, %v3067
        %v3069 = vpop.f32.mrb[0].mxu0
        %3070 = vmatprep.mubr.bf16.mxu0 0
        %3071 = vmatmul.mubr.bf16.gmra.mrb[0].mxu0 %v2853
        %v3072 = vpop.f32.mrb[0].mxu0
        %v3073 = vadd.f32 0.0, %v3072
        %v3074 = vpop.f32.mrb[0].mxu0
        %v3075 = vpop.f32.mrb[0].mxu0
        %v3076 = vadd.f32 0.0, %v3075
        %v3077 = vpop.f32.mrb[0].mxu0
        %3078 = vmatprep.mubr.bf16.mxu0 0
        %3079 = vmatmul.mubr.bf16.gmra.mrb[0].mxu0 %v2861
        %v3080 = vpop.f32.mrb[0].mxu0
        %v3081 = vadd.f32 0.0, %v3080
        %v3082 = vpop.f32.mrb[0].mxu0
        %v3083 = vpop.f32.mrb[0].mxu0
        %v3084 = vadd.f32 0.0, %v3083
        %v3085 = vpop.f32.mrb[0].mxu0
        %3086 = vmatprep.mubr.bf16.mxu0 0
        %3087 = vmatmul.mubr.bf16.gmra.mrb[0].mxu0 %v2869
        %v3088 = vpop.f32.mrb[0].mxu0
        %v3089 = vadd.f32 0.0, %v3088
        %v3090 = vpop.f32.mrb[0].mxu0
        %v3091 = vpop.f32.mrb[0].mxu0
        %v3092 = vadd.f32 0.0, %v3091
        %v3093 = vpop.f32.mrb[0].mxu0
        %3094 = vmatprep.mubr.bf16.mxu0 0
        %3095 = vmatmul.mubr.bf16.gmra.mrb[0].mxu0 %v2877
        %v3096 = vpop.f32.mrb[0].mxu0
        %v3097 = vadd.f32 0.0, %v3096
        %v3098 = vpop.f32.mrb[0].mxu0
        %v3099 = vpop.f32.mrb[0].mxu0
        %v3100 = vadd.f32 0.0, %v3099
        %v3101 = vpop.f32.mrb[0].mxu0
        %3102 = vmatprep.mubr.bf16.mxu0 0
        %3103 = vmatmul.mubr.bf16.gmra.mrb[0].mxu0 %v2885
        %v3104 = vpop.f32.mrb[0].mxu0
        %v3105 = vadd.f32 0.0, %v3104
        %v3106 = vpop.f32.mrb[0].mxu0
        %v3107 = vpop.f32.mrb[0].mxu0
        %v3108 = vadd.f32 0.0, %v3107
        %v3109 = vpop.f32.mrb[0].mxu0
        %3110 = vmatprep.mubr.bf16.mxu0 0
        %3111 = vmatmul.mubr.bf16.gmra.mrb[0].mxu0 %v2893
        %v3112 = vpop.f32.mrb[0].mxu0
        %v3113 = vadd.f32 0.0, %v3112
        %v3114 = vpop.f32.mrb[0].mxu0
        %v3115 = vpop.f32.mrb[0].mxu0
        %v3116 = vadd.f32 0.0, %v3115
        %v3117 = vpop.f32.mrb[0].mxu0
        %3118 = vmatprep.mubr.bf16.mxu0 0
        %3119 = vmatmul.mubr.bf16.gmra.mrb[0].mxu0 %v2901
        %v3120 = vpop.f32.mrb[0].mxu0
        %v3121 = vadd.f32 0.0, %v3120
        %v3122 = vpop.f32.mrb[0].mxu0
        %v3123 = vpop.f32.mrb[0].mxu0
        %v3124 = vadd.f32 0.0, %v3123
        %v3125 = vpop.f32.mrb[0].mxu0
        %3126 = vmatprep.mubr.bf16.mxu0 0
        %3127 = vmatmul.mubr.bf16.gmra.mrb[0].mxu0 %v2909
        %v3128 = vpop.f32.mrb[0].mxu0
        %v3129 = vadd.f32 0.0, %v3128
        %v3130 = vpop.f32.mrb[0].mxu0
        %v3131 = vpop.f32.mrb[0].mxu0
        %v3132 = vadd.f32 0.0, %v3131
        %v3133 = vpop.f32.mrb[0].mxu0
        %3134 = vdwg.mxu0
        %v3135 = vadd.f32 %v2457, %v3009
        %v3136 = vadd.f32 %v2460, %v3012
        %v3137 = vadd.f32 %v2465, %v3017
        %v3138 = vadd.f32 %v2468, %v3020
        %v3139 = vadd.f32 %v2473, %v3025
        %v3140 = vadd.f32 %v2476, %v3028
        %v3141 = vadd.f32 %v2481, %v3033
        %v3142 = vadd.f32 %v2484, %v3036
        %v3143 = vadd.f32 %v2489, %v3041
        %v3144 = vadd.f32 %v2492, %v3044
        %v3145 = vadd.f32 %v2497, %v3049
        %v3146 = vadd.f32 %v2500, %v3052
        %v3147 = vadd.f32 %v2505, %v3057
        %v3148 = vadd.f32 %v2508, %v3060
        %v3149 = vadd.f32 %v2513, %v3065
        %v3150 = vadd.f32 %v2516, %v3068
        %v3151 = vadd.f32 %v2521, %v3073
        %v3152 = vadd.f32 %v2524, %v3076
        %v3153 = vadd.f32 %v2529, %v3081
        %v3154 = vadd.f32 %v2532, %v3084
        %v3155 = vadd.f32 %v2537, %v3089
        %v3156 = vadd.f32 %v2540, %v3092
        %v3157 = vadd.f32 %v2545, %v3097
        %v3158 = vadd.f32 %v2548, %v3100
        %v3159 = vadd.f32 %v2553, %v3105
        %v3160 = vadd.f32 %v2556, %v3108
        %v3161 = vadd.f32 %v2561, %v3113
        %v3162 = vadd.f32 %v2564, %v3116
        %v3163 = vadd.f32 %v2569, %v3121
        %v3164 = vadd.f32 %v2572, %v3124
        %v3165 = vadd.f32 %v2577, %v3129
        %v3166 = vadd.f32 %v2580, %v3132
        %v3167 = vld [vmem:[#allocation2 + $0x8] sm:$0x80]
        %v3168 = vld [vmem:[#allocation2 + $0x88] sm:$0xff]
        %v3169 = vmul.bf16 %v3167, %v1825
        %v3170 = vmul.bf16 %v2584, %v1833
        %v3171 = vmul.bf16 %v2585, %v1841
        %v3172 = vmul.bf16 %v2586, %v1849
        %v3173 = vmul.bf16 %v2587, %v1857
        %v3174 = vmul.bf16 %v2588, %v1865
        %v3175 = vmul.bf16 %v2589, %v1873
        %v3176 = vmul.bf16 %v2590, %v1881
        %v3177 = vmul.bf16 %v2591, %v1889
        %v3178 = vmul.bf16 %v2592, %v1897
        %v3179 = vmul.bf16 %v2593, %v1905
        %v3180 = vmul.bf16 %v2594, %v1913
        %v3181 = vmul.bf16 %v2595, %v1921
        %v3182 = vmul.bf16 %v2596, %v1929
        %v3183 = vmul.bf16 %v2597, %v1937
        %v3184 = vmul.bf16 %v2598, %v1945
        %v3185 = vmul.bf16 %v3168, %v1948
        %s3186 = scalar_lea.vmem [#allocation6], 192
        %v3187 = vld [vmem:[%s3186] sm:$0xf]
        %v3188 = vld [vmem:[%s3186 + $0x4] sm:$0xf]
        %v3189 = vld [vmem:[%s3186 + $0x8] sm:$0xf]
        %v3190 = vld [vmem:[%s3186 + $0xc] sm:$0xf]
        %v3191 = vld [vmem:[%s3186 + $0x10] sm:$0xf]
        %v3192 = vld [vmem:[%s3186 + $0x14] sm:$0xf]
        %v3193 = vld [vmem:[%s3186 + $0x18] sm:$0xf]
        %v3194 = vld [vmem:[%s3186 + $0x1c] sm:$0xf]
        %v3195 = vld [vmem:[%s3186 + $0x20] sm:$0xf]
        %v3196 = vld [vmem:[%s3186 + $0x24] sm:$0xf]
        %v3197 = vld [vmem:[%s3186 + $0x28] sm:$0xf]
        %v3198 = vld [vmem:[%s3186 + $0x2c] sm:$0xf]
        %v3199 = vld [vmem:[%s3186 + $0x30] sm:$0xf]
        %v3200 = vld [vmem:[%s3186 + $0x34] sm:$0xf]
        %v3201 = vld [vmem:[%s3186 + $0x38] sm:$0xf]
        %v3202 = vld [vmem:[%s3186 + $0x3c] sm:$0xf]
        %v3204 = vshrl.u32 %v3169, 16
        %v3206 = vrot.slane %v3204, 7
        %v3208 = vshrl.u32 %v3170, 16
        %v3210 = vrot.slane %v3208, 7
        %v3211 = vshll.u32 %v3170, 16
        %v3213 = vor.u32 %v3210, %v3211
        %v3214 = vsel %vm2225, %v3206, %v3213
        %v3216 = vshrl.u32 %v3171, 16
        %v3218 = vrot.slane %v3216, 7
        %v3219 = vshll.u32 %v3171, 16
        %v3221 = vor.u32 %v3218, %v3219
        %v3222 = vsel %vm2225, %v3210, %v3221
        %v3224 = vshrl.u32 %v3172, 16
        %v3226 = vrot.slane %v3224, 7
        %v3227 = vshll.u32 %v3172, 16
        %v3229 = vor.u32 %v3226, %v3227
        %v3230 = vsel %vm2225, %v3218, %v3229
        %v3232 = vshrl.u32 %v3173, 16
        %v3234 = vrot.slane %v3232, 7
        %v3235 = vshll.u32 %v3173, 16
        %v3237 = vor.u32 %v3234, %v3235
        %v3238 = vsel %vm2225, %v3226, %v3237
        %v3240 = vshrl.u32 %v3174, 16
        %v3242 = vrot.slane %v3240, 7
        %v3243 = vshll.u32 %v3174, 16
        %v3245 = vor.u32 %v3242, %v3243
        %v3246 = vsel %vm2225, %v3234, %v3245
        %v3248 = vshrl.u32 %v3175, 16
        %v3250 = vrot.slane %v3248, 7
        %v3251 = vshll.u32 %v3175, 16
        %v3253 = vor.u32 %v3250, %v3251
        %v3254 = vsel %vm2225, %v3242, %v3253
        %v3256 = vshrl.u32 %v3176, 16
        %v3258 = vrot.slane %v3256, 7
        %v3259 = vshll.u32 %v3176, 16
        %v3261 = vor.u32 %v3258, %v3259
        %v3262 = vsel %vm2225, %v3250, %v3261
        %v3264 = vshrl.u32 %v3177, 16
        %v3266 = vrot.slane %v3264, 7
        %v3267 = vshll.u32 %v3177, 16
        %v3269 = vor.u32 %v3266, %v3267
        %v3270 = vsel %vm2225, %v3258, %v3269
        %v3272 = vshrl.u32 %v3178, 16
        %v3274 = vrot.slane %v3272, 7
        %v3275 = vshll.u32 %v3178, 16
        %v3277 = vor.u32 %v3274, %v3275
        %v3278 = vsel %vm2225, %v3266, %v3277
        %v3280 = vshrl.u32 %v3179, 16
        %v3282 = vrot.slane %v3280, 7
        %v3283 = vshll.u32 %v3179, 16
        %v3285 = vor.u32 %v3282, %v3283
        %v3286 = vsel %vm2225, %v3274, %v3285
        %v3288 = vshrl.u32 %v3180, 16
        %v3290 = vrot.slane %v3288, 7
        %v3291 = vshll.u32 %v3180, 16
        %v3293 = vor.u32 %v3290, %v3291
        %v3294 = vsel %vm2225, %v3282, %v3293
        %v3296 = vshrl.u32 %v3181, 16
        %v3298 = vrot.slane %v3296, 7
        %v3299 = vshll.u32 %v3181, 16
        %v3301 = vor.u32 %v3298, %v3299
        %v3302 = vsel %vm2225, %v3290, %v3301
        %v3304 = vshrl.u32 %v3182, 16
        %v3306 = vrot.slane %v3304, 7
        %v3307 = vshll.u32 %v3182, 16
        %v3309 = vor.u32 %v3306, %v3307
        %v3310 = vsel %vm2225, %v3298, %v3309
        %v3312 = vshrl.u32 %v3183, 16
        %v3314 = vrot.slane %v3312, 7
        %v3315 = vshll.u32 %v3183, 16
        %v3317 = vor.u32 %v3314, %v3315
        %v3318 = vsel %vm2225, %v3306, %v3317
        %v3320 = vshrl.u32 %v3184, 16
        %v3322 = vrot.slane %v3320, 7
        %v3323 = vshll.u32 %v3184, 16
        %v3325 = vor.u32 %v3322, %v3323
        %v3326 = vsel %vm2225, %v3314, %v3325
        %v3328 = vshrl.u32 %v3185, 16
        %v3330 = vrot.slane %v3328, 7
        %v3331 = vshll.u32 %v3185, 16
        %v3333 = vor.u32 %v3330, %v3331
        %v3334 = vsel %vm2225, %v3322, %v3333
        %v3367 = vunpack.c.l.b16 %v3187
        %v3368 = vunpack.c.l.b16 %v3188
        %v3369 = vunpack.c.l.b16 %v3189
        %v3370 = vunpack.c.l.b16 %v3190
        %v3371 = vunpack.c.l.b16 %v3191
        %v3372 = vunpack.c.l.b16 %v3192
        %v3373 = vunpack.c.l.b16 %v3193
        %v3374 = vunpack.c.l.b16 %v3194
        %v3375 = vunpack.c.l.b16 %v3195
        %v3376 = vunpack.c.l.b16 %v3196
        %v3377 = vunpack.c.l.b16 %v3197
        %v3378 = vunpack.c.l.b16 %v3198
        %v3379 = vunpack.c.l.b16 %v3199
        %v3380 = vunpack.c.l.b16 %v3200
        %v3381 = vunpack.c.l.b16 %v3201
        %v3382 = vunpack.c.l.b16 %v3202
        %v3383 = vpack.c.b16 %v3368, %v3367
        %v3384 = vpack.c.b16 %v3370, %v3369
        %v3385 = vpack.c.b16 %v3372, %v3371
        %v3386 = vpack.c.b16 %v3374, %v3373
        %v3387 = vpack.c.b16 %v3376, %v3375
        %v3388 = vpack.c.b16 %v3378, %v3377
        %v3389 = vpack.c.b16 %v3380, %v3379
        %v3390 = vpack.c.b16 %v3382, %v3381
        %3399 = vmatprep.subr.bf16.mxu0 0
        %3400 = vmatpush1.bf16.msra.mxu0 %v3383
        %3401 = vmatprep.subr.bf16.mxu0 0
        %3402 = vmatpush1.bf16.msra.mxu0 %v3384
        %3403 = vmatprep.subr.bf16.mxu0 0
        %3404 = vmatpush1.bf16.msra.mxu0 %v3385
        %3405 = vmatprep.subr.bf16.mxu0 0
        %3406 = vmatpush1.bf16.msra.mxu0 %v3386
        %3407 = vmatprep.subr.bf16.mxu0 0
        %3408 = vmatpush1.bf16.msra.mxu0 %v3387
        %3409 = vmatprep.subr.bf16.mxu0 0
        %3410 = vmatpush1.bf16.msra.mxu0 %v3388
        %3411 = vmatprep.subr.bf16.mxu0 0
        %3412 = vmatpush1.bf16.msra.mxu0 %v3389
        %3413 = vmatprep.subr.bf16.mxu0 0
        %3414 = vmatpush1.bf16.msra.mxu0 %v3390
        %3415 = vmatprep.subr.bf16.mxu0 0
        %3416 = vmatpush1.bf16.msra.mxu0 0
        %3417 = vmatprep.subr.bf16.mxu0 0
        %3418 = vmatpush1.bf16.msra.mxu0 0
        %3419 = vmatprep.subr.bf16.mxu0 0
        %3420 = vmatpush1.bf16.msra.mxu0 0
        %3421 = vmatprep.subr.bf16.mxu0 0
        %3422 = vmatpush1.bf16.msra.mxu0 0
        %3423 = vmatprep.subr.bf16.mxu0 0
        %3424 = vmatpush1.bf16.msra.mxu0 0
        %3425 = vmatprep.subr.bf16.mxu0 0
        %3426 = vmatpush1.bf16.msra.mxu0 0
        %3427 = vmatprep.subr.bf16.mxu0 0
        %3428 = vmatpush1.bf16.msra.mxu0 0
        %3429 = vmatprep.subr.bf16.mxu0 0
        %3430 = vmatpush1.bf16.msra.mxu0 0
        %3431 = vmatprep.mubr.bf16.mxu0 0
        %3432 = vmatmul.mubr.bf16.gmra.mrb[0].mxu0 %v3214
        %v3433 = vpop.f32.mrb[0].mxu0
        %v3434 = vadd.f32 0.0, %v3433
        %v3435 = vpop.f32.mrb[0].mxu0
        %v3436 = vpop.f32.mrb[0].mxu0
        %v3437 = vadd.f32 0.0, %v3436
        %v3438 = vpop.f32.mrb[0].mxu0
        %3439 = vmatprep.mubr.bf16.mxu0 0
        %3440 = vmatmul.mubr.bf16.gmra.mrb[0].mxu0 %v3222
        %v3441 = vpop.f32.mrb[0].mxu0
        %v3442 = vadd.f32 0.0, %v3441
        %v3443 = vpop.f32.mrb[0].mxu0
        %v3444 = vpop.f32.mrb[0].mxu0
        %v3445 = vadd.f32 0.0, %v3444
        %v3446 = vpop.f32.mrb[0].mxu0
        %3447 = vmatprep.mubr.bf16.mxu0 0
        %3448 = vmatmul.mubr.bf16.gmra.mrb[0].mxu0 %v3230
        %v3449 = vpop.f32.mrb[0].mxu0
        %v3450 = vadd.f32 0.0, %v3449
        %v3451 = vpop.f32.mrb[0].mxu0
        %v3452 = vpop.f32.mrb[0].mxu0
        %v3453 = vadd.f32 0.0, %v3452
        %v3454 = vpop.f32.mrb[0].mxu0
        %3455 = vmatprep.mubr.bf16.mxu0 0
        %3456 = vmatmul.mubr.bf16.gmra.mrb[0].mxu0 %v3238
        %v3457 = vpop.f32.mrb[0].mxu0
        %v3458 = vadd.f32 0.0, %v3457
        %v3459 = vpop.f32.mrb[0].mxu0
        %v3460 = vpop.f32.mrb[0].mxu0
        %v3461 = vadd.f32 0.0, %v3460
        %v3462 = vpop.f32.mrb[0].mxu0
        %3463 = vmatprep.mubr.bf16.mxu0 0
        %3464 = vmatmul.mubr.bf16.gmra.mrb[0].mxu0 %v3246
        %v3465 = vpop.f32.mrb[0].mxu0
        %v3466 = vadd.f32 0.0, %v3465
        %v3467 = vpop.f32.mrb[0].mxu0
        %v3468 = vpop.f32.mrb[0].mxu0
        %v3469 = vadd.f32 0.0, %v3468
        %v3470 = vpop.f32.mrb[0].mxu0
        %3471 = vmatprep.mubr.bf16.mxu0 0
        %3472 = vmatmul.mubr.bf16.gmra.mrb[0].mxu0 %v3254
        %v3473 = vpop.f32.mrb[0].mxu0
        %v3474 = vadd.f32 0.0, %v3473
        %v3475 = vpop.f32.mrb[0].mxu0
        %v3476 = vpop.f32.mrb[0].mxu0
        %v3477 = vadd.f32 0.0, %v3476
        %v3478 = vpop.f32.mrb[0].mxu0
        %3479 = vmatprep.mubr.bf16.mxu0 0
        %3480 = vmatmul.mubr.bf16.gmra.mrb[0].mxu0 %v3262
        %v3481 = vpop.f32.mrb[0].mxu0
        %v3482 = vadd.f32 0.0, %v3481
        %v3483 = vpop.f32.mrb[0].mxu0
        %v3484 = vpop.f32.mrb[0].mxu0
        %v3485 = vadd.f32 0.0, %v3484
        %v3486 = vpop.f32.mrb[0].mxu0
        %3487 = vmatprep.mubr.bf16.mxu0 0
        %3488 = vmatmul.mubr.bf16.gmra.mrb[0].mxu0 %v3270
        %v3489 = vpop.f32.mrb[0].mxu0
        %v3490 = vadd.f32 0.0, %v3489
        %v3491 = vpop.f32.mrb[0].mxu0
        %v3492 = vpop.f32.mrb[0].mxu0
        %v3493 = vadd.f32 0.0, %v3492
        %v3494 = vpop.f32.mrb[0].mxu0
        %3495 = vmatprep.mubr.bf16.mxu0 0
        %3496 = vmatmul.mubr.bf16.gmra.mrb[0].mxu0 %v3278
        %v3497 = vpop.f32.mrb[0].mxu0
        %v3498 = vadd.f32 0.0, %v3497
        %v3499 = vpop.f32.mrb[0].mxu0
        %v3500 = vpop.f32.mrb[0].mxu0
        %v3501 = vadd.f32 0.0, %v3500
        %v3502 = vpop.f32.mrb[0].mxu0
        %3503 = vmatprep.mubr.bf16.mxu0 0
        %3504 = vmatmul.mubr.bf16.gmra.mrb[0].mxu0 %v3286
        %v3505 = vpop.f32.mrb[0].mxu0
        %v3506 = vadd.f32 0.0, %v3505
        %v3507 = vpop.f32.mrb[0].mxu0
        %v3508 = vpop.f32.mrb[0].mxu0
        %v3509 = vadd.f32 0.0, %v3508
        %v3510 = vpop.f32.mrb[0].mxu0
        %3511 = vmatprep.mubr.bf16.mxu0 0
        %3512 = vmatmul.mubr.bf16.gmra.mrb[0].mxu0 %v3294
        %v3513 = vpop.f32.mrb[0].mxu0
        %v3514 = vadd.f32 0.0, %v3513
        %v3515 = vpop.f32.mrb[0].mxu0
        %v3516 = vpop.f32.mrb[0].mxu0
        %v3517 = vadd.f32 0.0, %v3516
        %v3518 = vpop.f32.mrb[0].mxu0
        %3519 = vmatprep.mubr.bf16.mxu0 0
        %3520 = vmatmul.mubr.bf16.gmra.mrb[0].mxu0 %v3302
        %v3521 = vpop.f32.mrb[0].mxu0
        %v3522 = vadd.f32 0.0, %v3521
        %v3523 = vpop.f32.mrb[0].mxu0
        %v3524 = vpop.f32.mrb[0].mxu0
        %v3525 = vadd.f32 0.0, %v3524
        %v3526 = vpop.f32.mrb[0].mxu0
        %3527 = vmatprep.mubr.bf16.mxu0 0
        %3528 = vmatmul.mubr.bf16.gmra.mrb[0].mxu0 %v3310
        %v3529 = vpop.f32.mrb[0].mxu0
        %v3530 = vadd.f32 0.0, %v3529
        %v3531 = vpop.f32.mrb[0].mxu0
        %v3532 = vpop.f32.mrb[0].mxu0
        %v3533 = vadd.f32 0.0, %v3532
        %v3534 = vpop.f32.mrb[0].mxu0
        %3535 = vmatprep.mubr.bf16.mxu0 0
        %3536 = vmatmul.mubr.bf16.gmra.mrb[0].mxu0 %v3318
        %v3537 = vpop.f32.mrb[0].mxu0
        %v3538 = vadd.f32 0.0, %v3537
        %v3539 = vpop.f32.mrb[0].mxu0
        %v3540 = vpop.f32.mrb[0].mxu0
        %v3541 = vadd.f32 0.0, %v3540
        %v3542 = vpop.f32.mrb[0].mxu0
        %3543 = vmatprep.mubr.bf16.mxu0 0
        %3544 = vmatmul.mubr.bf16.gmra.mrb[0].mxu0 %v3326
        %v3545 = vpop.f32.mrb[0].mxu0
        %v3546 = vadd.f32 0.0, %v3545
        %v3547 = vpop.f32.mrb[0].mxu0
        %v3548 = vpop.f32.mrb[0].mxu0
        %v3549 = vadd.f32 0.0, %v3548
        %v3550 = vpop.f32.mrb[0].mxu0
        %3551 = vmatprep.mubr.bf16.mxu0 0
        %3552 = vmatmul.mubr.bf16.gmra.mrb[0].mxu0 %v3334
        %v3553 = vpop.f32.mrb[0].mxu0
        %v3554 = vadd.f32 0.0, %v3553
        %v3555 = vpop.f32.mrb[0].mxu0
        %v3556 = vpop.f32.mrb[0].mxu0
        %v3557 = vadd.f32 0.0, %v3556
        %v3558 = vpop.f32.mrb[0].mxu0
        %3559 = vdwg.mxu0
        %v3560 = vadd.f32 %v3135, %v3434
        %v3561 = vadd.f32 %v3136, %v3437
        %v3562 = vadd.f32 %v3137, %v3442
        %v3563 = vadd.f32 %v3138, %v3445
        %v3564 = vadd.f32 %v3139, %v3450
        %v3565 = vadd.f32 %v3140, %v3453
        %v3566 = vadd.f32 %v3141, %v3458
        %v3567 = vadd.f32 %v3142, %v3461
        %v3568 = vadd.f32 %v3143, %v3466
        %v3569 = vadd.f32 %v3144, %v3469
        %v3570 = vadd.f32 %v3145, %v3474
        %v3571 = vadd.f32 %v3146, %v3477
        %v3572 = vadd.f32 %v3147, %v3482
        %v3573 = vadd.f32 %v3148, %v3485
        %v3574 = vadd.f32 %v3149, %v3490
        %v3575 = vadd.f32 %v3150, %v3493
        %v3576 = vadd.f32 %v3151, %v3498
        %v3577 = vadd.f32 %v3152, %v3501
        %v3578 = vadd.f32 %v3153, %v3506
        %v3579 = vadd.f32 %v3154, %v3509
        %v3580 = vadd.f32 %v3155, %v3514
        %v3581 = vadd.f32 %v3156, %v3517
        %v3582 = vadd.f32 %v3157, %v3522
        %v3583 = vadd.f32 %v3158, %v3525
        %v3584 = vadd.f32 %v3159, %v3530
        %v3585 = vadd.f32 %v3160, %v3533
        %v3586 = vadd.f32 %v3161, %v3538
        %v3587 = vadd.f32 %v3162, %v3541
        %v3588 = vadd.f32 %v3163, %v3546
        %v3589 = vadd.f32 %v3164, %v3549
        %v3590 = vadd.f32 %v3165, %v3554
        %v3591 = vadd.f32 %v3166, %v3557
        %s3592 = scalar_lea.vmem [#allocation6], 256
        %v3593 = vld [vmem:[%s3592] sm:$0xf]
        %v3594 = vld [vmem:[%s3592 + $0x4] sm:$0xf]
        %v3595 = vld [vmem:[%s3592 + $0x8] sm:$0xf]
        %v3596 = vld [vmem:[%s3592 + $0xc] sm:$0xf]
        %v3597 = vld [vmem:[%s3592 + $0x10] sm:$0xf]
        %v3598 = vld [vmem:[%s3592 + $0x14] sm:$0xf]
        %v3599 = vld [vmem:[%s3592 + $0x18] sm:$0xf]
        %v3600 = vld [vmem:[%s3592 + $0x1c] sm:$0xf]
        %v3601 = vld [vmem:[%s3592 + $0x20] sm:$0xf]
        %v3602 = vld [vmem:[%s3592 + $0x24] sm:$0xf]
        %v3603 = vld [vmem:[%s3592 + $0x28] sm:$0xf]
        %v3604 = vld [vmem:[%s3592 + $0x2c] sm:$0xf]
        %v3605 = vld [vmem:[%s3592 + $0x30] sm:$0xf]
        %v3606 = vld [vmem:[%s3592 + $0x34] sm:$0xf]
        %v3607 = vld [vmem:[%s3592 + $0x38] sm:$0xf]
        %v3608 = vld [vmem:[%s3592 + $0x3c] sm:$0xf]
        %v3625 = vunpack.c.l.b16 %v3593
        %v3626 = vunpack.c.l.b16 %v3594
        %v3627 = vunpack.c.l.b16 %v3595
        %v3628 = vunpack.c.l.b16 %v3596
        %v3629 = vunpack.c.l.b16 %v3597
        %v3630 = vunpack.c.l.b16 %v3598
        %v3631 = vunpack.c.l.b16 %v3599
        %v3632 = vunpack.c.l.b16 %v3600
        %v3633 = vunpack.c.l.b16 %v3601
        %v3634 = vunpack.c.l.b16 %v3602
        %v3635 = vunpack.c.l.b16 %v3603
        %v3636 = vunpack.c.l.b16 %v3604
        %v3637 = vunpack.c.l.b16 %v3605
        %v3638 = vunpack.c.l.b16 %v3606
        %v3639 = vunpack.c.l.b16 %v3607
        %v3640 = vunpack.c.l.b16 %v3608
        %v3641 = vpack.c.b16 %v3626, %v3625
        %v3642 = vpack.c.b16 %v3628, %v3627
        %v3643 = vpack.c.b16 %v3630, %v3629
        %v3644 = vpack.c.b16 %v3632, %v3631
        %v3645 = vpack.c.b16 %v3634, %v3633
        %v3646 = vpack.c.b16 %v3636, %v3635
        %v3647 = vpack.c.b16 %v3638, %v3637
        %v3648 = vpack.c.b16 %v3640, %v3639
        %3657 = vmatprep.subr.bf16.mxu0 0
        %3658 = vmatpush1.bf16.msra.mxu0 %v3641
        %3659 = vmatprep.subr.bf16.mxu0 0
        %3660 = vmatpush1.bf16.msra.mxu0 %v3642
        %3661 = vmatprep.subr.bf16.mxu0 0
        %3662 = vmatpush1.bf16.msra.mxu0 %v3643
        %3663 = vmatprep.subr.bf16.mxu0 0
        %3664 = vmatpush1.bf16.msra.mxu0 %v3644
        %3665 = vmatprep.subr.bf16.mxu0 0
        %3666 = vmatpush1.bf16.msra.mxu0 %v3645
        %3667 = vmatprep.subr.bf16.mxu0 0
        %3668 = vmatpush1.bf16.msra.mxu0 %v3646
        %3669 = vmatprep.subr.bf16.mxu0 0
        %3670 = vmatpush1.bf16.msra.mxu0 %v3647
        %3671 = vmatprep.subr.bf16.mxu0 0
        %3672 = vmatpush1.bf16.msra.mxu0 %v3648
        %3673 = vmatprep.subr.bf16.mxu0 0
        %3674 = vmatpush1.bf16.msra.mxu0 0
        %3675 = vmatprep.subr.bf16.mxu0 0
        %3676 = vmatpush1.bf16.msra.mxu0 0
        %3677 = vmatprep.subr.bf16.mxu0 0
        %3678 = vmatpush1.bf16.msra.mxu0 0
        %3679 = vmatprep.subr.bf16.mxu0 0
        %3680 = vmatpush1.bf16.msra.mxu0 0
        %3681 = vmatprep.subr.bf16.mxu0 0
        %3682 = vmatpush1.bf16.msra.mxu0 0
        %3683 = vmatprep.subr.bf16.mxu0 0
        %3684 = vmatpush1.bf16.msra.mxu0 0
        %3685 = vmatprep.subr.bf16.mxu0 0
        %3686 = vmatpush1.bf16.msra.mxu0 0
        %3687 = vmatprep.subr.bf16.mxu0 0
        %3688 = vmatpush1.bf16.msra.mxu0 0
        %3689 = vmatprep.mubr.bf16.mxu0 0
        %3690 = vmatmul.mubr.bf16.gmra.mrb[0].mxu0 %v2584
        %v3691 = vpop.f32.mrb[0].mxu0
        %v3692 = vadd.f32 0.0, %v3691
        %v3693 = vpop.f32.mrb[0].mxu0
        %v3694 = vpop.f32.mrb[0].mxu0
        %v3695 = vadd.f32 0.0, %v3694
        %v3696 = vpop.f32.mrb[0].mxu0
        %3697 = vmatprep.mubr.bf16.mxu0 0
        %3698 = vmatmul.mubr.bf16.gmra.mrb[0].mxu0 %v2585
        %v3699 = vpop.f32.mrb[0].mxu0
        %v3700 = vadd.f32 0.0, %v3699
        %v3701 = vpop.f32.mrb[0].mxu0
        %v3702 = vpop.f32.mrb[0].mxu0
        %v3703 = vadd.f32 0.0, %v3702
        %v3704 = vpop.f32.mrb[0].mxu0
        %3705 = vmatprep.mubr.bf16.mxu0 0
        %3706 = vmatmul.mubr.bf16.gmra.mrb[0].mxu0 %v2586
        %v3707 = vpop.f32.mrb[0].mxu0
        %v3708 = vadd.f32 0.0, %v3707
        %v3709 = vpop.f32.mrb[0].mxu0
        %v3710 = vpop.f32.mrb[0].mxu0
        %v3711 = vadd.f32 0.0, %v3710
        %v3712 = vpop.f32.mrb[0].mxu0
        %3713 = vmatprep.mubr.bf16.mxu0 0
        %3714 = vmatmul.mubr.bf16.gmra.mrb[0].mxu0 %v2587
        %v3715 = vpop.f32.mrb[0].mxu0
        %v3716 = vadd.f32 0.0, %v3715
        %v3717 = vpop.f32.mrb[0].mxu0
        %v3718 = vpop.f32.mrb[0].mxu0
        %v3719 = vadd.f32 0.0, %v3718
        %v3720 = vpop.f32.mrb[0].mxu0
        %3721 = vmatprep.mubr.bf16.mxu0 0
        %3722 = vmatmul.mubr.bf16.gmra.mrb[0].mxu0 %v2588
        %v3723 = vpop.f32.mrb[0].mxu0
        %v3724 = vadd.f32 0.0, %v3723
        %v3725 = vpop.f32.mrb[0].mxu0
        %v3726 = vpop.f32.mrb[0].mxu0
        %v3727 = vadd.f32 0.0, %v3726
        %v3728 = vpop.f32.mrb[0].mxu0
        %3729 = vmatprep.mubr.bf16.mxu0 0
        %3730 = vmatmul.mubr.bf16.gmra.mrb[0].mxu0 %v2589
        %v3731 = vpop.f32.mrb[0].mxu0
        %v3732 = vadd.f32 0.0, %v3731
        %v3733 = vpop.f32.mrb[0].mxu0
        %v3734 = vpop.f32.mrb[0].mxu0
        %v3735 = vadd.f32 0.0, %v3734
        %v3736 = vpop.f32.mrb[0].mxu0
        %3737 = vmatprep.mubr.bf16.mxu0 0
        %3738 = vmatmul.mubr.bf16.gmra.mrb[0].mxu0 %v2590
        %v3739 = vpop.f32.mrb[0].mxu0
        %v3740 = vadd.f32 0.0, %v3739
        %v3741 = vpop.f32.mrb[0].mxu0
        %v3742 = vpop.f32.mrb[0].mxu0
        %v3743 = vadd.f32 0.0, %v3742
        %v3744 = vpop.f32.mrb[0].mxu0
        %3745 = vmatprep.mubr.bf16.mxu0 0
        %3746 = vmatmul.mubr.bf16.gmra.mrb[0].mxu0 %v2591
        %v3747 = vpop.f32.mrb[0].mxu0
        %v3748 = vadd.f32 0.0, %v3747
        %v3749 = vpop.f32.mrb[0].mxu0
        %v3750 = vpop.f32.mrb[0].mxu0
        %v3751 = vadd.f32 0.0, %v3750
        %v3752 = vpop.f32.mrb[0].mxu0
        %3753 = vmatprep.mubr.bf16.mxu0 0
        %3754 = vmatmul.mubr.bf16.gmra.mrb[0].mxu0 %v2592
        %v3755 = vpop.f32.mrb[0].mxu0
        %v3756 = vadd.f32 0.0, %v3755
        %v3757 = vpop.f32.mrb[0].mxu0
        %v3758 = vpop.f32.mrb[0].mxu0
        %v3759 = vadd.f32 0.0, %v3758
        %v3760 = vpop.f32.mrb[0].mxu0
        %3761 = vmatprep.mubr.bf16.mxu0 0
        %3762 = vmatmul.mubr.bf16.gmra.mrb[0].mxu0 %v2593
        %v3763 = vpop.f32.mrb[0].mxu0
        %v3764 = vadd.f32 0.0, %v3763
        %v3765 = vpop.f32.mrb[0].mxu0
        %v3766 = vpop.f32.mrb[0].mxu0
        %v3767 = vadd.f32 0.0, %v3766
        %v3768 = vpop.f32.mrb[0].mxu0
        %3769 = vmatprep.mubr.bf16.mxu0 0
        %3770 = vmatmul.mubr.bf16.gmra.mrb[0].mxu0 %v2594
        %v3771 = vpop.f32.mrb[0].mxu0
        %v3772 = vadd.f32 0.0, %v3771
        %v3773 = vpop.f32.mrb[0].mxu0
        %v3774 = vpop.f32.mrb[0].mxu0
        %v3775 = vadd.f32 0.0, %v3774
        %v3776 = vpop.f32.mrb[0].mxu0
        %3777 = vmatprep.mubr.bf16.mxu0 0
        %3778 = vmatmul.mubr.bf16.gmra.mrb[0].mxu0 %v2595
        %v3779 = vpop.f32.mrb[0].mxu0
        %v3780 = vadd.f32 0.0, %v3779
        %v3781 = vpop.f32.mrb[0].mxu0
        %v3782 = vpop.f32.mrb[0].mxu0
        %v3783 = vadd.f32 0.0, %v3782
        %v3784 = vpop.f32.mrb[0].mxu0
        %3785 = vmatprep.mubr.bf16.mxu0 0
        %3786 = vmatmul.mubr.bf16.gmra.mrb[0].mxu0 %v2596
        %v3787 = vpop.f32.mrb[0].mxu0
        %v3788 = vadd.f32 0.0, %v3787
        %v3789 = vpop.f32.mrb[0].mxu0
        %v3790 = vpop.f32.mrb[0].mxu0
        %v3791 = vadd.f32 0.0, %v3790
        %v3792 = vpop.f32.mrb[0].mxu0
        %3793 = vmatprep.mubr.bf16.mxu0 0
        %3794 = vmatmul.mubr.bf16.gmra.mrb[0].mxu0 %v2597
        %v3795 = vpop.f32.mrb[0].mxu0
        %v3796 = vadd.f32 0.0, %v3795
        %v3797 = vpop.f32.mrb[0].mxu0
        %v3798 = vpop.f32.mrb[0].mxu0
        %v3799 = vadd.f32 0.0, %v3798
        %v3800 = vpop.f32.mrb[0].mxu0
        %3801 = vmatprep.mubr.bf16.mxu0 0
        %3802 = vmatmul.mubr.bf16.gmra.mrb[0].mxu0 %v2598
        %v3803 = vpop.f32.mrb[0].mxu0
        %v3804 = vadd.f32 0.0, %v3803
        %v3805 = vpop.f32.mrb[0].mxu0
        %v3806 = vpop.f32.mrb[0].mxu0
        %v3807 = vadd.f32 0.0, %v3806
        %v3808 = vpop.f32.mrb[0].mxu0
        %3809 = vmatprep.mubr.bf16.mxu0 0
        %3810 = vmatmul.mubr.bf16.gmra.mrb[0].mxu0 %v3168
        %v3811 = vpop.f32.mrb[0].mxu0
        %v3812 = vadd.f32 0.0, %v3811
        %v3813 = vpop.f32.mrb[0].mxu0
        %v3814 = vpop.f32.mrb[0].mxu0
        %v3815 = vadd.f32 0.0, %v3814
        %v3816 = vpop.f32.mrb[0].mxu0
        %3817 = vdwg.mxu0
        %v3818 = vadd.f32 %v3560, %v3692
        %v3819 = vadd.f32 %v3561, %v3695
        %v3820 = vadd.f32 %v3562, %v3700
        %v3821 = vadd.f32 %v3563, %v3703
        %v3822 = vadd.f32 %v3564, %v3708
        %v3823 = vadd.f32 %v3565, %v3711
        %v3824 = vadd.f32 %v3566, %v3716
        %v3825 = vadd.f32 %v3567, %v3719
        %v3826 = vadd.f32 %v3568, %v3724
        %v3827 = vadd.f32 %v3569, %v3727
        %v3828 = vadd.f32 %v3570, %v3732
        %v3829 = vadd.f32 %v3571, %v3735
        %v3830 = vadd.f32 %v3572, %v3740
        %v3831 = vadd.f32 %v3573, %v3743
        %v3832 = vadd.f32 %v3574, %v3748
        %v3833 = vadd.f32 %v3575, %v3751
        %v3834 = vadd.f32 %v3576, %v3756
        %v3835 = vadd.f32 %v3577, %v3759
        %v3836 = vadd.f32 %v3578, %v3764
        %v3837 = vadd.f32 %v3579, %v3767
        %v3838 = vadd.f32 %v3580, %v3772
        %v3839 = vadd.f32 %v3581, %v3775
        %v3840 = vadd.f32 %v3582, %v3780
        %v3841 = vadd.f32 %v3583, %v3783
        %v3842 = vadd.f32 %v3584, %v3788
        %v3843 = vadd.f32 %v3585, %v3791
        %v3844 = vadd.f32 %v3586, %v3796
        %v3845 = vadd.f32 %v3587, %v3799
        %v3846 = vadd.f32 %v3588, %v3804
        %v3847 = vadd.f32 %v3589, %v3807
        %v3848 = vadd.f32 %v3590, %v3812
        %v3849 = vadd.f32 %v3591, %v3815
        %v3850 = vld [vmem:[#allocation2 + $0x10] sm:$0xff]
        %v3851 = vld [vmem:[#allocation2 + $0x18] sm:$0xff]
        %v3852 = vld [vmem:[#allocation2 + $0x20] sm:$0xff]
        %v3853 = vld [vmem:[#allocation2 + $0x28] sm:$0xff]
        %v3854 = vld [vmem:[#allocation2 + $0x30] sm:$0xff]
        %v3855 = vld [vmem:[#allocation2 + $0x38] sm:$0xff]
        %v3856 = vld [vmem:[#allocation2 + $0x40] sm:$0xff]
        %v3857 = vld [vmem:[#allocation2 + $0x48] sm:$0xff]
        %v3858 = vld [vmem:[#allocation2 + $0x50] sm:$0xff]
        %v3859 = vld [vmem:[#allocation2 + $0x58] sm:$0xff]
        %v3860 = vld [vmem:[#allocation2 + $0x60] sm:$0xff]
        %v3861 = vld [vmem:[#allocation2 + $0x68] sm:$0xff]
        %v3862 = vld [vmem:[#allocation2 + $0x70] sm:$0xff]
        %v3863 = vld [vmem:[#allocation2 + $0x78] sm:$0xff]
        %v3864 = vld [vmem:[#allocation2 + $0x80] sm:$0xff]
        %v3865 = vld [vmem:[#allocation2 + $0x88] sm:$0xff]
        %v3866 = vld [vmem:[#allocation2 + $0x90] sm:$0x1]
        %v3867 = vmul.bf16 %v3850, %v2606
        %v3868 = vmul.bf16 %v3851, %v2614
        %v3869 = vmul.bf16 %v3852, %v2622
        %v3870 = vmul.bf16 %v3853, %v2630
        %v3871 = vmul.bf16 %v3854, %v2638
        %v3872 = vmul.bf16 %v3855, %v2646
        %v3873 = vmul.bf16 %v3856, %v2654
        %v3874 = vmul.bf16 %v3857, %v2662
        %v3875 = vmul.bf16 %v3858, %v2670
        %v3876 = vmul.bf16 %v3859, %v2678
        %v3877 = vmul.bf16 %v3860, %v2686
        %v3878 = vmul.bf16 %v3861, %v2694
        %v3879 = vmul.bf16 %v3862, %v2702
        %v3880 = vmul.bf16 %v3863, %v2710
        %v3881 = vmul.bf16 %v3864, %v2718
        %v3882 = vmul.bf16 %v3865, %v2726
        %v3883 = vmul.bf16 %v3866, %v2722
        %s3884 = scalar_lea.vmem [#allocation6], 320
        %v3885 = vld [vmem:[%s3884] sm:$0xf]
        %v3886 = vld [vmem:[%s3884 + $0x4] sm:$0xf]
        %v3887 = vld [vmem:[%s3884 + $0x8] sm:$0xf]
        %v3888 = vld [vmem:[%s3884 + $0xc] sm:$0xf]
        %v3889 = vld [vmem:[%s3884 + $0x10] sm:$0xf]
        %v3890 = vld [vmem:[%s3884 + $0x14] sm:$0xf]
        %v3891 = vld [vmem:[%s3884 + $0x18] sm:$0xf]
        %v3892 = vld [vmem:[%s3884 + $0x1c] sm:$0xf]
        %v3893 = vld [vmem:[%s3884 + $0x20] sm:$0xf]
        %v3894 = vld [vmem:[%s3884 + $0x24] sm:$0xf]
        %v3895 = vld [vmem:[%s3884 + $0x28] sm:$0xf]
        %v3896 = vld [vmem:[%s3884 + $0x2c] sm:$0xf]
        %v3897 = vld [vmem:[%s3884 + $0x30] sm:$0xf]
        %v3898 = vld [vmem:[%s3884 + $0x34] sm:$0xf]
        %v3899 = vld [vmem:[%s3884 + $0x38] sm:$0xf]
        %v3900 = vld [vmem:[%s3884 + $0x3c] sm:$0xf]
        %v3902 = vshrl.u32 %v3867, 16
        %v3904 = vshll.u32 %v3867, 16
        %v3906 = vrot.slane %v3904, 1
        %v3907 = vor.u32 %v3902, %v3906
        %v3909 = vshll.u32 %v3868, 16
        %v3911 = vrot.slane %v3909, 1
        %v3912 = vsel %vm1821, %v3907, %v3911
        %v3913 = vshrl.u32 %v3868, 16
        %v3915 = vor.u32 %v3913, %v3911
        %v3917 = vshll.u32 %v3869, 16
        %v3919 = vrot.slane %v3917, 1
        %v3920 = vsel %vm1821, %v3915, %v3919
        %v3921 = vshrl.u32 %v3869, 16
        %v3923 = vor.u32 %v3921, %v3919
        %v3925 = vshll.u32 %v3870, 16
        %v3927 = vrot.slane %v3925, 1
        %v3928 = vsel %vm1821, %v3923, %v3927
        %v3929 = vshrl.u32 %v3870, 16
        %v3931 = vor.u32 %v3929, %v3927
        %v3933 = vshll.u32 %v3871, 16
        %v3935 = vrot.slane %v3933, 1
        %v3936 = vsel %vm1821, %v3931, %v3935
        %v3937 = vshrl.u32 %v3871, 16
        %v3939 = vor.u32 %v3937, %v3935
        %v3941 = vshll.u32 %v3872, 16
        %v3943 = vrot.slane %v3941, 1
        %v3944 = vsel %vm1821, %v3939, %v3943
        %v3945 = vshrl.u32 %v3872, 16
        %v3947 = vor.u32 %v3945, %v3943
        %v3949 = vshll.u32 %v3873, 16
        %v3951 = vrot.slane %v3949, 1
        %v3952 = vsel %vm1821, %v3947, %v3951
        %v3953 = vshrl.u32 %v3873, 16
        %v3955 = vor.u32 %v3953, %v3951
        %v3957 = vshll.u32 %v3874, 16
        %v3959 = vrot.slane %v3957, 1
        %v3960 = vsel %vm1821, %v3955, %v3959
        %v3961 = vshrl.u32 %v3874, 16
        %v3963 = vor.u32 %v3961, %v3959
        %v3965 = vshll.u32 %v3875, 16
        %v3967 = vrot.slane %v3965, 1
        %v3968 = vsel %vm1821, %v3963, %v3967
        %v3969 = vshrl.u32 %v3875, 16
        %v3971 = vor.u32 %v3969, %v3967
        %v3973 = vshll.u32 %v3876, 16
        %v3975 = vrot.slane %v3973, 1
        %v3976 = vsel %vm1821, %v3971, %v3975
        %v3977 = vshrl.u32 %v3876, 16
        %v3979 = vor.u32 %v3977, %v3975
        %v3981 = vshll.u32 %v3877, 16
        %v3983 = vrot.slane %v3981, 1
        %v3984 = vsel %vm1821, %v3979, %v3983
        %v3985 = vshrl.u32 %v3877, 16
        %v3987 = vor.u32 %v3985, %v3983
        %v3989 = vshll.u32 %v3878, 16
        %v3991 = vrot.slane %v3989, 1
        %v3992 = vsel %vm1821, %v3987, %v3991
        %v3993 = vshrl.u32 %v3878, 16
        %v3995 = vor.u32 %v3993, %v3991
        %v3997 = vshll.u32 %v3879, 16
        %v3999 = vrot.slane %v3997, 1
        %v4000 = vsel %vm1821, %v3995, %v3999
        %v4001 = vshrl.u32 %v3879, 16
        %v4003 = vor.u32 %v4001, %v3999
        %v4005 = vshll.u32 %v3880, 16
        %v4007 = vrot.slane %v4005, 1
        %v4008 = vsel %vm1821, %v4003, %v4007
        %v4009 = vshrl.u32 %v3880, 16
        %v4011 = vor.u32 %v4009, %v4007
        %v4013 = vshll.u32 %v3881, 16
        %v4015 = vrot.slane %v4013, 1
        %v4016 = vsel %vm1821, %v4011, %v4015
        %v4017 = vshrl.u32 %v3881, 16
        %v4019 = vor.u32 %v4017, %v4015
        %v4021 = vshll.u32 %v3882, 16
        %v4023 = vrot.slane %v4021, 1
        %v4024 = vsel %vm1821, %v4019, %v4023
        %v4025 = vshrl.u32 %v3882, 16
        %v4027 = vor.u32 %v4025, %v4023
        %v4029 = vshll.u32 %v3883, 16
        %v4031 = vrot.slane %v4029, 1
        %v4032 = vsel %vm1821, %v4027, %v4031
        %v4065 = vunpack.c.l.b16 %v3885
        %v4066 = vunpack.c.l.b16 %v3886
        %v4067 = vunpack.c.l.b16 %v3887
        %v4068 = vunpack.c.l.b16 %v3888
        %v4069 = vunpack.c.l.b16 %v3889
        %v4070 = vunpack.c.l.b16 %v3890
        %v4071 = vunpack.c.l.b16 %v3891
        %v4072 = vunpack.c.l.b16 %v3892
        %v4073 = vunpack.c.l.b16 %v3893
        %v4074 = vunpack.c.l.b16 %v3894
        %v4075 = vunpack.c.l.b16 %v3895
        %v4076 = vunpack.c.l.b16 %v3896
        %v4077 = vunpack.c.l.b16 %v3897
        %v4078 = vunpack.c.l.b16 %v3898
        %v4079 = vunpack.c.l.b16 %v3899
        %v4080 = vunpack.c.l.b16 %v3900
        %v4081 = vpack.c.b16 %v4066, %v4065
        %v4082 = vpack.c.b16 %v4068, %v4067
        %v4083 = vpack.c.b16 %v4070, %v4069
        %v4084 = vpack.c.b16 %v4072, %v4071
        %v4085 = vpack.c.b16 %v4074, %v4073
        %v4086 = vpack.c.b16 %v4076, %v4075
        %v4087 = vpack.c.b16 %v4078, %v4077
        %v4088 = vpack.c.b16 %v4080, %v4079
        %4097 = vmatprep.subr.bf16.mxu0 0
        %4098 = vmatpush1.bf16.msra.mxu0 %v4081
        %4099 = vmatprep.subr.bf16.mxu0 0
        %4100 = vmatpush1.bf16.msra.mxu0 %v4082
        %4101 = vmatprep.subr.bf16.mxu0 0
        %4102 = vmatpush1.bf16.msra.mxu0 %v4083
        %4103 = vmatprep.subr.bf16.mxu0 0
        %4104 = vmatpush1.bf16.msra.mxu0 %v4084
        %4105 = vmatprep.subr.bf16.mxu0 0
        %4106 = vmatpush1.bf16.msra.mxu0 %v4085
        %4107 = vmatprep.subr.bf16.mxu0 0
        %4108 = vmatpush1.bf16.msra.mxu0 %v4086
        %4109 = vmatprep.subr.bf16.mxu0 0
        %4110 = vmatpush1.bf16.msra.mxu0 %v4087
        %4111 = vmatprep.subr.bf16.mxu0 0
        %4112 = vmatpush1.bf16.msra.mxu0 %v4088
        %4113 = vmatprep.subr.bf16.mxu0 0
        %4114 = vmatpush1.bf16.msra.mxu0 0
        %4115 = vmatprep.subr.bf16.mxu0 0
        %4116 = vmatpush1.bf16.msra.mxu0 0
        %4117 = vmatprep.subr.bf16.mxu0 0
        %4118 = vmatpush1.bf16.msra.mxu0 0
        %4119 = vmatprep.subr.bf16.mxu0 0
        %4120 = vmatpush1.bf16.msra.mxu0 0
        %4121 = vmatprep.subr.bf16.mxu0 0
        %4122 = vmatpush1.bf16.msra.mxu0 0
        %4123 = vmatprep.subr.bf16.mxu0 0
        %4124 = vmatpush1.bf16.msra.mxu0 0
        %4125 = vmatprep.subr.bf16.mxu0 0
        %4126 = vmatpush1.bf16.msra.mxu0 0
        %4127 = vmatprep.subr.bf16.mxu0 0
        %4128 = vmatpush1.bf16.msra.mxu0 0
        %4129 = vmatprep.mubr.bf16.mxu0 0
        %4130 = vmatmul.mubr.bf16.gmra.mrb[0].mxu0 %v3912
        %v4131 = vpop.f32.mrb[0].mxu0
        %v4132 = vadd.f32 0.0, %v4131
        %v4133 = vpop.f32.mrb[0].mxu0
        %v4134 = vpop.f32.mrb[0].mxu0
        %v4135 = vadd.f32 0.0, %v4134
        %v4136 = vpop.f32.mrb[0].mxu0
        %4137 = vmatprep.mubr.bf16.mxu0 0
        %4138 = vmatmul.mubr.bf16.gmra.mrb[0].mxu0 %v3920
        %v4139 = vpop.f32.mrb[0].mxu0
        %v4140 = vadd.f32 0.0, %v4139
        %v4141 = vpop.f32.mrb[0].mxu0
        %v4142 = vpop.f32.mrb[0].mxu0
        %v4143 = vadd.f32 0.0, %v4142
        %v4144 = vpop.f32.mrb[0].mxu0
        %4145 = vmatprep.mubr.bf16.mxu0 0
        %4146 = vmatmul.mubr.bf16.gmra.mrb[0].mxu0 %v3928
        %v4147 = vpop.f32.mrb[0].mxu0
        %v4148 = vadd.f32 0.0, %v4147
        %v4149 = vpop.f32.mrb[0].mxu0
        %v4150 = vpop.f32.mrb[0].mxu0
        %v4151 = vadd.f32 0.0, %v4150
        %v4152 = vpop.f32.mrb[0].mxu0
        %4153 = vmatprep.mubr.bf16.mxu0 0
        %4154 = vmatmul.mubr.bf16.gmra.mrb[0].mxu0 %v3936
        %v4155 = vpop.f32.mrb[0].mxu0
        %v4156 = vadd.f32 0.0, %v4155
        %v4157 = vpop.f32.mrb[0].mxu0
        %v4158 = vpop.f32.mrb[0].mxu0
        %v4159 = vadd.f32 0.0, %v4158
        %v4160 = vpop.f32.mrb[0].mxu0
        %4161 = vmatprep.mubr.bf16.mxu0 0
        %4162 = vmatmul.mubr.bf16.gmra.mrb[0].mxu0 %v3944
        %v4163 = vpop.f32.mrb[0].mxu0
        %v4164 = vadd.f32 0.0, %v4163
        %v4165 = vpop.f32.mrb[0].mxu0
        %v4166 = vpop.f32.mrb[0].mxu0
        %v4167 = vadd.f32 0.0, %v4166
        %v4168 = vpop.f32.mrb[0].mxu0
        %4169 = vmatprep.mubr.bf16.mxu0 0
        %4170 = vmatmul.mubr.bf16.gmra.mrb[0].mxu0 %v3952
        %v4171 = vpop.f32.mrb[0].mxu0
        %v4172 = vadd.f32 0.0, %v4171
        %v4173 = vpop.f32.mrb[0].mxu0
        %v4174 = vpop.f32.mrb[0].mxu0
        %v4175 = vadd.f32 0.0, %v4174
        %v4176 = vpop.f32.mrb[0].mxu0
        %4177 = vmatprep.mubr.bf16.mxu0 0
        %4178 = vmatmul.mubr.bf16.gmra.mrb[0].mxu0 %v3960
        %v4179 = vpop.f32.mrb[0].mxu0
        %v4180 = vadd.f32 0.0, %v4179
        %v4181 = vpop.f32.mrb[0].mxu0
        %v4182 = vpop.f32.mrb[0].mxu0
        %v4183 = vadd.f32 0.0, %v4182
        %v4184 = vpop.f32.mrb[0].mxu0
        %4185 = vmatprep.mubr.bf16.mxu0 0
        %4186 = vmatmul.mubr.bf16.gmra.mrb[0].mxu0 %v3968
        %v4187 = vpop.f32.mrb[0].mxu0
        %v4188 = vadd.f32 0.0, %v4187
        %v4189 = vpop.f32.mrb[0].mxu0
        %v4190 = vpop.f32.mrb[0].mxu0
        %v4191 = vadd.f32 0.0, %v4190
        %v4192 = vpop.f32.mrb[0].mxu0
        %4193 = vmatprep.mubr.bf16.mxu0 0
        %4194 = vmatmul.mubr.bf16.gmra.mrb[0].mxu0 %v3976
        %v4195 = vpop.f32.mrb[0].mxu0
        %v4196 = vadd.f32 0.0, %v4195
        %v4197 = vpop.f32.mrb[0].mxu0
        %v4198 = vpop.f32.mrb[0].mxu0
        %v4199 = vadd.f32 0.0, %v4198
        %v4200 = vpop.f32.mrb[0].mxu0
        %4201 = vmatprep.mubr.bf16.mxu0 0
        %4202 = vmatmul.mubr.bf16.gmra.mrb[0].mxu0 %v3984
        %v4203 = vpop.f32.mrb[0].mxu0
        %v4204 = vadd.f32 0.0, %v4203
        %v4205 = vpop.f32.mrb[0].mxu0
        %v4206 = vpop.f32.mrb[0].mxu0
        %v4207 = vadd.f32 0.0, %v4206
        %v4208 = vpop.f32.mrb[0].mxu0
        %4209 = vmatprep.mubr.bf16.mxu0 0
        %4210 = vmatmul.mubr.bf16.gmra.mrb[0].mxu0 %v3992
        %v4211 = vpop.f32.mrb[0].mxu0
        %v4212 = vadd.f32 0.0, %v4211
        %v4213 = vpop.f32.mrb[0].mxu0
        %v4214 = vpop.f32.mrb[0].mxu0
        %v4215 = vadd.f32 0.0, %v4214
        %v4216 = vpop.f32.mrb[0].mxu0
        %4217 = vmatprep.mubr.bf16.mxu0 0
        %4218 = vmatmul.mubr.bf16.gmra.mrb[0].mxu0 %v4000
        %v4219 = vpop.f32.mrb[0].mxu0
        %v4220 = vadd.f32 0.0, %v4219
        %v4221 = vpop.f32.mrb[0].mxu0
        %v4222 = vpop.f32.mrb[0].mxu0
        %v4223 = vadd.f32 0.0, %v4222
        %v4224 = vpop.f32.mrb[0].mxu0
        %4225 = vmatprep.mubr.bf16.mxu0 0
        %4226 = vmatmul.mubr.bf16.gmra.mrb[0].mxu0 %v4008
        %v4227 = vpop.f32.mrb[0].mxu0
        %v4228 = vadd.f32 0.0, %v4227
        %v4229 = vpop.f32.mrb[0].mxu0
        %v4230 = vpop.f32.mrb[0].mxu0
        %v4231 = vadd.f32 0.0, %v4230
        %v4232 = vpop.f32.mrb[0].mxu0
        %4233 = vmatprep.mubr.bf16.mxu0 0
        %4234 = vmatmul.mubr.bf16.gmra.mrb[0].mxu0 %v4016
        %v4235 = vpop.f32.mrb[0].mxu0
        %v4236 = vadd.f32 0.0, %v4235
        %v4237 = vpop.f32.mrb[0].mxu0
        %v4238 = vpop.f32.mrb[0].mxu0
        %v4239 = vadd.f32 0.0, %v4238
        %v4240 = vpop.f32.mrb[0].mxu0
        %4241 = vmatprep.mubr.bf16.mxu0 0
        %4242 = vmatmul.mubr.bf16.gmra.mrb[0].mxu0 %v4024
        %v4243 = vpop.f32.mrb[0].mxu0
        %v4244 = vadd.f32 0.0, %v4243
        %v4245 = vpop.f32.mrb[0].mxu0
        %v4246 = vpop.f32.mrb[0].mxu0
        %v4247 = vadd.f32 0.0, %v4246
        %v4248 = vpop.f32.mrb[0].mxu0
        %4249 = vmatprep.mubr.bf16.mxu0 0
        %4250 = vmatmul.mubr.bf16.gmra.mrb[0].mxu0 %v4032
        %v4251 = vpop.f32.mrb[0].mxu0
        %v4252 = vadd.f32 0.0, %v4251
        %v4253 = vpop.f32.mrb[0].mxu0
        %v4254 = vpop.f32.mrb[0].mxu0
        %v4255 = vadd.f32 0.0, %v4254
        %v4256 = vpop.f32.mrb[0].mxu0
        %4257 = vdwg.mxu0
        %v4258 = vadd.f32 %v3818, %v4132
        %v4259 = vadd.f32 %v3819, %v4135
        %v4260 = vadd.f32 %v3820, %v4140
        %v4261 = vadd.f32 %v3821, %v4143
        %v4262 = vadd.f32 %v3822, %v4148
        %v4263 = vadd.f32 %v3823, %v4151
        %v4264 = vadd.f32 %v3824, %v4156
        %v4265 = vadd.f32 %v3825, %v4159
        %v4266 = vadd.f32 %v3826, %v4164
        %v4267 = vadd.f32 %v3827, %v4167
        %v4268 = vadd.f32 %v3828, %v4172
        %v4269 = vadd.f32 %v3829, %v4175
        %v4270 = vadd.f32 %v3830, %v4180
        %v4271 = vadd.f32 %v3831, %v4183
        %v4272 = vadd.f32 %v3832, %v4188
        %v4273 = vadd.f32 %v3833, %v4191
        %v4274 = vadd.f32 %v3834, %v4196
        %v4275 = vadd.f32 %v3835, %v4199
        %v4276 = vadd.f32 %v3836, %v4204
        %v4277 = vadd.f32 %v3837, %v4207
        %v4278 = vadd.f32 %v3838, %v4212
        %v4279 = vadd.f32 %v3839, %v4215
        %v4280 = vadd.f32 %v3840, %v4220
        %v4281 = vadd.f32 %v3841, %v4223
        %v4282 = vadd.f32 %v3842, %v4228
        %v4283 = vadd.f32 %v3843, %v4231
        %v4284 = vadd.f32 %v3844, %v4236
        %v4285 = vadd.f32 %v3845, %v4239
        %v4286 = vadd.f32 %v3846, %v4244
        %v4287 = vadd.f32 %v3847, %v4247
        %v4288 = vadd.f32 %v3848, %v4252
        %v4289 = vadd.f32 %v3849, %v4255
        %v4290 = vld [vmem:[#allocation2 + $0x10] sm:$0x80]
        %v4291 = vld [vmem:[#allocation2 + $0x90] sm:$0xff]
        %v4292 = vmul.bf16 %v4290, %v1825
        %v4293 = vmul.bf16 %v3851, %v1833
        %v4294 = vmul.bf16 %v3852, %v1841
        %v4295 = vmul.bf16 %v3853, %v1849
        %v4296 = vmul.bf16 %v3854, %v1857
        %v4297 = vmul.bf16 %v3855, %v1865
        %v4298 = vmul.bf16 %v3856, %v1873
        %v4299 = vmul.bf16 %v3857, %v1881
        %v4300 = vmul.bf16 %v3858, %v1889
        %v4301 = vmul.bf16 %v3859, %v1897
        %v4302 = vmul.bf16 %v3860, %v1905
        %v4303 = vmul.bf16 %v3861, %v1913
        %v4304 = vmul.bf16 %v3862, %v1921
        %v4305 = vmul.bf16 %v3863, %v1929
        %v4306 = vmul.bf16 %v3864, %v1937
        %v4307 = vmul.bf16 %v3865, %v1945
        %v4308 = vmul.bf16 %v4291, %v1948
        %s4309 = scalar_lea.vmem [#allocation6], 384
        %v4310 = vld [vmem:[%s4309] sm:$0xf]
        %v4311 = vld [vmem:[%s4309 + $0x4] sm:$0xf]
        %v4312 = vld [vmem:[%s4309 + $0x8] sm:$0xf]
        %v4313 = vld [vmem:[%s4309 + $0xc] sm:$0xf]
        %v4314 = vld [vmem:[%s4309 + $0x10] sm:$0xf]
        %v4315 = vld [vmem:[%s4309 + $0x14] sm:$0xf]
        %v4316 = vld [vmem:[%s4309 + $0x18] sm:$0xf]
        %v4317 = vld [vmem:[%s4309 + $0x1c] sm:$0xf]
        %v4318 = vld [vmem:[%s4309 + $0x20] sm:$0xf]
        %v4319 = vld [vmem:[%s4309 + $0x24] sm:$0xf]
        %v4320 = vld [vmem:[%s4309 + $0x28] sm:$0xf]
        %v4321 = vld [vmem:[%s4309 + $0x2c] sm:$0xf]
        %v4322 = vld [vmem:[%s4309 + $0x30] sm:$0xf]
        %v4323 = vld [vmem:[%s4309 + $0x34] sm:$0xf]
        %v4324 = vld [vmem:[%s4309 + $0x38] sm:$0xf]
        %v4325 = vld [vmem:[%s4309 + $0x3c] sm:$0xf]
        %v4327 = vshrl.u32 %v4292, 16
        %v4329 = vrot.slane %v4327, 7
        %v4331 = vshrl.u32 %v4293, 16
        %v4333 = vrot.slane %v4331, 7
        %v4334 = vshll.u32 %v4293, 16
        %v4336 = vor.u32 %v4333, %v4334
        %v4337 = vsel %vm2225, %v4329, %v4336
        %v4339 = vshrl.u32 %v4294, 16
        %v4341 = vrot.slane %v4339, 7
        %v4342 = vshll.u32 %v4294, 16
        %v4344 = vor.u32 %v4341, %v4342
        %v4345 = vsel %vm2225, %v4333, %v4344
        %v4347 = vshrl.u32 %v4295, 16
        %v4349 = vrot.slane %v4347, 7
        %v4350 = vshll.u32 %v4295, 16
        %v4352 = vor.u32 %v4349, %v4350
        %v4353 = vsel %vm2225, %v4341, %v4352
        %v4355 = vshrl.u32 %v4296, 16
        %v4357 = vrot.slane %v4355, 7
        %v4358 = vshll.u32 %v4296, 16
        %v4360 = vor.u32 %v4357, %v4358
        %v4361 = vsel %vm2225, %v4349, %v4360
        %v4363 = vshrl.u32 %v4297, 16
        %v4365 = vrot.slane %v4363, 7
        %v4366 = vshll.u32 %v4297, 16
        %v4368 = vor.u32 %v4365, %v4366
        %v4369 = vsel %vm2225, %v4357, %v4368
        %v4371 = vshrl.u32 %v4298, 16
        %v4373 = vrot.slane %v4371, 7
        %v4374 = vshll.u32 %v4298, 16
        %v4376 = vor.u32 %v4373, %v4374
        %v4377 = vsel %vm2225, %v4365, %v4376
        %v4379 = vshrl.u32 %v4299, 16
        %v4381 = vrot.slane %v4379, 7
        %v4382 = vshll.u32 %v4299, 16
        %v4384 = vor.u32 %v4381, %v4382
        %v4385 = vsel %vm2225, %v4373, %v4384
        %v4387 = vshrl.u32 %v4300, 16
        %v4389 = vrot.slane %v4387, 7
        %v4390 = vshll.u32 %v4300, 16
        %v4392 = vor.u32 %v4389, %v4390
        %v4393 = vsel %vm2225, %v4381, %v4392
        %v4395 = vshrl.u32 %v4301, 16
        %v4397 = vrot.slane %v4395, 7
        %v4398 = vshll.u32 %v4301, 16
        %v4400 = vor.u32 %v4397, %v4398
        %v4401 = vsel %vm2225, %v4389, %v4400
        %v4403 = vshrl.u32 %v4302, 16
        %v4405 = vrot.slane %v4403, 7
        %v4406 = vshll.u32 %v4302, 16
        %v4408 = vor.u32 %v4405, %v4406
        %v4409 = vsel %vm2225, %v4397, %v4408
        %v4411 = vshrl.u32 %v4303, 16
        %v4413 = vrot.slane %v4411, 7
        %v4414 = vshll.u32 %v4303, 16
        %v4416 = vor.u32 %v4413, %v4414
        %v4417 = vsel %vm2225, %v4405, %v4416
        %v4419 = vshrl.u32 %v4304, 16
        %v4421 = vrot.slane %v4419, 7
        %v4422 = vshll.u32 %v4304, 16
        %v4424 = vor.u32 %v4421, %v4422
        %v4425 = vsel %vm2225, %v4413, %v4424
        %v4427 = vshrl.u32 %v4305, 16
        %v4429 = vrot.slane %v4427, 7
        %v4430 = vshll.u32 %v4305, 16
        %v4432 = vor.u32 %v4429, %v4430
        %v4433 = vsel %vm2225, %v4421, %v4432
        %v4435 = vshrl.u32 %v4306, 16
        %v4437 = vrot.slane %v4435, 7
        %v4438 = vshll.u32 %v4306, 16
        %v4440 = vor.u32 %v4437, %v4438
        %v4441 = vsel %vm2225, %v4429, %v4440
        %v4443 = vshrl.u32 %v4307, 16
        %v4445 = vrot.slane %v4443, 7
        %v4446 = vshll.u32 %v4307, 16
        %v4448 = vor.u32 %v4445, %v4446
        %v4449 = vsel %vm2225, %v4437, %v4448
        %v4451 = vshrl.u32 %v4308, 16
        %v4453 = vrot.slane %v4451, 7
        %v4454 = vshll.u32 %v4308, 16
        %v4456 = vor.u32 %v4453, %v4454
        %v4457 = vsel %vm2225, %v4445, %v4456
        %v4490 = vunpack.c.l.b16 %v4310
        %v4491 = vunpack.c.l.b16 %v4311
        %v4492 = vunpack.c.l.b16 %v4312
        %v4493 = vunpack.c.l.b16 %v4313
        %v4494 = vunpack.c.l.b16 %v4314
        %v4495 = vunpack.c.l.b16 %v4315
        %v4496 = vunpack.c.l.b16 %v4316
        %v4497 = vunpack.c.l.b16 %v4317
        %v4498 = vunpack.c.l.b16 %v4318
        %v4499 = vunpack.c.l.b16 %v4319
        %v4500 = vunpack.c.l.b16 %v4320
        %v4501 = vunpack.c.l.b16 %v4321
        %v4502 = vunpack.c.l.b16 %v4322
        %v4503 = vunpack.c.l.b16 %v4323
        %v4504 = vunpack.c.l.b16 %v4324
        %v4505 = vunpack.c.l.b16 %v4325
        %v4506 = vpack.c.b16 %v4491, %v4490
        %v4507 = vpack.c.b16 %v4493, %v4492
        %v4508 = vpack.c.b16 %v4495, %v4494
        %v4509 = vpack.c.b16 %v4497, %v4496
        %v4510 = vpack.c.b16 %v4499, %v4498
        %v4511 = vpack.c.b16 %v4501, %v4500
        %v4512 = vpack.c.b16 %v4503, %v4502
        %v4513 = vpack.c.b16 %v4505, %v4504
        %4522 = vmatprep.subr.bf16.mxu0 0
        %4523 = vmatpush1.bf16.msra.mxu0 %v4506
        %4524 = vmatprep.subr.bf16.mxu0 0
        %4525 = vmatpush1.bf16.msra.mxu0 %v4507
        %4526 = vmatprep.subr.bf16.mxu0 0
        %4527 = vmatpush1.bf16.msra.mxu0 %v4508
        %4528 = vmatprep.subr.bf16.mxu0 0
        %4529 = vmatpush1.bf16.msra.mxu0 %v4509
        %4530 = vmatprep.subr.bf16.mxu0 0
        %4531 = vmatpush1.bf16.msra.mxu0 %v4510
        %4532 = vmatprep.subr.bf16.mxu0 0
        %4533 = vmatpush1.bf16.msra.mxu0 %v4511
        %4534 = vmatprep.subr.bf16.mxu0 0
        %4535 = vmatpush1.bf16.msra.mxu0 %v4512
        %4536 = vmatprep.subr.bf16.mxu0 0
        %4537 = vmatpush1.bf16.msra.mxu0 %v4513
        %4538 = vmatprep.subr.bf16.mxu0 0
        %4539 = vmatpush1.bf16.msra.mxu0 0
        %4540 = vmatprep.subr.bf16.mxu0 0
        %4541 = vmatpush1.bf16.msra.mxu0 0
        %4542 = vmatprep.subr.bf16.mxu0 0
        %4543 = vmatpush1.bf16.msra.mxu0 0
        %4544 = vmatprep.subr.bf16.mxu0 0
        %4545 = vmatpush1.bf16.msra.mxu0 0
        %4546 = vmatprep.subr.bf16.mxu0 0
        %4547 = vmatpush1.bf16.msra.mxu0 0
        %4548 = vmatprep.subr.bf16.mxu0 0
        %4549 = vmatpush1.bf16.msra.mxu0 0
        %4550 = vmatprep.subr.bf16.mxu0 0
        %4551 = vmatpush1.bf16.msra.mxu0 0
        %4552 = vmatprep.subr.bf16.mxu0 0
        %4553 = vmatpush1.bf16.msra.mxu0 0
        %4554 = vmatprep.mubr.bf16.mxu0 0
        %4555 = vmatmul.mubr.bf16.gmra.mrb[0].mxu0 %v4337
        %v4556 = vpop.f32.mrb[0].mxu0
        %v4557 = vadd.f32 0.0, %v4556
        %v4558 = vpop.f32.mrb[0].mxu0
        %v4559 = vpop.f32.mrb[0].mxu0
        %v4560 = vadd.f32 0.0, %v4559
        %v4561 = vpop.f32.mrb[0].mxu0
        %4562 = vmatprep.mubr.bf16.mxu0 0
        %4563 = vmatmul.mubr.bf16.gmra.mrb[0].mxu0 %v4345
        %v4564 = vpop.f32.mrb[0].mxu0
        %v4565 = vadd.f32 0.0, %v4564
        %v4566 = vpop.f32.mrb[0].mxu0
        %v4567 = vpop.f32.mrb[0].mxu0
        %v4568 = vadd.f32 0.0, %v4567
        %v4569 = vpop.f32.mrb[0].mxu0
        %4570 = vmatprep.mubr.bf16.mxu0 0
        %4571 = vmatmul.mubr.bf16.gmra.mrb[0].mxu0 %v4353
        %v4572 = vpop.f32.mrb[0].mxu0
        %v4573 = vadd.f32 0.0, %v4572
        %v4574 = vpop.f32.mrb[0].mxu0
        %v4575 = vpop.f32.mrb[0].mxu0
        %v4576 = vadd.f32 0.0, %v4575
        %v4577 = vpop.f32.mrb[0].mxu0
        %4578 = vmatprep.mubr.bf16.mxu0 0
        %4579 = vmatmul.mubr.bf16.gmra.mrb[0].mxu0 %v4361
        %v4580 = vpop.f32.mrb[0].mxu0
        %v4581 = vadd.f32 0.0, %v4580
        %v4582 = vpop.f32.mrb[0].mxu0
        %v4583 = vpop.f32.mrb[0].mxu0
        %v4584 = vadd.f32 0.0, %v4583
        %v4585 = vpop.f32.mrb[0].mxu0
        %4586 = vmatprep.mubr.bf16.mxu0 0
        %4587 = vmatmul.mubr.bf16.gmra.mrb[0].mxu0 %v4369
        %v4588 = vpop.f32.mrb[0].mxu0
        %v4589 = vadd.f32 0.0, %v4588
        %v4590 = vpop.f32.mrb[0].mxu0
        %v4591 = vpop.f32.mrb[0].mxu0
        %v4592 = vadd.f32 0.0, %v4591
        %v4593 = vpop.f32.mrb[0].mxu0
        %4594 = vmatprep.mubr.bf16.mxu0 0
        %4595 = vmatmul.mubr.bf16.gmra.mrb[0].mxu0 %v4377
        %v4596 = vpop.f32.mrb[0].mxu0
        %v4597 = vadd.f32 0.0, %v4596
        %v4598 = vpop.f32.mrb[0].mxu0
        %v4599 = vpop.f32.mrb[0].mxu0
        %v4600 = vadd.f32 0.0, %v4599
        %v4601 = vpop.f32.mrb[0].mxu0
        %4602 = vmatprep.mubr.bf16.mxu0 0
        %4603 = vmatmul.mubr.bf16.gmra.mrb[0].mxu0 %v4385
        %v4604 = vpop.f32.mrb[0].mxu0
        %v4605 = vadd.f32 0.0, %v4604
        %v4606 = vpop.f32.mrb[0].mxu0
        %v4607 = vpop.f32.mrb[0].mxu0
        %v4608 = vadd.f32 0.0, %v4607
        %v4609 = vpop.f32.mrb[0].mxu0
        %4610 = vmatprep.mubr.bf16.mxu0 0
        %4611 = vmatmul.mubr.bf16.gmra.mrb[0].mxu0 %v4393
        %v4612 = vpop.f32.mrb[0].mxu0
        %v4613 = vadd.f32 0.0, %v4612
        %v4614 = vpop.f32.mrb[0].mxu0
        %v4615 = vpop.f32.mrb[0].mxu0
        %v4616 = vadd.f32 0.0, %v4615
        %v4617 = vpop.f32.mrb[0].mxu0
        %4618 = vmatprep.mubr.bf16.mxu0 0
        %4619 = vmatmul.mubr.bf16.gmra.mrb[0].mxu0 %v4401
        %v4620 = vpop.f32.mrb[0].mxu0
        %v4621 = vadd.f32 0.0, %v4620
        %v4622 = vpop.f32.mrb[0].mxu0
        %v4623 = vpop.f32.mrb[0].mxu0
        %v4624 = vadd.f32 0.0, %v4623
        %v4625 = vpop.f32.mrb[0].mxu0
        %4626 = vmatprep.mubr.bf16.mxu0 0
        %4627 = vmatmul.mubr.bf16.gmra.mrb[0].mxu0 %v4409
        %v4628 = vpop.f32.mrb[0].mxu0
        %v4629 = vadd.f32 0.0, %v4628
        %v4630 = vpop.f32.mrb[0].mxu0
        %v4631 = vpop.f32.mrb[0].mxu0
        %v4632 = vadd.f32 0.0, %v4631
        %v4633 = vpop.f32.mrb[0].mxu0
        %4634 = vmatprep.mubr.bf16.mxu0 0
        %4635 = vmatmul.mubr.bf16.gmra.mrb[0].mxu0 %v4417
        %v4636 = vpop.f32.mrb[0].mxu0
        %v4637 = vadd.f32 0.0, %v4636
        %v4638 = vpop.f32.mrb[0].mxu0
        %v4639 = vpop.f32.mrb[0].mxu0
        %v4640 = vadd.f32 0.0, %v4639
        %v4641 = vpop.f32.mrb[0].mxu0
        %4642 = vmatprep.mubr.bf16.mxu0 0
        %4643 = vmatmul.mubr.bf16.gmra.mrb[0].mxu0 %v4425
        %v4644 = vpop.f32.mrb[0].mxu0
        %v4645 = vadd.f32 0.0, %v4644
        %v4646 = vpop.f32.mrb[0].mxu0
        %v4647 = vpop.f32.mrb[0].mxu0
        %v4648 = vadd.f32 0.0, %v4647
        %v4649 = vpop.f32.mrb[0].mxu0
        %4650 = vmatprep.mubr.bf16.mxu0 0
        %4651 = vmatmul.mubr.bf16.gmra.mrb[0].mxu0 %v4433
        %v4652 = vpop.f32.mrb[0].mxu0
        %v4653 = vadd.f32 0.0, %v4652
        %v4654 = vpop.f32.mrb[0].mxu0
        %v4655 = vpop.f32.mrb[0].mxu0
        %v4656 = vadd.f32 0.0, %v4655
        %v4657 = vpop.f32.mrb[0].mxu0
        %4658 = vmatprep.mubr.bf16.mxu0 0
        %4659 = vmatmul.mubr.bf16.gmra.mrb[0].mxu0 %v4441
        %v4660 = vpop.f32.mrb[0].mxu0
        %v4661 = vadd.f32 0.0, %v4660
        %v4662 = vpop.f32.mrb[0].mxu0
        %v4663 = vpop.f32.mrb[0].mxu0
        %v4664 = vadd.f32 0.0, %v4663
        %v4665 = vpop.f32.mrb[0].mxu0
        %4666 = vmatprep.mubr.bf16.mxu0 0
        %4667 = vmatmul.mubr.bf16.gmra.mrb[0].mxu0 %v4449
        %v4668 = vpop.f32.mrb[0].mxu0
        %v4669 = vadd.f32 0.0, %v4668
        %v4670 = vpop.f32.mrb[0].mxu0
        %v4671 = vpop.f32.mrb[0].mxu0
        %v4672 = vadd.f32 0.0, %v4671
        %v4673 = vpop.f32.mrb[0].mxu0
        %4674 = vmatprep.mubr.bf16.mxu0 0
        %4675 = vmatmul.mubr.bf16.gmra.mrb[0].mxu0 %v4457
        %v4676 = vpop.f32.mrb[0].mxu0
        %v4677 = vadd.f32 0.0, %v4676
        %v4678 = vpop.f32.mrb[0].mxu0
        %v4679 = vpop.f32.mrb[0].mxu0
        %v4680 = vadd.f32 0.0, %v4679
        %v4681 = vpop.f32.mrb[0].mxu0
        %4682 = vdwg.mxu0
        %v4683 = vadd.f32 %v4258, %v4557
        %v4684 = vadd.f32 %v4259, %v4560
        %v4685 = vadd.f32 %v4260, %v4565
        %v4686 = vadd.f32 %v4261, %v4568
        %v4687 = vadd.f32 %v4262, %v4573
        %v4688 = vadd.f32 %v4263, %v4576
        %v4689 = vadd.f32 %v4264, %v4581
        %v4690 = vadd.f32 %v4265, %v4584
        %v4691 = vadd.f32 %v4266, %v4589
        %v4692 = vadd.f32 %v4267, %v4592
        %v4693 = vadd.f32 %v4268, %v4597
        %v4694 = vadd.f32 %v4269, %v4600
        %v4695 = vadd.f32 %v4270, %v4605
        %v4696 = vadd.f32 %v4271, %v4608
        %v4697 = vadd.f32 %v4272, %v4613
        %v4698 = vadd.f32 %v4273, %v4616
        %v4699 = vadd.f32 %v4274, %v4621
        %v4700 = vadd.f32 %v4275, %v4624
        %v4701 = vadd.f32 %v4276, %v4629
        %v4702 = vadd.f32 %v4277, %v4632
        %v4703 = vadd.f32 %v4278, %v4637
        %v4704 = vadd.f32 %v4279, %v4640
        %v4705 = vadd.f32 %v4280, %v4645
        %v4706 = vadd.f32 %v4281, %v4648
        %v4707 = vadd.f32 %v4282, %v4653
        %v4708 = vadd.f32 %v4283, %v4656
        %v4709 = vadd.f32 %v4284, %v4661
        %v4710 = vadd.f32 %v4285, %v4664
        %v4711 = vadd.f32 %v4286, %v4669
        %v4712 = vadd.f32 %v4287, %v4672
        %v4713 = vadd.f32 %v4288, %v4677
        %v4714 = vadd.f32 %v4289, %v4680
        %s4715 = scalar_lea.vmem [#allocation6], 448
        %v4716 = vld [vmem:[%s4715] sm:$0xf]
        %v4717 = vld [vmem:[%s4715 + $0x4] sm:$0xf]
        %v4718 = vld [vmem:[%s4715 + $0x8] sm:$0xf]
        %v4719 = vld [vmem:[%s4715 + $0xc] sm:$0xf]
        %v4720 = vld [vmem:[%s4715 + $0x10] sm:$0xf]
        %v4721 = vld [vmem:[%s4715 + $0x14] sm:$0xf]
        %v4722 = vld [vmem:[%s4715 + $0x18] sm:$0xf]
        %v4723 = vld [vmem:[%s4715 + $0x1c] sm:$0xf]
        %v4724 = vld [vmem:[%s4715 + $0x20] sm:$0xf]
        %v4725 = vld [vmem:[%s4715 + $0x24] sm:$0xf]
        %v4726 = vld [vmem:[%s4715 + $0x28] sm:$0xf]
        %v4727 = vld [vmem:[%s4715 + $0x2c] sm:$0xf]
        %v4728 = vld [vmem:[%s4715 + $0x30] sm:$0xf]
        %v4729 = vld [vmem:[%s4715 + $0x34] sm:$0xf]
        %v4730 = vld [vmem:[%s4715 + $0x38] sm:$0xf]
        %v4731 = vld [vmem:[%s4715 + $0x3c] sm:$0xf]
        %v4748 = vunpack.c.l.b16 %v4716
        %v4749 = vunpack.c.l.b16 %v4717
        %v4750 = vunpack.c.l.b16 %v4718
        %v4751 = vunpack.c.l.b16 %v4719
        %v4752 = vunpack.c.l.b16 %v4720
        %v4753 = vunpack.c.l.b16 %v4721
        %v4754 = vunpack.c.l.b16 %v4722
        %v4755 = vunpack.c.l.b16 %v4723
        %v4756 = vunpack.c.l.b16 %v4724
        %v4757 = vunpack.c.l.b16 %v4725
        %v4758 = vunpack.c.l.b16 %v4726
        %v4759 = vunpack.c.l.b16 %v4727
        %v4760 = vunpack.c.l.b16 %v4728
        %v4761 = vunpack.c.l.b16 %v4729
        %v4762 = vunpack.c.l.b16 %v4730
        %v4763 = vunpack.c.l.b16 %v4731
        %v4764 = vpack.c.b16 %v4749, %v4748
        %v4765 = vpack.c.b16 %v4751, %v4750
        %v4766 = vpack.c.b16 %v4753, %v4752
        %v4767 = vpack.c.b16 %v4755, %v4754
        %v4768 = vpack.c.b16 %v4757, %v4756
        %v4769 = vpack.c.b16 %v4759, %v4758
        %v4770 = vpack.c.b16 %v4761, %v4760
        %v4771 = vpack.c.b16 %v4763, %v4762
        %4780 = vmatprep.subr.bf16.mxu0 0
        %4781 = vmatpush1.bf16.msra.mxu0 %v4764
        %4782 = vmatprep.subr.bf16.mxu0 0
        %4783 = vmatpush1.bf16.msra.mxu0 %v4765
        %4784 = vmatprep.subr.bf16.mxu0 0
        %4785 = vmatpush1.bf16.msra.mxu0 %v4766
        %4786 = vmatprep.subr.bf16.mxu0 0
        %4787 = vmatpush1.bf16.msra.mxu0 %v4767
        %4788 = vmatprep.subr.bf16.mxu0 0
        %4789 = vmatpush1.bf16.msra.mxu0 %v4768
        %4790 = vmatprep.subr.bf16.mxu0 0
        %4791 = vmatpush1.bf16.msra.mxu0 %v4769
        %4792 = vmatprep.subr.bf16.mxu0 0
        %4793 = vmatpush1.bf16.msra.mxu0 %v4770
        %4794 = vmatprep.subr.bf16.mxu0 0
        %4795 = vmatpush1.bf16.msra.mxu0 %v4771
        %4796 = vmatprep.subr.bf16.mxu0 0
        %4797 = vmatpush1.bf16.msra.mxu0 0
        %4798 = vmatprep.subr.bf16.mxu0 0
        %4799 = vmatpush1.bf16.msra.mxu0 0
        %4800 = vmatprep.subr.bf16.mxu0 0
        %4801 = vmatpush1.bf16.msra.mxu0 0
        %4802 = vmatprep.subr.bf16.mxu0 0
        %4803 = vmatpush1.bf16.msra.mxu0 0
        %4804 = vmatprep.subr.bf16.mxu0 0
        %4805 = vmatpush1.bf16.msra.mxu0 0
        %4806 = vmatprep.subr.bf16.mxu0 0
        %4807 = vmatpush1.bf16.msra.mxu0 0
        %4808 = vmatprep.subr.bf16.mxu0 0
        %4809 = vmatpush1.bf16.msra.mxu0 0
        %4810 = vmatprep.subr.bf16.mxu0 0
        %4811 = vmatpush1.bf16.msra.mxu0 0
        %4812 = vmatprep.mubr.bf16.mxu0 0
        %4813 = vmatmul.mubr.bf16.gmra.mrb[0].mxu0 %v3851
        %v4814 = vpop.f32.mrb[0].mxu0
        %v4815 = vadd.f32 0.0, %v4814
        %v4816 = vpop.f32.mrb[0].mxu0
        %v4817 = vpop.f32.mrb[0].mxu0
        %v4818 = vadd.f32 0.0, %v4817
        %v4819 = vpop.f32.mrb[0].mxu0
        %4820 = vmatprep.mubr.bf16.mxu0 0
        %4821 = vmatmul.mubr.bf16.gmra.mrb[0].mxu0 %v3852
        %v4822 = vpop.f32.mrb[0].mxu0
        %v4823 = vadd.f32 0.0, %v4822
        %v4824 = vpop.f32.mrb[0].mxu0
        %v4825 = vpop.f32.mrb[0].mxu0
        %v4826 = vadd.f32 0.0, %v4825
        %v4827 = vpop.f32.mrb[0].mxu0
        %4828 = vmatprep.mubr.bf16.mxu0 0
        %4829 = vmatmul.mubr.bf16.gmra.mrb[0].mxu0 %v3853
        %v4830 = vpop.f32.mrb[0].mxu0
        %v4831 = vadd.f32 0.0, %v4830
        %v4832 = vpop.f32.mrb[0].mxu0
        %v4833 = vpop.f32.mrb[0].mxu0
        %v4834 = vadd.f32 0.0, %v4833
        %v4835 = vpop.f32.mrb[0].mxu0
        %4836 = vmatprep.mubr.bf16.mxu0 0
        %4837 = vmatmul.mubr.bf16.gmra.mrb[0].mxu0 %v3854
        %v4838 = vpop.f32.mrb[0].mxu0
        %v4839 = vadd.f32 0.0, %v4838
        %v4840 = vpop.f32.mrb[0].mxu0
        %v4841 = vpop.f32.mrb[0].mxu0
        %v4842 = vadd.f32 0.0, %v4841
        %v4843 = vpop.f32.mrb[0].mxu0
        %4844 = vmatprep.mubr.bf16.mxu0 0
        %4845 = vmatmul.mubr.bf16.gmra.mrb[0].mxu0 %v3855
        %v4846 = vpop.f32.mrb[0].mxu0
        %v4847 = vadd.f32 0.0, %v4846
        %v4848 = vpop.f32.mrb[0].mxu0
        %v4849 = vpop.f32.mrb[0].mxu0
        %v4850 = vadd.f32 0.0, %v4849
        %v4851 = vpop.f32.mrb[0].mxu0
        %4852 = vmatprep.mubr.bf16.mxu0 0
        %4853 = vmatmul.mubr.bf16.gmra.mrb[0].mxu0 %v3856
        %v4854 = vpop.f32.mrb[0].mxu0
        %v4855 = vadd.f32 0.0, %v4854
        %v4856 = vpop.f32.mrb[0].mxu0
        %v4857 = vpop.f32.mrb[0].mxu0
        %v4858 = vadd.f32 0.0, %v4857
        %v4859 = vpop.f32.mrb[0].mxu0
        %4860 = vmatprep.mubr.bf16.mxu0 0
        %4861 = vmatmul.mubr.bf16.gmra.mrb[0].mxu0 %v3857
        %v4862 = vpop.f32.mrb[0].mxu0
        %v4863 = vadd.f32 0.0, %v4862
        %v4864 = vpop.f32.mrb[0].mxu0
        %v4865 = vpop.f32.mrb[0].mxu0
        %v4866 = vadd.f32 0.0, %v4865
        %v4867 = vpop.f32.mrb[0].mxu0
        %4868 = vmatprep.mubr.bf16.mxu0 0
        %4869 = vmatmul.mubr.bf16.gmra.mrb[0].mxu0 %v3858
        %v4870 = vpop.f32.mrb[0].mxu0
        %v4871 = vadd.f32 0.0, %v4870
        %v4872 = vpop.f32.mrb[0].mxu0
        %v4873 = vpop.f32.mrb[0].mxu0
        %v4874 = vadd.f32 0.0, %v4873
        %v4875 = vpop.f32.mrb[0].mxu0
        %4876 = vmatprep.mubr.bf16.mxu0 0
        %4877 = vmatmul.mubr.bf16.gmra.mrb[0].mxu0 %v3859
        %v4878 = vpop.f32.mrb[0].mxu0
        %v4879 = vadd.f32 0.0, %v4878
        %v4880 = vpop.f32.mrb[0].mxu0
        %v4881 = vpop.f32.mrb[0].mxu0
        %v4882 = vadd.f32 0.0, %v4881
        %v4883 = vpop.f32.mrb[0].mxu0
        %4884 = vmatprep.mubr.bf16.mxu0 0
        %4885 = vmatmul.mubr.bf16.gmra.mrb[0].mxu0 %v3860
        %v4886 = vpop.f32.mrb[0].mxu0
        %v4887 = vadd.f32 0.0, %v4886
        %v4888 = vpop.f32.mrb[0].mxu0
        %v4889 = vpop.f32.mrb[0].mxu0
        %v4890 = vadd.f32 0.0, %v4889
        %v4891 = vpop.f32.mrb[0].mxu0
        %4892 = vmatprep.mubr.bf16.mxu0 0
        %4893 = vmatmul.mubr.bf16.gmra.mrb[0].mxu0 %v3861
        %v4894 = vpop.f32.mrb[0].mxu0
        %v4895 = vadd.f32 0.0, %v4894
        %v4896 = vpop.f32.mrb[0].mxu0
        %v4897 = vpop.f32.mrb[0].mxu0
        %v4898 = vadd.f32 0.0, %v4897
        %v4899 = vpop.f32.mrb[0].mxu0
        %4900 = vmatprep.mubr.bf16.mxu0 0
        %4901 = vmatmul.mubr.bf16.gmra.mrb[0].mxu0 %v3862
        %v4902 = vpop.f32.mrb[0].mxu0
        %v4903 = vadd.f32 0.0, %v4902
        %v4904 = vpop.f32.mrb[0].mxu0
        %v4905 = vpop.f32.mrb[0].mxu0
        %v4906 = vadd.f32 0.0, %v4905
        %v4907 = vpop.f32.mrb[0].mxu0
        %4908 = vmatprep.mubr.bf16.mxu0 0
        %4909 = vmatmul.mubr.bf16.gmra.mrb[0].mxu0 %v3863
        %v4910 = vpop.f32.mrb[0].mxu0
        %v4911 = vadd.f32 0.0, %v4910
        %v4912 = vpop.f32.mrb[0].mxu0
        %v4913 = vpop.f32.mrb[0].mxu0
        %v4914 = vadd.f32 0.0, %v4913
        %v4915 = vpop.f32.mrb[0].mxu0
        %4916 = vmatprep.mubr.bf16.mxu0 0
        %4917 = vmatmul.mubr.bf16.gmra.mrb[0].mxu0 %v3864
        %v4918 = vpop.f32.mrb[0].mxu0
        %v4919 = vadd.f32 0.0, %v4918
        %v4920 = vpop.f32.mrb[0].mxu0
        %v4921 = vpop.f32.mrb[0].mxu0
        %v4922 = vadd.f32 0.0, %v4921
        %v4923 = vpop.f32.mrb[0].mxu0
        %4924 = vmatprep.mubr.bf16.mxu0 0
        %4925 = vmatmul.mubr.bf16.gmra.mrb[0].mxu0 %v3865
        %v4926 = vpop.f32.mrb[0].mxu0
        %v4927 = vadd.f32 0.0, %v4926
        %v4928 = vpop.f32.mrb[0].mxu0
        %v4929 = vpop.f32.mrb[0].mxu0
        %v4930 = vadd.f32 0.0, %v4929
        %v4931 = vpop.f32.mrb[0].mxu0
        %4932 = vmatprep.mubr.bf16.mxu0 0
        %4933 = vmatmul.mubr.bf16.gmra.mrb[0].mxu0 %v4291
        %v4934 = vpop.f32.mrb[0].mxu0
        %v4935 = vadd.f32 0.0, %v4934
        %v4936 = vpop.f32.mrb[0].mxu0
        %v4937 = vpop.f32.mrb[0].mxu0
        %v4938 = vadd.f32 0.0, %v4937
        %v4939 = vpop.f32.mrb[0].mxu0
        %4940 = vdwg.mxu0
        %v4941 = vadd.f32 %v4683, %v4815
        %v4942 = vadd.f32 %v4684, %v4818
        %v4943 = vadd.f32 %v4685, %v4823
        %v4944 = vadd.f32 %v4686, %v4826
        %v4945 = vadd.f32 %v4687, %v4831
        %v4946 = vadd.f32 %v4688, %v4834
        %v4947 = vadd.f32 %v4689, %v4839
        %v4948 = vadd.f32 %v4690, %v4842
        %v4949 = vadd.f32 %v4691, %v4847
        %v4950 = vadd.f32 %v4692, %v4850
        %v4951 = vadd.f32 %v4693, %v4855
        %v4952 = vadd.f32 %v4694, %v4858
        %v4953 = vadd.f32 %v4695, %v4863
        %v4954 = vadd.f32 %v4696, %v4866
        %v4955 = vadd.f32 %v4697, %v4871
        %v4956 = vadd.f32 %v4698, %v4874
        %v4957 = vadd.f32 %v4699, %v4879
        %v4958 = vadd.f32 %v4700, %v4882
        %v4959 = vadd.f32 %v4701, %v4887
        %v4960 = vadd.f32 %v4702, %v4890
        %v4961 = vadd.f32 %v4703, %v4895
        %v4962 = vadd.f32 %v4704, %v4898
        %v4963 = vadd.f32 %v4705, %v4903
        %v4964 = vadd.f32 %v4706, %v4906
        %v4965 = vadd.f32 %v4707, %v4911
        %v4966 = vadd.f32 %v4708, %v4914
        %v4967 = vadd.f32 %v4709, %v4919
        %v4968 = vadd.f32 %v4710, %v4922
        %v4969 = vadd.f32 %v4711, %v4927
        %v4970 = vadd.f32 %v4712, %v4930
        %v4971 = vadd.f32 %v4713, %v4935
        %v4972 = vadd.f32 %v4714, %v4938
        %v4973 = vld [vmem:[#allocation2 + $0x18] sm:$0xff]
        %v4974 = vld [vmem:[#allocation2 + $0x20] sm:$0xff]
        %v4975 = vld [vmem:[#allocation2 + $0x28] sm:$0xff]
        %v4976 = vld [vmem:[#allocation2 + $0x30] sm:$0xff]
        %v4977 = vld [vmem:[#allocation2 + $0x38] sm:$0xff]
        %v4978 = vld [vmem:[#allocation2 + $0x40] sm:$0xff]
        %v4979 = vld [vmem:[#allocation2 + $0x48] sm:$0xff]
        %v4980 = vld [vmem:[#allocation2 + $0x50] sm:$0xff]
        %v4981 = vld [vmem:[#allocation2 + $0x58] sm:$0xff]
        %v4982 = vld [vmem:[#allocation2 + $0x60] sm:$0xff]
        %v4983 = vld [vmem:[#allocation2 + $0x68] sm:$0xff]
        %v4984 = vld [vmem:[#allocation2 + $0x70] sm:$0xff]
        %v4985 = vld [vmem:[#allocation2 + $0x78] sm:$0xff]
        %v4986 = vld [vmem:[#allocation2 + $0x80] sm:$0xff]
        %v4987 = vld [vmem:[#allocation2 + $0x88] sm:$0xff]
        %v4988 = vld [vmem:[#allocation2 + $0x90] sm:$0xff]
        %v4989 = vld [vmem:[#allocation2 + $0x98] sm:$0x1]
        %v4990 = vmul.bf16 %v4973, %v2606
        %v4991 = vmul.bf16 %v4974, %v2614
        %v4992 = vmul.bf16 %v4975, %v2622
        %v4993 = vmul.bf16 %v4976, %v2630
        %v4994 = vmul.bf16 %v4977, %v2638
        %v4995 = vmul.bf16 %v4978, %v2646
        %v4996 = vmul.bf16 %v4979, %v2654
        %v4997 = vmul.bf16 %v4980, %v2662
        %v4998 = vmul.bf16 %v4981, %v2670
        %v4999 = vmul.bf16 %v4982, %v2678
        %v5000 = vmul.bf16 %v4983, %v2686
        %v5001 = vmul.bf16 %v4984, %v2694
        %v5002 = vmul.bf16 %v4985, %v2702
        %v5003 = vmul.bf16 %v4986, %v2710
        %v5004 = vmul.bf16 %v4987, %v2718
        %v5005 = vmul.bf16 %v4988, %v2726
        %v5006 = vmul.bf16 %v4989, %v2722
        %s5007 = scalar_lea.vmem [#allocation6], 512
        %v5008 = vld [vmem:[%s5007] sm:$0xf]
        %v5009 = vld [vmem:[%s5007 + $0x4] sm:$0xf]
        %v5010 = vld [vmem:[%s5007 + $0x8] sm:$0xf]
        %v5011 = vld [vmem:[%s5007 + $0xc] sm:$0xf]
        %v5012 = vld [vmem:[%s5007 + $0x10] sm:$0xf]
        %v5013 = vld [vmem:[%s5007 + $0x14] sm:$0xf]
        %v5014 = vld [vmem:[%s5007 + $0x18] sm:$0xf]
        %v5015 = vld [vmem:[%s5007 + $0x1c] sm:$0xf]
        %v5016 = vld [vmem:[%s5007 + $0x20] sm:$0xf]
        %v5017 = vld [vmem:[%s5007 + $0x24] sm:$0xf]
        %v5018 = vld [vmem:[%s5007 + $0x28] sm:$0xf]
        %v5019 = vld [vmem:[%s5007 + $0x2c] sm:$0xf]
        %v5020 = vld [vmem:[%s5007 + $0x30] sm:$0xf]
        %v5021 = vld [vmem:[%s5007 + $0x34] sm:$0xf]
        %v5022 = vld [vmem:[%s5007 + $0x38] sm:$0xf]
        %v5023 = vld [vmem:[%s5007 + $0x3c] sm:$0xf]
        %v5025 = vshrl.u32 %v4990, 16
        %v5027 = vshll.u32 %v4990, 16
        %v5029 = vrot.slane %v5027, 1
        %v5030 = vor.u32 %v5025, %v5029
        %v5032 = vshll.u32 %v4991, 16
        %v5034 = vrot.slane %v5032, 1
        %v5035 = vsel %vm1821, %v5030, %v5034
        %v5036 = vshrl.u32 %v4991, 16
        %v5038 = vor.u32 %v5036, %v5034
        %v5040 = vshll.u32 %v4992, 16
        %v5042 = vrot.slane %v5040, 1
        %v5043 = vsel %vm1821, %v5038, %v5042
        %v5044 = vshrl.u32 %v4992, 16
        %v5046 = vor.u32 %v5044, %v5042
        %v5048 = vshll.u32 %v4993, 16
        %v5050 = vrot.slane %v5048, 1
        %v5051 = vsel %vm1821, %v5046, %v5050
        %v5052 = vshrl.u32 %v4993, 16
        %v5054 = vor.u32 %v5052, %v5050
        %v5056 = vshll.u32 %v4994, 16
        %v5058 = vrot.slane %v5056, 1
        %v5059 = vsel %vm1821, %v5054, %v5058
        %v5060 = vshrl.u32 %v4994, 16
        %v5062 = vor.u32 %v5060, %v5058
        %v5064 = vshll.u32 %v4995, 16
        %v5066 = vrot.slane %v5064, 1
        %v5067 = vsel %vm1821, %v5062, %v5066
        %v5068 = vshrl.u32 %v4995, 16
        %v5070 = vor.u32 %v5068, %v5066
        %v5072 = vshll.u32 %v4996, 16
        %v5074 = vrot.slane %v5072, 1
        %v5075 = vsel %vm1821, %v5070, %v5074
        %v5076 = vshrl.u32 %v4996, 16
        %v5078 = vor.u32 %v5076, %v5074
        %v5080 = vshll.u32 %v4997, 16
        %v5082 = vrot.slane %v5080, 1
        %v5083 = vsel %vm1821, %v5078, %v5082
        %v5084 = vshrl.u32 %v4997, 16
        %v5086 = vor.u32 %v5084, %v5082
        %v5088 = vshll.u32 %v4998, 16
        %v5090 = vrot.slane %v5088, 1
        %v5091 = vsel %vm1821, %v5086, %v5090
        %v5092 = vshrl.u32 %v4998, 16
        %v5094 = vor.u32 %v5092, %v5090
        %v5096 = vshll.u32 %v4999, 16
        %v5098 = vrot.slane %v5096, 1
        %v5099 = vsel %vm1821, %v5094, %v5098
        %v5100 = vshrl.u32 %v4999, 16
        %v5102 = vor.u32 %v5100, %v5098
        %v5104 = vshll.u32 %v5000, 16
        %v5106 = vrot.slane %v5104, 1
        %v5107 = vsel %vm1821, %v5102, %v5106
        %v5108 = vshrl.u32 %v5000, 16
        %v5110 = vor.u32 %v5108, %v5106
        %v5112 = vshll.u32 %v5001, 16
        %v5114 = vrot.slane %v5112, 1
        %v5115 = vsel %vm1821, %v5110, %v5114
        %v5116 = vshrl.u32 %v5001, 16
        %v5118 = vor.u32 %v5116, %v5114
        %v5120 = vshll.u32 %v5002, 16
        %v5122 = vrot.slane %v5120, 1
        %v5123 = vsel %vm1821, %v5118, %v5122
        %v5124 = vshrl.u32 %v5002, 16
        %v5126 = vor.u32 %v5124, %v5122
        %v5128 = vshll.u32 %v5003, 16
        %v5130 = vrot.slane %v5128, 1
        %v5131 = vsel %vm1821, %v5126, %v5130
        %v5132 = vshrl.u32 %v5003, 16
        %v5134 = vor.u32 %v5132, %v5130
        %v5136 = vshll.u32 %v5004, 16
        %v5138 = vrot.slane %v5136, 1
        %v5139 = vsel %vm1821, %v5134, %v5138
        %v5140 = vshrl.u32 %v5004, 16
        %v5142 = vor.u32 %v5140, %v5138
        %v5144 = vshll.u32 %v5005, 16
        %v5146 = vrot.slane %v5144, 1
        %v5147 = vsel %vm1821, %v5142, %v5146
        %v5148 = vshrl.u32 %v5005, 16
        %v5150 = vor.u32 %v5148, %v5146
        %v5152 = vshll.u32 %v5006, 16
        %v5154 = vrot.slane %v5152, 1
        %v5155 = vsel %vm1821, %v5150, %v5154
        %v5188 = vunpack.c.l.b16 %v5008
        %v5189 = vunpack.c.l.b16 %v5009
        %v5190 = vunpack.c.l.b16 %v5010
        %v5191 = vunpack.c.l.b16 %v5011
        %v5192 = vunpack.c.l.b16 %v5012
        %v5193 = vunpack.c.l.b16 %v5013
        %v5194 = vunpack.c.l.b16 %v5014
        %v5195 = vunpack.c.l.b16 %v5015
        %v5196 = vunpack.c.l.b16 %v5016
        %v5197 = vunpack.c.l.b16 %v5017
        %v5198 = vunpack.c.l.b16 %v5018
        %v5199 = vunpack.c.l.b16 %v5019
        %v5200 = vunpack.c.l.b16 %v5020
        %v5201 = vunpack.c.l.b16 %v5021
        %v5202 = vunpack.c.l.b16 %v5022
        %v5203 = vunpack.c.l.b16 %v5023
        %v5204 = vpack.c.b16 %v5189, %v5188
        %v5205 = vpack.c.b16 %v5191, %v5190
        %v5206 = vpack.c.b16 %v5193, %v5192
        %v5207 = vpack.c.b16 %v5195, %v5194
        %v5208 = vpack.c.b16 %v5197, %v5196
        %v5209 = vpack.c.b16 %v5199, %v5198
        %v5210 = vpack.c.b16 %v5201, %v5200
        %v5211 = vpack.c.b16 %v5203, %v5202
        %5220 = vmatprep.subr.bf16.mxu0 0
        %5221 = vmatpush1.bf16.msra.mxu0 %v5204
        %5222 = vmatprep.subr.bf16.mxu0 0
        %5223 = vmatpush1.bf16.msra.mxu0 %v5205
        %5224 = vmatprep.subr.bf16.mxu0 0
        %5225 = vmatpush1.bf16.msra.mxu0 %v5206
        %5226 = vmatprep.subr.bf16.mxu0 0
        %5227 = vmatpush1.bf16.msra.mxu0 %v5207
        %5228 = vmatprep.subr.bf16.mxu0 0
        %5229 = vmatpush1.bf16.msra.mxu0 %v5208
        %5230 = vmatprep.subr.bf16.mxu0 0
        %5231 = vmatpush1.bf16.msra.mxu0 %v5209
        %5232 = vmatprep.subr.bf16.mxu0 0
        %5233 = vmatpush1.bf16.msra.mxu0 %v5210
        %5234 = vmatprep.subr.bf16.mxu0 0
        %5235 = vmatpush1.bf16.msra.mxu0 %v5211
        %5236 = vmatprep.subr.bf16.mxu0 0
        %5237 = vmatpush1.bf16.msra.mxu0 0
        %5238 = vmatprep.subr.bf16.mxu0 0
        %5239 = vmatpush1.bf16.msra.mxu0 0
        %5240 = vmatprep.subr.bf16.mxu0 0
        %5241 = vmatpush1.bf16.msra.mxu0 0
        %5242 = vmatprep.subr.bf16.mxu0 0
        %5243 = vmatpush1.bf16.msra.mxu0 0
        %5244 = vmatprep.subr.bf16.mxu0 0
        %5245 = vmatpush1.bf16.msra.mxu0 0
        %5246 = vmatprep.subr.bf16.mxu0 0
        %5247 = vmatpush1.bf16.msra.mxu0 0
        %5248 = vmatprep.subr.bf16.mxu0 0
        %5249 = vmatpush1.bf16.msra.mxu0 0
        %5250 = vmatprep.subr.bf16.mxu0 0
        %5251 = vmatpush1.bf16.msra.mxu0 0
        %5252 = vmatprep.mubr.bf16.mxu0 0
        %5253 = vmatmul.mubr.bf16.gmra.mrb[0].mxu0 %v5035
        %v5254 = vpop.f32.mrb[0].mxu0
        %v5255 = vadd.f32 0.0, %v5254
        %v5256 = vpop.f32.mrb[0].mxu0
        %v5257 = vpop.f32.mrb[0].mxu0
        %v5258 = vadd.f32 0.0, %v5257
        %v5259 = vpop.f32.mrb[0].mxu0
        %5260 = vmatprep.mubr.bf16.mxu0 0
        %5261 = vmatmul.mubr.bf16.gmra.mrb[0].mxu0 %v5043
        %v5262 = vpop.f32.mrb[0].mxu0
        %v5263 = vadd.f32 0.0, %v5262
        %v5264 = vpop.f32.mrb[0].mxu0
        %v5265 = vpop.f32.mrb[0].mxu0
        %v5266 = vadd.f32 0.0, %v5265
        %v5267 = vpop.f32.mrb[0].mxu0
        %5268 = vmatprep.mubr.bf16.mxu0 0
        %5269 = vmatmul.mubr.bf16.gmra.mrb[0].mxu0 %v5051
        %v5270 = vpop.f32.mrb[0].mxu0
        %v5271 = vadd.f32 0.0, %v5270
        %v5272 = vpop.f32.mrb[0].mxu0
        %v5273 = vpop.f32.mrb[0].mxu0
        %v5274 = vadd.f32 0.0, %v5273
        %v5275 = vpop.f32.mrb[0].mxu0
        %5276 = vmatprep.mubr.bf16.mxu0 0
        %5277 = vmatmul.mubr.bf16.gmra.mrb[0].mxu0 %v5059
        %v5278 = vpop.f32.mrb[0].mxu0
        %v5279 = vadd.f32 0.0, %v5278
        %v5280 = vpop.f32.mrb[0].mxu0
        %v5281 = vpop.f32.mrb[0].mxu0
        %v5282 = vadd.f32 0.0, %v5281
        %v5283 = vpop.f32.mrb[0].mxu0
        %5284 = vmatprep.mubr.bf16.mxu0 0
        %5285 = vmatmul.mubr.bf16.gmra.mrb[0].mxu0 %v5067
        %v5286 = vpop.f32.mrb[0].mxu0
        %v5287 = vadd.f32 0.0, %v5286
        %v5288 = vpop.f32.mrb[0].mxu0
        %v5289 = vpop.f32.mrb[0].mxu0
        %v5290 = vadd.f32 0.0, %v5289
        %v5291 = vpop.f32.mrb[0].mxu0
        %5292 = vmatprep.mubr.bf16.mxu0 0
        %5293 = vmatmul.mubr.bf16.gmra.mrb[0].mxu0 %v5075
        %v5294 = vpop.f32.mrb[0].mxu0
        %v5295 = vadd.f32 0.0, %v5294
        %v5296 = vpop.f32.mrb[0].mxu0
        %v5297 = vpop.f32.mrb[0].mxu0
        %v5298 = vadd.f32 0.0, %v5297
        %v5299 = vpop.f32.mrb[0].mxu0
        %5300 = vmatprep.mubr.bf16.mxu0 0
        %5301 = vmatmul.mubr.bf16.gmra.mrb[0].mxu0 %v5083
        %v5302 = vpop.f32.mrb[0].mxu0
        %v5303 = vadd.f32 0.0, %v5302
        %v5304 = vpop.f32.mrb[0].mxu0
        %v5305 = vpop.f32.mrb[0].mxu0
        %v5306 = vadd.f32 0.0, %v5305
        %v5307 = vpop.f32.mrb[0].mxu0
        %5308 = vmatprep.mubr.bf16.mxu0 0
        %5309 = vmatmul.mubr.bf16.gmra.mrb[0].mxu0 %v5091
        %v5310 = vpop.f32.mrb[0].mxu0
        %v5311 = vadd.f32 0.0, %v5310
        %v5312 = vpop.f32.mrb[0].mxu0
        %v5313 = vpop.f32.mrb[0].mxu0
        %v5314 = vadd.f32 0.0, %v5313
        %v5315 = vpop.f32.mrb[0].mxu0
        %5316 = vmatprep.mubr.bf16.mxu0 0
        %5317 = vmatmul.mubr.bf16.gmra.mrb[0].mxu0 %v5099
        %v5318 = vpop.f32.mrb[0].mxu0
        %v5319 = vadd.f32 0.0, %v5318
        %v5320 = vpop.f32.mrb[0].mxu0
        %v5321 = vpop.f32.mrb[0].mxu0
        %v5322 = vadd.f32 0.0, %v5321
        %v5323 = vpop.f32.mrb[0].mxu0
        %5324 = vmatprep.mubr.bf16.mxu0 0
        %5325 = vmatmul.mubr.bf16.gmra.mrb[0].mxu0 %v5107
        %v5326 = vpop.f32.mrb[0].mxu0
        %v5327 = vadd.f32 0.0, %v5326
        %v5328 = vpop.f32.mrb[0].mxu0
        %v5329 = vpop.f32.mrb[0].mxu0
        %v5330 = vadd.f32 0.0, %v5329
        %v5331 = vpop.f32.mrb[0].mxu0
        %5332 = vmatprep.mubr.bf16.mxu0 0
        %5333 = vmatmul.mubr.bf16.gmra.mrb[0].mxu0 %v5115
        %v5334 = vpop.f32.mrb[0].mxu0
        %v5335 = vadd.f32 0.0, %v5334
        %v5336 = vpop.f32.mrb[0].mxu0
        %v5337 = vpop.f32.mrb[0].mxu0
        %v5338 = vadd.f32 0.0, %v5337
        %v5339 = vpop.f32.mrb[0].mxu0
        %5340 = vmatprep.mubr.bf16.mxu0 0
        %5341 = vmatmul.mubr.bf16.gmra.mrb[0].mxu0 %v5123
        %v5342 = vpop.f32.mrb[0].mxu0
        %v5343 = vadd.f32 0.0, %v5342
        %v5344 = vpop.f32.mrb[0].mxu0
        %v5345 = vpop.f32.mrb[0].mxu0
        %v5346 = vadd.f32 0.0, %v5345
        %v5347 = vpop.f32.mrb[0].mxu0
        %5348 = vmatprep.mubr.bf16.mxu0 0
        %5349 = vmatmul.mubr.bf16.gmra.mrb[0].mxu0 %v5131
        %v5350 = vpop.f32.mrb[0].mxu0
        %v5351 = vadd.f32 0.0, %v5350
        %v5352 = vpop.f32.mrb[0].mxu0
        %v5353 = vpop.f32.mrb[0].mxu0
        %v5354 = vadd.f32 0.0, %v5353
        %v5355 = vpop.f32.mrb[0].mxu0
        %5356 = vmatprep.mubr.bf16.mxu0 0
        %5357 = vmatmul.mubr.bf16.gmra.mrb[0].mxu0 %v5139
        %v5358 = vpop.f32.mrb[0].mxu0
        %v5359 = vadd.f32 0.0, %v5358
        %v5360 = vpop.f32.mrb[0].mxu0
        %v5361 = vpop.f32.mrb[0].mxu0
        %v5362 = vadd.f32 0.0, %v5361
        %v5363 = vpop.f32.mrb[0].mxu0
        %5364 = vmatprep.mubr.bf16.mxu0 0
        %5365 = vmatmul.mubr.bf16.gmra.mrb[0].mxu0 %v5147
        %v5366 = vpop.f32.mrb[0].mxu0
        %v5367 = vadd.f32 0.0, %v5366
        %v5368 = vpop.f32.mrb[0].mxu0
        %v5369 = vpop.f32.mrb[0].mxu0
        %v5370 = vadd.f32 0.0, %v5369
        %v5371 = vpop.f32.mrb[0].mxu0
        %5372 = vmatprep.mubr.bf16.mxu0 0
        %5373 = vmatmul.mubr.bf16.gmra.mrb[0].mxu0 %v5155
        %v5374 = vpop.f32.mrb[0].mxu0
        %v5375 = vadd.f32 0.0, %v5374
        %v5376 = vpop.f32.mrb[0].mxu0
        %v5377 = vpop.f32.mrb[0].mxu0
        %v5378 = vadd.f32 0.0, %v5377
        %v5379 = vpop.f32.mrb[0].mxu0
        %5380 = vdwg.mxu0
        %v5381 = vadd.f32 %v4941, %v5255
        %v5382 = vadd.f32 %v4942, %v5258
        %v5383 = vadd.f32 %v4943, %v5263
        %v5384 = vadd.f32 %v4944, %v5266
        %v5385 = vadd.f32 %v4945, %v5271
        %v5386 = vadd.f32 %v4946, %v5274
        %v5387 = vadd.f32 %v4947, %v5279
        %v5388 = vadd.f32 %v4948, %v5282
        %v5389 = vadd.f32 %v4949, %v5287
        %v5390 = vadd.f32 %v4950, %v5290
        %v5391 = vadd.f32 %v4951, %v5295
        %v5392 = vadd.f32 %v4952, %v5298
        %v5393 = vadd.f32 %v4953, %v5303
        %v5394 = vadd.f32 %v4954, %v5306
        %v5395 = vadd.f32 %v4955, %v5311
        %v5396 = vadd.f32 %v4956, %v5314
        %v5397 = vadd.f32 %v4957, %v5319
        %v5398 = vadd.f32 %v4958, %v5322
        %v5399 = vadd.f32 %v4959, %v5327
        %v5400 = vadd.f32 %v4960, %v5330
        %v5401 = vadd.f32 %v4961, %v5335
        %v5402 = vadd.f32 %v4962, %v5338
        %v5403 = vadd.f32 %v4963, %v5343
        %v5404 = vadd.f32 %v4964, %v5346
        %v5405 = vadd.f32 %v4965, %v5351
        %v5406 = vadd.f32 %v4966, %v5354
        %v5407 = vadd.f32 %v4967, %v5359
        %v5408 = vadd.f32 %v4968, %v5362
        %v5409 = vadd.f32 %v4969, %v5367
        %v5410 = vadd.f32 %v4970, %v5370
        %v5411 = vadd.f32 %v4971, %v5375
        %v5412 = vadd.f32 %v4972, %v5378
        %v5414 = vlaneseq
        %v5415 = vshrl.u32 %v5414, 7
        %v5416 = vsub.s32 0, %v5415
        %v5417 = vrot.slane %v1771, %v5416
        %v5419 = vadd.f32 %v5381, %v5417
        %v5420 = vadd.f32 %v5382, %v5417
        %v5421 = vadd.f32 %v5383, %v5417
        %v5422 = vadd.f32 %v5384, %v5417
        %v5423 = vadd.f32 %v5385, %v5417
        %v5424 = vadd.f32 %v5386, %v5417
        %v5425 = vadd.f32 %v5387, %v5417
        %v5426 = vadd.f32 %v5388, %v5417
        %v5427 = vadd.f32 %v5389, %v5417
        %v5428 = vadd.f32 %v5390, %v5417
        %v5429 = vadd.f32 %v5391, %v5417
        %v5430 = vadd.f32 %v5392, %v5417
        %v5431 = vadd.f32 %v5393, %v5417
        %v5432 = vadd.f32 %v5394, %v5417
        %v5433 = vadd.f32 %v5395, %v5417
        %v5434 = vadd.f32 %v5396, %v5417
        %v5435 = vadd.f32 %v5397, %v5417
        %v5436 = vadd.f32 %v5398, %v5417
        %v5437 = vadd.f32 %v5399, %v5417
        %v5438 = vadd.f32 %v5400, %v5417
        %v5439 = vadd.f32 %v5401, %v5417
        %v5440 = vadd.f32 %v5402, %v5417
        %v5441 = vadd.f32 %v5403, %v5417
        %v5442 = vadd.f32 %v5404, %v5417
        %v5443 = vadd.f32 %v5405, %v5417
        %v5444 = vadd.f32 %v5406, %v5417
        %v5445 = vadd.f32 %v5407, %v5417
        %v5446 = vadd.f32 %v5408, %v5417
        %v5447 = vadd.f32 %v5409, %v5417
        %v5448 = vadd.f32 %v5410, %v5417
        %v5449 = vadd.f32 %v5411, %v5417
        %v5450 = vadd.f32 %v5412, %v5417
        %v5451 = vld [vmem:[%s516] sm:$0x1]
        %v5452 = vxor.u32 %v5451, 2147483648
        %v5453 = vmul.f32 %v5452, 1.442695
        %v5454 = vpow.pop %v5453
        %v5455 = vadd.f32 %v5454, 1.0
        %v5456 = vrcp.pop %v5455
        %v5457 = vmul.f32 1.0, %v5456
        %v5458 = vmul.f32 %v5451, %v5457
        %v5459 = vpack.c.bf16 %v5458, %v5458
        %v5460 = vld [vmem:[%s6] sm:$0xf]
        %v5461 = vld [vmem:[%s6 + $0x4] sm:$0xf]
        %v5462 = vld [vmem:[%s6 + $0x8] sm:$0xf]
        %v5463 = vld [vmem:[%s6 + $0xc] sm:$0xf]
        %v5464 = vld [vmem:[%s6 + $0x10] sm:$0xf]
        %v5465 = vld [vmem:[%s6 + $0x14] sm:$0xf]
        %v5466 = vld [vmem:[%s6 + $0x18] sm:$0xf]
        %v5467 = vld [vmem:[%s6 + $0x1c] sm:$0xf]
        %v5468 = vld [vmem:[%s7] sm:$0x1]
        %v5477 = vunpack.c.l.b16 %v5460
        %v5478 = vunpack.c.l.b16 %v5461
        %v5479 = vunpack.c.l.b16 %v5462
        %v5480 = vunpack.c.l.b16 %v5463
        %v5481 = vunpack.c.l.b16 %v5464
        %v5482 = vunpack.c.l.b16 %v5465
        %v5483 = vunpack.c.l.b16 %v5466
        %v5484 = vunpack.c.l.b16 %v5467
        %v5485 = vpack.c.b16 %v5478, %v5477
        %v5486 = vpack.c.b16 %v5480, %v5479
        %v5487 = vpack.c.b16 %v5482, %v5481
        %v5488 = vpack.c.b16 %v5484, %v5483
        %vm5493 = vcmask 523264
        %v5495 = vsel %vm5493, %v5459, 0
        %5497 = vmatprep.subr.bf16.mxu0 0
        %5498 = vmatpush1.bf16.msra.mxu0 %v5485
        %5499 = vmatprep.subr.bf16.mxu0 0
        %5500 = vmatpush1.bf16.msra.mxu0 %v5486
        %5501 = vmatprep.subr.bf16.mxu0 0
        %5502 = vmatpush1.bf16.msra.mxu0 %v5487
        %5503 = vmatprep.subr.bf16.mxu0 0
        %5504 = vmatpush1.bf16.msra.mxu0 %v5488
        %5505 = vmatprep.subr.bf16.mxu0 0
        %5506 = vmatpush1.bf16.msra.mxu0 0
        %5507 = vmatprep.subr.bf16.mxu0 0
        %5508 = vmatpush1.bf16.msra.mxu0 0
        %5509 = vmatprep.subr.bf16.mxu0 0
        %5510 = vmatpush1.bf16.msra.mxu0 0
        %5511 = vmatprep.subr.bf16.mxu0 0
        %5512 = vmatpush1.bf16.msra.mxu0 0
        %5513 = vmatprep.subr.bf16.mxu0 0
        %5514 = vmatpush1.bf16.msra.mxu0 0
        %5515 = vmatprep.subr.bf16.mxu0 0
        %5516 = vmatpush1.bf16.msra.mxu0 0
        %5517 = vmatprep.subr.bf16.mxu0 0
        %5518 = vmatpush1.bf16.msra.mxu0 0
        %5519 = vmatprep.subr.bf16.mxu0 0
        %5520 = vmatpush1.bf16.msra.mxu0 0
        %5521 = vmatprep.subr.bf16.mxu0 0
        %5522 = vmatpush1.bf16.msra.mxu0 0
        %5523 = vmatprep.subr.bf16.mxu0 0
        %5524 = vmatpush1.bf16.msra.mxu0 0
        %5525 = vmatprep.subr.bf16.mxu0 0
        %5526 = vmatpush1.bf16.msra.mxu0 0
        %5527 = vmatprep.subr.bf16.mxu0 0
        %5528 = vmatpush1.bf16.msra.mxu0 0
        %5529 = vmatprep.mubr.bf16.mxu0 0
        %5530 = vmatmul.mubr.bf16.gmra.mrb[0].mxu0 %v5495
        %v5531 = vpop.f32.mrb[0].mxu0
        %v5532 = vadd.f32 %v5468, %v5531
        %v5533 = vpop.f32.mrb[0].mxu0
        %v5534 = vpop.f32.mrb[0].mxu0
        %v5535 = vpop.f32.mrb[0].mxu0
        %5536 = vdwg.mxu0
        %v5537 = vlaneseq
        %v5538 = vshrl.u32 %v5537, 7
        %v5539 = vsub.s32 0, %v5538
        %v5540 = vrot.slane %v5532, %v5539
        %v5541 = vadd.f32 %v5419, %v5540
        %v5542 = vadd.f32 %v5420, %v5540
        %v5543 = vadd.f32 %v5421, %v5540
        %v5544 = vadd.f32 %v5422, %v5540
        %v5545 = vadd.f32 %v5423, %v5540
        %v5546 = vadd.f32 %v5424, %v5540
        %v5547 = vadd.f32 %v5425, %v5540
        %v5548 = vadd.f32 %v5426, %v5540
        %v5549 = vadd.f32 %v5427, %v5540
        %v5550 = vadd.f32 %v5428, %v5540
        %v5551 = vadd.f32 %v5429, %v5540
        %v5552 = vadd.f32 %v5430, %v5540
        %v5553 = vadd.f32 %v5431, %v5540
        %v5554 = vadd.f32 %v5432, %v5540
        %v5555 = vadd.f32 %v5433, %v5540
        %v5556 = vadd.f32 %v5434, %v5540
        %v5557 = vadd.f32 %v5435, %v5540
        %v5558 = vadd.f32 %v5436, %v5540
        %v5559 = vadd.f32 %v5437, %v5540
        %v5560 = vadd.f32 %v5438, %v5540
        %v5561 = vadd.f32 %v5439, %v5540
        %v5562 = vadd.f32 %v5440, %v5540
        %v5563 = vadd.f32 %v5441, %v5540
        %v5564 = vadd.f32 %v5442, %v5540
        %v5565 = vadd.f32 %v5443, %v5540
        %v5566 = vadd.f32 %v5444, %v5540
        %v5567 = vadd.f32 %v5445, %v5540
        %v5568 = vadd.f32 %v5446, %v5540
        %v5569 = vadd.f32 %v5447, %v5540
        %v5570 = vadd.f32 %v5448, %v5540
        %v5571 = vadd.f32 %v5449, %v5540
        %v5572 = vadd.f32 %v5450, %v5540
        %v5573 = vld [vmem:[%s8] sm:$0x1]
        %v5574 = vld [vmem:[%s9] sm:$0x1]
        %v5575 = vadd.f32 %v5541, %v5542
        %v5576 = vadd.f32 %v5575, %v5543
        %v5577 = vadd.f32 %v5576, %v5544
        %v5578 = vadd.f32 %v5577, %v5545
        %v5579 = vadd.f32 %v5578, %v5546
        %v5580 = vadd.f32 %v5579, %v5547
        %v5581 = vadd.f32 %v5580, %v5548
        %v5582 = vadd.f32 %v5581, %v5549
        %v5583 = vadd.f32 %v5582, %v5550
        %v5584 = vadd.f32 %v5583, %v5551
        %v5585 = vadd.f32 %v5584, %v5552
        %v5586 = vadd.f32 %v5585, %v5553
        %v5587 = vadd.f32 %v5586, %v5554
        %v5588 = vadd.f32 %v5587, %v5555
        %v5589 = vadd.f32 %v5588, %v5556
        %v5590 = vadd.f32 %v5589, %v5557
        %v5591 = vadd.f32 %v5590, %v5558
        %v5592 = vadd.f32 %v5591, %v5559
        %v5593 = vadd.f32 %v5592, %v5560
        %v5594 = vadd.f32 %v5593, %v5561
        %v5595 = vadd.f32 %v5594, %v5562
        %v5596 = vadd.f32 %v5595, %v5563
        %v5597 = vadd.f32 %v5596, %v5564
        %v5598 = vadd.f32 %v5597, %v5565
        %v5599 = vadd.f32 %v5598, %v5566
        %v5600 = vadd.f32 %v5599, %v5567
        %v5601 = vadd.f32 %v5600, %v5568
        %v5602 = vadd.f32 %v5601, %v5569
        %v5603 = vadd.f32 %v5602, %v5570
        %v5604 = vadd.f32 %v5603, %v5571
        %v5605 = vadd.f32 %v5604, %v5572
        %v5606 = vrot.slane %v5605, 4
        %v5607 = vadd.f32 %v5605, %v5606
        %v5608 = vrot.slane %v5607, 2
        %v5609 = vadd.f32 %v5607, %v5608
        %v5610 = vrot.slane %v5609, 1
        %v5611 = vadd.f32 %v5609, %v5610
        %v5612 = vmul.f32 %v5541, %v5541
        %v5613 = vmul.f32 %v5542, %v5542
        %v5614 = vmul.f32 %v5543, %v5543
        %v5615 = vmul.f32 %v5544, %v5544
        %v5616 = vmul.f32 %v5545, %v5545
        %v5617 = vmul.f32 %v5546, %v5546
        %v5618 = vmul.f32 %v5547, %v5547
        %v5619 = vmul.f32 %v5548, %v5548
        %v5620 = vmul.f32 %v5549, %v5549
        %v5621 = vmul.f32 %v5550, %v5550
        %v5622 = vmul.f32 %v5551, %v5551
        %v5623 = vmul.f32 %v5552, %v5552
        %v5624 = vmul.f32 %v5553, %v5553
        %v5625 = vmul.f32 %v5554, %v5554
        %v5626 = vmul.f32 %v5555, %v5555
        %v5627 = vmul.f32 %v5556, %v5556
        %v5628 = vmul.f32 %v5557, %v5557
        %v5629 = vmul.f32 %v5558, %v5558
        %v5630 = vmul.f32 %v5559, %v5559
        %v5631 = vmul.f32 %v5560, %v5560
        %v5632 = vmul.f32 %v5561, %v5561
        %v5633 = vmul.f32 %v5562, %v5562
        %v5634 = vmul.f32 %v5563, %v5563
        %v5635 = vmul.f32 %v5564, %v5564
        %v5636 = vmul.f32 %v5565, %v5565
        %v5637 = vmul.f32 %v5566, %v5566
        %v5638 = vmul.f32 %v5567, %v5567
        %v5639 = vmul.f32 %v5568, %v5568
        %v5640 = vmul.f32 %v5569, %v5569
        %v5641 = vmul.f32 %v5570, %v5570
        %v5642 = vmul.f32 %v5571, %v5571
        %v5643 = vmul.f32 %v5572, %v5572
        %v5644 = vadd.f32 %v5612, %v5613
        %v5645 = vadd.f32 %v5644, %v5614
        %v5646 = vadd.f32 %v5645, %v5615
        %v5647 = vadd.f32 %v5646, %v5616
        %v5648 = vadd.f32 %v5647, %v5617
        %v5649 = vadd.f32 %v5648, %v5618
        %v5650 = vadd.f32 %v5649, %v5619
        %v5651 = vadd.f32 %v5650, %v5620
        %v5652 = vadd.f32 %v5651, %v5621
        %v5653 = vadd.f32 %v5652, %v5622
        %v5654 = vadd.f32 %v5653, %v5623
        %v5655 = vadd.f32 %v5654, %v5624
        %v5656 = vadd.f32 %v5655, %v5625
        %v5657 = vadd.f32 %v5656, %v5626
        %v5658 = vadd.f32 %v5657, %v5627
        %v5659 = vadd.f32 %v5658, %v5628
        %v5660 = vadd.f32 %v5659, %v5629
        %v5661 = vadd.f32 %v5660, %v5630
        %v5662 = vadd.f32 %v5661, %v5631
        %v5663 = vadd.f32 %v5662, %v5632
        %v5664 = vadd.f32 %v5663, %v5633
        %v5665 = vadd.f32 %v5664, %v5634
        %v5666 = vadd.f32 %v5665, %v5635
        %v5667 = vadd.f32 %v5666, %v5636
        %v5668 = vadd.f32 %v5667, %v5637
        %v5669 = vadd.f32 %v5668, %v5638
        %v5670 = vadd.f32 %v5669, %v5639
        %v5671 = vadd.f32 %v5670, %v5640
        %v5672 = vadd.f32 %v5671, %v5641
        %v5673 = vadd.f32 %v5672, %v5642
        %v5674 = vadd.f32 %v5673, %v5643
        %v5675 = vrot.slane %v5674, 4
        %v5676 = vadd.f32 %v5674, %v5675
        %v5677 = vrot.slane %v5676, 2
        %v5678 = vadd.f32 %v5676, %v5677
        %v5679 = vrot.slane %v5678, 1
        %v5680 = vadd.f32 %v5678, %v5679
        %v5681 = vsel %vm1319, %v5611, %v5680
        %5682 = vmatprep.subr.mxu0 0.0
        %5683 = vmatpush1.msra.mxu0 %v1159
        %5684 = vmatprep.subr.mxu0 0.0
        %5685 = vmatpush1.msra.mxu0 %v1160
        %5686 = vmatprep.subr.mxu0 0.0
        %5687 = vmatpush1.msra.mxu0 %v1161
        %5688 = vmatprep.subr.mxu0 0.0
        %5689 = vmatpush1.msra.mxu0 %v1162
        %5690 = vmatprep.subr.mxu0 0.0
        %5691 = vmatpush1.msra.mxu0 %v1163
        %5692 = vmatprep.subr.mxu0 0.0
        %5693 = vmatpush1.msra.mxu0 %v1164
        %5694 = vmatprep.subr.mxu0 0.0
        %5695 = vmatpush1.msra.mxu0 %v1165
        %5696 = vmatprep.subr.mxu0 0.0
        %5697 = vmatpush1.msra.mxu0 %v1166
        %5698 = vmatprep.subr.mxu0 0.0
        %5699 = vmatpush1.msra.mxu0 %v1167
        %5700 = vmatprep.subr.mxu0 0.0
        %5701 = vmatpush1.msra.mxu0 %v1168
        %5702 = vmatprep.subr.mxu0 0.0
        %5703 = vmatpush1.msra.mxu0 %v1169
        %5704 = vmatprep.subr.mxu0 0.0
        %5705 = vmatpush1.msra.mxu0 %v1170
        %5706 = vmatprep.subr.mxu0 0.0
        %5707 = vmatpush1.msra.mxu0 %v1171
        %5708 = vmatprep.subr.mxu0 0.0
        %5709 = vmatpush1.msra.mxu0 %v1172
        %5710 = vmatprep.subr.mxu0 0.0
        %5711 = vmatpush1.msra.mxu0 %v1173
        %5712 = vmatprep.subr.mxu0 0.0
        %5713 = vmatpush1.msra.mxu0 %v1174
        %5714 = vmatprep.subr.mxu0 0.0
        %5715 = vmatpush1.msra.mxu0 0.0
        %5716 = vmatprep.subr.mxu0 0.0
        %5717 = vmatpush1.msra.mxu0 0.0
        %5718 = vmatprep.subr.mxu0 0.0
        %5719 = vmatpush1.msra.mxu0 0.0
        %5720 = vmatprep.subr.mxu0 0.0
        %5721 = vmatpush1.msra.mxu0 0.0
        %5722 = vmatprep.subr.mxu0 0.0
        %5723 = vmatpush1.msra.mxu0 0.0
        %5724 = vmatprep.subr.mxu0 0.0
        %5725 = vmatpush1.msra.mxu0 0.0
        %5726 = vmatprep.subr.mxu0 0.0
        %5727 = vmatpush1.msra.mxu0 0.0
        %5728 = vmatprep.subr.mxu0 0.0
        %5729 = vmatpush1.msra.mxu0 0.0
        %5730 = vmatprep.subr.mxu0 0.0
        %5731 = vmatpush1.msra.mxu0 0.0
        %5732 = vmatprep.subr.mxu0 0.0
        %5733 = vmatpush1.msra.mxu0 0.0
        %5734 = vmatprep.subr.mxu0 0.0
        %5735 = vmatpush1.msra.mxu0 0.0
        %5736 = vmatprep.subr.mxu0 0.0
        %5737 = vmatpush1.msra.mxu0 0.0
        %5738 = vmatprep.subr.mxu0 0.0
        %5739 = vmatpush1.msra.mxu0 0.0
        %5740 = vmatprep.subr.mxu0 0.0
        %5741 = vmatpush1.msra.mxu0 0.0
        %5742 = vmatprep.subr.mxu0 0.0
        %5743 = vmatpush1.msra.mxu0 0.0
        %5744 = vmatprep.subr.mxu0 0.0
        %5745 = vmatpush1.msra.mxu0 0.0
        %5746 = vmatprep.mubr.f32.mxu0 0.0
        %5747 = vmatmul.mubr.f32.gmra.mrb[0].mxu0 %v5681
        %v5748 = vpop.f32.mrb[0].mxu0
        %v5749 = vadd.f32 0.0, %v5748
        %v5750 = vpop.f32.mrb[0].mxu0
        %5751 = vdwg.mxu0
        %v5752 = vmul.f32 %v5749, 0.0009765625
        %v5753 = vmul.f32 %v5752, %v5752
        %v5755 = vrot.slane %v5753, 7
        %v5757 = vsub.f32 %v5752, %v5755
        %v5758 = vlaneseq
        %v5759 = vshrl.u32 %v5758, 7
        %v5760 = vsub.s32 0, %v5759
        %v5761 = vrot.slane %v5752, %v5760
        %v5762 = vsub.f32 %v5541, %v5761
        %v5763 = vsub.f32 %v5542, %v5761
        %v5764 = vsub.f32 %v5543, %v5761
        %v5765 = vsub.f32 %v5544, %v5761
        %v5766 = vsub.f32 %v5545, %v5761
        %v5767 = vsub.f32 %v5546, %v5761
        %v5768 = vsub.f32 %v5547, %v5761
        %v5769 = vsub.f32 %v5548, %v5761
        %v5770 = vsub.f32 %v5549, %v5761
        %v5771 = vsub.f32 %v5550, %v5761
        %v5772 = vsub.f32 %v5551, %v5761
        %v5773 = vsub.f32 %v5552, %v5761
        %v5774 = vsub.f32 %v5553, %v5761
        %v5775 = vsub.f32 %v5554, %v5761
        %v5776 = vsub.f32 %v5555, %v5761
        %v5777 = vsub.f32 %v5556, %v5761
        %v5778 = vsub.f32 %v5557, %v5761
        %v5779 = vsub.f32 %v5558, %v5761
        %v5780 = vsub.f32 %v5559, %v5761
        %v5781 = vsub.f32 %v5560, %v5761
        %v5782 = vsub.f32 %v5561, %v5761
        %v5783 = vsub.f32 %v5562, %v5761
        %v5784 = vsub.f32 %v5563, %v5761
        %v5785 = vsub.f32 %v5564, %v5761
        %v5786 = vsub.f32 %v5565, %v5761
        %v5787 = vsub.f32 %v5566, %v5761
        %v5788 = vsub.f32 %v5567, %v5761
        %v5789 = vsub.f32 %v5568, %v5761
        %v5790 = vsub.f32 %v5569, %v5761
        %v5791 = vsub.f32 %v5570, %v5761
        %v5792 = vsub.f32 %v5571, %v5761
        %v5793 = vsub.f32 %v5572, %v5761
        %v5794 = vadd.f32 %v5757, 1e-05
        %v5795 = vrsqrt.pop %v5794
        %v5796 = vlaneseq
        %v5797 = vshrl.u32 %v5796, 7
        %v5798 = vsub.s32 1, %v5797
        %v5799 = vrot.slane %v5795, %v5798
        %v5800 = vmul.f32 %v5762, %v5799
        %v5801 = vmul.f32 %v5763, %v5799
        %v5802 = vmul.f32 %v5764, %v5799
        %v5803 = vmul.f32 %v5765, %v5799
        %v5804 = vmul.f32 %v5766, %v5799
        %v5805 = vmul.f32 %v5767, %v5799
        %v5806 = vmul.f32 %v5768, %v5799
        %v5807 = vmul.f32 %v5769, %v5799
        %v5808 = vmul.f32 %v5770, %v5799
        %v5809 = vmul.f32 %v5771, %v5799
        %v5810 = vmul.f32 %v5772, %v5799
        %v5811 = vmul.f32 %v5773, %v5799
        %v5812 = vmul.f32 %v5774, %v5799
        %v5813 = vmul.f32 %v5775, %v5799
        %v5814 = vmul.f32 %v5776, %v5799
        %v5815 = vmul.f32 %v5777, %v5799
        %v5816 = vmul.f32 %v5778, %v5799
        %v5817 = vmul.f32 %v5779, %v5799
        %v5818 = vmul.f32 %v5780, %v5799
        %v5819 = vmul.f32 %v5781, %v5799
        %v5820 = vmul.f32 %v5782, %v5799
        %v5821 = vmul.f32 %v5783, %v5799
        %v5822 = vmul.f32 %v5784, %v5799
        %v5823 = vmul.f32 %v5785, %v5799
        %v5824 = vmul.f32 %v5786, %v5799
        %v5825 = vmul.f32 %v5787, %v5799
        %v5826 = vmul.f32 %v5788, %v5799
        %v5827 = vmul.f32 %v5789, %v5799
        %v5828 = vmul.f32 %v5790, %v5799
        %v5829 = vmul.f32 %v5791, %v5799
        %v5830 = vmul.f32 %v5792, %v5799
        %v5831 = vmul.f32 %v5793, %v5799
        %v5833 = vlaneseq
        %v5834 = vshrl.u32 %v5833, 7
        %v5835 = vsub.s32 0, %v5834
        %v5836 = vrot.slane %v5573, %v5835
        %v5838 = vmul.f32 %v5800, %v5836
        %v5839 = vmul.f32 %v5801, %v5836
        %v5840 = vmul.f32 %v5802, %v5836
        %v5841 = vmul.f32 %v5803, %v5836
        %v5842 = vmul.f32 %v5804, %v5836
        %v5843 = vmul.f32 %v5805, %v5836
        %v5844 = vmul.f32 %v5806, %v5836
        %v5845 = vmul.f32 %v5807, %v5836
        %v5846 = vmul.f32 %v5808, %v5836
        %v5847 = vmul.f32 %v5809, %v5836
        %v5848 = vmul.f32 %v5810, %v5836
        %v5849 = vmul.f32 %v5811, %v5836
        %v5850 = vmul.f32 %v5812, %v5836
        %v5851 = vmul.f32 %v5813, %v5836
        %v5852 = vmul.f32 %v5814, %v5836
        %v5853 = vmul.f32 %v5815, %v5836
        %v5854 = vmul.f32 %v5816, %v5836
        %v5855 = vmul.f32 %v5817, %v5836
        %v5856 = vmul.f32 %v5818, %v5836
        %v5857 = vmul.f32 %v5819, %v5836
        %v5858 = vmul.f32 %v5820, %v5836
        %v5859 = vmul.f32 %v5821, %v5836
        %v5860 = vmul.f32 %v5822, %v5836
        %v5861 = vmul.f32 %v5823, %v5836
        %v5862 = vmul.f32 %v5824, %v5836
        %v5863 = vmul.f32 %v5825, %v5836
        %v5864 = vmul.f32 %v5826, %v5836
        %v5865 = vmul.f32 %v5827, %v5836
        %v5866 = vmul.f32 %v5828, %v5836
        %v5867 = vmul.f32 %v5829, %v5836
        %v5868 = vmul.f32 %v5830, %v5836
        %v5869 = vmul.f32 %v5831, %v5836
        %v5871 = vlaneseq
        %v5872 = vshrl.u32 %v5871, 7
        %v5873 = vsub.s32 0, %v5872
        %v5874 = vrot.slane %v5574, %v5873
        %v5876 = vadd.f32 %v5838, %v5874
        %v5877 = vadd.f32 %v5839, %v5874
        %v5878 = vadd.f32 %v5840, %v5874
        %v5879 = vadd.f32 %v5841, %v5874
        %v5880 = vadd.f32 %v5842, %v5874
        %v5881 = vadd.f32 %v5843, %v5874
        %v5882 = vadd.f32 %v5844, %v5874
        %v5883 = vadd.f32 %v5845, %v5874
        %v5884 = vadd.f32 %v5846, %v5874
        %v5885 = vadd.f32 %v5847, %v5874
        %v5886 = vadd.f32 %v5848, %v5874
        %v5887 = vadd.f32 %v5849, %v5874
        %v5888 = vadd.f32 %v5850, %v5874
        %v5889 = vadd.f32 %v5851, %v5874
        %v5890 = vadd.f32 %v5852, %v5874
        %v5891 = vadd.f32 %v5853, %v5874
        %v5892 = vadd.f32 %v5854, %v5874
        %v5893 = vadd.f32 %v5855, %v5874
        %v5894 = vadd.f32 %v5856, %v5874
        %v5895 = vadd.f32 %v5857, %v5874
        %v5896 = vadd.f32 %v5858, %v5874
        %v5897 = vadd.f32 %v5859, %v5874
        %v5898 = vadd.f32 %v5860, %v5874
        %v5899 = vadd.f32 %v5861, %v5874
        %v5900 = vadd.f32 %v5862, %v5874
        %v5901 = vadd.f32 %v5863, %v5874
        %v5902 = vadd.f32 %v5864, %v5874
        %v5903 = vadd.f32 %v5865, %v5874
        %v5904 = vadd.f32 %v5866, %v5874
        %v5905 = vadd.f32 %v5867, %v5874
        %v5906 = vadd.f32 %v5868, %v5874
        %v5907 = vadd.f32 %v5869, %v5874
        %v5908 = vxor.u32 %v5876, 2147483648
        %v5909 = vxor.u32 %v5877, 2147483648
        %v5910 = vxor.u32 %v5878, 2147483648
        %v5911 = vxor.u32 %v5879, 2147483648
        %v5912 = vxor.u32 %v5880, 2147483648
        %v5913 = vxor.u32 %v5881, 2147483648
        %v5914 = vxor.u32 %v5882, 2147483648
        %v5915 = vxor.u32 %v5883, 2147483648
        %v5916 = vxor.u32 %v5884, 2147483648
        %v5917 = vxor.u32 %v5885, 2147483648
        %v5918 = vxor.u32 %v5886, 2147483648
        %v5919 = vxor.u32 %v5887, 2147483648
        %v5920 = vxor.u32 %v5888, 2147483648
        %v5921 = vxor.u32 %v5889, 2147483648
        %v5922 = vxor.u32 %v5890, 2147483648
        %v5923 = vxor.u32 %v5891, 2147483648
        %v5924 = vxor.u32 %v5892, 2147483648
        %v5925 = vxor.u32 %v5893, 2147483648
        %v5926 = vxor.u32 %v5894, 2147483648
        %v5927 = vxor.u32 %v5895, 2147483648
        %v5928 = vxor.u32 %v5896, 2147483648
        %v5929 = vxor.u32 %v5897, 2147483648
        %v5930 = vxor.u32 %v5898, 2147483648
        %v5931 = vxor.u32 %v5899, 2147483648
        %v5932 = vxor.u32 %v5900, 2147483648
        %v5933 = vxor.u32 %v5901, 2147483648
        %v5934 = vxor.u32 %v5902, 2147483648
        %v5935 = vxor.u32 %v5903, 2147483648
        %v5936 = vxor.u32 %v5904, 2147483648
        %v5937 = vxor.u32 %v5905, 2147483648
        %v5938 = vxor.u32 %v5906, 2147483648
        %v5939 = vxor.u32 %v5907, 2147483648
        %v5940 = vmul.f32 %v5908, 1.442695
        %v5941 = vpow.pop %v5940
        %v5942 = vmul.f32 %v5909, 1.442695
        %v5943 = vpow.pop %v5942
        %v5944 = vmul.f32 %v5910, 1.442695
        %v5945 = vpow.pop %v5944
        %v5946 = vmul.f32 %v5911, 1.442695
        %v5947 = vpow.pop %v5946
        %v5948 = vmul.f32 %v5912, 1.442695
        %v5949 = vpow.pop %v5948
        %v5950 = vmul.f32 %v5913, 1.442695
        %v5951 = vpow.pop %v5950
        %v5952 = vmul.f32 %v5914, 1.442695
        %v5953 = vpow.pop %v5952
        %v5954 = vmul.f32 %v5915, 1.442695
        %v5955 = vpow.pop %v5954
        %v5956 = vmul.f32 %v5916, 1.442695
        %v5957 = vpow.pop %v5956
        %v5958 = vmul.f32 %v5917, 1.442695
        %v5959 = vpow.pop %v5958
        %v5960 = vmul.f32 %v5918, 1.442695
        %v5961 = vpow.pop %v5960
        %v5962 = vmul.f32 %v5919, 1.442695
        %v5963 = vpow.pop %v5962
        %v5964 = vmul.f32 %v5920, 1.442695
        %v5965 = vpow.pop %v5964
        %v5966 = vmul.f32 %v5921, 1.442695
        %v5967 = vpow.pop %v5966
        %v5968 = vmul.f32 %v5922, 1.442695
        %v5969 = vpow.pop %v5968
        %v5970 = vmul.f32 %v5923, 1.442695
        %v5971 = vpow.pop %v5970
        %v5972 = vmul.f32 %v5924, 1.442695
        %v5973 = vpow.pop %v5972
        %v5974 = vmul.f32 %v5925, 1.442695
        %v5975 = vpow.pop %v5974
        %v5976 = vmul.f32 %v5926, 1.442695
        %v5977 = vpow.pop %v5976
        %v5978 = vmul.f32 %v5927, 1.442695
        %v5979 = vpow.pop %v5978
        %v5980 = vmul.f32 %v5928, 1.442695
        %v5981 = vpow.pop %v5980
        %v5982 = vmul.f32 %v5929, 1.442695
        %v5983 = vpow.pop %v5982
        %v5984 = vmul.f32 %v5930, 1.442695
        %v5985 = vpow.pop %v5984
        %v5986 = vmul.f32 %v5931, 1.442695
        %v5987 = vpow.pop %v5986
        %v5988 = vmul.f32 %v5932, 1.442695
        %v5989 = vpow.pop %v5988
        %v5990 = vmul.f32 %v5933, 1.442695
        %v5991 = vpow.pop %v5990
        %v5992 = vmul.f32 %v5934, 1.442695
        %v5993 = vpow.pop %v5992
        %v5994 = vmul.f32 %v5935, 1.442695
        %v5995 = vpow.pop %v5994
        %v5996 = vmul.f32 %v5936, 1.442695
        %v5997 = vpow.pop %v5996
        %v5998 = vmul.f32 %v5937, 1.442695
        %v5999 = vpow.pop %v5998
        %v6000 = vmul.f32 %v5938, 1.442695
        %v6001 = vpow.pop %v6000
        %v6002 = vmul.f32 %v5939, 1.442695
        %v6003 = vpow.pop %v6002
        %v6004 = vadd.f32 %v5941, 1.0
        %v6005 = vadd.f32 %v5943, 1.0
        %v6006 = vadd.f32 %v5945, 1.0
        %v6007 = vadd.f32 %v5947, 1.0
        %v6008 = vadd.f32 %v5949, 1.0
        %v6009 = vadd.f32 %v5951, 1.0
        %v6010 = vadd.f32 %v5953, 1.0
        %v6011 = vadd.f32 %v5955, 1.0
        %v6012 = vadd.f32 %v5957, 1.0
        %v6013 = vadd.f32 %v5959, 1.0
        %v6014 = vadd.f32 %v5961, 1.0
        %v6015 = vadd.f32 %v5963, 1.0
        %v6016 = vadd.f32 %v5965, 1.0
        %v6017 = vadd.f32 %v5967, 1.0
        %v6018 = vadd.f32 %v5969, 1.0
        %v6019 = vadd.f32 %v5971, 1.0
        %v6020 = vadd.f32 %v5973, 1.0
        %v6021 = vadd.f32 %v5975, 1.0
        %v6022 = vadd.f32 %v5977, 1.0
        %v6023 = vadd.f32 %v5979, 1.0
        %v6024 = vadd.f32 %v5981, 1.0
        %v6025 = vadd.f32 %v5983, 1.0
        %v6026 = vadd.f32 %v5985, 1.0
        %v6027 = vadd.f32 %v5987, 1.0
        %v6028 = vadd.f32 %v5989, 1.0
        %v6029 = vadd.f32 %v5991, 1.0
        %v6030 = vadd.f32 %v5993, 1.0
        %v6031 = vadd.f32 %v5995, 1.0
        %v6032 = vadd.f32 %v5997, 1.0
        %v6033 = vadd.f32 %v5999, 1.0
        %v6034 = vadd.f32 %v6001, 1.0
        %v6035 = vadd.f32 %v6003, 1.0
        %v6036 = vrcp.pop %v6004
        %v6037 = vmul.f32 1.0, %v6036
        %v6038 = vrcp.pop %v6005
        %v6039 = vmul.f32 1.0, %v6038
        %v6040 = vrcp.pop %v6006
        %v6041 = vmul.f32 1.0, %v6040
        %v6042 = vrcp.pop %v6007
        %v6043 = vmul.f32 1.0, %v6042
        %v6044 = vrcp.pop %v6008
        %v6045 = vmul.f32 1.0, %v6044
        %v6046 = vrcp.pop %v6009
        %v6047 = vmul.f32 1.0, %v6046
        %v6048 = vrcp.pop %v6010
        %v6049 = vmul.f32 1.0, %v6048
        %v6050 = vrcp.pop %v6011
        %v6051 = vmul.f32 1.0, %v6050
        %v6052 = vrcp.pop %v6012
        %v6053 = vmul.f32 1.0, %v6052
        %v6054 = vrcp.pop %v6013
        %v6055 = vmul.f32 1.0, %v6054
        %v6056 = vrcp.pop %v6014
        %v6057 = vmul.f32 1.0, %v6056
        %v6058 = vrcp.pop %v6015
        %v6059 = vmul.f32 1.0, %v6058
        %v6060 = vrcp.pop %v6016
        %v6061 = vmul.f32 1.0, %v6060
        %v6062 = vrcp.pop %v6017
        %v6063 = vmul.f32 1.0, %v6062
        %v6064 = vrcp.pop %v6018
        %v6065 = vmul.f32 1.0, %v6064
        %v6066 = vrcp.pop %v6019
        %v6067 = vmul.f32 1.0, %v6066
        %v6068 = vrcp.pop %v6020
        %v6069 = vmul.f32 1.0, %v6068
        %v6070 = vrcp.pop %v6021
        %v6071 = vmul.f32 1.0, %v6070
        %v6072 = vrcp.pop %v6022
        %v6073 = vmul.f32 1.0, %v6072
        %v6074 = vrcp.pop %v6023
        %v6075 = vmul.f32 1.0, %v6074
        %v6076 = vrcp.pop %v6024
        %v6077 = vmul.f32 1.0, %v6076
        %v6078 = vrcp.pop %v6025
        %v6079 = vmul.f32 1.0, %v6078
        %v6080 = vrcp.pop %v6026
        %v6081 = vmul.f32 1.0, %v6080
        %v6082 = vrcp.pop %v6027
        %v6083 = vmul.f32 1.0, %v6082
        %v6084 = vrcp.pop %v6028
        %v6085 = vmul.f32 1.0, %v6084
        %v6086 = vrcp.pop %v6029
        %v6087 = vmul.f32 1.0, %v6086
        %v6088 = vrcp.pop %v6030
        %v6089 = vmul.f32 1.0, %v6088
        %v6090 = vrcp.pop %v6031
        %v6091 = vmul.f32 1.0, %v6090
        %v6092 = vrcp.pop %v6032
        %v6093 = vmul.f32 1.0, %v6092
        %v6094 = vrcp.pop %v6033
        %v6095 = vmul.f32 1.0, %v6094
        %v6096 = vrcp.pop %v6034
        %v6097 = vmul.f32 1.0, %v6096
        %v6098 = vrcp.pop %v6035
        %v6099 = vmul.f32 1.0, %v6098
        %v6100 = vmul.f32 %v5876, %v6037
        %v6101 = vmul.f32 %v5877, %v6039
        %v6102 = vmul.f32 %v5878, %v6041
        %v6103 = vmul.f32 %v5879, %v6043
        %v6104 = vmul.f32 %v5880, %v6045
        %v6105 = vmul.f32 %v5881, %v6047
        %v6106 = vmul.f32 %v5882, %v6049
        %v6107 = vmul.f32 %v5883, %v6051
        %v6108 = vmul.f32 %v5884, %v6053
        %v6109 = vmul.f32 %v5885, %v6055
        %v6110 = vmul.f32 %v5886, %v6057
        %v6111 = vmul.f32 %v5887, %v6059
        %v6112 = vmul.f32 %v5888, %v6061
        %v6113 = vmul.f32 %v5889, %v6063
        %v6114 = vmul.f32 %v5890, %v6065
        %v6115 = vmul.f32 %v5891, %v6067
        %v6116 = vmul.f32 %v5892, %v6069
        %v6117 = vmul.f32 %v5893, %v6071
        %v6118 = vmul.f32 %v5894, %v6073
        %v6119 = vmul.f32 %v5895, %v6075
        %v6120 = vmul.f32 %v5896, %v6077
        %v6121 = vmul.f32 %v5897, %v6079
        %v6122 = vmul.f32 %v5898, %v6081
        %v6123 = vmul.f32 %v5899, %v6083
        %v6124 = vmul.f32 %v5900, %v6085
        %v6125 = vmul.f32 %v5901, %v6087
        %v6126 = vmul.f32 %v5902, %v6089
        %v6127 = vmul.f32 %v5903, %v6091
        %v6128 = vmul.f32 %v5904, %v6093
        %v6129 = vmul.f32 %v5905, %v6095
        %v6130 = vmul.f32 %v5906, %v6097
        %v6131 = vmul.f32 %v5907, %v6099
        %v6132 = vld [vmem:[%s11] sm:$0x1]
        %v6133 = vpack.c.bf16 %v6101, %v6100
        %v6134 = vpack.c.bf16 %v6103, %v6102
        %v6135 = vpack.c.bf16 %v6105, %v6104
        %v6136 = vpack.c.bf16 %v6107, %v6106
        %v6137 = vpack.c.bf16 %v6109, %v6108
        %v6138 = vpack.c.bf16 %v6111, %v6110
        %v6139 = vpack.c.bf16 %v6113, %v6112
        %v6140 = vpack.c.bf16 %v6115, %v6114
        %v6141 = vpack.c.bf16 %v6117, %v6116
        %v6142 = vpack.c.bf16 %v6119, %v6118
        %v6143 = vpack.c.bf16 %v6121, %v6120
        %v6144 = vpack.c.bf16 %v6123, %v6122
        %v6145 = vpack.c.bf16 %v6125, %v6124
        %v6146 = vpack.c.bf16 %v6127, %v6126
        %v6147 = vpack.c.bf16 %v6129, %v6128
        %v6148 = vpack.c.bf16 %v6131, %v6130
        %6149 = vst [vmem:[#allocation2 + $0x10] sm:$0xff] %v6133
        %6150 = vst [vmem:[#allocation2 + $0x18] sm:$0xff] %v6134
        %6151 = vst [vmem:[#allocation2 + $0x20] sm:$0xff] %v6135
        %6152 = vst [vmem:[#allocation2 + $0x28] sm:$0xff] %v6136
        %6153 = vst [vmem:[#allocation2 + $0x30] sm:$0xff] %v6137
        %6154 = vst [vmem:[#allocation2 + $0x38] sm:$0xff] %v6138
        %6155 = vst [vmem:[#allocation2 + $0x40] sm:$0xff] %v6139
        %6156 = vst [vmem:[#allocation2 + $0x48] sm:$0xff] %v6140
        %6157 = vst [vmem:[#allocation2 + $0x50] sm:$0xff] %v6141
        %6158 = vst [vmem:[#allocation2 + $0x58] sm:$0xff] %v6142
        %6159 = vst [vmem:[#allocation2 + $0x60] sm:$0xff] %v6143
        %6160 = vst [vmem:[#allocation2 + $0x68] sm:$0xff] %v6144
        %6161 = vst [vmem:[#allocation2 + $0x70] sm:$0xff] %v6145
        %6162 = vst [vmem:[#allocation2 + $0x78] sm:$0xff] %v6146
        %6163 = vst [vmem:[#allocation2 + $0x80] sm:$0xff] %v6147
        %6164 = vst [vmem:[#allocation2 + $0x88] sm:$0xff] %v6148
        %v6165 = vld [vmem:[#allocation2] sm:$0x80]
        %v6166 = vld [vmem:[#allocation2 + $0x8] sm:$0xff]
        %v6167 = vld [vmem:[#allocation2 + $0x10] sm:$0xff]
        %v6168 = vld [vmem:[#allocation2 + $0x18] sm:$0xff]
        %v6169 = vld [vmem:[#allocation2 + $0x20] sm:$0xff]
        %v6170 = vld [vmem:[#allocation2 + $0x28] sm:$0xff]
        %v6171 = vld [vmem:[#allocation2 + $0x30] sm:$0xff]
        %v6172 = vld [vmem:[#allocation2 + $0x38] sm:$0xff]
        %v6173 = vld [vmem:[#allocation2 + $0x40] sm:$0xff]
        %v6174 = vld [vmem:[#allocation2 + $0x48] sm:$0xff]
        %v6175 = vld [vmem:[#allocation2 + $0x50] sm:$0xff]
        %v6176 = vld [vmem:[#allocation2 + $0x58] sm:$0xff]
        %v6177 = vld [vmem:[#allocation2 + $0x60] sm:$0xff]
        %v6178 = vld [vmem:[#allocation2 + $0x68] sm:$0xff]
        %v6179 = vld [vmem:[#allocation2 + $0x70] sm:$0xff]
        %v6180 = vld [vmem:[#allocation2 + $0x78] sm:$0xff]
        %v6181 = vld [vmem:[#allocation2 + $0x80] sm:$0xff]
        %v6182 = vmul.bf16 %v6165, %v1825
        %v6183 = vmul.bf16 %v6166, %v1833
        %v6184 = vmul.bf16 %v6167, %v1841
        %v6185 = vmul.bf16 %v6168, %v1849
        %v6186 = vmul.bf16 %v6169, %v1857
        %v6187 = vmul.bf16 %v6170, %v1865
        %v6188 = vmul.bf16 %v6171, %v1873
        %v6189 = vmul.bf16 %v6172, %v1881
        %v6190 = vmul.bf16 %v6173, %v1889
        %v6191 = vmul.bf16 %v6174, %v1897
        %v6192 = vmul.bf16 %v6175, %v1905
        %v6193 = vmul.bf16 %v6176, %v1913
        %v6194 = vmul.bf16 %v6177, %v1921
        %v6195 = vmul.bf16 %v6178, %v1929
        %v6196 = vmul.bf16 %v6179, %v1937
        %v6197 = vmul.bf16 %v6180, %v1945
        %v6198 = vmul.bf16 %v6181, %v1948
        %v6199 = vld [vmem:[#allocation8] sm:$0xf]
        %v6200 = vld [vmem:[#allocation8 + $0x4] sm:$0xf]
        %v6201 = vld [vmem:[#allocation8 + $0x8] sm:$0xf]
        %v6202 = vld [vmem:[#allocation8 + $0xc] sm:$0xf]
        %v6203 = vld [vmem:[#allocation8 + $0x10] sm:$0xf]
        %v6204 = vld [vmem:[#allocation8 + $0x14] sm:$0xf]
        %v6205 = vld [vmem:[#allocation8 + $0x18] sm:$0xf]
        %v6206 = vld [vmem:[#allocation8 + $0x1c] sm:$0xf]
        %v6207 = vld [vmem:[#allocation8 + $0x20] sm:$0xf]
        %v6208 = vld [vmem:[#allocation8 + $0x24] sm:$0xf]
        %v6209 = vld [vmem:[#allocation8 + $0x28] sm:$0xf]
        %v6210 = vld [vmem:[#allocation8 + $0x2c] sm:$0xf]
        %v6211 = vld [vmem:[#allocation8 + $0x30] sm:$0xf]
        %v6212 = vld [vmem:[#allocation8 + $0x34] sm:$0xf]
        %v6213 = vld [vmem:[#allocation8 + $0x38] sm:$0xf]
        %v6214 = vld [vmem:[#allocation8 + $0x3c] sm:$0xf]
        %s6215 = scalar_lea.vmem [#allocation8], 64
        %v6216 = vld [vmem:[%s6215] sm:$0xf]
        %v6217 = vld [vmem:[%s6215 + $0x4] sm:$0xf]
        %v6218 = vld [vmem:[%s6215 + $0x8] sm:$0xf]
        %v6219 = vld [vmem:[%s6215 + $0xc] sm:$0xf]
        %v6220 = vld [vmem:[%s6215 + $0x10] sm:$0xf]
        %v6221 = vld [vmem:[%s6215 + $0x14] sm:$0xf]
        %v6222 = vld [vmem:[%s6215 + $0x18] sm:$0xf]
        %v6223 = vld [vmem:[%s6215 + $0x1c] sm:$0xf]
        %v6224 = vld [vmem:[%s6215 + $0x20] sm:$0xf]
        %v6225 = vld [vmem:[%s6215 + $0x24] sm:$0xf]
        %v6226 = vld [vmem:[%s6215 + $0x28] sm:$0xf]
        %v6227 = vld [vmem:[%s6215 + $0x2c] sm:$0xf]
        %v6228 = vld [vmem:[%s6215 + $0x30] sm:$0xf]
        %v6229 = vld [vmem:[%s6215 + $0x34] sm:$0xf]
        %v6230 = vld [vmem:[%s6215 + $0x38] sm:$0xf]
        %v6231 = vld [vmem:[%s6215 + $0x3c] sm:$0xf]
        %v6248 = vunpack.c.l.b16 %v6216
        %v6249 = vunpack.c.l.b16 %v6217
        %v6250 = vunpack.c.l.b16 %v6218
        %v6251 = vunpack.c.l.b16 %v6219
        %v6252 = vunpack.c.l.b16 %v6220
        %v6253 = vunpack.c.l.b16 %v6221
        %v6254 = vunpack.c.l.b16 %v6222
        %v6255 = vunpack.c.l.b16 %v6223
        %v6256 = vunpack.c.l.b16 %v6224
        %v6257 = vunpack.c.l.b16 %v6225
        %v6258 = vunpack.c.l.b16 %v6226
        %v6259 = vunpack.c.l.b16 %v6227
        %v6260 = vunpack.c.l.b16 %v6228
        %v6261 = vunpack.c.l.b16 %v6229
        %v6262 = vunpack.c.l.b16 %v6230
        %v6263 = vunpack.c.l.b16 %v6231
        %v6264 = vpack.c.b16 %v6249, %v6248
        %v6265 = vpack.c.b16 %v6251, %v6250
        %v6266 = vpack.c.b16 %v6253, %v6252
        %v6267 = vpack.c.b16 %v6255, %v6254
        %v6268 = vpack.c.b16 %v6257, %v6256
        %v6269 = vpack.c.b16 %v6259, %v6258
        %v6270 = vpack.c.b16 %v6261, %v6260
        %v6271 = vpack.c.b16 %v6263, %v6262
        %6280 = vmatprep.subr.bf16.mxu0 0
        %6281 = vmatpush1.bf16.msra.mxu0 %v6264
        %6282 = vmatprep.subr.bf16.mxu0 0
        %6283 = vmatpush1.bf16.msra.mxu0 %v6265
        %6284 = vmatprep.subr.bf16.mxu0 0
        %6285 = vmatpush1.bf16.msra.mxu0 %v6266
        %6286 = vmatprep.subr.bf16.mxu0 0
        %6287 = vmatpush1.bf16.msra.mxu0 %v6267
        %6288 = vmatprep.subr.bf16.mxu0 0
        %6289 = vmatpush1.bf16.msra.mxu0 %v6268
        %6290 = vmatprep.subr.bf16.mxu0 0
        %6291 = vmatpush1.bf16.msra.mxu0 %v6269
        %6292 = vmatprep.subr.bf16.mxu0 0
        %6293 = vmatpush1.bf16.msra.mxu0 %v6270
        %6294 = vmatprep.subr.bf16.mxu0 0
        %6295 = vmatpush1.bf16.msra.mxu0 %v6271
        %6296 = vmatprep.subr.bf16.mxu0 0
        %6297 = vmatpush1.bf16.msra.mxu0 0
        %6298 = vmatprep.subr.bf16.mxu0 0
        %6299 = vmatpush1.bf16.msra.mxu0 0
        %6300 = vmatprep.subr.bf16.mxu0 0
        %6301 = vmatpush1.bf16.msra.mxu0 0
        %6302 = vmatprep.subr.bf16.mxu0 0
        %6303 = vmatpush1.bf16.msra.mxu0 0
        %6304 = vmatprep.subr.bf16.mxu0 0
        %6305 = vmatpush1.bf16.msra.mxu0 0
        %6306 = vmatprep.subr.bf16.mxu0 0
        %6307 = vmatpush1.bf16.msra.mxu0 0
        %6308 = vmatprep.subr.bf16.mxu0 0
        %6309 = vmatpush1.bf16.msra.mxu0 0
        %6310 = vmatprep.subr.bf16.mxu0 0
        %6311 = vmatpush1.bf16.msra.mxu0 0
        %6312 = vmatprep.mubr.bf16.mxu0 0
        %6313 = vmatmul.mubr.bf16.gmra.mrb[0].mxu0 %v6166
        %v6314 = vpop.f32.mrb[0].mxu0
        %v6315 = vadd.f32 0.0, %v6314
        %v6316 = vpop.f32.mrb[0].mxu0
        %v6317 = vpop.f32.mrb[0].mxu0
        %v6318 = vadd.f32 0.0, %v6317
        %v6319 = vpop.f32.mrb[0].mxu0
        %6320 = vmatprep.mubr.bf16.mxu0 0
        %6321 = vmatmul.mubr.bf16.gmra.mrb[0].mxu0 %v6167
        %v6322 = vpop.f32.mrb[0].mxu0
        %v6323 = vadd.f32 0.0, %v6322
        %v6324 = vpop.f32.mrb[0].mxu0
        %v6325 = vpop.f32.mrb[0].mxu0
        %v6326 = vadd.f32 0.0, %v6325
        %v6327 = vpop.f32.mrb[0].mxu0
        %6328 = vmatprep.mubr.bf16.mxu0 0
        %6329 = vmatmul.mubr.bf16.gmra.mrb[0].mxu0 %v6168
        %v6330 = vpop.f32.mrb[0].mxu0
        %v6331 = vadd.f32 0.0, %v6330
        %v6332 = vpop.f32.mrb[0].mxu0
        %v6333 = vpop.f32.mrb[0].mxu0
        %v6334 = vadd.f32 0.0, %v6333
        %v6335 = vpop.f32.mrb[0].mxu0
        %6336 = vmatprep.mubr.bf16.mxu0 0
        %6337 = vmatmul.mubr.bf16.gmra.mrb[0].mxu0 %v6169
        %v6338 = vpop.f32.mrb[0].mxu0
        %v6339 = vadd.f32 0.0, %v6338
        %v6340 = vpop.f32.mrb[0].mxu0
        %v6341 = vpop.f32.mrb[0].mxu0
        %v6342 = vadd.f32 0.0, %v6341
        %v6343 = vpop.f32.mrb[0].mxu0
        %6344 = vmatprep.mubr.bf16.mxu0 0
        %6345 = vmatmul.mubr.bf16.gmra.mrb[0].mxu0 %v6170
        %v6346 = vpop.f32.mrb[0].mxu0
        %v6347 = vadd.f32 0.0, %v6346
        %v6348 = vpop.f32.mrb[0].mxu0
        %v6349 = vpop.f32.mrb[0].mxu0
        %v6350 = vadd.f32 0.0, %v6349
        %v6351 = vpop.f32.mrb[0].mxu0
        %6352 = vmatprep.mubr.bf16.mxu0 0
        %6353 = vmatmul.mubr.bf16.gmra.mrb[0].mxu0 %v6171
        %v6354 = vpop.f32.mrb[0].mxu0
        %v6355 = vadd.f32 0.0, %v6354
        %v6356 = vpop.f32.mrb[0].mxu0
        %v6357 = vpop.f32.mrb[0].mxu0
        %v6358 = vadd.f32 0.0, %v6357
        %v6359 = vpop.f32.mrb[0].mxu0
        %6360 = vmatprep.mubr.bf16.mxu0 0
        %6361 = vmatmul.mubr.bf16.gmra.mrb[0].mxu0 %v6172
        %v6362 = vpop.f32.mrb[0].mxu0
        %v6363 = vadd.f32 0.0, %v6362
        %v6364 = vpop.f32.mrb[0].mxu0
        %v6365 = vpop.f32.mrb[0].mxu0
        %v6366 = vadd.f32 0.0, %v6365
        %v6367 = vpop.f32.mrb[0].mxu0
        %6368 = vmatprep.mubr.bf16.mxu0 0
        %6369 = vmatmul.mubr.bf16.gmra.mrb[0].mxu0 %v6173
        %v6370 = vpop.f32.mrb[0].mxu0
        %v6371 = vadd.f32 0.0, %v6370
        %v6372 = vpop.f32.mrb[0].mxu0
        %v6373 = vpop.f32.mrb[0].mxu0
        %v6374 = vadd.f32 0.0, %v6373
        %v6375 = vpop.f32.mrb[0].mxu0
        %6376 = vmatprep.mubr.bf16.mxu0 0
        %6377 = vmatmul.mubr.bf16.gmra.mrb[0].mxu0 %v6174
        %v6378 = vpop.f32.mrb[0].mxu0
        %v6379 = vadd.f32 0.0, %v6378
        %v6380 = vpop.f32.mrb[0].mxu0
        %v6381 = vpop.f32.mrb[0].mxu0
        %v6382 = vadd.f32 0.0, %v6381
        %v6383 = vpop.f32.mrb[0].mxu0
        %6384 = vmatprep.mubr.bf16.mxu0 0
        %6385 = vmatmul.mubr.bf16.gmra.mrb[0].mxu0 %v6175
        %v6386 = vpop.f32.mrb[0].mxu0
        %v6387 = vadd.f32 0.0, %v6386
        %v6388 = vpop.f32.mrb[0].mxu0
        %v6389 = vpop.f32.mrb[0].mxu0
        %v6390 = vadd.f32 0.0, %v6389
        %v6391 = vpop.f32.mrb[0].mxu0
        %6392 = vmatprep.mubr.bf16.mxu0 0
        %6393 = vmatmul.mubr.bf16.gmra.mrb[0].mxu0 %v6176
        %v6394 = vpop.f32.mrb[0].mxu0
        %v6395 = vadd.f32 0.0, %v6394
        %v6396 = vpop.f32.mrb[0].mxu0
        %v6397 = vpop.f32.mrb[0].mxu0
        %v6398 = vadd.f32 0.0, %v6397
        %v6399 = vpop.f32.mrb[0].mxu0
        %6400 = vmatprep.mubr.bf16.mxu0 0
        %6401 = vmatmul.mubr.bf16.gmra.mrb[0].mxu0 %v6177
        %v6402 = vpop.f32.mrb[0].mxu0
        %v6403 = vadd.f32 0.0, %v6402
        %v6404 = vpop.f32.mrb[0].mxu0
        %v6405 = vpop.f32.mrb[0].mxu0
        %v6406 = vadd.f32 0.0, %v6405
        %v6407 = vpop.f32.mrb[0].mxu0
        %6408 = vmatprep.mubr.bf16.mxu0 0
        %6409 = vmatmul.mubr.bf16.gmra.mrb[0].mxu0 %v6178
        %v6410 = vpop.f32.mrb[0].mxu0
        %v6411 = vadd.f32 0.0, %v6410
        %v6412 = vpop.f32.mrb[0].mxu0
        %v6413 = vpop.f32.mrb[0].mxu0
        %v6414 = vadd.f32 0.0, %v6413
        %v6415 = vpop.f32.mrb[0].mxu0
        %6416 = vmatprep.mubr.bf16.mxu0 0
        %6417 = vmatmul.mubr.bf16.gmra.mrb[0].mxu0 %v6179
        %v6418 = vpop.f32.mrb[0].mxu0
        %v6419 = vadd.f32 0.0, %v6418
        %v6420 = vpop.f32.mrb[0].mxu0
        %v6421 = vpop.f32.mrb[0].mxu0
        %v6422 = vadd.f32 0.0, %v6421
        %v6423 = vpop.f32.mrb[0].mxu0
        %6424 = vmatprep.mubr.bf16.mxu0 0
        %6425 = vmatmul.mubr.bf16.gmra.mrb[0].mxu0 %v6180
        %v6426 = vpop.f32.mrb[0].mxu0
        %v6427 = vadd.f32 0.0, %v6426
        %v6428 = vpop.f32.mrb[0].mxu0
        %v6429 = vpop.f32.mrb[0].mxu0
        %v6430 = vadd.f32 0.0, %v6429
        %v6431 = vpop.f32.mrb[0].mxu0
        %6432 = vmatprep.mubr.bf16.mxu0 0
        %6433 = vmatmul.mubr.bf16.gmra.mrb[0].mxu0 %v6181
        %v6434 = vpop.f32.mrb[0].mxu0
        %v6435 = vadd.f32 0.0, %v6434
        %v6436 = vpop.f32.mrb[0].mxu0
        %v6437 = vpop.f32.mrb[0].mxu0
        %v6438 = vadd.f32 0.0, %v6437
        %v6439 = vpop.f32.mrb[0].mxu0
        %6440 = vdwg.mxu0
        %v6442 = vshrl.u32 %v6182, 16
        %v6444 = vrot.slane %v6442, 7
        %v6446 = vshrl.u32 %v6183, 16
        %v6448 = vrot.slane %v6446, 7
        %v6449 = vshll.u32 %v6183, 16
        %v6451 = vor.u32 %v6448, %v6449
        %v6452 = vsel %vm2225, %v6444, %v6451
        %v6454 = vshrl.u32 %v6184, 16
        %v6456 = vrot.slane %v6454, 7
        %v6457 = vshll.u32 %v6184, 16
        %v6459 = vor.u32 %v6456, %v6457
        %v6460 = vsel %vm2225, %v6448, %v6459
        %v6462 = vshrl.u32 %v6185, 16
        %v6464 = vrot.slane %v6462, 7
        %v6465 = vshll.u32 %v6185, 16
        %v6467 = vor.u32 %v6464, %v6465
        %v6468 = vsel %vm2225, %v6456, %v6467
        %v6470 = vshrl.u32 %v6186, 16
        %v6472 = vrot.slane %v6470, 7
        %v6473 = vshll.u32 %v6186, 16
        %v6475 = vor.u32 %v6472, %v6473
        %v6476 = vsel %vm2225, %v6464, %v6475
        %v6478 = vshrl.u32 %v6187, 16
        %v6480 = vrot.slane %v6478, 7
        %v6481 = vshll.u32 %v6187, 16
        %v6483 = vor.u32 %v6480, %v6481
        %v6484 = vsel %vm2225, %v6472, %v6483
        %v6486 = vshrl.u32 %v6188, 16
        %v6488 = vrot.slane %v6486, 7
        %v6489 = vshll.u32 %v6188, 16
        %v6491 = vor.u32 %v6488, %v6489
        %v6492 = vsel %vm2225, %v6480, %v6491
        %v6494 = vshrl.u32 %v6189, 16
        %v6496 = vrot.slane %v6494, 7
        %v6497 = vshll.u32 %v6189, 16
        %v6499 = vor.u32 %v6496, %v6497
        %v6500 = vsel %vm2225, %v6488, %v6499
        %v6502 = vshrl.u32 %v6190, 16
        %v6504 = vrot.slane %v6502, 7
        %v6505 = vshll.u32 %v6190, 16
        %v6507 = vor.u32 %v6504, %v6505
        %v6508 = vsel %vm2225, %v6496, %v6507
        %v6510 = vshrl.u32 %v6191, 16
        %v6512 = vrot.slane %v6510, 7
        %v6513 = vshll.u32 %v6191, 16
        %v6515 = vor.u32 %v6512, %v6513
        %v6516 = vsel %vm2225, %v6504, %v6515
        %v6518 = vshrl.u32 %v6192, 16
        %v6520 = vrot.slane %v6518, 7
        %v6521 = vshll.u32 %v6192, 16
        %v6523 = vor.u32 %v6520, %v6521
        %v6524 = vsel %vm2225, %v6512, %v6523
        %v6526 = vshrl.u32 %v6193, 16
        %v6528 = vrot.slane %v6526, 7
        %v6529 = vshll.u32 %v6193, 16
        %v6531 = vor.u32 %v6528, %v6529
        %v6532 = vsel %vm2225, %v6520, %v6531
        %v6534 = vshrl.u32 %v6194, 16
        %v6536 = vrot.slane %v6534, 7
        %v6537 = vshll.u32 %v6194, 16
        %v6539 = vor.u32 %v6536, %v6537
        %v6540 = vsel %vm2225, %v6528, %v6539
        %v6542 = vshrl.u32 %v6195, 16
        %v6544 = vrot.slane %v6542, 7
        %v6545 = vshll.u32 %v6195, 16
        %v6547 = vor.u32 %v6544, %v6545
        %v6548 = vsel %vm2225, %v6536, %v6547
        %v6550 = vshrl.u32 %v6196, 16
        %v6552 = vrot.slane %v6550, 7
        %v6553 = vshll.u32 %v6196, 16
        %v6555 = vor.u32 %v6552, %v6553
        %v6556 = vsel %vm2225, %v6544, %v6555
        %v6558 = vshrl.u32 %v6197, 16
        %v6560 = vrot.slane %v6558, 7
        %v6561 = vshll.u32 %v6197, 16
        %v6563 = vor.u32 %v6560, %v6561
        %v6564 = vsel %vm2225, %v6552, %v6563
        %v6566 = vshrl.u32 %v6198, 16
        %v6568 = vrot.slane %v6566, 7
        %v6569 = vshll.u32 %v6198, 16
        %v6571 = vor.u32 %v6568, %v6569
        %v6572 = vsel %vm2225, %v6560, %v6571
        %v6605 = vunpack.c.l.b16 %v6199
        %v6606 = vunpack.c.l.b16 %v6200
        %v6607 = vunpack.c.l.b16 %v6201
        %v6608 = vunpack.c.l.b16 %v6202
        %v6609 = vunpack.c.l.b16 %v6203
        %v6610 = vunpack.c.l.b16 %v6204
        %v6611 = vunpack.c.l.b16 %v6205
        %v6612 = vunpack.c.l.b16 %v6206
        %v6613 = vunpack.c.l.b16 %v6207
        %v6614 = vunpack.c.l.b16 %v6208
        %v6615 = vunpack.c.l.b16 %v6209
        %v6616 = vunpack.c.l.b16 %v6210
        %v6617 = vunpack.c.l.b16 %v6211
        %v6618 = vunpack.c.l.b16 %v6212
        %v6619 = vunpack.c.l.b16 %v6213
        %v6620 = vunpack.c.l.b16 %v6214
        %v6621 = vpack.c.b16 %v6606, %v6605
        %v6622 = vpack.c.b16 %v6608, %v6607
        %v6623 = vpack.c.b16 %v6610, %v6609
        %v6624 = vpack.c.b16 %v6612, %v6611
        %v6625 = vpack.c.b16 %v6614, %v6613
        %v6626 = vpack.c.b16 %v6616, %v6615
        %v6627 = vpack.c.b16 %v6618, %v6617
        %v6628 = vpack.c.b16 %v6620, %v6619
        %6637 = vmatprep.subr.bf16.mxu0 0
        %6638 = vmatpush1.bf16.msra.mxu0 %v6621
        %6639 = vmatprep.subr.bf16.mxu0 0
        %6640 = vmatpush1.bf16.msra.mxu0 %v6622
        %6641 = vmatprep.subr.bf16.mxu0 0
        %6642 = vmatpush1.bf16.msra.mxu0 %v6623
        %6643 = vmatprep.subr.bf16.mxu0 0
        %6644 = vmatpush1.bf16.msra.mxu0 %v6624
        %6645 = vmatprep.subr.bf16.mxu0 0
        %6646 = vmatpush1.bf16.msra.mxu0 %v6625
        %6647 = vmatprep.subr.bf16.mxu0 0
        %6648 = vmatpush1.bf16.msra.mxu0 %v6626
        %6649 = vmatprep.subr.bf16.mxu0 0
        %6650 = vmatpush1.bf16.msra.mxu0 %v6627
        %6651 = vmatprep.subr.bf16.mxu0 0
        %6652 = vmatpush1.bf16.msra.mxu0 %v6628
        %6653 = vmatprep.subr.bf16.mxu0 0
        %6654 = vmatpush1.bf16.msra.mxu0 0
        %6655 = vmatprep.subr.bf16.mxu0 0
        %6656 = vmatpush1.bf16.msra.mxu0 0
        %6657 = vmatprep.subr.bf16.mxu0 0
        %6658 = vmatpush1.bf16.msra.mxu0 0
        %6659 = vmatprep.subr.bf16.mxu0 0
        %6660 = vmatpush1.bf16.msra.mxu0 0
        %6661 = vmatprep.subr.bf16.mxu0 0
        %6662 = vmatpush1.bf16.msra.mxu0 0
        %6663 = vmatprep.subr.bf16.mxu0 0
        %6664 = vmatpush1.bf16.msra.mxu0 0
        %6665 = vmatprep.subr.bf16.mxu0 0
        %6666 = vmatpush1.bf16.msra.mxu0 0
        %6667 = vmatprep.subr.bf16.mxu0 0
        %6668 = vmatpush1.bf16.msra.mxu0 0
        %6669 = vmatprep.mubr.bf16.mxu0 0
        %6670 = vmatmul.mubr.bf16.gmra.mrb[0].mxu0 %v6452
        %v6671 = vpop.f32.mrb[0].mxu0
        %v6672 = vadd.f32 %v6315, %v6671
        %v6673 = vpop.f32.mrb[0].mxu0
        %v6674 = vpop.f32.mrb[0].mxu0
        %v6675 = vadd.f32 %v6318, %v6674
        %v6676 = vpop.f32.mrb[0].mxu0
        %6677 = vmatprep.mubr.bf16.mxu0 0
        %6678 = vmatmul.mubr.bf16.gmra.mrb[0].mxu0 %v6460
        %v6679 = vpop.f32.mrb[0].mxu0
        %v6680 = vadd.f32 %v6323, %v6679
        %v6681 = vpop.f32.mrb[0].mxu0
        %v6682 = vpop.f32.mrb[0].mxu0
        %v6683 = vadd.f32 %v6326, %v6682
        %v6684 = vpop.f32.mrb[0].mxu0
        %6685 = vmatprep.mubr.bf16.mxu0 0
        %6686 = vmatmul.mubr.bf16.gmra.mrb[0].mxu0 %v6468
        %v6687 = vpop.f32.mrb[0].mxu0
        %v6688 = vadd.f32 %v6331, %v6687
        %v6689 = vpop.f32.mrb[0].mxu0
        %v6690 = vpop.f32.mrb[0].mxu0
        %v6691 = vadd.f32 %v6334, %v6690
        %v6692 = vpop.f32.mrb[0].mxu0
        %6693 = vmatprep.mubr.bf16.mxu0 0
        %6694 = vmatmul.mubr.bf16.gmra.mrb[0].mxu0 %v6476
        %v6695 = vpop.f32.mrb[0].mxu0
        %v6696 = vadd.f32 %v6339, %v6695
        %v6697 = vpop.f32.mrb[0].mxu0
        %v6698 = vpop.f32.mrb[0].mxu0
        %v6699 = vadd.f32 %v6342, %v6698
        %v6700 = vpop.f32.mrb[0].mxu0
        %6701 = vmatprep.mubr.bf16.mxu0 0
        %6702 = vmatmul.mubr.bf16.gmra.mrb[0].mxu0 %v6484
        %v6703 = vpop.f32.mrb[0].mxu0
        %v6704 = vadd.f32 %v6347, %v6703
        %v6705 = vpop.f32.mrb[0].mxu0
        %v6706 = vpop.f32.mrb[0].mxu0
        %v6707 = vadd.f32 %v6350, %v6706
        %v6708 = vpop.f32.mrb[0].mxu0
        %6709 = vmatprep.mubr.bf16.mxu0 0
        %6710 = vmatmul.mubr.bf16.gmra.mrb[0].mxu0 %v6492
        %v6711 = vpop.f32.mrb[0].mxu0
        %v6712 = vadd.f32 %v6355, %v6711
        %v6713 = vpop.f32.mrb[0].mxu0
        %v6714 = vpop.f32.mrb[0].mxu0
        %v6715 = vadd.f32 %v6358, %v6714
        %v6716 = vpop.f32.mrb[0].mxu0
        %6717 = vmatprep.mubr.bf16.mxu0 0
        %6718 = vmatmul.mubr.bf16.gmra.mrb[0].mxu0 %v6500
        %v6719 = vpop.f32.mrb[0].mxu0
        %v6720 = vadd.f32 %v6363, %v6719
        %v6721 = vpop.f32.mrb[0].mxu0
        %v6722 = vpop.f32.mrb[0].mxu0
        %v6723 = vadd.f32 %v6366, %v6722
        %v6724 = vpop.f32.mrb[0].mxu0
        %6725 = vmatprep.mubr.bf16.mxu0 0
        %6726 = vmatmul.mubr.bf16.gmra.mrb[0].mxu0 %v6508
        %v6727 = vpop.f32.mrb[0].mxu0
        %v6728 = vadd.f32 %v6371, %v6727
        %v6729 = vpop.f32.mrb[0].mxu0
        %v6730 = vpop.f32.mrb[0].mxu0
        %v6731 = vadd.f32 %v6374, %v6730
        %v6732 = vpop.f32.mrb[0].mxu0
        %6733 = vmatprep.mubr.bf16.mxu0 0
        %6734 = vmatmul.mubr.bf16.gmra.mrb[0].mxu0 %v6516
        %v6735 = vpop.f32.mrb[0].mxu0
        %v6736 = vadd.f32 %v6379, %v6735
        %v6737 = vpop.f32.mrb[0].mxu0
        %v6738 = vpop.f32.mrb[0].mxu0
        %v6739 = vadd.f32 %v6382, %v6738
        %v6740 = vpop.f32.mrb[0].mxu0
        %6741 = vmatprep.mubr.bf16.mxu0 0
        %6742 = vmatmul.mubr.bf16.gmra.mrb[0].mxu0 %v6524
        %v6743 = vpop.f32.mrb[0].mxu0
        %v6744 = vadd.f32 %v6387, %v6743
        %v6745 = vpop.f32.mrb[0].mxu0
        %v6746 = vpop.f32.mrb[0].mxu0
        %v6747 = vadd.f32 %v6390, %v6746
        %v6748 = vpop.f32.mrb[0].mxu0
        %6749 = vmatprep.mubr.bf16.mxu0 0
        %6750 = vmatmul.mubr.bf16.gmra.mrb[0].mxu0 %v6532
        %v6751 = vpop.f32.mrb[0].mxu0
        %v6752 = vadd.f32 %v6395, %v6751
        %v6753 = vpop.f32.mrb[0].mxu0
        %v6754 = vpop.f32.mrb[0].mxu0
        %v6755 = vadd.f32 %v6398, %v6754
        %v6756 = vpop.f32.mrb[0].mxu0
        %6757 = vmatprep.mubr.bf16.mxu0 0
        %6758 = vmatmul.mubr.bf16.gmra.mrb[0].mxu0 %v6540
        %v6759 = vpop.f32.mrb[0].mxu0
        %v6760 = vadd.f32 %v6403, %v6759
        %v6761 = vpop.f32.mrb[0].mxu0
        %v6762 = vpop.f32.mrb[0].mxu0
        %v6763 = vadd.f32 %v6406, %v6762
        %v6764 = vpop.f32.mrb[0].mxu0
        %6765 = vmatprep.mubr.bf16.mxu0 0
        %6766 = vmatmul.mubr.bf16.gmra.mrb[0].mxu0 %v6548
        %v6767 = vpop.f32.mrb[0].mxu0
        %v6768 = vadd.f32 %v6411, %v6767
        %v6769 = vpop.f32.mrb[0].mxu0
        %v6770 = vpop.f32.mrb[0].mxu0
        %v6771 = vadd.f32 %v6414, %v6770
        %v6772 = vpop.f32.mrb[0].mxu0
        %6773 = vmatprep.mubr.bf16.mxu0 0
        %6774 = vmatmul.mubr.bf16.gmra.mrb[0].mxu0 %v6556
        %v6775 = vpop.f32.mrb[0].mxu0
        %v6776 = vadd.f32 %v6419, %v6775
        %v6777 = vpop.f32.mrb[0].mxu0
        %v6778 = vpop.f32.mrb[0].mxu0
        %v6779 = vadd.f32 %v6422, %v6778
        %v6780 = vpop.f32.mrb[0].mxu0
        %6781 = vmatprep.mubr.bf16.mxu0 0
        %6782 = vmatmul.mubr.bf16.gmra.mrb[0].mxu0 %v6564
        %v6783 = vpop.f32.mrb[0].mxu0
        %v6784 = vadd.f32 %v6427, %v6783
        %v6785 = vpop.f32.mrb[0].mxu0
        %v6786 = vpop.f32.mrb[0].mxu0
        %v6787 = vadd.f32 %v6430, %v6786
        %v6788 = vpop.f32.mrb[0].mxu0
        %6789 = vmatprep.mubr.bf16.mxu0 0
        %6790 = vmatmul.mubr.bf16.gmra.mrb[0].mxu0 %v6572
        %v6791 = vpop.f32.mrb[0].mxu0
        %v6792 = vadd.f32 %v6435, %v6791
        %v6793 = vpop.f32.mrb[0].mxu0
        %v6794 = vpop.f32.mrb[0].mxu0
        %v6795 = vadd.f32 %v6438, %v6794
        %v6796 = vpop.f32.mrb[0].mxu0
        %6797 = vdwg.mxu0
        %v6798 = vld [vmem:[#allocation2 + $0x8] sm:$0xff]
        %v6799 = vld [vmem:[#allocation2 + $0x10] sm:$0xff]
        %v6800 = vld [vmem:[#allocation2 + $0x18] sm:$0xff]
        %v6801 = vld [vmem:[#allocation2 + $0x20] sm:$0xff]
        %v6802 = vld [vmem:[#allocation2 + $0x28] sm:$0xff]
        %v6803 = vld [vmem:[#allocation2 + $0x30] sm:$0xff]
        %v6804 = vld [vmem:[#allocation2 + $0x38] sm:$0xff]
        %v6805 = vld [vmem:[#allocation2 + $0x40] sm:$0xff]
        %v6806 = vld [vmem:[#allocation2 + $0x48] sm:$0xff]
        %v6807 = vld [vmem:[#allocation2 + $0x50] sm:$0xff]
        %v6808 = vld [vmem:[#allocation2 + $0x58] sm:$0xff]
        %v6809 = vld [vmem:[#allocation2 + $0x60] sm:$0xff]
        %v6810 = vld [vmem:[#allocation2 + $0x68] sm:$0xff]
        %v6811 = vld [vmem:[#allocation2 + $0x70] sm:$0xff]
        %v6812 = vld [vmem:[#allocation2 + $0x78] sm:$0xff]
        %v6813 = vld [vmem:[#allocation2 + $0x80] sm:$0xff]
        %v6814 = vld [vmem:[#allocation2 + $0x88] sm:$0x1]
        %v6815 = vmul.bf16 %v6798, %v2606
        %v6816 = vmul.bf16 %v6799, %v2614
        %v6817 = vmul.bf16 %v6800, %v2622
        %v6818 = vmul.bf16 %v6801, %v2630
        %v6819 = vmul.bf16 %v6802, %v2638
        %v6820 = vmul.bf16 %v6803, %v2646
        %v6821 = vmul.bf16 %v6804, %v2654
        %v6822 = vmul.bf16 %v6805, %v2662
        %v6823 = vmul.bf16 %v6806, %v2670
        %v6824 = vmul.bf16 %v6807, %v2678
        %v6825 = vmul.bf16 %v6808, %v2686
        %v6826 = vmul.bf16 %v6809, %v2694
        %v6827 = vmul.bf16 %v6810, %v2702
        %v6828 = vmul.bf16 %v6811, %v2710
        %v6829 = vmul.bf16 %v6812, %v2718
        %v6830 = vmul.bf16 %v6813, %v2726
        %v6831 = vmul.bf16 %v6814, %v2722
        %s6832 = scalar_lea.vmem [#allocation8], 128
        %v6833 = vld [vmem:[%s6832] sm:$0xf]
        %v6834 = vld [vmem:[%s6832 + $0x4] sm:$0xf]
        %v6835 = vld [vmem:[%s6832 + $0x8] sm:$0xf]
        %v6836 = vld [vmem:[%s6832 + $0xc] sm:$0xf]
        %v6837 = vld [vmem:[%s6832 + $0x10] sm:$0xf]
        %v6838 = vld [vmem:[%s6832 + $0x14] sm:$0xf]
        %v6839 = vld [vmem:[%s6832 + $0x18] sm:$0xf]
        %v6840 = vld [vmem:[%s6832 + $0x1c] sm:$0xf]
        %v6841 = vld [vmem:[%s6832 + $0x20] sm:$0xf]
        %v6842 = vld [vmem:[%s6832 + $0x24] sm:$0xf]
        %v6843 = vld [vmem:[%s6832 + $0x28] sm:$0xf]
        %v6844 = vld [vmem:[%s6832 + $0x2c] sm:$0xf]
        %v6845 = vld [vmem:[%s6832 + $0x30] sm:$0xf]
        %v6846 = vld [vmem:[%s6832 + $0x34] sm:$0xf]
        %v6847 = vld [vmem:[%s6832 + $0x38] sm:$0xf]
        %v6848 = vld [vmem:[%s6832 + $0x3c] sm:$0xf]
        %v6850 = vshrl.u32 %v6815, 16
        %v6852 = vshll.u32 %v6815, 16
        %v6854 = vrot.slane %v6852, 1
        %v6855 = vor.u32 %v6850, %v6854
        %v6857 = vshll.u32 %v6816, 16
        %v6859 = vrot.slane %v6857, 1
        %v6860 = vsel %vm1821, %v6855, %v6859
        %v6861 = vshrl.u32 %v6816, 16
        %v6863 = vor.u32 %v6861, %v6859
        %v6865 = vshll.u32 %v6817, 16
        %v6867 = vrot.slane %v6865, 1
        %v6868 = vsel %vm1821, %v6863, %v6867
        %v6869 = vshrl.u32 %v6817, 16
        %v6871 = vor.u32 %v6869, %v6867
        %v6873 = vshll.u32 %v6818, 16
        %v6875 = vrot.slane %v6873, 1
        %v6876 = vsel %vm1821, %v6871, %v6875
        %v6877 = vshrl.u32 %v6818, 16
        %v6879 = vor.u32 %v6877, %v6875
        %v6881 = vshll.u32 %v6819, 16
        %v6883 = vrot.slane %v6881, 1
        %v6884 = vsel %vm1821, %v6879, %v6883
        %v6885 = vshrl.u32 %v6819, 16
        %v6887 = vor.u32 %v6885, %v6883
        %v6889 = vshll.u32 %v6820, 16
        %v6891 = vrot.slane %v6889, 1
        %v6892 = vsel %vm1821, %v6887, %v6891
        %v6893 = vshrl.u32 %v6820, 16
        %v6895 = vor.u32 %v6893, %v6891
        %v6897 = vshll.u32 %v6821, 16
        %v6899 = vrot.slane %v6897, 1
        %v6900 = vsel %vm1821, %v6895, %v6899
        %v6901 = vshrl.u32 %v6821, 16
        %v6903 = vor.u32 %v6901, %v6899
        %v6905 = vshll.u32 %v6822, 16
        %v6907 = vrot.slane %v6905, 1
        %v6908 = vsel %vm1821, %v6903, %v6907
        %v6909 = vshrl.u32 %v6822, 16
        %v6911 = vor.u32 %v6909, %v6907
        %v6913 = vshll.u32 %v6823, 16
        %v6915 = vrot.slane %v6913, 1
        %v6916 = vsel %vm1821, %v6911, %v6915
        %v6917 = vshrl.u32 %v6823, 16
        %v6919 = vor.u32 %v6917, %v6915
        %v6921 = vshll.u32 %v6824, 16
        %v6923 = vrot.slane %v6921, 1
        %v6924 = vsel %vm1821, %v6919, %v6923
        %v6925 = vshrl.u32 %v6824, 16
        %v6927 = vor.u32 %v6925, %v6923
        %v6929 = vshll.u32 %v6825, 16
        %v6931 = vrot.slane %v6929, 1
        %v6932 = vsel %vm1821, %v6927, %v6931
        %v6933 = vshrl.u32 %v6825, 16
        %v6935 = vor.u32 %v6933, %v6931
        %v6937 = vshll.u32 %v6826, 16
        %v6939 = vrot.slane %v6937, 1
        %v6940 = vsel %vm1821, %v6935, %v6939
        %v6941 = vshrl.u32 %v6826, 16
        %v6943 = vor.u32 %v6941, %v6939
        %v6945 = vshll.u32 %v6827, 16
        %v6947 = vrot.slane %v6945, 1
        %v6948 = vsel %vm1821, %v6943, %v6947
        %v6949 = vshrl.u32 %v6827, 16
        %v6951 = vor.u32 %v6949, %v6947
        %v6953 = vshll.u32 %v6828, 16
        %v6955 = vrot.slane %v6953, 1
        %v6956 = vsel %vm1821, %v6951, %v6955
        %v6957 = vshrl.u32 %v6828, 16
        %v6959 = vor.u32 %v6957, %v6955
        %v6961 = vshll.u32 %v6829, 16
        %v6963 = vrot.slane %v6961, 1
        %v6964 = vsel %vm1821, %v6959, %v6963
        %v6965 = vshrl.u32 %v6829, 16
        %v6967 = vor.u32 %v6965, %v6963
        %v6969 = vshll.u32 %v6830, 16
        %v6971 = vrot.slane %v6969, 1
        %v6972 = vsel %vm1821, %v6967, %v6971
        %v6973 = vshrl.u32 %v6830, 16
        %v6975 = vor.u32 %v6973, %v6971
        %v6977 = vshll.u32 %v6831, 16
        %v6979 = vrot.slane %v6977, 1
        %v6980 = vsel %vm1821, %v6975, %v6979
        %v7013 = vunpack.c.l.b16 %v6833
        %v7014 = vunpack.c.l.b16 %v6834
        %v7015 = vunpack.c.l.b16 %v6835
        %v7016 = vunpack.c.l.b16 %v6836
        %v7017 = vunpack.c.l.b16 %v6837
        %v7018 = vunpack.c.l.b16 %v6838
        %v7019 = vunpack.c.l.b16 %v6839
        %v7020 = vunpack.c.l.b16 %v6840
        %v7021 = vunpack.c.l.b16 %v6841
        %v7022 = vunpack.c.l.b16 %v6842
        %v7023 = vunpack.c.l.b16 %v6843
        %v7024 = vunpack.c.l.b16 %v6844
        %v7025 = vunpack.c.l.b16 %v6845
        %v7026 = vunpack.c.l.b16 %v6846
        %v7027 = vunpack.c.l.b16 %v6847
        %v7028 = vunpack.c.l.b16 %v6848
        %v7029 = vpack.c.b16 %v7014, %v7013
        %v7030 = vpack.c.b16 %v7016, %v7015
        %v7031 = vpack.c.b16 %v7018, %v7017
        %v7032 = vpack.c.b16 %v7020, %v7019
        %v7033 = vpack.c.b16 %v7022, %v7021
        %v7034 = vpack.c.b16 %v7024, %v7023
        %v7035 = vpack.c.b16 %v7026, %v7025
        %v7036 = vpack.c.b16 %v7028, %v7027
        %7045 = vmatprep.subr.bf16.mxu0 0
        %7046 = vmatpush1.bf16.msra.mxu0 %v7029
        %7047 = vmatprep.subr.bf16.mxu0 0
        %7048 = vmatpush1.bf16.msra.mxu0 %v7030
        %7049 = vmatprep.subr.bf16.mxu0 0
        %7050 = vmatpush1.bf16.msra.mxu0 %v7031
        %7051 = vmatprep.subr.bf16.mxu0 0
        %7052 = vmatpush1.bf16.msra.mxu0 %v7032
        %7053 = vmatprep.subr.bf16.mxu0 0
        %7054 = vmatpush1.bf16.msra.mxu0 %v7033
        %7055 = vmatprep.subr.bf16.mxu0 0
        %7056 = vmatpush1.bf16.msra.mxu0 %v7034
        %7057 = vmatprep.subr.bf16.mxu0 0
        %7058 = vmatpush1.bf16.msra.mxu0 %v7035
        %7059 = vmatprep.subr.bf16.mxu0 0
        %7060 = vmatpush1.bf16.msra.mxu0 %v7036
        %7061 = vmatprep.subr.bf16.mxu0 0
        %7062 = vmatpush1.bf16.msra.mxu0 0
        %7063 = vmatprep.subr.bf16.mxu0 0
        %7064 = vmatpush1.bf16.msra.mxu0 0
        %7065 = vmatprep.subr.bf16.mxu0 0
        %7066 = vmatpush1.bf16.msra.mxu0 0
        %7067 = vmatprep.subr.bf16.mxu0 0
        %7068 = vmatpush1.bf16.msra.mxu0 0
        %7069 = vmatprep.subr.bf16.mxu0 0
        %7070 = vmatpush1.bf16.msra.mxu0 0
        %7071 = vmatprep.subr.bf16.mxu0 0
        %7072 = vmatpush1.bf16.msra.mxu0 0
        %7073 = vmatprep.subr.bf16.mxu0 0
        %7074 = vmatpush1.bf16.msra.mxu0 0
        %7075 = vmatprep.subr.bf16.mxu0 0
        %7076 = vmatpush1.bf16.msra.mxu0 0
        %7077 = vmatprep.mubr.bf16.mxu0 0
        %7078 = vmatmul.mubr.bf16.gmra.mrb[0].mxu0 %v6860
        %v7079 = vpop.f32.mrb[0].mxu0
        %v7080 = vadd.f32 0.0, %v7079
        %v7081 = vpop.f32.mrb[0].mxu0
        %v7082 = vpop.f32.mrb[0].mxu0
        %v7083 = vadd.f32 0.0, %v7082
        %v7084 = vpop.f32.mrb[0].mxu0
        %7085 = vmatprep.mubr.bf16.mxu0 0
        %7086 = vmatmul.mubr.bf16.gmra.mrb[0].mxu0 %v6868
        %v7087 = vpop.f32.mrb[0].mxu0
        %v7088 = vadd.f32 0.0, %v7087
        %v7089 = vpop.f32.mrb[0].mxu0
        %v7090 = vpop.f32.mrb[0].mxu0
        %v7091 = vadd.f32 0.0, %v7090
        %v7092 = vpop.f32.mrb[0].mxu0
        %7093 = vmatprep.mubr.bf16.mxu0 0
        %7094 = vmatmul.mubr.bf16.gmra.mrb[0].mxu0 %v6876
        %v7095 = vpop.f32.mrb[0].mxu0
        %v7096 = vadd.f32 0.0, %v7095
        %v7097 = vpop.f32.mrb[0].mxu0
        %v7098 = vpop.f32.mrb[0].mxu0
        %v7099 = vadd.f32 0.0, %v7098
        %v7100 = vpop.f32.mrb[0].mxu0
        %7101 = vmatprep.mubr.bf16.mxu0 0
        %7102 = vmatmul.mubr.bf16.gmra.mrb[0].mxu0 %v6884
        %v7103 = vpop.f32.mrb[0].mxu0
        %v7104 = vadd.f32 0.0, %v7103
        %v7105 = vpop.f32.mrb[0].mxu0
        %v7106 = vpop.f32.mrb[0].mxu0
        %v7107 = vadd.f32 0.0, %v7106
        %v7108 = vpop.f32.mrb[0].mxu0
        %7109 = vmatprep.mubr.bf16.mxu0 0
        %7110 = vmatmul.mubr.bf16.gmra.mrb[0].mxu0 %v6892
        %v7111 = vpop.f32.mrb[0].mxu0
        %v7112 = vadd.f32 0.0, %v7111
        %v7113 = vpop.f32.mrb[0].mxu0
        %v7114 = vpop.f32.mrb[0].mxu0
        %v7115 = vadd.f32 0.0, %v7114
        %v7116 = vpop.f32.mrb[0].mxu0
        %7117 = vmatprep.mubr.bf16.mxu0 0
        %7118 = vmatmul.mubr.bf16.gmra.mrb[0].mxu0 %v6900
        %v7119 = vpop.f32.mrb[0].mxu0
        %v7120 = vadd.f32 0.0, %v7119
        %v7121 = vpop.f32.mrb[0].mxu0
        %v7122 = vpop.f32.mrb[0].mxu0
        %v7123 = vadd.f32 0.0, %v7122
        %v7124 = vpop.f32.mrb[0].mxu0
        %7125 = vmatprep.mubr.bf16.mxu0 0
        %7126 = vmatmul.mubr.bf16.gmra.mrb[0].mxu0 %v6908
        %v7127 = vpop.f32.mrb[0].mxu0
        %v7128 = vadd.f32 0.0, %v7127
        %v7129 = vpop.f32.mrb[0].mxu0
        %v7130 = vpop.f32.mrb[0].mxu0
        %v7131 = vadd.f32 0.0, %v7130
        %v7132 = vpop.f32.mrb[0].mxu0
        %7133 = vmatprep.mubr.bf16.mxu0 0
        %7134 = vmatmul.mubr.bf16.gmra.mrb[0].mxu0 %v6916
        %v7135 = vpop.f32.mrb[0].mxu0
        %v7136 = vadd.f32 0.0, %v7135
        %v7137 = vpop.f32.mrb[0].mxu0
        %v7138 = vpop.f32.mrb[0].mxu0
        %v7139 = vadd.f32 0.0, %v7138
        %v7140 = vpop.f32.mrb[0].mxu0
        %7141 = vmatprep.mubr.bf16.mxu0 0
        %7142 = vmatmul.mubr.bf16.gmra.mrb[0].mxu0 %v6924
        %v7143 = vpop.f32.mrb[0].mxu0
        %v7144 = vadd.f32 0.0, %v7143
        %v7145 = vpop.f32.mrb[0].mxu0
        %v7146 = vpop.f32.mrb[0].mxu0
        %v7147 = vadd.f32 0.0, %v7146
        %v7148 = vpop.f32.mrb[0].mxu0
        %7149 = vmatprep.mubr.bf16.mxu0 0
        %7150 = vmatmul.mubr.bf16.gmra.mrb[0].mxu0 %v6932
        %v7151 = vpop.f32.mrb[0].mxu0
        %v7152 = vadd.f32 0.0, %v7151
        %v7153 = vpop.f32.mrb[0].mxu0
        %v7154 = vpop.f32.mrb[0].mxu0
        %v7155 = vadd.f32 0.0, %v7154
        %v7156 = vpop.f32.mrb[0].mxu0
        %7157 = vmatprep.mubr.bf16.mxu0 0
        %7158 = vmatmul.mubr.bf16.gmra.mrb[0].mxu0 %v6940
        %v7159 = vpop.f32.mrb[0].mxu0
        %v7160 = vadd.f32 0.0, %v7159
        %v7161 = vpop.f32.mrb[0].mxu0
        %v7162 = vpop.f32.mrb[0].mxu0
        %v7163 = vadd.f32 0.0, %v7162
        %v7164 = vpop.f32.mrb[0].mxu0
        %7165 = vmatprep.mubr.bf16.mxu0 0
        %7166 = vmatmul.mubr.bf16.gmra.mrb[0].mxu0 %v6948
        %v7167 = vpop.f32.mrb[0].mxu0
        %v7168 = vadd.f32 0.0, %v7167
        %v7169 = vpop.f32.mrb[0].mxu0
        %v7170 = vpop.f32.mrb[0].mxu0
        %v7171 = vadd.f32 0.0, %v7170
        %v7172 = vpop.f32.mrb[0].mxu0
        %7173 = vmatprep.mubr.bf16.mxu0 0
        %7174 = vmatmul.mubr.bf16.gmra.mrb[0].mxu0 %v6956
        %v7175 = vpop.f32.mrb[0].mxu0
        %v7176 = vadd.f32 0.0, %v7175
        %v7177 = vpop.f32.mrb[0].mxu0
        %v7178 = vpop.f32.mrb[0].mxu0
        %v7179 = vadd.f32 0.0, %v7178
        %v7180 = vpop.f32.mrb[0].mxu0
        %7181 = vmatprep.mubr.bf16.mxu0 0
        %7182 = vmatmul.mubr.bf16.gmra.mrb[0].mxu0 %v6964
        %v7183 = vpop.f32.mrb[0].mxu0
        %v7184 = vadd.f32 0.0, %v7183
        %v7185 = vpop.f32.mrb[0].mxu0
        %v7186 = vpop.f32.mrb[0].mxu0
        %v7187 = vadd.f32 0.0, %v7186
        %v7188 = vpop.f32.mrb[0].mxu0
        %7189 = vmatprep.mubr.bf16.mxu0 0
        %7190 = vmatmul.mubr.bf16.gmra.mrb[0].mxu0 %v6972
        %v7191 = vpop.f32.mrb[0].mxu0
        %v7192 = vadd.f32 0.0, %v7191
        %v7193 = vpop.f32.mrb[0].mxu0
        %v7194 = vpop.f32.mrb[0].mxu0
        %v7195 = vadd.f32 0.0, %v7194
        %v7196 = vpop.f32.mrb[0].mxu0
        %7197 = vmatprep.mubr.bf16.mxu0 0
        %7198 = vmatmul.mubr.bf16.gmra.mrb[0].mxu0 %v6980
        %v7199 = vpop.f32.mrb[0].mxu0
        %v7200 = vadd.f32 0.0, %v7199
        %v7201 = vpop.f32.mrb[0].mxu0
        %v7202 = vpop.f32.mrb[0].mxu0
        %v7203 = vadd.f32 0.0, %v7202
        %v7204 = vpop.f32.mrb[0].mxu0
        %7205 = vdwg.mxu0
        %v7206 = vadd.f32 %v6672, %v7080
        %v7207 = vadd.f32 %v6675, %v7083
        %v7208 = vadd.f32 %v6680, %v7088
        %v7209 = vadd.f32 %v6683, %v7091
        %v7210 = vadd.f32 %v6688, %v7096
        %v7211 = vadd.f32 %v6691, %v7099
        %v7212 = vadd.f32 %v6696, %v7104
        %v7213 = vadd.f32 %v6699, %v7107
        %v7214 = vadd.f32 %v6704, %v7112
        %v7215 = vadd.f32 %v6707, %v7115
        %v7216 = vadd.f32 %v6712, %v7120
        %v7217 = vadd.f32 %v6715, %v7123
        %v7218 = vadd.f32 %v6720, %v7128
        %v7219 = vadd.f32 %v6723, %v7131
        %v7220 = vadd.f32 %v6728, %v7136
        %v7221 = vadd.f32 %v6731, %v7139
        %v7222 = vadd.f32 %v6736, %v7144
        %v7223 = vadd.f32 %v6739, %v7147
        %v7224 = vadd.f32 %v6744, %v7152
        %v7225 = vadd.f32 %v6747, %v7155
        %v7226 = vadd.f32 %v6752, %v7160
        %v7227 = vadd.f32 %v6755, %v7163
        %v7228 = vadd.f32 %v6760, %v7168
        %v7229 = vadd.f32 %v6763, %v7171
        %v7230 = vadd.f32 %v6768, %v7176
        %v7231 = vadd.f32 %v6771, %v7179
        %v7232 = vadd.f32 %v6776, %v7184
        %v7233 = vadd.f32 %v6779, %v7187
        %v7234 = vadd.f32 %v6784, %v7192
        %v7235 = vadd.f32 %v6787, %v7195
        %v7236 = vadd.f32 %v6792, %v7200
        %v7237 = vadd.f32 %v6795, %v7203
        %v7238 = vld [vmem:[#allocation2 + $0x8] sm:$0x80]
        %v7239 = vld [vmem:[#allocation2 + $0x88] sm:$0xff]
        %v7240 = vmul.bf16 %v7238, %v1825
        %v7241 = vmul.bf16 %v6799, %v1833
        %v7242 = vmul.bf16 %v6800, %v1841
        %v7243 = vmul.bf16 %v6801, %v1849
        %v7244 = vmul.bf16 %v6802, %v1857
        %v7245 = vmul.bf16 %v6803, %v1865
        %v7246 = vmul.bf16 %v6804, %v1873
        %v7247 = vmul.bf16 %v6805, %v1881
        %v7248 = vmul.bf16 %v6806, %v1889
        %v7249 = vmul.bf16 %v6807, %v1897
        %v7250 = vmul.bf16 %v6808, %v1905
        %v7251 = vmul.bf16 %v6809, %v1913
        %v7252 = vmul.bf16 %v6810, %v1921
        %v7253 = vmul.bf16 %v6811, %v1929
        %v7254 = vmul.bf16 %v6812, %v1937
        %v7255 = vmul.bf16 %v6813, %v1945
        %v7256 = vmul.bf16 %v7239, %v1948
        %s7257 = scalar_lea.vmem [#allocation8], 192
        %v7258 = vld [vmem:[%s7257] sm:$0xf]
        %v7259 = vld [vmem:[%s7257 + $0x4] sm:$0xf]
        %v7260 = vld [vmem:[%s7257 + $0x8] sm:$0xf]
        %v7261 = vld [vmem:[%s7257 + $0xc] sm:$0xf]
        %v7262 = vld [vmem:[%s7257 + $0x10] sm:$0xf]
        %v7263 = vld [vmem:[%s7257 + $0x14] sm:$0xf]
        %v7264 = vld [vmem:[%s7257 + $0x18] sm:$0xf]
        %v7265 = vld [vmem:[%s7257 + $0x1c] sm:$0xf]
        %v7266 = vld [vmem:[%s7257 + $0x20] sm:$0xf]
        %v7267 = vld [vmem:[%s7257 + $0x24] sm:$0xf]
        %v7268 = vld [vmem:[%s7257 + $0x28] sm:$0xf]
        %v7269 = vld [vmem:[%s7257 + $0x2c] sm:$0xf]
        %v7270 = vld [vmem:[%s7257 + $0x30] sm:$0xf]
        %v7271 = vld [vmem:[%s7257 + $0x34] sm:$0xf]
        %v7272 = vld [vmem:[%s7257 + $0x38] sm:$0xf]
        %v7273 = vld [vmem:[%s7257 + $0x3c] sm:$0xf]
        %v7275 = vshrl.u32 %v7240, 16
        %v7277 = vrot.slane %v7275, 7
        %v7279 = vshrl.u32 %v7241, 16
        %v7281 = vrot.slane %v7279, 7
        %v7282 = vshll.u32 %v7241, 16
        %v7284 = vor.u32 %v7281, %v7282
        %v7285 = vsel %vm2225, %v7277, %v7284
        %v7287 = vshrl.u32 %v7242, 16
        %v7289 = vrot.slane %v7287, 7
        %v7290 = vshll.u32 %v7242, 16
        %v7292 = vor.u32 %v7289, %v7290
        %v7293 = vsel %vm2225, %v7281, %v7292
        %v7295 = vshrl.u32 %v7243, 16
        %v7297 = vrot.slane %v7295, 7
        %v7298 = vshll.u32 %v7243, 16
        %v7300 = vor.u32 %v7297, %v7298
        %v7301 = vsel %vm2225, %v7289, %v7300
        %v7303 = vshrl.u32 %v7244, 16
        %v7305 = vrot.slane %v7303, 7
        %v7306 = vshll.u32 %v7244, 16
        %v7308 = vor.u32 %v7305, %v7306
        %v7309 = vsel %vm2225, %v7297, %v7308
        %v7311 = vshrl.u32 %v7245, 16
        %v7313 = vrot.slane %v7311, 7
        %v7314 = vshll.u32 %v7245, 16
        %v7316 = vor.u32 %v7313, %v7314
        %v7317 = vsel %vm2225, %v7305, %v7316
        %v7319 = vshrl.u32 %v7246, 16
        %v7321 = vrot.slane %v7319, 7
        %v7322 = vshll.u32 %v7246, 16
        %v7324 = vor.u32 %v7321, %v7322
        %v7325 = vsel %vm2225, %v7313, %v7324
        %v7327 = vshrl.u32 %v7247, 16
        %v7329 = vrot.slane %v7327, 7
        %v7330 = vshll.u32 %v7247, 16
        %v7332 = vor.u32 %v7329, %v7330
        %v7333 = vsel %vm2225, %v7321, %v7332
        %v7335 = vshrl.u32 %v7248, 16
        %v7337 = vrot.slane %v7335, 7
        %v7338 = vshll.u32 %v7248, 16
        %v7340 = vor.u32 %v7337, %v7338
        %v7341 = vsel %vm2225, %v7329, %v7340
        %v7343 = vshrl.u32 %v7249, 16
        %v7345 = vrot.slane %v7343, 7
        %v7346 = vshll.u32 %v7249, 16
        %v7348 = vor.u32 %v7345, %v7346
        %v7349 = vsel %vm2225, %v7337, %v7348
        %v7351 = vshrl.u32 %v7250, 16
        %v7353 = vrot.slane %v7351, 7
        %v7354 = vshll.u32 %v7250, 16
        %v7356 = vor.u32 %v7353, %v7354
        %v7357 = vsel %vm2225, %v7345, %v7356
        %v7359 = vshrl.u32 %v7251, 16
        %v7361 = vrot.slane %v7359, 7
        %v7362 = vshll.u32 %v7251, 16
        %v7364 = vor.u32 %v7361, %v7362
        %v7365 = vsel %vm2225, %v7353, %v7364
        %v7367 = vshrl.u32 %v7252, 16
        %v7369 = vrot.slane %v7367, 7
        %v7370 = vshll.u32 %v7252, 16
        %v7372 = vor.u32 %v7369, %v7370
        %v7373 = vsel %vm2225, %v7361, %v7372
        %v7375 = vshrl.u32 %v7253, 16
        %v7377 = vrot.slane %v7375, 7
        %v7378 = vshll.u32 %v7253, 16
        %v7380 = vor.u32 %v7377, %v7378
        %v7381 = vsel %vm2225, %v7369, %v7380
        %v7383 = vshrl.u32 %v7254, 16
        %v7385 = vrot.slane %v7383, 7
        %v7386 = vshll.u32 %v7254, 16
        %v7388 = vor.u32 %v7385, %v7386
        %v7389 = vsel %vm2225, %v7377, %v7388
        %v7391 = vshrl.u32 %v7255, 16
        %v7393 = vrot.slane %v7391, 7
        %v7394 = vshll.u32 %v7255, 16
        %v7396 = vor.u32 %v7393, %v7394
        %v7397 = vsel %vm2225, %v7385, %v7396
        %v7399 = vshrl.u32 %v7256, 16
        %v7401 = vrot.slane %v7399, 7
        %v7402 = vshll.u32 %v7256, 16
        %v7404 = vor.u32 %v7401, %v7402
        %v7405 = vsel %vm2225, %v7393, %v7404
        %v7438 = vunpack.c.l.b16 %v7258
        %v7439 = vunpack.c.l.b16 %v7259
        %v7440 = vunpack.c.l.b16 %v7260
        %v7441 = vunpack.c.l.b16 %v7261
        %v7442 = vunpack.c.l.b16 %v7262
        %v7443 = vunpack.c.l.b16 %v7263
        %v7444 = vunpack.c.l.b16 %v7264
        %v7445 = vunpack.c.l.b16 %v7265
        %v7446 = vunpack.c.l.b16 %v7266
        %v7447 = vunpack.c.l.b16 %v7267
        %v7448 = vunpack.c.l.b16 %v7268
        %v7449 = vunpack.c.l.b16 %v7269
        %v7450 = vunpack.c.l.b16 %v7270
        %v7451 = vunpack.c.l.b16 %v7271
        %v7452 = vunpack.c.l.b16 %v7272
        %v7453 = vunpack.c.l.b16 %v7273
        %v7454 = vpack.c.b16 %v7439, %v7438
        %v7455 = vpack.c.b16 %v7441, %v7440
        %v7456 = vpack.c.b16 %v7443, %v7442
        %v7457 = vpack.c.b16 %v7445, %v7444
        %v7458 = vpack.c.b16 %v7447, %v7446
        %v7459 = vpack.c.b16 %v7449, %v7448
        %v7460 = vpack.c.b16 %v7451, %v7450
        %v7461 = vpack.c.b16 %v7453, %v7452
        %7470 = vmatprep.subr.bf16.mxu0 0
        %7471 = vmatpush1.bf16.msra.mxu0 %v7454
        %7472 = vmatprep.subr.bf16.mxu0 0
        %7473 = vmatpush1.bf16.msra.mxu0 %v7455
        %7474 = vmatprep.subr.bf16.mxu0 0
        %7475 = vmatpush1.bf16.msra.mxu0 %v7456
        %7476 = vmatprep.subr.bf16.mxu0 0
        %7477 = vmatpush1.bf16.msra.mxu0 %v7457
        %7478 = vmatprep.subr.bf16.mxu0 0
        %7479 = vmatpush1.bf16.msra.mxu0 %v7458
        %7480 = vmatprep.subr.bf16.mxu0 0
        %7481 = vmatpush1.bf16.msra.mxu0 %v7459
        %7482 = vmatprep.subr.bf16.mxu0 0
        %7483 = vmatpush1.bf16.msra.mxu0 %v7460
        %7484 = vmatprep.subr.bf16.mxu0 0
        %7485 = vmatpush1.bf16.msra.mxu0 %v7461
        %7486 = vmatprep.subr.bf16.mxu0 0
        %7487 = vmatpush1.bf16.msra.mxu0 0
        %7488 = vmatprep.subr.bf16.mxu0 0
        %7489 = vmatpush1.bf16.msra.mxu0 0
        %7490 = vmatprep.subr.bf16.mxu0 0
        %7491 = vmatpush1.bf16.msra.mxu0 0
        %7492 = vmatprep.subr.bf16.mxu0 0
        %7493 = vmatpush1.bf16.msra.mxu0 0
        %7494 = vmatprep.subr.bf16.mxu0 0
        %7495 = vmatpush1.bf16.msra.mxu0 0
        %7496 = vmatprep.subr.bf16.mxu0 0
        %7497 = vmatpush1.bf16.msra.mxu0 0
        %7498 = vmatprep.subr.bf16.mxu0 0
        %7499 = vmatpush1.bf16.msra.mxu0 0
        %7500 = vmatprep.subr.bf16.mxu0 0
        %7501 = vmatpush1.bf16.msra.mxu0 0
        %7502 = vmatprep.mubr.bf16.mxu0 0
        %7503 = vmatmul.mubr.bf16.gmra.mrb[0].mxu0 %v7285
        %v7504 = vpop.f32.mrb[0].mxu0
        %v7505 = vadd.f32 0.0, %v7504
        %v7506 = vpop.f32.mrb[0].mxu0
        %v7507 = vpop.f32.mrb[0].mxu0
        %v7508 = vadd.f32 0.0, %v7507
        %v7509 = vpop.f32.mrb[0].mxu0
        %7510 = vmatprep.mubr.bf16.mxu0 0
        %7511 = vmatmul.mubr.bf16.gmra.mrb[0].mxu0 %v7293
        %v7512 = vpop.f32.mrb[0].mxu0
        %v7513 = vadd.f32 0.0, %v7512
        %v7514 = vpop.f32.mrb[0].mxu0
        %v7515 = vpop.f32.mrb[0].mxu0
        %v7516 = vadd.f32 0.0, %v7515
        %v7517 = vpop.f32.mrb[0].mxu0
        %7518 = vmatprep.mubr.bf16.mxu0 0
        %7519 = vmatmul.mubr.bf16.gmra.mrb[0].mxu0 %v7301
        %v7520 = vpop.f32.mrb[0].mxu0
        %v7521 = vadd.f32 0.0, %v7520
        %v7522 = vpop.f32.mrb[0].mxu0
        %v7523 = vpop.f32.mrb[0].mxu0
        %v7524 = vadd.f32 0.0, %v7523
        %v7525 = vpop.f32.mrb[0].mxu0
        %7526 = vmatprep.mubr.bf16.mxu0 0
        %7527 = vmatmul.mubr.bf16.gmra.mrb[0].mxu0 %v7309
        %v7528 = vpop.f32.mrb[0].mxu0
        %v7529 = vadd.f32 0.0, %v7528
        %v7530 = vpop.f32.mrb[0].mxu0
        %v7531 = vpop.f32.mrb[0].mxu0
        %v7532 = vadd.f32 0.0, %v7531
        %v7533 = vpop.f32.mrb[0].mxu0
        %7534 = vmatprep.mubr.bf16.mxu0 0
        %7535 = vmatmul.mubr.bf16.gmra.mrb[0].mxu0 %v7317
        %v7536 = vpop.f32.mrb[0].mxu0
        %v7537 = vadd.f32 0.0, %v7536
        %v7538 = vpop.f32.mrb[0].mxu0
        %v7539 = vpop.f32.mrb[0].mxu0
        %v7540 = vadd.f32 0.0, %v7539
        %v7541 = vpop.f32.mrb[0].mxu0
        %7542 = vmatprep.mubr.bf16.mxu0 0
        %7543 = vmatmul.mubr.bf16.gmra.mrb[0].mxu0 %v7325
        %v7544 = vpop.f32.mrb[0].mxu0
        %v7545 = vadd.f32 0.0, %v7544
        %v7546 = vpop.f32.mrb[0].mxu0
        %v7547 = vpop.f32.mrb[0].mxu0
        %v7548 = vadd.f32 0.0, %v7547
        %v7549 = vpop.f32.mrb[0].mxu0
        %7550 = vmatprep.mubr.bf16.mxu0 0
        %7551 = vmatmul.mubr.bf16.gmra.mrb[0].mxu0 %v7333
        %v7552 = vpop.f32.mrb[0].mxu0
        %v7553 = vadd.f32 0.0, %v7552
        %v7554 = vpop.f32.mrb[0].mxu0
        %v7555 = vpop.f32.mrb[0].mxu0
        %v7556 = vadd.f32 0.0, %v7555
        %v7557 = vpop.f32.mrb[0].mxu0
        %7558 = vmatprep.mubr.bf16.mxu0 0
        %7559 = vmatmul.mubr.bf16.gmra.mrb[0].mxu0 %v7341
        %v7560 = vpop.f32.mrb[0].mxu0
        %v7561 = vadd.f32 0.0, %v7560
        %v7562 = vpop.f32.mrb[0].mxu0
        %v7563 = vpop.f32.mrb[0].mxu0
        %v7564 = vadd.f32 0.0, %v7563
        %v7565 = vpop.f32.mrb[0].mxu0
        %7566 = vmatprep.mubr.bf16.mxu0 0
        %7567 = vmatmul.mubr.bf16.gmra.mrb[0].mxu0 %v7349
        %v7568 = vpop.f32.mrb[0].mxu0
        %v7569 = vadd.f32 0.0, %v7568
        %v7570 = vpop.f32.mrb[0].mxu0
        %v7571 = vpop.f32.mrb[0].mxu0
        %v7572 = vadd.f32 0.0, %v7571
        %v7573 = vpop.f32.mrb[0].mxu0
        %7574 = vmatprep.mubr.bf16.mxu0 0
        %7575 = vmatmul.mubr.bf16.gmra.mrb[0].mxu0 %v7357
        %v7576 = vpop.f32.mrb[0].mxu0
        %v7577 = vadd.f32 0.0, %v7576
        %v7578 = vpop.f32.mrb[0].mxu0
        %v7579 = vpop.f32.mrb[0].mxu0
        %v7580 = vadd.f32 0.0, %v7579
        %v7581 = vpop.f32.mrb[0].mxu0
        %7582 = vmatprep.mubr.bf16.mxu0 0
        %7583 = vmatmul.mubr.bf16.gmra.mrb[0].mxu0 %v7365
        %v7584 = vpop.f32.mrb[0].mxu0
        %v7585 = vadd.f32 0.0, %v7584
        %v7586 = vpop.f32.mrb[0].mxu0
        %v7587 = vpop.f32.mrb[0].mxu0
        %v7588 = vadd.f32 0.0, %v7587
        %v7589 = vpop.f32.mrb[0].mxu0
        %7590 = vmatprep.mubr.bf16.mxu0 0
        %7591 = vmatmul.mubr.bf16.gmra.mrb[0].mxu0 %v7373
        %v7592 = vpop.f32.mrb[0].mxu0
        %v7593 = vadd.f32 0.0, %v7592
        %v7594 = vpop.f32.mrb[0].mxu0
        %v7595 = vpop.f32.mrb[0].mxu0
        %v7596 = vadd.f32 0.0, %v7595
        %v7597 = vpop.f32.mrb[0].mxu0
        %7598 = vmatprep.mubr.bf16.mxu0 0
        %7599 = vmatmul.mubr.bf16.gmra.mrb[0].mxu0 %v7381
        %v7600 = vpop.f32.mrb[0].mxu0
        %v7601 = vadd.f32 0.0, %v7600
        %v7602 = vpop.f32.mrb[0].mxu0
        %v7603 = vpop.f32.mrb[0].mxu0
        %v7604 = vadd.f32 0.0, %v7603
        %v7605 = vpop.f32.mrb[0].mxu0
        %7606 = vmatprep.mubr.bf16.mxu0 0
        %7607 = vmatmul.mubr.bf16.gmra.mrb[0].mxu0 %v7389
        %v7608 = vpop.f32.mrb[0].mxu0
        %v7609 = vadd.f32 0.0, %v7608
        %v7610 = vpop.f32.mrb[0].mxu0
        %v7611 = vpop.f32.mrb[0].mxu0
        %v7612 = vadd.f32 0.0, %v7611
        %v7613 = vpop.f32.mrb[0].mxu0
        %7614 = vmatprep.mubr.bf16.mxu0 0
        %7615 = vmatmul.mubr.bf16.gmra.mrb[0].mxu0 %v7397
        %v7616 = vpop.f32.mrb[0].mxu0
        %v7617 = vadd.f32 0.0, %v7616
        %v7618 = vpop.f32.mrb[0].mxu0
        %v7619 = vpop.f32.mrb[0].mxu0
        %v7620 = vadd.f32 0.0, %v7619
        %v7621 = vpop.f32.mrb[0].mxu0
        %7622 = vmatprep.mubr.bf16.mxu0 0
        %7623 = vmatmul.mubr.bf16.gmra.mrb[0].mxu0 %v7405
        %v7624 = vpop.f32.mrb[0].mxu0
        %v7625 = vadd.f32 0.0, %v7624
        %v7626 = vpop.f32.mrb[0].mxu0
        %v7627 = vpop.f32.mrb[0].mxu0
        %v7628 = vadd.f32 0.0, %v7627
        %v7629 = vpop.f32.mrb[0].mxu0
        %7630 = vdwg.mxu0
        %v7631 = vadd.f32 %v7206, %v7505
        %v7632 = vadd.f32 %v7207, %v7508
        %v7633 = vadd.f32 %v7208, %v7513
        %v7634 = vadd.f32 %v7209, %v7516
        %v7635 = vadd.f32 %v7210, %v7521
        %v7636 = vadd.f32 %v7211, %v7524
        %v7637 = vadd.f32 %v7212, %v7529
        %v7638 = vadd.f32 %v7213, %v7532
        %v7639 = vadd.f32 %v7214, %v7537
        %v7640 = vadd.f32 %v7215, %v7540
        %v7641 = vadd.f32 %v7216, %v7545
        %v7642 = vadd.f32 %v7217, %v7548
        %v7643 = vadd.f32 %v7218, %v7553
        %v7644 = vadd.f32 %v7219, %v7556
        %v7645 = vadd.f32 %v7220, %v7561
        %v7646 = vadd.f32 %v7221, %v7564
        %v7647 = vadd.f32 %v7222, %v7569
        %v7648 = vadd.f32 %v7223, %v7572
        %v7649 = vadd.f32 %v7224, %v7577
        %v7650 = vadd.f32 %v7225, %v7580
        %v7651 = vadd.f32 %v7226, %v7585
        %v7652 = vadd.f32 %v7227, %v7588
        %v7653 = vadd.f32 %v7228, %v7593
        %v7654 = vadd.f32 %v7229, %v7596
        %v7655 = vadd.f32 %v7230, %v7601
        %v7656 = vadd.f32 %v7231, %v7604
        %v7657 = vadd.f32 %v7232, %v7609
        %v7658 = vadd.f32 %v7233, %v7612
        %v7659 = vadd.f32 %v7234, %v7617
        %v7660 = vadd.f32 %v7235, %v7620
        %v7661 = vadd.f32 %v7236, %v7625
        %v7662 = vadd.f32 %v7237, %v7628
        %s7663 = scalar_lea.vmem [#allocation8], 256
        %v7664 = vld [vmem:[%s7663] sm:$0xf]
        %v7665 = vld [vmem:[%s7663 + $0x4] sm:$0xf]
        %v7666 = vld [vmem:[%s7663 + $0x8] sm:$0xf]
        %v7667 = vld [vmem:[%s7663 + $0xc] sm:$0xf]
        %v7668 = vld [vmem:[%s7663 + $0x10] sm:$0xf]
        %v7669 = vld [vmem:[%s7663 + $0x14] sm:$0xf]
        %v7670 = vld [vmem:[%s7663 + $0x18] sm:$0xf]
        %v7671 = vld [vmem:[%s7663 + $0x1c] sm:$0xf]
        %v7672 = vld [vmem:[%s7663 + $0x20] sm:$0xf]
        %v7673 = vld [vmem:[%s7663 + $0x24] sm:$0xf]
        %v7674 = vld [vmem:[%s7663 + $0x28] sm:$0xf]
        %v7675 = vld [vmem:[%s7663 + $0x2c] sm:$0xf]
        %v7676 = vld [vmem:[%s7663 + $0x30] sm:$0xf]
        %v7677 = vld [vmem:[%s7663 + $0x34] sm:$0xf]
        %v7678 = vld [vmem:[%s7663 + $0x38] sm:$0xf]
        %v7679 = vld [vmem:[%s7663 + $0x3c] sm:$0xf]
        %v7696 = vunpack.c.l.b16 %v7664
        %v7697 = vunpack.c.l.b16 %v7665
        %v7698 = vunpack.c.l.b16 %v7666
        %v7699 = vunpack.c.l.b16 %v7667
        %v7700 = vunpack.c.l.b16 %v7668
        %v7701 = vunpack.c.l.b16 %v7669
        %v7702 = vunpack.c.l.b16 %v7670
        %v7703 = vunpack.c.l.b16 %v7671
        %v7704 = vunpack.c.l.b16 %v7672
        %v7705 = vunpack.c.l.b16 %v7673
        %v7706 = vunpack.c.l.b16 %v7674
        %v7707 = vunpack.c.l.b16 %v7675
        %v7708 = vunpack.c.l.b16 %v7676
        %v7709 = vunpack.c.l.b16 %v7677
        %v7710 = vunpack.c.l.b16 %v7678
        %v7711 = vunpack.c.l.b16 %v7679
        %v7712 = vpack.c.b16 %v7697, %v7696
        %v7713 = vpack.c.b16 %v7699, %v7698
        %v7714 = vpack.c.b16 %v7701, %v7700
        %v7715 = vpack.c.b16 %v7703, %v7702
        %v7716 = vpack.c.b16 %v7705, %v7704
        %v7717 = vpack.c.b16 %v7707, %v7706
        %v7718 = vpack.c.b16 %v7709, %v7708
        %v7719 = vpack.c.b16 %v7711, %v7710
        %7728 = vmatprep.subr.bf16.mxu0 0
        %7729 = vmatpush1.bf16.msra.mxu0 %v7712
        %7730 = vmatprep.subr.bf16.mxu0 0
        %7731 = vmatpush1.bf16.msra.mxu0 %v7713
        %7732 = vmatprep.subr.bf16.mxu0 0
        %7733 = vmatpush1.bf16.msra.mxu0 %v7714
        %7734 = vmatprep.subr.bf16.mxu0 0
        %7735 = vmatpush1.bf16.msra.mxu0 %v7715
        %7736 = vmatprep.subr.bf16.mxu0 0
        %7737 = vmatpush1.bf16.msra.mxu0 %v7716
        %7738 = vmatprep.subr.bf16.mxu0 0
        %7739 = vmatpush1.bf16.msra.mxu0 %v7717
        %7740 = vmatprep.subr.bf16.mxu0 0
        %7741 = vmatpush1.bf16.msra.mxu0 %v7718
        %7742 = vmatprep.subr.bf16.mxu0 0
        %7743 = vmatpush1.bf16.msra.mxu0 %v7719
        %7744 = vmatprep.subr.bf16.mxu0 0
        %7745 = vmatpush1.bf16.msra.mxu0 0
        %7746 = vmatprep.subr.bf16.mxu0 0
        %7747 = vmatpush1.bf16.msra.mxu0 0
        %7748 = vmatprep.subr.bf16.mxu0 0
        %7749 = vmatpush1.bf16.msra.mxu0 0
        %7750 = vmatprep.subr.bf16.mxu0 0
        %7751 = vmatpush1.bf16.msra.mxu0 0
        %7752 = vmatprep.subr.bf16.mxu0 0
        %7753 = vmatpush1.bf16.msra.mxu0 0
        %7754 = vmatprep.subr.bf16.mxu0 0
        %7755 = vmatpush1.bf16.msra.mxu0 0
        %7756 = vmatprep.subr.bf16.mxu0 0
        %7757 = vmatpush1.bf16.msra.mxu0 0
        %7758 = vmatprep.subr.bf16.mxu0 0
        %7759 = vmatpush1.bf16.msra.mxu0 0
        %7760 = vmatprep.mubr.bf16.mxu0 0
        %7761 = vmatmul.mubr.bf16.gmra.mrb[0].mxu0 %v6799
        %v7762 = vpop.f32.mrb[0].mxu0
        %v7763 = vadd.f32 0.0, %v7762
        %v7764 = vpop.f32.mrb[0].mxu0
        %v7765 = vpop.f32.mrb[0].mxu0
        %v7766 = vadd.f32 0.0, %v7765
        %v7767 = vpop.f32.mrb[0].mxu0
        %7768 = vmatprep.mubr.bf16.mxu0 0
        %7769 = vmatmul.mubr.bf16.gmra.mrb[0].mxu0 %v6800
        %v7770 = vpop.f32.mrb[0].mxu0
        %v7771 = vadd.f32 0.0, %v7770
        %v7772 = vpop.f32.mrb[0].mxu0
        %v7773 = vpop.f32.mrb[0].mxu0
        %v7774 = vadd.f32 0.0, %v7773
        %v7775 = vpop.f32.mrb[0].mxu0
        %7776 = vmatprep.mubr.bf16.mxu0 0
        %7777 = vmatmul.mubr.bf16.gmra.mrb[0].mxu0 %v6801
        %v7778 = vpop.f32.mrb[0].mxu0
        %v7779 = vadd.f32 0.0, %v7778
        %v7780 = vpop.f32.mrb[0].mxu0
        %v7781 = vpop.f32.mrb[0].mxu0
        %v7782 = vadd.f32 0.0, %v7781
        %v7783 = vpop.f32.mrb[0].mxu0
        %7784 = vmatprep.mubr.bf16.mxu0 0
        %7785 = vmatmul.mubr.bf16.gmra.mrb[0].mxu0 %v6802
        %v7786 = vpop.f32.mrb[0].mxu0
        %v7787 = vadd.f32 0.0, %v7786
        %v7788 = vpop.f32.mrb[0].mxu0
        %v7789 = vpop.f32.mrb[0].mxu0
        %v7790 = vadd.f32 0.0, %v7789
        %v7791 = vpop.f32.mrb[0].mxu0
        %7792 = vmatprep.mubr.bf16.mxu0 0
        %7793 = vmatmul.mubr.bf16.gmra.mrb[0].mxu0 %v6803
        %v7794 = vpop.f32.mrb[0].mxu0
        %v7795 = vadd.f32 0.0, %v7794
        %v7796 = vpop.f32.mrb[0].mxu0
        %v7797 = vpop.f32.mrb[0].mxu0
        %v7798 = vadd.f32 0.0, %v7797
        %v7799 = vpop.f32.mrb[0].mxu0
        %7800 = vmatprep.mubr.bf16.mxu0 0
        %7801 = vmatmul.mubr.bf16.gmra.mrb[0].mxu0 %v6804
        %v7802 = vpop.f32.mrb[0].mxu0
        %v7803 = vadd.f32 0.0, %v7802
        %v7804 = vpop.f32.mrb[0].mxu0
        %v7805 = vpop.f32.mrb[0].mxu0
        %v7806 = vadd.f32 0.0, %v7805
        %v7807 = vpop.f32.mrb[0].mxu0
        %7808 = vmatprep.mubr.bf16.mxu0 0
        %7809 = vmatmul.mubr.bf16.gmra.mrb[0].mxu0 %v6805
        %v7810 = vpop.f32.mrb[0].mxu0
        %v7811 = vadd.f32 0.0, %v7810
        %v7812 = vpop.f32.mrb[0].mxu0
        %v7813 = vpop.f32.mrb[0].mxu0
        %v7814 = vadd.f32 0.0, %v7813
        %v7815 = vpop.f32.mrb[0].mxu0
        %7816 = vmatprep.mubr.bf16.mxu0 0
        %7817 = vmatmul.mubr.bf16.gmra.mrb[0].mxu0 %v6806
        %v7818 = vpop.f32.mrb[0].mxu0
        %v7819 = vadd.f32 0.0, %v7818
        %v7820 = vpop.f32.mrb[0].mxu0
        %v7821 = vpop.f32.mrb[0].mxu0
        %v7822 = vadd.f32 0.0, %v7821
        %v7823 = vpop.f32.mrb[0].mxu0
        %7824 = vmatprep.mubr.bf16.mxu0 0
        %7825 = vmatmul.mubr.bf16.gmra.mrb[0].mxu0 %v6807
        %v7826 = vpop.f32.mrb[0].mxu0
        %v7827 = vadd.f32 0.0, %v7826
        %v7828 = vpop.f32.mrb[0].mxu0
        %v7829 = vpop.f32.mrb[0].mxu0
        %v7830 = vadd.f32 0.0, %v7829
        %v7831 = vpop.f32.mrb[0].mxu0
        %7832 = vmatprep.mubr.bf16.mxu0 0
        %7833 = vmatmul.mubr.bf16.gmra.mrb[0].mxu0 %v6808
        %v7834 = vpop.f32.mrb[0].mxu0
        %v7835 = vadd.f32 0.0, %v7834
        %v7836 = vpop.f32.mrb[0].mxu0
        %v7837 = vpop.f32.mrb[0].mxu0
        %v7838 = vadd.f32 0.0, %v7837
        %v7839 = vpop.f32.mrb[0].mxu0
        %7840 = vmatprep.mubr.bf16.mxu0 0
        %7841 = vmatmul.mubr.bf16.gmra.mrb[0].mxu0 %v6809
        %v7842 = vpop.f32.mrb[0].mxu0
        %v7843 = vadd.f32 0.0, %v7842
        %v7844 = vpop.f32.mrb[0].mxu0
        %v7845 = vpop.f32.mrb[0].mxu0
        %v7846 = vadd.f32 0.0, %v7845
        %v7847 = vpop.f32.mrb[0].mxu0
        %7848 = vmatprep.mubr.bf16.mxu0 0
        %7849 = vmatmul.mubr.bf16.gmra.mrb[0].mxu0 %v6810
        %v7850 = vpop.f32.mrb[0].mxu0
        %v7851 = vadd.f32 0.0, %v7850
        %v7852 = vpop.f32.mrb[0].mxu0
        %v7853 = vpop.f32.mrb[0].mxu0
        %v7854 = vadd.f32 0.0, %v7853
        %v7855 = vpop.f32.mrb[0].mxu0
        %7856 = vmatprep.mubr.bf16.mxu0 0
        %7857 = vmatmul.mubr.bf16.gmra.mrb[0].mxu0 %v6811
        %v7858 = vpop.f32.mrb[0].mxu0
        %v7859 = vadd.f32 0.0, %v7858
        %v7860 = vpop.f32.mrb[0].mxu0
        %v7861 = vpop.f32.mrb[0].mxu0
        %v7862 = vadd.f32 0.0, %v7861
        %v7863 = vpop.f32.mrb[0].mxu0
        %7864 = vmatprep.mubr.bf16.mxu0 0
        %7865 = vmatmul.mubr.bf16.gmra.mrb[0].mxu0 %v6812
        %v7866 = vpop.f32.mrb[0].mxu0
        %v7867 = vadd.f32 0.0, %v7866
        %v7868 = vpop.f32.mrb[0].mxu0
        %v7869 = vpop.f32.mrb[0].mxu0
        %v7870 = vadd.f32 0.0, %v7869
        %v7871 = vpop.f32.mrb[0].mxu0
        %7872 = vmatprep.mubr.bf16.mxu0 0
        %7873 = vmatmul.mubr.bf16.gmra.mrb[0].mxu0 %v6813
        %v7874 = vpop.f32.mrb[0].mxu0
        %v7875 = vadd.f32 0.0, %v7874
        %v7876 = vpop.f32.mrb[0].mxu0
        %v7877 = vpop.f32.mrb[0].mxu0
        %v7878 = vadd.f32 0.0, %v7877
        %v7879 = vpop.f32.mrb[0].mxu0
        %7880 = vmatprep.mubr.bf16.mxu0 0
        %7881 = vmatmul.mubr.bf16.gmra.mrb[0].mxu0 %v7239
        %v7882 = vpop.f32.mrb[0].mxu0
        %v7883 = vadd.f32 0.0, %v7882
        %v7884 = vpop.f32.mrb[0].mxu0
        %v7885 = vpop.f32.mrb[0].mxu0
        %v7886 = vadd.f32 0.0, %v7885
        %v7887 = vpop.f32.mrb[0].mxu0
        %7888 = vdwg.mxu0
        %v7889 = vadd.f32 %v7631, %v7763
        %v7890 = vadd.f32 %v7632, %v7766
        %v7891 = vadd.f32 %v7633, %v7771
        %v7892 = vadd.f32 %v7634, %v7774
        %v7893 = vadd.f32 %v7635, %v7779
        %v7894 = vadd.f32 %v7636, %v7782
        %v7895 = vadd.f32 %v7637, %v7787
        %v7896 = vadd.f32 %v7638, %v7790
        %v7897 = vadd.f32 %v7639, %v7795
        %v7898 = vadd.f32 %v7640, %v7798
        %v7899 = vadd.f32 %v7641, %v7803
        %v7900 = vadd.f32 %v7642, %v7806
        %v7901 = vadd.f32 %v7643, %v7811
        %v7902 = vadd.f32 %v7644, %v7814
        %v7903 = vadd.f32 %v7645, %v7819
        %v7904 = vadd.f32 %v7646, %v7822
        %v7905 = vadd.f32 %v7647, %v7827
        %v7906 = vadd.f32 %v7648, %v7830
        %v7907 = vadd.f32 %v7649, %v7835
        %v7908 = vadd.f32 %v7650, %v7838
        %v7909 = vadd.f32 %v7651, %v7843
        %v7910 = vadd.f32 %v7652, %v7846
        %v7911 = vadd.f32 %v7653, %v7851
        %v7912 = vadd.f32 %v7654, %v7854
        %v7913 = vadd.f32 %v7655, %v7859
        %v7914 = vadd.f32 %v7656, %v7862
        %v7915 = vadd.f32 %v7657, %v7867
        %v7916 = vadd.f32 %v7658, %v7870
        %v7917 = vadd.f32 %v7659, %v7875
        %v7918 = vadd.f32 %v7660, %v7878
        %v7919 = vadd.f32 %v7661, %v7883
        %v7920 = vadd.f32 %v7662, %v7886
        %v7921 = vld [vmem:[#allocation2 + $0x10] sm:$0xff]
        %v7922 = vld [vmem:[#allocation2 + $0x18] sm:$0xff]
        %v7923 = vld [vmem:[#allocation2 + $0x20] sm:$0xff]
        %v7924 = vld [vmem:[#allocation2 + $0x28] sm:$0xff]
        %v7925 = vld [vmem:[#allocation2 + $0x30] sm:$0xff]
        %v7926 = vld [vmem:[#allocation2 + $0x38] sm:$0xff]
        %v7927 = vld [vmem:[#allocation2 + $0x40] sm:$0xff]
        %v7928 = vld [vmem:[#allocation2 + $0x48] sm:$0xff]
        %v7929 = vld [vmem:[#allocation2 + $0x50] sm:$0xff]
        %v7930 = vld [vmem:[#allocation2 + $0x58] sm:$0xff]
        %v7931 = vld [vmem:[#allocation2 + $0x60] sm:$0xff]
        %v7932 = vld [vmem:[#allocation2 + $0x68] sm:$0xff]
        %v7933 = vld [vmem:[#allocation2 + $0x70] sm:$0xff]
        %v7934 = vld [vmem:[#allocation2 + $0x78] sm:$0xff]
        %v7935 = vld [vmem:[#allocation2 + $0x80] sm:$0xff]
        %v7936 = vld [vmem:[#allocation2 + $0x88] sm:$0xff]
        %v7937 = vld [vmem:[#allocation2 + $0x90] sm:$0x1]
        %v7938 = vmul.bf16 %v7921, %v2606
        %v7939 = vmul.bf16 %v7922, %v2614
        %v7940 = vmul.bf16 %v7923, %v2622
        %v7941 = vmul.bf16 %v7924, %v2630
        %v7942 = vmul.bf16 %v7925, %v2638
        %v7943 = vmul.bf16 %v7926, %v2646
        %v7944 = vmul.bf16 %v7927, %v2654
        %v7945 = vmul.bf16 %v7928, %v2662
        %v7946 = vmul.bf16 %v7929, %v2670
        %v7947 = vmul.bf16 %v7930, %v2678
        %v7948 = vmul.bf16 %v7931, %v2686
        %v7949 = vmul.bf16 %v7932, %v2694
        %v7950 = vmul.bf16 %v7933, %v2702
        %v7951 = vmul.bf16 %v7934, %v2710
        %v7952 = vmul.bf16 %v7935, %v2718
        %v7953 = vmul.bf16 %v7936, %v2726
        %v7954 = vmul.bf16 %v7937, %v2722
        %s7955 = scalar_lea.vmem [#allocation8], 320
        %v7956 = vld [vmem:[%s7955] sm:$0xf]
        %v7957 = vld [vmem:[%s7955 + $0x4] sm:$0xf]
        %v7958 = vld [vmem:[%s7955 + $0x8] sm:$0xf]
        %v7959 = vld [vmem:[%s7955 + $0xc] sm:$0xf]
        %v7960 = vld [vmem:[%s7955 + $0x10] sm:$0xf]
        %v7961 = vld [vmem:[%s7955 + $0x14] sm:$0xf]
        %v7962 = vld [vmem:[%s7955 + $0x18] sm:$0xf]
        %v7963 = vld [vmem:[%s7955 + $0x1c] sm:$0xf]
        %v7964 = vld [vmem:[%s7955 + $0x20] sm:$0xf]
        %v7965 = vld [vmem:[%s7955 + $0x24] sm:$0xf]
        %v7966 = vld [vmem:[%s7955 + $0x28] sm:$0xf]
        %v7967 = vld [vmem:[%s7955 + $0x2c] sm:$0xf]
        %v7968 = vld [vmem:[%s7955 + $0x30] sm:$0xf]
        %v7969 = vld [vmem:[%s7955 + $0x34] sm:$0xf]
        %v7970 = vld [vmem:[%s7955 + $0x38] sm:$0xf]
        %v7971 = vld [vmem:[%s7955 + $0x3c] sm:$0xf]
        %v7973 = vshrl.u32 %v7938, 16
        %v7975 = vshll.u32 %v7938, 16
        %v7977 = vrot.slane %v7975, 1
        %v7978 = vor.u32 %v7973, %v7977
        %v7980 = vshll.u32 %v7939, 16
        %v7982 = vrot.slane %v7980, 1
        %v7983 = vsel %vm1821, %v7978, %v7982
        %v7984 = vshrl.u32 %v7939, 16
        %v7986 = vor.u32 %v7984, %v7982
        %v7988 = vshll.u32 %v7940, 16
        %v7990 = vrot.slane %v7988, 1
        %v7991 = vsel %vm1821, %v7986, %v7990
        %v7992 = vshrl.u32 %v7940, 16
        %v7994 = vor.u32 %v7992, %v7990
        %v7996 = vshll.u32 %v7941, 16
        %v7998 = vrot.slane %v7996, 1
        %v7999 = vsel %vm1821, %v7994, %v7998
        %v8000 = vshrl.u32 %v7941, 16
        %v8002 = vor.u32 %v8000, %v7998
        %v8004 = vshll.u32 %v7942, 16
        %v8006 = vrot.slane %v8004, 1
        %v8007 = vsel %vm1821, %v8002, %v8006
        %v8008 = vshrl.u32 %v7942, 16
        %v8010 = vor.u32 %v8008, %v8006
        %v8012 = vshll.u32 %v7943, 16
        %v8014 = vrot.slane %v8012, 1
        %v8015 = vsel %vm1821, %v8010, %v8014
        %v8016 = vshrl.u32 %v7943, 16
        %v8018 = vor.u32 %v8016, %v8014
        %v8020 = vshll.u32 %v7944, 16
        %v8022 = vrot.slane %v8020, 1
        %v8023 = vsel %vm1821, %v8018, %v8022
        %v8024 = vshrl.u32 %v7944, 16
        %v8026 = vor.u32 %v8024, %v8022
        %v8028 = vshll.u32 %v7945, 16
        %v8030 = vrot.slane %v8028, 1
        %v8031 = vsel %vm1821, %v8026, %v8030
        %v8032 = vshrl.u32 %v7945, 16
        %v8034 = vor.u32 %v8032, %v8030
        %v8036 = vshll.u32 %v7946, 16
        %v8038 = vrot.slane %v8036, 1
        %v8039 = vsel %vm1821, %v8034, %v8038
        %v8040 = vshrl.u32 %v7946, 16
        %v8042 = vor.u32 %v8040, %v8038
        %v8044 = vshll.u32 %v7947, 16
        %v8046 = vrot.slane %v8044, 1
        %v8047 = vsel %vm1821, %v8042, %v8046
        %v8048 = vshrl.u32 %v7947, 16
        %v8050 = vor.u32 %v8048, %v8046
        %v8052 = vshll.u32 %v7948, 16
        %v8054 = vrot.slane %v8052, 1
        %v8055 = vsel %vm1821, %v8050, %v8054
        %v8056 = vshrl.u32 %v7948, 16
        %v8058 = vor.u32 %v8056, %v8054
        %v8060 = vshll.u32 %v7949, 16
        %v8062 = vrot.slane %v8060, 1
        %v8063 = vsel %vm1821, %v8058, %v8062
        %v8064 = vshrl.u32 %v7949, 16
        %v8066 = vor.u32 %v8064, %v8062
        %v8068 = vshll.u32 %v7950, 16
        %v8070 = vrot.slane %v8068, 1
        %v8071 = vsel %vm1821, %v8066, %v8070
        %v8072 = vshrl.u32 %v7950, 16
        %v8074 = vor.u32 %v8072, %v8070
        %v8076 = vshll.u32 %v7951, 16
        %v8078 = vrot.slane %v8076, 1
        %v8079 = vsel %vm1821, %v8074, %v8078
        %v8080 = vshrl.u32 %v7951, 16
        %v8082 = vor.u32 %v8080, %v8078
        %v8084 = vshll.u32 %v7952, 16
        %v8086 = vrot.slane %v8084, 1
        %v8087 = vsel %vm1821, %v8082, %v8086
        %v8088 = vshrl.u32 %v7952, 16
        %v8090 = vor.u32 %v8088, %v8086
        %v8092 = vshll.u32 %v7953, 16
        %v8094 = vrot.slane %v8092, 1
        %v8095 = vsel %vm1821, %v8090, %v8094
        %v8096 = vshrl.u32 %v7953, 16
        %v8098 = vor.u32 %v8096, %v8094
        %v8100 = vshll.u32 %v7954, 16
        %v8102 = vrot.slane %v8100, 1
        %v8103 = vsel %vm1821, %v8098, %v8102
        %v8136 = vunpack.c.l.b16 %v7956
        %v8137 = vunpack.c.l.b16 %v7957
        %v8138 = vunpack.c.l.b16 %v7958
        %v8139 = vunpack.c.l.b16 %v7959
        %v8140 = vunpack.c.l.b16 %v7960
        %v8141 = vunpack.c.l.b16 %v7961
        %v8142 = vunpack.c.l.b16 %v7962
        %v8143 = vunpack.c.l.b16 %v7963
        %v8144 = vunpack.c.l.b16 %v7964
        %v8145 = vunpack.c.l.b16 %v7965
        %v8146 = vunpack.c.l.b16 %v7966
        %v8147 = vunpack.c.l.b16 %v7967
        %v8148 = vunpack.c.l.b16 %v7968
        %v8149 = vunpack.c.l.b16 %v7969
        %v8150 = vunpack.c.l.b16 %v7970
        %v8151 = vunpack.c.l.b16 %v7971
        %v8152 = vpack.c.b16 %v8137, %v8136
        %v8153 = vpack.c.b16 %v8139, %v8138
        %v8154 = vpack.c.b16 %v8141, %v8140
        %v8155 = vpack.c.b16 %v8143, %v8142
        %v8156 = vpack.c.b16 %v8145, %v8144
        %v8157 = vpack.c.b16 %v8147, %v8146
        %v8158 = vpack.c.b16 %v8149, %v8148
        %v8159 = vpack.c.b16 %v8151, %v8150
        %8168 = vmatprep.subr.bf16.mxu0 0
        %8169 = vmatpush1.bf16.msra.mxu0 %v8152
        %8170 = vmatprep.subr.bf16.mxu0 0
        %8171 = vmatpush1.bf16.msra.mxu0 %v8153
        %8172 = vmatprep.subr.bf16.mxu0 0
        %8173 = vmatpush1.bf16.msra.mxu0 %v8154
        %8174 = vmatprep.subr.bf16.mxu0 0
        %8175 = vmatpush1.bf16.msra.mxu0 %v8155
        %8176 = vmatprep.subr.bf16.mxu0 0
        %8177 = vmatpush1.bf16.msra.mxu0 %v8156
        %8178 = vmatprep.subr.bf16.mxu0 0
        %8179 = vmatpush1.bf16.msra.mxu0 %v8157
        %8180 = vmatprep.subr.bf16.mxu0 0
        %8181 = vmatpush1.bf16.msra.mxu0 %v8158
        %8182 = vmatprep.subr.bf16.mxu0 0
        %8183 = vmatpush1.bf16.msra.mxu0 %v8159
        %8184 = vmatprep.subr.bf16.mxu0 0
        %8185 = vmatpush1.bf16.msra.mxu0 0
        %8186 = vmatprep.subr.bf16.mxu0 0
        %8187 = vmatpush1.bf16.msra.mxu0 0
        %8188 = vmatprep.subr.bf16.mxu0 0
        %8189 = vmatpush1.bf16.msra.mxu0 0
        %8190 = vmatprep.subr.bf16.mxu0 0
        %8191 = vmatpush1.bf16.msra.mxu0 0
        %8192 = vmatprep.subr.bf16.mxu0 0
        %8193 = vmatpush1.bf16.msra.mxu0 0
        %8194 = vmatprep.subr.bf16.mxu0 0
        %8195 = vmatpush1.bf16.msra.mxu0 0
        %8196 = vmatprep.subr.bf16.mxu0 0
        %8197 = vmatpush1.bf16.msra.mxu0 0
        %8198 = vmatprep.subr.bf16.mxu0 0
        %8199 = vmatpush1.bf16.msra.mxu0 0
        %8200 = vmatprep.mubr.bf16.mxu0 0
        %8201 = vmatmul.mubr.bf16.gmra.mrb[0].mxu0 %v7983
        %v8202 = vpop.f32.mrb[0].mxu0
        %v8203 = vadd.f32 0.0, %v8202
        %v8204 = vpop.f32.mrb[0].mxu0
        %v8205 = vpop.f32.mrb[0].mxu0
        %v8206 = vadd.f32 0.0, %v8205
        %v8207 = vpop.f32.mrb[0].mxu0
        %8208 = vmatprep.mubr.bf16.mxu0 0
        %8209 = vmatmul.mubr.bf16.gmra.mrb[0].mxu0 %v7991
        %v8210 = vpop.f32.mrb[0].mxu0
        %v8211 = vadd.f32 0.0, %v8210
        %v8212 = vpop.f32.mrb[0].mxu0
        %v8213 = vpop.f32.mrb[0].mxu0
        %v8214 = vadd.f32 0.0, %v8213
        %v8215 = vpop.f32.mrb[0].mxu0
        %8216 = vmatprep.mubr.bf16.mxu0 0
        %8217 = vmatmul.mubr.bf16.gmra.mrb[0].mxu0 %v7999
        %v8218 = vpop.f32.mrb[0].mxu0
        %v8219 = vadd.f32 0.0, %v8218
        %v8220 = vpop.f32.mrb[0].mxu0
        %v8221 = vpop.f32.mrb[0].mxu0
        %v8222 = vadd.f32 0.0, %v8221
        %v8223 = vpop.f32.mrb[0].mxu0
        %8224 = vmatprep.mubr.bf16.mxu0 0
        %8225 = vmatmul.mubr.bf16.gmra.mrb[0].mxu0 %v8007
        %v8226 = vpop.f32.mrb[0].mxu0
        %v8227 = vadd.f32 0.0, %v8226
        %v8228 = vpop.f32.mrb[0].mxu0
        %v8229 = vpop.f32.mrb[0].mxu0
        %v8230 = vadd.f32 0.0, %v8229
        %v8231 = vpop.f32.mrb[0].mxu0
        %8232 = vmatprep.mubr.bf16.mxu0 0
        %8233 = vmatmul.mubr.bf16.gmra.mrb[0].mxu0 %v8015
        %v8234 = vpop.f32.mrb[0].mxu0
        %v8235 = vadd.f32 0.0, %v8234
        %v8236 = vpop.f32.mrb[0].mxu0
        %v8237 = vpop.f32.mrb[0].mxu0
        %v8238 = vadd.f32 0.0, %v8237
        %v8239 = vpop.f32.mrb[0].mxu0
        %8240 = vmatprep.mubr.bf16.mxu0 0
        %8241 = vmatmul.mubr.bf16.gmra.mrb[0].mxu0 %v8023
        %v8242 = vpop.f32.mrb[0].mxu0
        %v8243 = vadd.f32 0.0, %v8242
        %v8244 = vpop.f32.mrb[0].mxu0
        %v8245 = vpop.f32.mrb[0].mxu0
        %v8246 = vadd.f32 0.0, %v8245
        %v8247 = vpop.f32.mrb[0].mxu0
        %8248 = vmatprep.mubr.bf16.mxu0 0
        %8249 = vmatmul.mubr.bf16.gmra.mrb[0].mxu0 %v8031
        %v8250 = vpop.f32.mrb[0].mxu0
        %v8251 = vadd.f32 0.0, %v8250
        %v8252 = vpop.f32.mrb[0].mxu0
        %v8253 = vpop.f32.mrb[0].mxu0
        %v8254 = vadd.f32 0.0, %v8253
        %v8255 = vpop.f32.mrb[0].mxu0
        %8256 = vmatprep.mubr.bf16.mxu0 0
        %8257 = vmatmul.mubr.bf16.gmra.mrb[0].mxu0 %v8039
        %v8258 = vpop.f32.mrb[0].mxu0
        %v8259 = vadd.f32 0.0, %v8258
        %v8260 = vpop.f32.mrb[0].mxu0
        %v8261 = vpop.f32.mrb[0].mxu0
        %v8262 = vadd.f32 0.0, %v8261
        %v8263 = vpop.f32.mrb[0].mxu0
        %8264 = vmatprep.mubr.bf16.mxu0 0
        %8265 = vmatmul.mubr.bf16.gmra.mrb[0].mxu0 %v8047
        %v8266 = vpop.f32.mrb[0].mxu0
        %v8267 = vadd.f32 0.0, %v8266
        %v8268 = vpop.f32.mrb[0].mxu0
        %v8269 = vpop.f32.mrb[0].mxu0
        %v8270 = vadd.f32 0.0, %v8269
        %v8271 = vpop.f32.mrb[0].mxu0
        %8272 = vmatprep.mubr.bf16.mxu0 0
        %8273 = vmatmul.mubr.bf16.gmra.mrb[0].mxu0 %v8055
        %v8274 = vpop.f32.mrb[0].mxu0
        %v8275 = vadd.f32 0.0, %v8274
        %v8276 = vpop.f32.mrb[0].mxu0
        %v8277 = vpop.f32.mrb[0].mxu0
        %v8278 = vadd.f32 0.0, %v8277
        %v8279 = vpop.f32.mrb[0].mxu0
        %8280 = vmatprep.mubr.bf16.mxu0 0
        %8281 = vmatmul.mubr.bf16.gmra.mrb[0].mxu0 %v8063
        %v8282 = vpop.f32.mrb[0].mxu0
        %v8283 = vadd.f32 0.0, %v8282
        %v8284 = vpop.f32.mrb[0].mxu0
        %v8285 = vpop.f32.mrb[0].mxu0
        %v8286 = vadd.f32 0.0, %v8285
        %v8287 = vpop.f32.mrb[0].mxu0
        %8288 = vmatprep.mubr.bf16.mxu0 0
        %8289 = vmatmul.mubr.bf16.gmra.mrb[0].mxu0 %v8071
        %v8290 = vpop.f32.mrb[0].mxu0
        %v8291 = vadd.f32 0.0, %v8290
        %v8292 = vpop.f32.mrb[0].mxu0
        %v8293 = vpop.f32.mrb[0].mxu0
        %v8294 = vadd.f32 0.0, %v8293
        %v8295 = vpop.f32.mrb[0].mxu0
        %8296 = vmatprep.mubr.bf16.mxu0 0
        %8297 = vmatmul.mubr.bf16.gmra.mrb[0].mxu0 %v8079
        %v8298 = vpop.f32.mrb[0].mxu0
        %v8299 = vadd.f32 0.0, %v8298
        %v8300 = vpop.f32.mrb[0].mxu0
        %v8301 = vpop.f32.mrb[0].mxu0
        %v8302 = vadd.f32 0.0, %v8301
        %v8303 = vpop.f32.mrb[0].mxu0
        %8304 = vmatprep.mubr.bf16.mxu0 0
        %8305 = vmatmul.mubr.bf16.gmra.mrb[0].mxu0 %v8087
        %v8306 = vpop.f32.mrb[0].mxu0
        %v8307 = vadd.f32 0.0, %v8306
        %v8308 = vpop.f32.mrb[0].mxu0
        %v8309 = vpop.f32.mrb[0].mxu0
        %v8310 = vadd.f32 0.0, %v8309
        %v8311 = vpop.f32.mrb[0].mxu0
        %8312 = vmatprep.mubr.bf16.mxu0 0
        %8313 = vmatmul.mubr.bf16.gmra.mrb[0].mxu0 %v8095
        %v8314 = vpop.f32.mrb[0].mxu0
        %v8315 = vadd.f32 0.0, %v8314
        %v8316 = vpop.f32.mrb[0].mxu0
        %v8317 = vpop.f32.mrb[0].mxu0
        %v8318 = vadd.f32 0.0, %v8317
        %v8319 = vpop.f32.mrb[0].mxu0
        %8320 = vmatprep.mubr.bf16.mxu0 0
        %8321 = vmatmul.mubr.bf16.gmra.mrb[0].mxu0 %v8103
        %v8322 = vpop.f32.mrb[0].mxu0
        %v8323 = vadd.f32 0.0, %v8322
        %v8324 = vpop.f32.mrb[0].mxu0
        %v8325 = vpop.f32.mrb[0].mxu0
        %v8326 = vadd.f32 0.0, %v8325
        %v8327 = vpop.f32.mrb[0].mxu0
        %8328 = vdwg.mxu0
        %v8329 = vadd.f32 %v7889, %v8203
        %v8330 = vadd.f32 %v7890, %v8206
        %v8331 = vadd.f32 %v7891, %v8211
        %v8332 = vadd.f32 %v7892, %v8214
        %v8333 = vadd.f32 %v7893, %v8219
        %v8334 = vadd.f32 %v7894, %v8222
        %v8335 = vadd.f32 %v7895, %v8227
        %v8336 = vadd.f32 %v7896, %v8230
        %v8337 = vadd.f32 %v7897, %v8235
        %v8338 = vadd.f32 %v7898, %v8238
        %v8339 = vadd.f32 %v7899, %v8243
        %v8340 = vadd.f32 %v7900, %v8246
        %v8341 = vadd.f32 %v7901, %v8251
        %v8342 = vadd.f32 %v7902, %v8254
        %v8343 = vadd.f32 %v7903, %v8259
        %v8344 = vadd.f32 %v7904, %v8262
        %v8345 = vadd.f32 %v7905, %v8267
        %v8346 = vadd.f32 %v7906, %v8270
        %v8347 = vadd.f32 %v7907, %v8275
        %v8348 = vadd.f32 %v7908, %v8278
        %v8349 = vadd.f32 %v7909, %v8283
        %v8350 = vadd.f32 %v7910, %v8286
        %v8351 = vadd.f32 %v7911, %v8291
        %v8352 = vadd.f32 %v7912, %v8294
        %v8353 = vadd.f32 %v7913, %v8299
        %v8354 = vadd.f32 %v7914, %v8302
        %v8355 = vadd.f32 %v7915, %v8307
        %v8356 = vadd.f32 %v7916, %v8310
        %v8357 = vadd.f32 %v7917, %v8315
        %v8358 = vadd.f32 %v7918, %v8318
        %v8359 = vadd.f32 %v7919, %v8323
        %v8360 = vadd.f32 %v7920, %v8326
        %v8361 = vld [vmem:[#allocation2 + $0x10] sm:$0x80]
        %v8362 = vld [vmem:[#allocation2 + $0x90] sm:$0xff]
        %v8363 = vmul.bf16 %v8361, %v1825
        %v8364 = vmul.bf16 %v7922, %v1833
        %v8365 = vmul.bf16 %v7923, %v1841
        %v8366 = vmul.bf16 %v7924, %v1849
        %v8367 = vmul.bf16 %v7925, %v1857
        %v8368 = vmul.bf16 %v7926, %v1865
        %v8369 = vmul.bf16 %v7927, %v1873
        %v8370 = vmul.bf16 %v7928, %v1881
        %v8371 = vmul.bf16 %v7929, %v1889
        %v8372 = vmul.bf16 %v7930, %v1897
        %v8373 = vmul.bf16 %v7931, %v1905
        %v8374 = vmul.bf16 %v7932, %v1913
        %v8375 = vmul.bf16 %v7933, %v1921
        %v8376 = vmul.bf16 %v7934, %v1929
        %v8377 = vmul.bf16 %v7935, %v1937
        %v8378 = vmul.bf16 %v7936, %v1945
        %v8379 = vmul.bf16 %v8362, %v1948
        %s8380 = scalar_lea.vmem [#allocation8], 384
        %v8381 = vld [vmem:[%s8380] sm:$0xf]
        %v8382 = vld [vmem:[%s8380 + $0x4] sm:$0xf]
        %v8383 = vld [vmem:[%s8380 + $0x8] sm:$0xf]
        %v8384 = vld [vmem:[%s8380 + $0xc] sm:$0xf]
        %v8385 = vld [vmem:[%s8380 + $0x10] sm:$0xf]
        %v8386 = vld [vmem:[%s8380 + $0x14] sm:$0xf]
        %v8387 = vld [vmem:[%s8380 + $0x18] sm:$0xf]
        %v8388 = vld [vmem:[%s8380 + $0x1c] sm:$0xf]
        %v8389 = vld [vmem:[%s8380 + $0x20] sm:$0xf]
        %v8390 = vld [vmem:[%s8380 + $0x24] sm:$0xf]
        %v8391 = vld [vmem:[%s8380 + $0x28] sm:$0xf]
        %v8392 = vld [vmem:[%s8380 + $0x2c] sm:$0xf]
        %v8393 = vld [vmem:[%s8380 + $0x30] sm:$0xf]
        %v8394 = vld [vmem:[%s8380 + $0x34] sm:$0xf]
        %v8395 = vld [vmem:[%s8380 + $0x38] sm:$0xf]
        %v8396 = vld [vmem:[%s8380 + $0x3c] sm:$0xf]
        %v8398 = vshrl.u32 %v8363, 16
        %v8400 = vrot.slane %v8398, 7
        %v8402 = vshrl.u32 %v8364, 16
        %v8404 = vrot.slane %v8402, 7
        %v8405 = vshll.u32 %v8364, 16
        %v8407 = vor.u32 %v8404, %v8405
        %v8408 = vsel %vm2225, %v8400, %v8407
        %v8410 = vshrl.u32 %v8365, 16
        %v8412 = vrot.slane %v8410, 7
        %v8413 = vshll.u32 %v8365, 16
        %v8415 = vor.u32 %v8412, %v8413
        %v8416 = vsel %vm2225, %v8404, %v8415
        %v8418 = vshrl.u32 %v8366, 16
        %v8420 = vrot.slane %v8418, 7
        %v8421 = vshll.u32 %v8366, 16
        %v8423 = vor.u32 %v8420, %v8421
        %v8424 = vsel %vm2225, %v8412, %v8423
        %v8426 = vshrl.u32 %v8367, 16
        %v8428 = vrot.slane %v8426, 7
        %v8429 = vshll.u32 %v8367, 16
        %v8431 = vor.u32 %v8428, %v8429
        %v8432 = vsel %vm2225, %v8420, %v8431
        %v8434 = vshrl.u32 %v8368, 16
        %v8436 = vrot.slane %v8434, 7
        %v8437 = vshll.u32 %v8368, 16
        %v8439 = vor.u32 %v8436, %v8437
        %v8440 = vsel %vm2225, %v8428, %v8439
        %v8442 = vshrl.u32 %v8369, 16
        %v8444 = vrot.slane %v8442, 7
        %v8445 = vshll.u32 %v8369, 16
        %v8447 = vor.u32 %v8444, %v8445
        %v8448 = vsel %vm2225, %v8436, %v8447
        %v8450 = vshrl.u32 %v8370, 16
        %v8452 = vrot.slane %v8450, 7
        %v8453 = vshll.u32 %v8370, 16
        %v8455 = vor.u32 %v8452, %v8453
        %v8456 = vsel %vm2225, %v8444, %v8455
        %v8458 = vshrl.u32 %v8371, 16
        %v8460 = vrot.slane %v8458, 7
        %v8461 = vshll.u32 %v8371, 16
        %v8463 = vor.u32 %v8460, %v8461
        %v8464 = vsel %vm2225, %v8452, %v8463
        %v8466 = vshrl.u32 %v8372, 16
        %v8468 = vrot.slane %v8466, 7
        %v8469 = vshll.u32 %v8372, 16
        %v8471 = vor.u32 %v8468, %v8469
        %v8472 = vsel %vm2225, %v8460, %v8471
        %v8474 = vshrl.u32 %v8373, 16
        %v8476 = vrot.slane %v8474, 7
        %v8477 = vshll.u32 %v8373, 16
        %v8479 = vor.u32 %v8476, %v8477
        %v8480 = vsel %vm2225, %v8468, %v8479
        %v8482 = vshrl.u32 %v8374, 16
        %v8484 = vrot.slane %v8482, 7
        %v8485 = vshll.u32 %v8374, 16
        %v8487 = vor.u32 %v8484, %v8485
        %v8488 = vsel %vm2225, %v8476, %v8487
        %v8490 = vshrl.u32 %v8375, 16
        %v8492 = vrot.slane %v8490, 7
        %v8493 = vshll.u32 %v8375, 16
        %v8495 = vor.u32 %v8492, %v8493
        %v8496 = vsel %vm2225, %v8484, %v8495
        %v8498 = vshrl.u32 %v8376, 16
        %v8500 = vrot.slane %v8498, 7
        %v8501 = vshll.u32 %v8376, 16
        %v8503 = vor.u32 %v8500, %v8501
        %v8504 = vsel %vm2225, %v8492, %v8503
        %v8506 = vshrl.u32 %v8377, 16
        %v8508 = vrot.slane %v8506, 7
        %v8509 = vshll.u32 %v8377, 16
        %v8511 = vor.u32 %v8508, %v8509
        %v8512 = vsel %vm2225, %v8500, %v8511
        %v8514 = vshrl.u32 %v8378, 16
        %v8516 = vrot.slane %v8514, 7
        %v8517 = vshll.u32 %v8378, 16
        %v8519 = vor.u32 %v8516, %v8517
        %v8520 = vsel %vm2225, %v8508, %v8519
        %v8522 = vshrl.u32 %v8379, 16
        %v8524 = vrot.slane %v8522, 7
        %v8525 = vshll.u32 %v8379, 16
        %v8527 = vor.u32 %v8524, %v8525
        %v8528 = vsel %vm2225, %v8516, %v8527
        %v8561 = vunpack.c.l.b16 %v8381
        %v8562 = vunpack.c.l.b16 %v8382
        %v8563 = vunpack.c.l.b16 %v8383
        %v8564 = vunpack.c.l.b16 %v8384
        %v8565 = vunpack.c.l.b16 %v8385
        %v8566 = vunpack.c.l.b16 %v8386
        %v8567 = vunpack.c.l.b16 %v8387
        %v8568 = vunpack.c.l.b16 %v8388
        %v8569 = vunpack.c.l.b16 %v8389
        %v8570 = vunpack.c.l.b16 %v8390
        %v8571 = vunpack.c.l.b16 %v8391
        %v8572 = vunpack.c.l.b16 %v8392
        %v8573 = vunpack.c.l.b16 %v8393
        %v8574 = vunpack.c.l.b16 %v8394
        %v8575 = vunpack.c.l.b16 %v8395
        %v8576 = vunpack.c.l.b16 %v8396
        %v8577 = vpack.c.b16 %v8562, %v8561
        %v8578 = vpack.c.b16 %v8564, %v8563
        %v8579 = vpack.c.b16 %v8566, %v8565
        %v8580 = vpack.c.b16 %v8568, %v8567
        %v8581 = vpack.c.b16 %v8570, %v8569
        %v8582 = vpack.c.b16 %v8572, %v8571
        %v8583 = vpack.c.b16 %v8574, %v8573
        %v8584 = vpack.c.b16 %v8576, %v8575
        %8593 = vmatprep.subr.bf16.mxu0 0
        %8594 = vmatpush1.bf16.msra.mxu0 %v8577
        %8595 = vmatprep.subr.bf16.mxu0 0
        %8596 = vmatpush1.bf16.msra.mxu0 %v8578
        %8597 = vmatprep.subr.bf16.mxu0 0
        %8598 = vmatpush1.bf16.msra.mxu0 %v8579
        %8599 = vmatprep.subr.bf16.mxu0 0
        %8600 = vmatpush1.bf16.msra.mxu0 %v8580
        %8601 = vmatprep.subr.bf16.mxu0 0
        %8602 = vmatpush1.bf16.msra.mxu0 %v8581
        %8603 = vmatprep.subr.bf16.mxu0 0
        %8604 = vmatpush1.bf16.msra.mxu0 %v8582
        %8605 = vmatprep.subr.bf16.mxu0 0
        %8606 = vmatpush1.bf16.msra.mxu0 %v8583
        %8607 = vmatprep.subr.bf16.mxu0 0
        %8608 = vmatpush1.bf16.msra.mxu0 %v8584
        %8609 = vmatprep.subr.bf16.mxu0 0
        %8610 = vmatpush1.bf16.msra.mxu0 0
        %8611 = vmatprep.subr.bf16.mxu0 0
        %8612 = vmatpush1.bf16.msra.mxu0 0
        %8613 = vmatprep.subr.bf16.mxu0 0
        %8614 = vmatpush1.bf16.msra.mxu0 0
        %8615 = vmatprep.subr.bf16.mxu0 0
        %8616 = vmatpush1.bf16.msra.mxu0 0
        %8617 = vmatprep.subr.bf16.mxu0 0
        %8618 = vmatpush1.bf16.msra.mxu0 0
        %8619 = vmatprep.subr.bf16.mxu0 0
        %8620 = vmatpush1.bf16.msra.mxu0 0
        %8621 = vmatprep.subr.bf16.mxu0 0
        %8622 = vmatpush1.bf16.msra.mxu0 0
        %8623 = vmatprep.subr.bf16.mxu0 0
        %8624 = vmatpush1.bf16.msra.mxu0 0
        %8625 = vmatprep.mubr.bf16.mxu0 0
        %8626 = vmatmul.mubr.bf16.gmra.mrb[0].mxu0 %v8408
        %v8627 = vpop.f32.mrb[0].mxu0
        %v8628 = vadd.f32 0.0, %v8627
        %v8629 = vpop.f32.mrb[0].mxu0
        %v8630 = vpop.f32.mrb[0].mxu0
        %v8631 = vadd.f32 0.0, %v8630
        %v8632 = vpop.f32.mrb[0].mxu0
        %8633 = vmatprep.mubr.bf16.mxu0 0
        %8634 = vmatmul.mubr.bf16.gmra.mrb[0].mxu0 %v8416
        %v8635 = vpop.f32.mrb[0].mxu0
        %v8636 = vadd.f32 0.0, %v8635
        %v8637 = vpop.f32.mrb[0].mxu0
        %v8638 = vpop.f32.mrb[0].mxu0
        %v8639 = vadd.f32 0.0, %v8638
        %v8640 = vpop.f32.mrb[0].mxu0
        %8641 = vmatprep.mubr.bf16.mxu0 0
        %8642 = vmatmul.mubr.bf16.gmra.mrb[0].mxu0 %v8424
        %v8643 = vpop.f32.mrb[0].mxu0
        %v8644 = vadd.f32 0.0, %v8643
        %v8645 = vpop.f32.mrb[0].mxu0
        %v8646 = vpop.f32.mrb[0].mxu0
        %v8647 = vadd.f32 0.0, %v8646
        %v8648 = vpop.f32.mrb[0].mxu0
        %8649 = vmatprep.mubr.bf16.mxu0 0
        %8650 = vmatmul.mubr.bf16.gmra.mrb[0].mxu0 %v8432
        %v8651 = vpop.f32.mrb[0].mxu0
        %v8652 = vadd.f32 0.0, %v8651
        %v8653 = vpop.f32.mrb[0].mxu0
        %v8654 = vpop.f32.mrb[0].mxu0
        %v8655 = vadd.f32 0.0, %v8654
        %v8656 = vpop.f32.mrb[0].mxu0
        %8657 = vmatprep.mubr.bf16.mxu0 0
        %8658 = vmatmul.mubr.bf16.gmra.mrb[0].mxu0 %v8440
        %v8659 = vpop.f32.mrb[0].mxu0
        %v8660 = vadd.f32 0.0, %v8659
        %v8661 = vpop.f32.mrb[0].mxu0
        %v8662 = vpop.f32.mrb[0].mxu0
        %v8663 = vadd.f32 0.0, %v8662
        %v8664 = vpop.f32.mrb[0].mxu0
        %8665 = vmatprep.mubr.bf16.mxu0 0
        %8666 = vmatmul.mubr.bf16.gmra.mrb[0].mxu0 %v8448
        %v8667 = vpop.f32.mrb[0].mxu0
        %v8668 = vadd.f32 0.0, %v8667
        %v8669 = vpop.f32.mrb[0].mxu0
        %v8670 = vpop.f32.mrb[0].mxu0
        %v8671 = vadd.f32 0.0, %v8670
        %v8672 = vpop.f32.mrb[0].mxu0
        %8673 = vmatprep.mubr.bf16.mxu0 0
        %8674 = vmatmul.mubr.bf16.gmra.mrb[0].mxu0 %v8456
        %v8675 = vpop.f32.mrb[0].mxu0
        %v8676 = vadd.f32 0.0, %v8675
        %v8677 = vpop.f32.mrb[0].mxu0
        %v8678 = vpop.f32.mrb[0].mxu0
        %v8679 = vadd.f32 0.0, %v8678
        %v8680 = vpop.f32.mrb[0].mxu0
        %8681 = vmatprep.mubr.bf16.mxu0 0
        %8682 = vmatmul.mubr.bf16.gmra.mrb[0].mxu0 %v8464
        %v8683 = vpop.f32.mrb[0].mxu0
        %v8684 = vadd.f32 0.0, %v8683
        %v8685 = vpop.f32.mrb[0].mxu0
        %v8686 = vpop.f32.mrb[0].mxu0
        %v8687 = vadd.f32 0.0, %v8686
        %v8688 = vpop.f32.mrb[0].mxu0
        %8689 = vmatprep.mubr.bf16.mxu0 0
        %8690 = vmatmul.mubr.bf16.gmra.mrb[0].mxu0 %v8472
        %v8691 = vpop.f32.mrb[0].mxu0
        %v8692 = vadd.f32 0.0, %v8691
        %v8693 = vpop.f32.mrb[0].mxu0
        %v8694 = vpop.f32.mrb[0].mxu0
        %v8695 = vadd.f32 0.0, %v8694
        %v8696 = vpop.f32.mrb[0].mxu0
        %8697 = vmatprep.mubr.bf16.mxu0 0
        %8698 = vmatmul.mubr.bf16.gmra.mrb[0].mxu0 %v8480
        %v8699 = vpop.f32.mrb[0].mxu0
        %v8700 = vadd.f32 0.0, %v8699
        %v8701 = vpop.f32.mrb[0].mxu0
        %v8702 = vpop.f32.mrb[0].mxu0
        %v8703 = vadd.f32 0.0, %v8702
        %v8704 = vpop.f32.mrb[0].mxu0
        %8705 = vmatprep.mubr.bf16.mxu0 0
        %8706 = vmatmul.mubr.bf16.gmra.mrb[0].mxu0 %v8488
        %v8707 = vpop.f32.mrb[0].mxu0
        %v8708 = vadd.f32 0.0, %v8707
        %v8709 = vpop.f32.mrb[0].mxu0
        %v8710 = vpop.f32.mrb[0].mxu0
        %v8711 = vadd.f32 0.0, %v8710
        %v8712 = vpop.f32.mrb[0].mxu0
        %8713 = vmatprep.mubr.bf16.mxu0 0
        %8714 = vmatmul.mubr.bf16.gmra.mrb[0].mxu0 %v8496
        %v8715 = vpop.f32.mrb[0].mxu0
        %v8716 = vadd.f32 0.0, %v8715
        %v8717 = vpop.f32.mrb[0].mxu0
        %v8718 = vpop.f32.mrb[0].mxu0
        %v8719 = vadd.f32 0.0, %v8718
        %v8720 = vpop.f32.mrb[0].mxu0
        %8721 = vmatprep.mubr.bf16.mxu0 0
        %8722 = vmatmul.mubr.bf16.gmra.mrb[0].mxu0 %v8504
        %v8723 = vpop.f32.mrb[0].mxu0
        %v8724 = vadd.f32 0.0, %v8723
        %v8725 = vpop.f32.mrb[0].mxu0
        %v8726 = vpop.f32.mrb[0].mxu0
        %v8727 = vadd.f32 0.0, %v8726
        %v8728 = vpop.f32.mrb[0].mxu0
        %8729 = vmatprep.mubr.bf16.mxu0 0
        %8730 = vmatmul.mubr.bf16.gmra.mrb[0].mxu0 %v8512
        %v8731 = vpop.f32.mrb[0].mxu0
        %v8732 = vadd.f32 0.0, %v8731
        %v8733 = vpop.f32.mrb[0].mxu0
        %v8734 = vpop.f32.mrb[0].mxu0
        %v8735 = vadd.f32 0.0, %v8734
        %v8736 = vpop.f32.mrb[0].mxu0
        %8737 = vmatprep.mubr.bf16.mxu0 0
        %8738 = vmatmul.mubr.bf16.gmra.mrb[0].mxu0 %v8520
        %v8739 = vpop.f32.mrb[0].mxu0
        %v8740 = vadd.f32 0.0, %v8739
        %v8741 = vpop.f32.mrb[0].mxu0
        %v8742 = vpop.f32.mrb[0].mxu0
        %v8743 = vadd.f32 0.0, %v8742
        %v8744 = vpop.f32.mrb[0].mxu0
        %8745 = vmatprep.mubr.bf16.mxu0 0
        %8746 = vmatmul.mubr.bf16.gmra.mrb[0].mxu0 %v8528
        %v8747 = vpop.f32.mrb[0].mxu0
        %v8748 = vadd.f32 0.0, %v8747
        %v8749 = vpop.f32.mrb[0].mxu0
        %v8750 = vpop.f32.mrb[0].mxu0
        %v8751 = vadd.f32 0.0, %v8750
        %v8752 = vpop.f32.mrb[0].mxu0
        %8753 = vdwg.mxu0
        %v8754 = vadd.f32 %v8329, %v8628
        %v8755 = vadd.f32 %v8330, %v8631
        %v8756 = vadd.f32 %v8331, %v8636
        %v8757 = vadd.f32 %v8332, %v8639
        %v8758 = vadd.f32 %v8333, %v8644
        %v8759 = vadd.f32 %v8334, %v8647
        %v8760 = vadd.f32 %v8335, %v8652
        %v8761 = vadd.f32 %v8336, %v8655
        %v8762 = vadd.f32 %v8337, %v8660
        %v8763 = vadd.f32 %v8338, %v8663
        %v8764 = vadd.f32 %v8339, %v8668
        %v8765 = vadd.f32 %v8340, %v8671
        %v8766 = vadd.f32 %v8341, %v8676
        %v8767 = vadd.f32 %v8342, %v8679
        %v8768 = vadd.f32 %v8343, %v8684
        %v8769 = vadd.f32 %v8344, %v8687
        %v8770 = vadd.f32 %v8345, %v8692
        %v8771 = vadd.f32 %v8346, %v8695
        %v8772 = vadd.f32 %v8347, %v8700
        %v8773 = vadd.f32 %v8348, %v8703
        %v8774 = vadd.f32 %v8349, %v8708
        %v8775 = vadd.f32 %v8350, %v8711
        %v8776 = vadd.f32 %v8351, %v8716
        %v8777 = vadd.f32 %v8352, %v8719
        %v8778 = vadd.f32 %v8353, %v8724
        %v8779 = vadd.f32 %v8354, %v8727
        %v8780 = vadd.f32 %v8355, %v8732
        %v8781 = vadd.f32 %v8356, %v8735
        %v8782 = vadd.f32 %v8357, %v8740
        %v8783 = vadd.f32 %v8358, %v8743
        %v8784 = vadd.f32 %v8359, %v8748
        %v8785 = vadd.f32 %v8360, %v8751
        %s8786 = scalar_lea.vmem [#allocation8], 448
        %v8787 = vld [vmem:[%s8786] sm:$0xf]
        %v8788 = vld [vmem:[%s8786 + $0x4] sm:$0xf]
        %v8789 = vld [vmem:[%s8786 + $0x8] sm:$0xf]
        %v8790 = vld [vmem:[%s8786 + $0xc] sm:$0xf]
        %v8791 = vld [vmem:[%s8786 + $0x10] sm:$0xf]
        %v8792 = vld [vmem:[%s8786 + $0x14] sm:$0xf]
        %v8793 = vld [vmem:[%s8786 + $0x18] sm:$0xf]
        %v8794 = vld [vmem:[%s8786 + $0x1c] sm:$0xf]
        %v8795 = vld [vmem:[%s8786 + $0x20] sm:$0xf]
        %v8796 = vld [vmem:[%s8786 + $0x24] sm:$0xf]
        %v8797 = vld [vmem:[%s8786 + $0x28] sm:$0xf]
        %v8798 = vld [vmem:[%s8786 + $0x2c] sm:$0xf]
        %v8799 = vld [vmem:[%s8786 + $0x30] sm:$0xf]
        %v8800 = vld [vmem:[%s8786 + $0x34] sm:$0xf]
        %v8801 = vld [vmem:[%s8786 + $0x38] sm:$0xf]
        %v8802 = vld [vmem:[%s8786 + $0x3c] sm:$0xf]
        %v8819 = vunpack.c.l.b16 %v8787
        %v8820 = vunpack.c.l.b16 %v8788
        %v8821 = vunpack.c.l.b16 %v8789
        %v8822 = vunpack.c.l.b16 %v8790
        %v8823 = vunpack.c.l.b16 %v8791
        %v8824 = vunpack.c.l.b16 %v8792
        %v8825 = vunpack.c.l.b16 %v8793
        %v8826 = vunpack.c.l.b16 %v8794
        %v8827 = vunpack.c.l.b16 %v8795
        %v8828 = vunpack.c.l.b16 %v8796
        %v8829 = vunpack.c.l.b16 %v8797
        %v8830 = vunpack.c.l.b16 %v8798
        %v8831 = vunpack.c.l.b16 %v8799
        %v8832 = vunpack.c.l.b16 %v8800
        %v8833 = vunpack.c.l.b16 %v8801
        %v8834 = vunpack.c.l.b16 %v8802
        %v8835 = vpack.c.b16 %v8820, %v8819
        %v8836 = vpack.c.b16 %v8822, %v8821
        %v8837 = vpack.c.b16 %v8824, %v8823
        %v8838 = vpack.c.b16 %v8826, %v8825
        %v8839 = vpack.c.b16 %v8828, %v8827
        %v8840 = vpack.c.b16 %v8830, %v8829
        %v8841 = vpack.c.b16 %v8832, %v8831
        %v8842 = vpack.c.b16 %v8834, %v8833
        %8851 = vmatprep.subr.bf16.mxu0 0
        %8852 = vmatpush1.bf16.msra.mxu0 %v8835
        %8853 = vmatprep.subr.bf16.mxu0 0
        %8854 = vmatpush1.bf16.msra.mxu0 %v8836
        %8855 = vmatprep.subr.bf16.mxu0 0
        %8856 = vmatpush1.bf16.msra.mxu0 %v8837
        %8857 = vmatprep.subr.bf16.mxu0 0
        %8858 = vmatpush1.bf16.msra.mxu0 %v8838
        %8859 = vmatprep.subr.bf16.mxu0 0
        %8860 = vmatpush1.bf16.msra.mxu0 %v8839
        %8861 = vmatprep.subr.bf16.mxu0 0
        %8862 = vmatpush1.bf16.msra.mxu0 %v8840
        %8863 = vmatprep.subr.bf16.mxu0 0
        %8864 = vmatpush1.bf16.msra.mxu0 %v8841
        %8865 = vmatprep.subr.bf16.mxu0 0
        %8866 = vmatpush1.bf16.msra.mxu0 %v8842
        %8867 = vmatprep.subr.bf16.mxu0 0
        %8868 = vmatpush1.bf16.msra.mxu0 0
        %8869 = vmatprep.subr.bf16.mxu0 0
        %8870 = vmatpush1.bf16.msra.mxu0 0
        %8871 = vmatprep.subr.bf16.mxu0 0
        %8872 = vmatpush1.bf16.msra.mxu0 0
        %8873 = vmatprep.subr.bf16.mxu0 0
        %8874 = vmatpush1.bf16.msra.mxu0 0
        %8875 = vmatprep.subr.bf16.mxu0 0
        %8876 = vmatpush1.bf16.msra.mxu0 0
        %8877 = vmatprep.subr.bf16.mxu0 0
        %8878 = vmatpush1.bf16.msra.mxu0 0
        %8879 = vmatprep.subr.bf16.mxu0 0
        %8880 = vmatpush1.bf16.msra.mxu0 0
        %8881 = vmatprep.subr.bf16.mxu0 0
        %8882 = vmatpush1.bf16.msra.mxu0 0
        %8883 = vmatprep.mubr.bf16.mxu0 0
        %8884 = vmatmul.mubr.bf16.gmra.mrb[0].mxu0 %v7922
        %v8885 = vpop.f32.mrb[0].mxu0
        %v8886 = vadd.f32 0.0, %v8885
        %v8887 = vpop.f32.mrb[0].mxu0
        %v8888 = vpop.f32.mrb[0].mxu0
        %v8889 = vadd.f32 0.0, %v8888
        %v8890 = vpop.f32.mrb[0].mxu0
        %8891 = vmatprep.mubr.bf16.mxu0 0
        %8892 = vmatmul.mubr.bf16.gmra.mrb[0].mxu0 %v7923
        %v8893 = vpop.f32.mrb[0].mxu0
        %v8894 = vadd.f32 0.0, %v8893
        %v8895 = vpop.f32.mrb[0].mxu0
        %v8896 = vpop.f32.mrb[0].mxu0
        %v8897 = vadd.f32 0.0, %v8896
        %v8898 = vpop.f32.mrb[0].mxu0
        %8899 = vmatprep.mubr.bf16.mxu0 0
        %8900 = vmatmul.mubr.bf16.gmra.mrb[0].mxu0 %v7924
        %v8901 = vpop.f32.mrb[0].mxu0
        %v8902 = vadd.f32 0.0, %v8901
        %v8903 = vpop.f32.mrb[0].mxu0
        %v8904 = vpop.f32.mrb[0].mxu0
        %v8905 = vadd.f32 0.0, %v8904
        %v8906 = vpop.f32.mrb[0].mxu0
        %8907 = vmatprep.mubr.bf16.mxu0 0
        %8908 = vmatmul.mubr.bf16.gmra.mrb[0].mxu0 %v7925
        %v8909 = vpop.f32.mrb[0].mxu0
        %v8910 = vadd.f32 0.0, %v8909
        %v8911 = vpop.f32.mrb[0].mxu0
        %v8912 = vpop.f32.mrb[0].mxu0
        %v8913 = vadd.f32 0.0, %v8912
        %v8914 = vpop.f32.mrb[0].mxu0
        %8915 = vmatprep.mubr.bf16.mxu0 0
        %8916 = vmatmul.mubr.bf16.gmra.mrb[0].mxu0 %v7926
        %v8917 = vpop.f32.mrb[0].mxu0
        %v8918 = vadd.f32 0.0, %v8917
        %v8919 = vpop.f32.mrb[0].mxu0
        %v8920 = vpop.f32.mrb[0].mxu0
        %v8921 = vadd.f32 0.0, %v8920
        %v8922 = vpop.f32.mrb[0].mxu0
        %8923 = vmatprep.mubr.bf16.mxu0 0
        %8924 = vmatmul.mubr.bf16.gmra.mrb[0].mxu0 %v7927
        %v8925 = vpop.f32.mrb[0].mxu0
        %v8926 = vadd.f32 0.0, %v8925
        %v8927 = vpop.f32.mrb[0].mxu0
        %v8928 = vpop.f32.mrb[0].mxu0
        %v8929 = vadd.f32 0.0, %v8928
        %v8930 = vpop.f32.mrb[0].mxu0
        %8931 = vmatprep.mubr.bf16.mxu0 0
        %8932 = vmatmul.mubr.bf16.gmra.mrb[0].mxu0 %v7928
        %v8933 = vpop.f32.mrb[0].mxu0
        %v8934 = vadd.f32 0.0, %v8933
        %v8935 = vpop.f32.mrb[0].mxu0
        %v8936 = vpop.f32.mrb[0].mxu0
        %v8937 = vadd.f32 0.0, %v8936
        %v8938 = vpop.f32.mrb[0].mxu0
        %8939 = vmatprep.mubr.bf16.mxu0 0
        %8940 = vmatmul.mubr.bf16.gmra.mrb[0].mxu0 %v7929
        %v8941 = vpop.f32.mrb[0].mxu0
        %v8942 = vadd.f32 0.0, %v8941
        %v8943 = vpop.f32.mrb[0].mxu0
        %v8944 = vpop.f32.mrb[0].mxu0
        %v8945 = vadd.f32 0.0, %v8944
        %v8946 = vpop.f32.mrb[0].mxu0
        %8947 = vmatprep.mubr.bf16.mxu0 0
        %8948 = vmatmul.mubr.bf16.gmra.mrb[0].mxu0 %v7930
        %v8949 = vpop.f32.mrb[0].mxu0
        %v8950 = vadd.f32 0.0, %v8949
        %v8951 = vpop.f32.mrb[0].mxu0
        %v8952 = vpop.f32.mrb[0].mxu0
        %v8953 = vadd.f32 0.0, %v8952
        %v8954 = vpop.f32.mrb[0].mxu0
        %8955 = vmatprep.mubr.bf16.mxu0 0
        %8956 = vmatmul.mubr.bf16.gmra.mrb[0].mxu0 %v7931
        %v8957 = vpop.f32.mrb[0].mxu0
        %v8958 = vadd.f32 0.0, %v8957
        %v8959 = vpop.f32.mrb[0].mxu0
        %v8960 = vpop.f32.mrb[0].mxu0
        %v8961 = vadd.f32 0.0, %v8960
        %v8962 = vpop.f32.mrb[0].mxu0
        %8963 = vmatprep.mubr.bf16.mxu0 0
        %8964 = vmatmul.mubr.bf16.gmra.mrb[0].mxu0 %v7932
        %v8965 = vpop.f32.mrb[0].mxu0
        %v8966 = vadd.f32 0.0, %v8965
        %v8967 = vpop.f32.mrb[0].mxu0
        %v8968 = vpop.f32.mrb[0].mxu0
        %v8969 = vadd.f32 0.0, %v8968
        %v8970 = vpop.f32.mrb[0].mxu0
        %8971 = vmatprep.mubr.bf16.mxu0 0
        %8972 = vmatmul.mubr.bf16.gmra.mrb[0].mxu0 %v7933
        %v8973 = vpop.f32.mrb[0].mxu0
        %v8974 = vadd.f32 0.0, %v8973
        %v8975 = vpop.f32.mrb[0].mxu0
        %v8976 = vpop.f32.mrb[0].mxu0
        %v8977 = vadd.f32 0.0, %v8976
        %v8978 = vpop.f32.mrb[0].mxu0
        %8979 = vmatprep.mubr.bf16.mxu0 0
        %8980 = vmatmul.mubr.bf16.gmra.mrb[0].mxu0 %v7934
        %v8981 = vpop.f32.mrb[0].mxu0
        %v8982 = vadd.f32 0.0, %v8981
        %v8983 = vpop.f32.mrb[0].mxu0
        %v8984 = vpop.f32.mrb[0].mxu0
        %v8985 = vadd.f32 0.0, %v8984
        %v8986 = vpop.f32.mrb[0].mxu0
        %8987 = vmatprep.mubr.bf16.mxu0 0
        %8988 = vmatmul.mubr.bf16.gmra.mrb[0].mxu0 %v7935
        %v8989 = vpop.f32.mrb[0].mxu0
        %v8990 = vadd.f32 0.0, %v8989
        %v8991 = vpop.f32.mrb[0].mxu0
        %v8992 = vpop.f32.mrb[0].mxu0
        %v8993 = vadd.f32 0.0, %v8992
        %v8994 = vpop.f32.mrb[0].mxu0
        %8995 = vmatprep.mubr.bf16.mxu0 0
        %8996 = vmatmul.mubr.bf16.gmra.mrb[0].mxu0 %v7936
        %v8997 = vpop.f32.mrb[0].mxu0
        %v8998 = vadd.f32 0.0, %v8997
        %v8999 = vpop.f32.mrb[0].mxu0
        %v9000 = vpop.f32.mrb[0].mxu0
        %v9001 = vadd.f32 0.0, %v9000
        %v9002 = vpop.f32.mrb[0].mxu0
        %9003 = vmatprep.mubr.bf16.mxu0 0
        %9004 = vmatmul.mubr.bf16.gmra.mrb[0].mxu0 %v8362
        %v9005 = vpop.f32.mrb[0].mxu0
        %v9006 = vadd.f32 0.0, %v9005
        %v9007 = vpop.f32.mrb[0].mxu0
        %v9008 = vpop.f32.mrb[0].mxu0
        %v9009 = vadd.f32 0.0, %v9008
        %v9010 = vpop.f32.mrb[0].mxu0
        %9011 = vdwg.mxu0
        %v9012 = vadd.f32 %v8754, %v8886
        %v9013 = vadd.f32 %v8755, %v8889
        %v9014 = vadd.f32 %v8756, %v8894
        %v9015 = vadd.f32 %v8757, %v8897
        %v9016 = vadd.f32 %v8758, %v8902
        %v9017 = vadd.f32 %v8759, %v8905
        %v9018 = vadd.f32 %v8760, %v8910
        %v9019 = vadd.f32 %v8761, %v8913
        %v9020 = vadd.f32 %v8762, %v8918
        %v9021 = vadd.f32 %v8763, %v8921
        %v9022 = vadd.f32 %v8764, %v8926
        %v9023 = vadd.f32 %v8765, %v8929
        %v9024 = vadd.f32 %v8766, %v8934
        %v9025 = vadd.f32 %v8767, %v8937
        %v9026 = vadd.f32 %v8768, %v8942
        %v9027 = vadd.f32 %v8769, %v8945
        %v9028 = vadd.f32 %v8770, %v8950
        %v9029 = vadd.f32 %v8771, %v8953
        %v9030 = vadd.f32 %v8772, %v8958
        %v9031 = vadd.f32 %v8773, %v8961
        %v9032 = vadd.f32 %v8774, %v8966
        %v9033 = vadd.f32 %v8775, %v8969
        %v9034 = vadd.f32 %v8776, %v8974
        %v9035 = vadd.f32 %v8777, %v8977
        %v9036 = vadd.f32 %v8778, %v8982
        %v9037 = vadd.f32 %v8779, %v8985
        %v9038 = vadd.f32 %v8780, %v8990
        %v9039 = vadd.f32 %v8781, %v8993
        %v9040 = vadd.f32 %v8782, %v8998
        %v9041 = vadd.f32 %v8783, %v9001
        %v9042 = vadd.f32 %v8784, %v9006
        %v9043 = vadd.f32 %v8785, %v9009
        %v9044 = vld [vmem:[#allocation2 + $0x18] sm:$0xff]
        %v9045 = vld [vmem:[#allocation2 + $0x20] sm:$0xff]
        %v9046 = vld [vmem:[#allocation2 + $0x28] sm:$0xff]
        %v9047 = vld [vmem:[#allocation2 + $0x30] sm:$0xff]
        %v9048 = vld [vmem:[#allocation2 + $0x38] sm:$0xff]
        %v9049 = vld [vmem:[#allocation2 + $0x40] sm:$0xff]
        %v9050 = vld [vmem:[#allocation2 + $0x48] sm:$0xff]
        %v9051 = vld [vmem:[#allocation2 + $0x50] sm:$0xff]
        %v9052 = vld [vmem:[#allocation2 + $0x58] sm:$0xff]
        %v9053 = vld [vmem:[#allocation2 + $0x60] sm:$0xff]
        %v9054 = vld [vmem:[#allocation2 + $0x68] sm:$0xff]
        %v9055 = vld [vmem:[#allocation2 + $0x70] sm:$0xff]
        %v9056 = vld [vmem:[#allocation2 + $0x78] sm:$0xff]
        %v9057 = vld [vmem:[#allocation2 + $0x80] sm:$0xff]
        %v9058 = vld [vmem:[#allocation2 + $0x88] sm:$0xff]
        %v9059 = vld [vmem:[#allocation2 + $0x90] sm:$0xff]
        %v9060 = vld [vmem:[#allocation2 + $0x98] sm:$0x1]
        %v9061 = vmul.bf16 %v9044, %v2606
        %v9062 = vmul.bf16 %v9045, %v2614
        %v9063 = vmul.bf16 %v9046, %v2622
        %v9064 = vmul.bf16 %v9047, %v2630
        %v9065 = vmul.bf16 %v9048, %v2638
        %v9066 = vmul.bf16 %v9049, %v2646
        %v9067 = vmul.bf16 %v9050, %v2654
        %v9068 = vmul.bf16 %v9051, %v2662
        %v9069 = vmul.bf16 %v9052, %v2670
        %v9070 = vmul.bf16 %v9053, %v2678
        %v9071 = vmul.bf16 %v9054, %v2686
        %v9072 = vmul.bf16 %v9055, %v2694
        %v9073 = vmul.bf16 %v9056, %v2702
        %v9074 = vmul.bf16 %v9057, %v2710
        %v9075 = vmul.bf16 %v9058, %v2718
        %v9076 = vmul.bf16 %v9059, %v2726
        %v9077 = vmul.bf16 %v9060, %v2722
        %s9078 = scalar_lea.vmem [#allocation8], 512
        %v9079 = vld [vmem:[%s9078] sm:$0xf]
        %v9080 = vld [vmem:[%s9078 + $0x4] sm:$0xf]
        %v9081 = vld [vmem:[%s9078 + $0x8] sm:$0xf]
        %v9082 = vld [vmem:[%s9078 + $0xc] sm:$0xf]
        %v9083 = vld [vmem:[%s9078 + $0x10] sm:$0xf]
        %v9084 = vld [vmem:[%s9078 + $0x14] sm:$0xf]
        %v9085 = vld [vmem:[%s9078 + $0x18] sm:$0xf]
        %v9086 = vld [vmem:[%s9078 + $0x1c] sm:$0xf]
        %v9087 = vld [vmem:[%s9078 + $0x20] sm:$0xf]
        %v9088 = vld [vmem:[%s9078 + $0x24] sm:$0xf]
        %v9089 = vld [vmem:[%s9078 + $0x28] sm:$0xf]
        %v9090 = vld [vmem:[%s9078 + $0x2c] sm:$0xf]
        %v9091 = vld [vmem:[%s9078 + $0x30] sm:$0xf]
        %v9092 = vld [vmem:[%s9078 + $0x34] sm:$0xf]
        %v9093 = vld [vmem:[%s9078 + $0x38] sm:$0xf]
        %v9094 = vld [vmem:[%s9078 + $0x3c] sm:$0xf]
        %v9096 = vshrl.u32 %v9061, 16
        %v9098 = vshll.u32 %v9061, 16
        %v9100 = vrot.slane %v9098, 1
        %v9101 = vor.u32 %v9096, %v9100
        %v9103 = vshll.u32 %v9062, 16
        %v9105 = vrot.slane %v9103, 1
        %v9106 = vsel %vm1821, %v9101, %v9105
        %v9107 = vshrl.u32 %v9062, 16
        %v9109 = vor.u32 %v9107, %v9105
        %v9111 = vshll.u32 %v9063, 16
        %v9113 = vrot.slane %v9111, 1
        %v9114 = vsel %vm1821, %v9109, %v9113
        %v9115 = vshrl.u32 %v9063, 16
        %v9117 = vor.u32 %v9115, %v9113
        %v9119 = vshll.u32 %v9064, 16
        %v9121 = vrot.slane %v9119, 1
        %v9122 = vsel %vm1821, %v9117, %v9121
        %v9123 = vshrl.u32 %v9064, 16
        %v9125 = vor.u32 %v9123, %v9121
        %v9127 = vshll.u32 %v9065, 16
        %v9129 = vrot.slane %v9127, 1
        %v9130 = vsel %vm1821, %v9125, %v9129
        %v9131 = vshrl.u32 %v9065, 16
        %v9133 = vor.u32 %v9131, %v9129
        %v9135 = vshll.u32 %v9066, 16
        %v9137 = vrot.slane %v9135, 1
        %v9138 = vsel %vm1821, %v9133, %v9137
        %v9139 = vshrl.u32 %v9066, 16
        %v9141 = vor.u32 %v9139, %v9137
        %v9143 = vshll.u32 %v9067, 16
        %v9145 = vrot.slane %v9143, 1
        %v9146 = vsel %vm1821, %v9141, %v9145
        %v9147 = vshrl.u32 %v9067, 16
        %v9149 = vor.u32 %v9147, %v9145
        %v9151 = vshll.u32 %v9068, 16
        %v9153 = vrot.slane %v9151, 1
        %v9154 = vsel %vm1821, %v9149, %v9153
        %v9155 = vshrl.u32 %v9068, 16
        %v9157 = vor.u32 %v9155, %v9153
        %v9159 = vshll.u32 %v9069, 16
        %v9161 = vrot.slane %v9159, 1
        %v9162 = vsel %vm1821, %v9157, %v9161
        %v9163 = vshrl.u32 %v9069, 16
        %v9165 = vor.u32 %v9163, %v9161
        %v9167 = vshll.u32 %v9070, 16
        %v9169 = vrot.slane %v9167, 1
        %v9170 = vsel %vm1821, %v9165, %v9169
        %v9171 = vshrl.u32 %v9070, 16
        %v9173 = vor.u32 %v9171, %v9169
        %v9175 = vshll.u32 %v9071, 16
        %v9177 = vrot.slane %v9175, 1
        %v9178 = vsel %vm1821, %v9173, %v9177
        %v9179 = vshrl.u32 %v9071, 16
        %v9181 = vor.u32 %v9179, %v9177
        %v9183 = vshll.u32 %v9072, 16
        %v9185 = vrot.slane %v9183, 1
        %v9186 = vsel %vm1821, %v9181, %v9185
        %v9187 = vshrl.u32 %v9072, 16
        %v9189 = vor.u32 %v9187, %v9185
        %v9191 = vshll.u32 %v9073, 16
        %v9193 = vrot.slane %v9191, 1
        %v9194 = vsel %vm1821, %v9189, %v9193
        %v9195 = vshrl.u32 %v9073, 16
        %v9197 = vor.u32 %v9195, %v9193
        %v9199 = vshll.u32 %v9074, 16
        %v9201 = vrot.slane %v9199, 1
        %v9202 = vsel %vm1821, %v9197, %v9201
        %v9203 = vshrl.u32 %v9074, 16
        %v9205 = vor.u32 %v9203, %v9201
        %v9207 = vshll.u32 %v9075, 16
        %v9209 = vrot.slane %v9207, 1
        %v9210 = vsel %vm1821, %v9205, %v9209
        %v9211 = vshrl.u32 %v9075, 16
        %v9213 = vor.u32 %v9211, %v9209
        %v9215 = vshll.u32 %v9076, 16
        %v9217 = vrot.slane %v9215, 1
        %v9218 = vsel %vm1821, %v9213, %v9217
        %v9219 = vshrl.u32 %v9076, 16
        %v9221 = vor.u32 %v9219, %v9217
        %v9223 = vshll.u32 %v9077, 16
        %v9225 = vrot.slane %v9223, 1
        %v9226 = vsel %vm1821, %v9221, %v9225
        %v9259 = vunpack.c.l.b16 %v9079
        %v9260 = vunpack.c.l.b16 %v9080
        %v9261 = vunpack.c.l.b16 %v9081
        %v9262 = vunpack.c.l.b16 %v9082
        %v9263 = vunpack.c.l.b16 %v9083
        %v9264 = vunpack.c.l.b16 %v9084
        %v9265 = vunpack.c.l.b16 %v9085
        %v9266 = vunpack.c.l.b16 %v9086
        %v9267 = vunpack.c.l.b16 %v9087
        %v9268 = vunpack.c.l.b16 %v9088
        %v9269 = vunpack.c.l.b16 %v9089
        %v9270 = vunpack.c.l.b16 %v9090
        %v9271 = vunpack.c.l.b16 %v9091
        %v9272 = vunpack.c.l.b16 %v9092
        %v9273 = vunpack.c.l.b16 %v9093
        %v9274 = vunpack.c.l.b16 %v9094
        %v9275 = vpack.c.b16 %v9260, %v9259
        %v9276 = vpack.c.b16 %v9262, %v9261
        %v9277 = vpack.c.b16 %v9264, %v9263
        %v9278 = vpack.c.b16 %v9266, %v9265
        %v9279 = vpack.c.b16 %v9268, %v9267
        %v9280 = vpack.c.b16 %v9270, %v9269
        %v9281 = vpack.c.b16 %v9272, %v9271
        %v9282 = vpack.c.b16 %v9274, %v9273
        %9291 = vmatprep.subr.bf16.mxu0 0
        %9292 = vmatpush1.bf16.msra.mxu0 %v9275
        %9293 = vmatprep.subr.bf16.mxu0 0
        %9294 = vmatpush1.bf16.msra.mxu0 %v9276
        %9295 = vmatprep.subr.bf16.mxu0 0
        %9296 = vmatpush1.bf16.msra.mxu0 %v9277
        %9297 = vmatprep.subr.bf16.mxu0 0
        %9298 = vmatpush1.bf16.msra.mxu0 %v9278
        %9299 = vmatprep.subr.bf16.mxu0 0
        %9300 = vmatpush1.bf16.msra.mxu0 %v9279
        %9301 = vmatprep.subr.bf16.mxu0 0
        %9302 = vmatpush1.bf16.msra.mxu0 %v9280
        %9303 = vmatprep.subr.bf16.mxu0 0
        %9304 = vmatpush1.bf16.msra.mxu0 %v9281
        %9305 = vmatprep.subr.bf16.mxu0 0
        %9306 = vmatpush1.bf16.msra.mxu0 %v9282
        %9307 = vmatprep.subr.bf16.mxu0 0
        %9308 = vmatpush1.bf16.msra.mxu0 0
        %9309 = vmatprep.subr.bf16.mxu0 0
        %9310 = vmatpush1.bf16.msra.mxu0 0
        %9311 = vmatprep.subr.bf16.mxu0 0
        %9312 = vmatpush1.bf16.msra.mxu0 0
        %9313 = vmatprep.subr.bf16.mxu0 0
        %9314 = vmatpush1.bf16.msra.mxu0 0
        %9315 = vmatprep.subr.bf16.mxu0 0
        %9316 = vmatpush1.bf16.msra.mxu0 0
        %9317 = vmatprep.subr.bf16.mxu0 0
        %9318 = vmatpush1.bf16.msra.mxu0 0
        %9319 = vmatprep.subr.bf16.mxu0 0
        %9320 = vmatpush1.bf16.msra.mxu0 0
        %9321 = vmatprep.subr.bf16.mxu0 0
        %9322 = vmatpush1.bf16.msra.mxu0 0
        %9323 = vmatprep.mubr.bf16.mxu0 0
        %9324 = vmatmul.mubr.bf16.gmra.mrb[0].mxu0 %v9106
        %v9325 = vpop.f32.mrb[0].mxu0
        %v9326 = vadd.f32 0.0, %v9325
        %v9327 = vpop.f32.mrb[0].mxu0
        %v9328 = vpop.f32.mrb[0].mxu0
        %v9329 = vadd.f32 0.0, %v9328
        %v9330 = vpop.f32.mrb[0].mxu0
        %9331 = vmatprep.mubr.bf16.mxu0 0
        %9332 = vmatmul.mubr.bf16.gmra.mrb[0].mxu0 %v9114
        %v9333 = vpop.f32.mrb[0].mxu0
        %v9334 = vadd.f32 0.0, %v9333
        %v9335 = vpop.f32.mrb[0].mxu0
        %v9336 = vpop.f32.mrb[0].mxu0
        %v9337 = vadd.f32 0.0, %v9336
        %v9338 = vpop.f32.mrb[0].mxu0
        %9339 = vmatprep.mubr.bf16.mxu0 0
        %9340 = vmatmul.mubr.bf16.gmra.mrb[0].mxu0 %v9122
        %v9341 = vpop.f32.mrb[0].mxu0
        %v9342 = vadd.f32 0.0, %v9341
        %v9343 = vpop.f32.mrb[0].mxu0
        %v9344 = vpop.f32.mrb[0].mxu0
        %v9345 = vadd.f32 0.0, %v9344
        %v9346 = vpop.f32.mrb[0].mxu0
        %9347 = vmatprep.mubr.bf16.mxu0 0
        %9348 = vmatmul.mubr.bf16.gmra.mrb[0].mxu0 %v9130
        %v9349 = vpop.f32.mrb[0].mxu0
        %v9350 = vadd.f32 0.0, %v9349
        %v9351 = vpop.f32.mrb[0].mxu0
        %v9352 = vpop.f32.mrb[0].mxu0
        %v9353 = vadd.f32 0.0, %v9352
        %v9354 = vpop.f32.mrb[0].mxu0
        %9355 = vmatprep.mubr.bf16.mxu0 0
        %9356 = vmatmul.mubr.bf16.gmra.mrb[0].mxu0 %v9138
        %v9357 = vpop.f32.mrb[0].mxu0
        %v9358 = vadd.f32 0.0, %v9357
        %v9359 = vpop.f32.mrb[0].mxu0
        %v9360 = vpop.f32.mrb[0].mxu0
        %v9361 = vadd.f32 0.0, %v9360
        %v9362 = vpop.f32.mrb[0].mxu0
        %9363 = vmatprep.mubr.bf16.mxu0 0
        %9364 = vmatmul.mubr.bf16.gmra.mrb[0].mxu0 %v9146
        %v9365 = vpop.f32.mrb[0].mxu0
        %v9366 = vadd.f32 0.0, %v9365
        %v9367 = vpop.f32.mrb[0].mxu0
        %v9368 = vpop.f32.mrb[0].mxu0
        %v9369 = vadd.f32 0.0, %v9368
        %v9370 = vpop.f32.mrb[0].mxu0
        %9371 = vmatprep.mubr.bf16.mxu0 0
        %9372 = vmatmul.mubr.bf16.gmra.mrb[0].mxu0 %v9154
        %v9373 = vpop.f32.mrb[0].mxu0
        %v9374 = vadd.f32 0.0, %v9373
        %v9375 = vpop.f32.mrb[0].mxu0
        %v9376 = vpop.f32.mrb[0].mxu0
        %v9377 = vadd.f32 0.0, %v9376
        %v9378 = vpop.f32.mrb[0].mxu0
        %9379 = vmatprep.mubr.bf16.mxu0 0
        %9380 = vmatmul.mubr.bf16.gmra.mrb[0].mxu0 %v9162
        %v9381 = vpop.f32.mrb[0].mxu0
        %v9382 = vadd.f32 0.0, %v9381
        %v9383 = vpop.f32.mrb[0].mxu0
        %v9384 = vpop.f32.mrb[0].mxu0
        %v9385 = vadd.f32 0.0, %v9384
        %v9386 = vpop.f32.mrb[0].mxu0
        %9387 = vmatprep.mubr.bf16.mxu0 0
        %9388 = vmatmul.mubr.bf16.gmra.mrb[0].mxu0 %v9170
        %v9389 = vpop.f32.mrb[0].mxu0
        %v9390 = vadd.f32 0.0, %v9389
        %v9391 = vpop.f32.mrb[0].mxu0
        %v9392 = vpop.f32.mrb[0].mxu0
        %v9393 = vadd.f32 0.0, %v9392
        %v9394 = vpop.f32.mrb[0].mxu0
        %9395 = vmatprep.mubr.bf16.mxu0 0
        %9396 = vmatmul.mubr.bf16.gmra.mrb[0].mxu0 %v9178
        %v9397 = vpop.f32.mrb[0].mxu0
        %v9398 = vadd.f32 0.0, %v9397
        %v9399 = vpop.f32.mrb[0].mxu0
        %v9400 = vpop.f32.mrb[0].mxu0
        %v9401 = vadd.f32 0.0, %v9400
        %v9402 = vpop.f32.mrb[0].mxu0
        %9403 = vmatprep.mubr.bf16.mxu0 0
        %9404 = vmatmul.mubr.bf16.gmra.mrb[0].mxu0 %v9186
        %v9405 = vpop.f32.mrb[0].mxu0
        %v9406 = vadd.f32 0.0, %v9405
        %v9407 = vpop.f32.mrb[0].mxu0
        %v9408 = vpop.f32.mrb[0].mxu0
        %v9409 = vadd.f32 0.0, %v9408
        %v9410 = vpop.f32.mrb[0].mxu0
        %9411 = vmatprep.mubr.bf16.mxu0 0
        %9412 = vmatmul.mubr.bf16.gmra.mrb[0].mxu0 %v9194
        %v9413 = vpop.f32.mrb[0].mxu0
        %v9414 = vadd.f32 0.0, %v9413
        %v9415 = vpop.f32.mrb[0].mxu0
        %v9416 = vpop.f32.mrb[0].mxu0
        %v9417 = vadd.f32 0.0, %v9416
        %v9418 = vpop.f32.mrb[0].mxu0
        %9419 = vmatprep.mubr.bf16.mxu0 0
        %9420 = vmatmul.mubr.bf16.gmra.mrb[0].mxu0 %v9202
        %v9421 = vpop.f32.mrb[0].mxu0
        %v9422 = vadd.f32 0.0, %v9421
        %v9423 = vpop.f32.mrb[0].mxu0
        %v9424 = vpop.f32.mrb[0].mxu0
        %v9425 = vadd.f32 0.0, %v9424
        %v9426 = vpop.f32.mrb[0].mxu0
        %9427 = vmatprep.mubr.bf16.mxu0 0
        %9428 = vmatmul.mubr.bf16.gmra.mrb[0].mxu0 %v9210
        %v9429 = vpop.f32.mrb[0].mxu0
        %v9430 = vadd.f32 0.0, %v9429
        %v9431 = vpop.f32.mrb[0].mxu0
        %v9432 = vpop.f32.mrb[0].mxu0
        %v9433 = vadd.f32 0.0, %v9432
        %v9434 = vpop.f32.mrb[0].mxu0
        %9435 = vmatprep.mubr.bf16.mxu0 0
        %9436 = vmatmul.mubr.bf16.gmra.mrb[0].mxu0 %v9218
        %v9437 = vpop.f32.mrb[0].mxu0
        %v9438 = vadd.f32 0.0, %v9437
        %v9439 = vpop.f32.mrb[0].mxu0
        %v9440 = vpop.f32.mrb[0].mxu0
        %v9441 = vadd.f32 0.0, %v9440
        %v9442 = vpop.f32.mrb[0].mxu0
        %9443 = vmatprep.mubr.bf16.mxu0 0
        %9444 = vmatmul.mubr.bf16.gmra.mrb[0].mxu0 %v9226
        %v9445 = vpop.f32.mrb[0].mxu0
        %v9446 = vadd.f32 0.0, %v9445
        %v9447 = vpop.f32.mrb[0].mxu0
        %v9448 = vpop.f32.mrb[0].mxu0
        %v9449 = vadd.f32 0.0, %v9448
        %v9450 = vpop.f32.mrb[0].mxu0
        %9451 = vdwg.mxu0
        %v9452 = vadd.f32 %v9012, %v9326
        %v9453 = vadd.f32 %v9013, %v9329
        %v9454 = vadd.f32 %v9014, %v9334
        %v9455 = vadd.f32 %v9015, %v9337
        %v9456 = vadd.f32 %v9016, %v9342
        %v9457 = vadd.f32 %v9017, %v9345
        %v9458 = vadd.f32 %v9018, %v9350
        %v9459 = vadd.f32 %v9019, %v9353
        %v9460 = vadd.f32 %v9020, %v9358
        %v9461 = vadd.f32 %v9021, %v9361
        %v9462 = vadd.f32 %v9022, %v9366
        %v9463 = vadd.f32 %v9023, %v9369
        %v9464 = vadd.f32 %v9024, %v9374
        %v9465 = vadd.f32 %v9025, %v9377
        %v9466 = vadd.f32 %v9026, %v9382
        %v9467 = vadd.f32 %v9027, %v9385
        %v9468 = vadd.f32 %v9028, %v9390
        %v9469 = vadd.f32 %v9029, %v9393
        %v9470 = vadd.f32 %v9030, %v9398
        %v9471 = vadd.f32 %v9031, %v9401
        %v9472 = vadd.f32 %v9032, %v9406
        %v9473 = vadd.f32 %v9033, %v9409
        %v9474 = vadd.f32 %v9034, %v9414
        %v9475 = vadd.f32 %v9035, %v9417
        %v9476 = vadd.f32 %v9036, %v9422
        %v9477 = vadd.f32 %v9037, %v9425
        %v9478 = vadd.f32 %v9038, %v9430
        %v9479 = vadd.f32 %v9039, %v9433
        %v9480 = vadd.f32 %v9040, %v9438
        %v9481 = vadd.f32 %v9041, %v9441
        %v9482 = vadd.f32 %v9042, %v9446
        %v9483 = vadd.f32 %v9043, %v9449
        %v9485 = vlaneseq
        %v9486 = vshrl.u32 %v9485, 7
        %v9487 = vsub.s32 0, %v9486
        %v9488 = vrot.slane %v6132, %v9487
        %v9490 = vadd.f32 %v9452, %v9488
        %v9491 = vadd.f32 %v9453, %v9488
        %v9492 = vadd.f32 %v9454, %v9488
        %v9493 = vadd.f32 %v9455, %v9488
        %v9494 = vadd.f32 %v9456, %v9488
        %v9495 = vadd.f32 %v9457, %v9488
        %v9496 = vadd.f32 %v9458, %v9488
        %v9497 = vadd.f32 %v9459, %v9488
        %v9498 = vadd.f32 %v9460, %v9488
        %v9499 = vadd.f32 %v9461, %v9488
        %v9500 = vadd.f32 %v9462, %v9488
        %v9501 = vadd.f32 %v9463, %v9488
        %v9502 = vadd.f32 %v9464, %v9488
        %v9503 = vadd.f32 %v9465, %v9488
        %v9504 = vadd.f32 %v9466, %v9488
        %v9505 = vadd.f32 %v9467, %v9488
        %v9506 = vadd.f32 %v9468, %v9488
        %v9507 = vadd.f32 %v9469, %v9488
        %v9508 = vadd.f32 %v9470, %v9488
        %v9509 = vadd.f32 %v9471, %v9488
        %v9510 = vadd.f32 %v9472, %v9488
        %v9511 = vadd.f32 %v9473, %v9488
        %v9512 = vadd.f32 %v9474, %v9488
        %v9513 = vadd.f32 %v9475, %v9488
        %v9514 = vadd.f32 %v9476, %v9488
        %v9515 = vadd.f32 %v9477, %v9488
        %v9516 = vadd.f32 %v9478, %v9488
        %v9517 = vadd.f32 %v9479, %v9488
        %v9518 = vadd.f32 %v9480, %v9488
        %v9519 = vadd.f32 %v9481, %v9488
        %v9520 = vadd.f32 %v9482, %v9488
        %v9521 = vadd.f32 %v9483, %v9488
        %v9522 = vld [vmem:[%s456] sm:$0xff]
        %v9523 = vld [vmem:[%s456 + $0x8] sm:$0xff]
        %v9524 = vld [vmem:[%s456 + $0x10] sm:$0xff]
        %v9525 = vld [vmem:[%s456 + $0x18] sm:$0xff]
        %v9526 = vld [vmem:[%s456 + $0x20] sm:$0xff]
        %v9527 = vld [vmem:[%s456 + $0x28] sm:$0xff]
        %v9528 = vld [vmem:[%s456 + $0x30] sm:$0xff]
        %v9529 = vld [vmem:[%s456 + $0x38] sm:$0xff]
        %v9530 = vld [vmem:[%s456 + $0x40] sm:$0xff]
        %v9531 = vld [vmem:[%s456 + $0x48] sm:$0xff]
        %v9532 = vld [vmem:[%s456 + $0x50] sm:$0xff]
        %v9533 = vld [vmem:[%s456 + $0x58] sm:$0xff]
        %v9534 = vld [vmem:[%s456 + $0x60] sm:$0xff]
        %v9535 = vld [vmem:[%s456 + $0x68] sm:$0xff]
        %v9536 = vld [vmem:[%s456 + $0x70] sm:$0xff]
        %v9537 = vld [vmem:[%s456 + $0x78] sm:$0xff]
        %v9538 = vld [vmem:[%s456 + $0x80] sm:$0xff]
        %v9539 = vld [vmem:[%s456 + $0x88] sm:$0xff]
        %v9540 = vld [vmem:[%s456 + $0x90] sm:$0xff]
        %v9541 = vld [vmem:[%s456 + $0x98] sm:$0xff]
        %v9542 = vld [vmem:[%s456 + $0xa0] sm:$0xff]
        %v9543 = vld [vmem:[%s456 + $0xa8] sm:$0xff]
        %v9544 = vld [vmem:[%s456 + $0xb0] sm:$0xff]
        %v9545 = vld [vmem:[%s456 + $0xb8] sm:$0xff]
        %v9546 = vld [vmem:[%s456 + $0xc0] sm:$0xff]
        %v9547 = vld [vmem:[%s456 + $0xc8] sm:$0xff]
        %v9548 = vld [vmem:[%s456 + $0xd0] sm:$0xff]
        %v9549 = vld [vmem:[%s456 + $0xd8] sm:$0xff]
        %v9550 = vld [vmem:[%s456 + $0xe0] sm:$0xff]
        %v9551 = vld [vmem:[%s456 + $0xe8] sm:$0xff]
        %v9552 = vld [vmem:[%s456 + $0xf0] sm:$0xff]
        %v9553 = vld [vmem:[%s456 + $0xf8] sm:$0xff]
        %v9554 = vadd.f32 %v9522, %v9490
        %v9555 = vadd.f32 %v9523, %v9491
        %v9556 = vadd.f32 %v9524, %v9492
        %v9557 = vadd.f32 %v9525, %v9493
        %v9558 = vadd.f32 %v9526, %v9494
        %v9559 = vadd.f32 %v9527, %v9495
        %v9560 = vadd.f32 %v9528, %v9496
        %v9561 = vadd.f32 %v9529, %v9497
        %v9562 = vadd.f32 %v9530, %v9498
        %v9563 = vadd.f32 %v9531, %v9499
        %v9564 = vadd.f32 %v9532, %v9500
        %v9565 = vadd.f32 %v9533, %v9501
        %v9566 = vadd.f32 %v9534, %v9502
        %v9567 = vadd.f32 %v9535, %v9503
        %v9568 = vadd.f32 %v9536, %v9504
        %v9569 = vadd.f32 %v9537, %v9505
        %v9570 = vadd.f32 %v9538, %v9506
        %v9571 = vadd.f32 %v9539, %v9507
        %v9572 = vadd.f32 %v9540, %v9508
        %v9573 = vadd.f32 %v9541, %v9509
        %v9574 = vadd.f32 %v9542, %v9510
        %v9575 = vadd.f32 %v9543, %v9511
        %v9576 = vadd.f32 %v9544, %v9512
        %v9577 = vadd.f32 %v9545, %v9513
        %v9578 = vadd.f32 %v9546, %v9514
        %v9579 = vadd.f32 %v9547, %v9515
        %v9580 = vadd.f32 %v9548, %v9516
        %v9581 = vadd.f32 %v9549, %v9517
        %v9582 = vadd.f32 %v9550, %v9518
        %v9583 = vadd.f32 %v9551, %v9519
        %v9584 = vadd.f32 %v9552, %v9520
        %v9585 = vadd.f32 %v9553, %v9521
        %9586 = vst [vmem:[%s513] sm:$0xff] %v9554
        %9587 = vst [vmem:[%s513 + $0x8] sm:$0xff] %v9555
        %9588 = vst [vmem:[%s513 + $0x10] sm:$0xff] %v9556
        %9589 = vst [vmem:[%s513 + $0x18] sm:$0xff] %v9557
        %9590 = vst [vmem:[%s513 + $0x20] sm:$0xff] %v9558
        %9591 = vst [vmem:[%s513 + $0x28] sm:$0xff] %v9559
        %9592 = vst [vmem:[%s513 + $0x30] sm:$0xff] %v9560
        %9593 = vst [vmem:[%s513 + $0x38] sm:$0xff] %v9561
        %9594 = vst [vmem:[%s513 + $0x40] sm:$0xff] %v9562
        %9595 = vst [vmem:[%s513 + $0x48] sm:$0xff] %v9563
        %9596 = vst [vmem:[%s513 + $0x50] sm:$0xff] %v9564
        %9597 = vst [vmem:[%s513 + $0x58] sm:$0xff] %v9565
        %9598 = vst [vmem:[%s513 + $0x60] sm:$0xff] %v9566
        %9599 = vst [vmem:[%s513 + $0x68] sm:$0xff] %v9567
        %9600 = vst [vmem:[%s513 + $0x70] sm:$0xff] %v9568
        %9601 = vst [vmem:[%s513 + $0x78] sm:$0xff] %v9569
        %9602 = vst [vmem:[%s513 + $0x80] sm:$0xff] %v9570
        %9603 = vst [vmem:[%s513 + $0x88] sm:$0xff] %v9571
        %9604 = vst [vmem:[%s513 + $0x90] sm:$0xff] %v9572
        %9605 = vst [vmem:[%s513 + $0x98] sm:$0xff] %v9573
        %9606 = vst [vmem:[%s513 + $0xa0] sm:$0xff] %v9574
        %9607 = vst [vmem:[%s513 + $0xa8] sm:$0xff] %v9575
        %9608 = vst [vmem:[%s513 + $0xb0] sm:$0xff] %v9576
        %9609 = vst [vmem:[%s513 + $0xb8] sm:$0xff] %v9577
        %9610 = vst [vmem:[%s513 + $0xc0] sm:$0xff] %v9578
        %9611 = vst [vmem:[%s513 + $0xc8] sm:$0xff] %v9579
        %9612 = vst [vmem:[%s513 + $0xd0] sm:$0xff] %v9580
        %9613 = vst [vmem:[%s513 + $0xd8] sm:$0xff] %v9581
        %9614 = vst [vmem:[%s513 + $0xe0] sm:$0xff] %v9582
        %9615 = vst [vmem:[%s513 + $0xe8] sm:$0xff] %v9583
        %9616 = vst [vmem:[%s513 + $0xf0] sm:$0xff] %v9584
        %9617 = vst [vmem:[%s513 + $0xf8] sm:$0xff] %v9585
        %s9618 = sand.u32 %s323, 1
        %s9619 = scalar_lea.sflag [#allocation5], %s9618
        %s9620 = sand.u32 %s323, 1
        %s9621 = smul.addr %s9620, 256
        %s9622 = scalar_lea.vmem [#allocation11], %s9621
        // Predicated region
        $region89: #{resblock_forward.1} parent=71 // pred_check
          %p9623 = pneg %p333
        $region90: #{resblock_forward.1} parent=71 // pred_check_branch
          %9625 = sbr.rel (%p9623) target = $region92
        $region91: #{resblock_forward.1} parent=71 // pred_region
          %s9627 = ssub.s32 4096, 4096
          %9628 = vsyncadd %s9619, %s9627
          %s9629 = smul.addr %s32, 32
          %s9630 = smul.addr %s9629, 128
          %s9631 = scalar_lea.hbm %s13, %s9630
          %s9632 = sshll.u32 %s9622, 4
          %s9633 = int_to_ptr.vmem [resolvable:$true] %s9632
          %9638 = dma.vmem_to_hbm [thread:$0]  %s9633, 4096, %s9631, %s9619, 128, 128, 8
        $region92: #{resblock_forward.1} parent=71 // pred_fallthru
          _
      $region72: #{resblock_forward.1} parent=5 // pred_fallthru
        _
      %p9639 = scmp.le.s32.totalorder 2, %s27
      // Predicated region
      $region93: #{resblock_forward.1} parent=5 // pred_check
        %p9640 = pneg %p9639
      $region94: #{resblock_forward.1} parent=5 // pred_check_branch
        %9642 = sbr.rel (%p9640) target = $region96
      $region95: #{resblock_forward.1} parent=5 // pred_region
        %s9643 = ssub.s32 %s27, 2
        // Predicated region
        $region97: #{resblock_forward.1} parent=95 // pred_check
          %p9644 = pneg %p339
        $region98: #{resblock_forward.1} parent=95 // pred_check_branch
          %9646 = sbr.rel (%p9644) target = $region100
        $region99: #{resblock_forward.1} parent=95 // pred_region
          %s9647 = sand.u32 %s324, 1
          %s9648 = scalar_lea.sflag [#allocation5], %s9647
          %s9649 = sand.u32 %s324, 1
          %s9650 = smul.addr %s9649, 256
          %s9651 = scalar_lea.vmem [#allocation11], %s9650
          %9652 = dma.done %s9648, 4096
        $region100: #{resblock_forward.1} parent=95 // pred_fallthru
          _
      $region96: #{resblock_forward.1} parent=5 // pred_fallthru
        _
    $region6: #{resblock_forward.1} parent=1 // loop_footer
      %s31 = sadd.s32 1, %s27
    $region7: #{resblock_forward.1} parent=1 // loop_footer_branch
      %26 = sbr.rel target = $region3
    $region8: #{resblock_forward.1} parent=1 // loop_exit
      _
    %9653 = vsyncpa [#allocation4], 1
    %s9654 = scalar_lea.sflag [#allocation4], 1
    %9655 = vsyncpa %s9654, 1
    %9656 = vsyncpa [#allocation7], 1
    %9657 = vsyncpa [#allocation10], 1
    %9658 = vsyncpa [#allocation5], 1
    %s9659 = scalar_lea.sflag [#allocation5], 1
    %9660 = vsyncpa %s9659, 1

</llo_original>
